<compile_context>
chip_gen: v5e
topology: v5e:2x2
jax: 0.10.0
libtpu: 0.0.40
codegen_flags: <defaults>
</compile_context>

<pallas_src>
import functools

import jax
import jax.numpy as jnp
from jax.experimental import pallas as pl
from jax.experimental.pallas import tpu as pltpu


def _round_up(x, m):
    return ((x + m - 1) // m) * m


def _pick_tile(dim, cap, align, floor=None):
    """Tile size for `dim`: full dim if small, else a divisor that is a multiple of
    `align` (no padding), else `cap` (padding as a last resort)."""
    if dim <= cap:
        return dim
    floor = align if floor is None else floor
    t = cap - (cap % align)
    while t >= floor:
        if dim % t == 0:
            return t
        t -= align
    return cap


# --------------------------- tiled matmul (+bias, +ReLU) ---------------------------

def _matmul_kernel_1k(x_ref, w_ref, b_ref, o_ref, *, activation):
    """Single K step: no accumulator scratch, no pl.when regions."""
    y = jnp.dot(x_ref[...], w_ref[...], preferred_element_type=jnp.float32) + b_ref[...]
    if activation == "relu":
        y = jnp.maximum(y, 0.0)
    o_ref[...] = y.astype(o_ref.dtype)


def _matmul_kernel(x_ref, w_ref, b_ref, o_ref, acc_ref, *, activation):
    @pl.when(pl.program_id(2) == 0)
    def _():
        acc_ref[...] = jnp.zeros_like(acc_ref)

    acc_ref[...] += jnp.dot(x_ref[...], w_ref[...],
                            preferred_element_type=jnp.float32)

    @pl.when(pl.program_id(2) == pl.num_programs(2) - 1)
    def _():
        y = acc_ref[...] + b_ref[...]          # bias only in the finalize step
        if activation == "relu":
            y = jnp.maximum(y, 0.0)
        o_ref[...] = y.astype(o_ref.dtype)


def pallas_linear(x, w, b, activation=None, out_dtype=jnp.bfloat16):
    """y = act(x @ w + b).  x:(M,K), w:(K,N) bf16 (pre-cast at init), b:(1,N) f32."""
    if x.dtype != jnp.bfloat16:
        x = x.astype(jnp.bfloat16)            # only the encoder-entry activations hit this
    M, K = x.shape
    N = w.shape[1]
    tm = _pick_tile(M, 256, 8, floor=64)
    tn = _pick_tile(N, 512, 128, floor=128)
    tk = _pick_tile(K, 512, 128, floor=128)
    Mp, Np, Kp = _round_up(M, tm), _round_up(N, tn), _round_up(K, tk)

    # Padding only as a fallback for ragged dims; with divisor tiles it normally no-ops.
    if Mp != M or Kp != K:
        x = jnp.pad(x, ((0, Mp - M), (0, Kp - K)))
    if Kp != K or Np != N:
        w = jnp.pad(w, ((0, Kp - K), (0, Np - N)))
    if Np != N:
        b = jnp.pad(b, ((0, 0), (0, Np - N)))

    nk = Kp // tk
    if nk == 1:
        out = pl.pallas_call(
            functools.partial(_matmul_kernel_1k, activation=activation),
            out_shape=jax.ShapeDtypeStruct((Mp, Np), out_dtype),
            grid=(Mp // tm, Np // tn),
            in_specs=[
                pl.BlockSpec((tm, tk), lambda i, j: (i, 0)),
                pl.BlockSpec((tk, tn), lambda i, j: (0, j)),
                pl.BlockSpec((1, tn), lambda i, j: (0, j)),
            ],
            out_specs=pl.BlockSpec((tm, tn), lambda i, j: (i, j)),
            compiler_params=pltpu.CompilerParams(
                dimension_semantics=("parallel", "parallel")),
        )(x, w, b)
    else:
        out = pl.pallas_call(
            functools.partial(_matmul_kernel, activation=activation),
            out_shape=jax.ShapeDtypeStruct((Mp, Np), out_dtype),
            grid=(Mp // tm, Np // tn, nk),
            in_specs=[
                pl.BlockSpec((tm, tk), lambda i, j, k: (i, k)),
                pl.BlockSpec((tk, tn), lambda i, j, k: (k, j)),
                pl.BlockSpec((1, tn), lambda i, j, k: (0, j)),
            ],
            out_specs=pl.BlockSpec((tm, tn), lambda i, j, k: (i, j)),
            scratch_shapes=[pltpu.VMEM((tm, tn), jnp.float32)],
            compiler_params=pltpu.CompilerParams(
                dimension_semantics=("parallel", "parallel", "arbitrary")),
        )(x, w, b)

    if Mp != M or Np != N:
        out = out[:M, :N]
    return out


# ---------------------- fused (residual +) LayerNorm (+ L2 norm) -------------------

def _ln_math(x, g, b, l2_normalize):
    mu = jnp.mean(x, axis=-1, keepdims=True)
    xc = x - mu
    var = jnp.mean(xc * xc, axis=-1, keepdims=True)      # biased var, eps=1e-5 (PyTorch)
    y = xc * jax.lax.rsqrt(var + 1e-5) * g + b
    if l2_normalize:
        n = jnp.sqrt(jnp.sum(y * y, axis=-1, keepdims=True))
        y = y / jnp.maximum(n, 1e-12)                     # F.normalize(eps=1e-12)
    return y


def _ln_kernel(x_ref, g_ref, b_ref, o_ref, *, l2_normalize):
    y = _ln_math(x_ref[...].astype(jnp.float32), g_ref[...], b_ref[...], l2_normalize)
    o_ref[...] = y.astype(o_ref.dtype)


def _add_ln_kernel(x_ref, r_ref, g_ref, b_ref, o_ref, *, l2_normalize):
    x = x_ref[...].astype(jnp.float32) + r_ref[...].astype(jnp.float32)
    y = _ln_math(x, g_ref[...], b_ref[...], l2_normalize)
    o_ref[...] = y.astype(o_ref.dtype)


def pallas_layernorm(x, g, b, residual=None, l2_normalize=False, out_dtype=jnp.bfloat16):
    """LayerNorm(x [+ residual]) over the last dim (f32 math), optional fused row
    L2-normalize.  Emits bf16 by default (next consumer is a bf16 GEMM)."""
    M, E = x.shape
    tr = _pick_tile(M, 256, 8)
    Mp = _round_up(M, tr)
    if Mp != M:
        x = jnp.pad(x, ((0, Mp - M), (0, 0)))
        if residual is not None:
            residual = jnp.pad(residual, ((0, Mp - M), (0, 0)))

    row_spec = pl.BlockSpec((tr, E), lambda i: (i, 0))
    vec_spec = pl.BlockSpec((1, E), lambda i: (0, 0))
    if residual is not None:
        kernel = functools.partial(_add_ln_kernel, l2_normalize=l2_normalize)
        ins, in_specs = [x, residual, g, b], [row_spec, row_spec, vec_spec, vec_spec]
    else:
        kernel = functools.partial(_ln_kernel, l2_normalize=l2_normalize)
        ins, in_specs = [x, g, b], [row_spec, vec_spec, vec_spec]

    out = pl.pallas_call(
        kernel,
        out_shape=jax.ShapeDtypeStruct((Mp, E), out_dtype),
        grid=(Mp // tr,),
        in_specs=in_specs,
        out_specs=row_spec,
        compiler_params=pltpu.CompilerParams(dimension_semantics=("parallel",)),
    )(*ins)
    return out[:M] if Mp != M else out


# ------------------- multi-head attention (out-projection fused) -------------------

def _mha_kernel(qkv_ref, wo_ref, bo_ref, o_ref, ctx_ref, *, num_heads, ts):
    """Block of `ts` sequence positions.  At each position attention mixes over the
    batch axis (reference batch_first quirk).  1/sqrt(Dh) is folded into wqkv/bqkv.
    Head contexts are written straight into a VMEM slab (no concat, no per-head
    outputs kept live); the wo/bo output projection runs once over the whole slab."""
    B = qkv_ref.shape[0]
    E = qkv_ref.shape[2] // 3
    Dh = E // num_heads

    for t in range(ts):                           # static unroll over positions in block
        qkv_t = qkv_ref[:, t, :]                  # (B, 3E) bf16
        for h in range(num_heads):                # static unroll over heads
            lo = h * Dh
            q_h = qkv_t[:, lo:lo + Dh]
            k_h = qkv_t[:, E + lo:E + lo + Dh]
            v_h = qkv_t[:, 2 * E + lo:2 * E + lo + Dh]
            # contract last dims directly (no explicit transpose)
            s = jax.lax.dot_general(q_h, k_h, (((1,), (1,)), ((), ())),
                                    preferred_element_type=jnp.float32)   # (B, B)
            s = s - jnp.max(s, axis=-1, keepdims=True)
            p = jnp.exp(s)
            p = p * pl.reciprocal(jnp.sum(p, axis=-1, keepdims=True), approx=True)
            ctx_ref[t * B:(t + 1) * B, lo:lo + Dh] = jnp.dot(
                p.astype(jnp.bfloat16), v_h, preferred_element_type=jnp.float32)

    # fused output projection over all ts*B rows at once
    y = jnp.dot(ctx_ref[...].astype(jnp.bfloat16), wo_ref[...],
                preferred_element_type=jnp.float32) + bo_ref[...]
    for t in range(ts):
        o_ref[:, t, :] = y[t * B:(t + 1) * B, :].astype(o_ref.dtype)


def pallas_attention(qkv, wo, bo, num_heads):
    """qkv: (B, S, 3E) bf16.  Returns (B, S, E) bf16 = out-projection(attention(qkv))."""
    B, S, E3 = qkv.shape
    E = E3 // 3
    # positions per grid step: full S for small S, else a multiple-of-8 divisor
    ts = S
    if S % 8 == 0:
        ts = 16 if S % 16 == 0 else 8
    ts = min(ts, S)

    return pl.pallas_call(
        functools.partial(_mha_kernel, num_heads=num_heads, ts=ts),
        out_shape=jax.ShapeDtypeStruct((B, S, E), jnp.bfloat16),
        grid=(S // ts,),
        in_specs=[
            pl.BlockSpec((B, ts, E3), lambda s: (0, s, 0)),
            pl.BlockSpec((E, E), lambda s: (0, 0)),     # wo: same block every step
            pl.BlockSpec((1, E), lambda s: (0, 0)),     # bo
        ],
        out_specs=pl.BlockSpec((B, ts, E), lambda s: (0, s, 0)),
        scratch_shapes=[pltpu.VMEM((ts * B, E), jnp.float32)],
        compiler_params=pltpu.CompilerParams(dimension_semantics=("parallel",)),
    )(qkv, wo, bo)


# ----------------------------- model building blocks -------------------------------

def transformer_encoder_layer(x, p, num_heads):
    """Post-norm nn.TransformerEncoderLayer (activation=relu, no dropout).
    x: (B, S, E) bf16; attention mixes over axis 0 (batch) — the reference quirk."""
    B, S, E = x.shape
    x2 = x.reshape(B * S, E)
    qkv = pallas_linear(x2, p["wqkv"], p["bqkv"])                      # fused QKV, bf16
    attn = pallas_attention(qkv.reshape(B, S, 3 * E), p["wo"], p["bo"], num_heads)
    x2 = pallas_layernorm(x2, p["ln1_g"], p["ln1_b"],
                          residual=attn.reshape(B * S, E))             # LN(x + attn)
    h = pallas_linear(x2, p["w1"], p["b1"], activation="relu")
    h = pallas_linear(h, p["w2"], p["b2"])
    x2 = pallas_layernorm(x2, p["ln2_g"], p["ln2_b"], residual=h)      # LN(x + ffn)
    return x2.reshape(B, S, E)


def vision_transformer_forward(images, p, cfg, l2_normalize=False):
    """images: (B, C, H, W) NCHW.  Keeps (B, S, E) layout end-to-end (no transposes)."""
    B, C, H, W = images.shape
    ps = cfg["patch_size"]
    E = cfg["embed_dim"]
    hp, wp = H // ps, W // ps
    # patch_embedding: Conv2d(kernel=stride=patch) == matmul over flattened patches
    patches = (
        images.reshape(B, C, hp, ps, wp, ps)
        .transpose(0, 2, 4, 1, 3, 5)             # (B, hp, wp, C, ps, ps)
        .reshape(B * hp * wp, C * ps * ps)
    )
    x = pallas_linear(patches, p["patch_w"], p["patch_b"]).reshape(B, hp * wp, E)
    cls = jnp.broadcast_to(p["class_token"], (B, 1, E))
    x = jnp.concatenate([cls, x], axis=1) + p["pos_emb"]   # (B, S, E) bf16
    for lp in p["layers"]:
        x = transformer_encoder_layer(x, lp, cfg["num_heads"])
    Bn, S, Ed = x.shape
    # final LayerNorm with the CLIPTrainer F.normalize fused in (f32 output)
    x = pallas_layernorm(x.reshape(Bn * S, Ed), p["ln_g"], p["ln_b"],
                         l2_normalize=l2_normalize, out_dtype=jnp.float32)
    return x.reshape(Bn, S, Ed)


def text_encoder_forward(text_ids, p, cfg, l2_normalize=False):
    """Stand-in CLIP text encoder (see TODO at top).  text_ids: (B, T) int32."""
    B, T = text_ids.shape
    E = cfg["embed_dim"]
    x = (jnp.take(p["tok_emb"], text_ids, axis=0) + p["pos_emb"]).astype(jnp.bfloat16)
    for lp in p["layers"]:
        x = transformer_encoder_layer(x, lp, cfg["num_heads"])
    Bn, T_, E_ = x.shape
    x = pallas_layernorm(x.reshape(Bn * T_, E_), p["ln_g"], p["ln_b"],
                         l2_normalize=l2_normalize, out_dtype=jnp.float32)
    return x.reshape(Bn, T_, E_)


def clip_trainer_forward(text, images, params, img_cfg, txt_cfg):
    # F.normalize(dim=-1) is fused into each encoder's final LayerNorm kernel.
    text_features = text_encoder_forward(text, params["text"], txt_cfg, l2_normalize=True)
    image_features = vision_transformer_forward(images, params["image"], img_cfg,
                                                l2_normalize=True)
    return text_features, image_features


# ----------------------------- deterministic params --------------------------------
# Weights are created in their kernel-ready form ONCE here: bf16 matmul weights,
# (1, N) f32 biases, (1, E) f32 LN params, attention scale folded into wqkv/bqkv.

def _init_layer_params(key, E, ffn, num_heads):
    ks = jax.random.split(key, 8)
    s = 0.02
    scale = 1.0 / (float(E // num_heads) ** 0.5)

    def w(k, shape):
        return (s * jax.random.normal(k, shape, jnp.float32)).astype(jnp.bfloat16)

    def bias(k, n):
        # PyTorch's default Linear init gives non-zero biases; non-zero biases also keep
        # the all-zero class-token row from producing a zero (un-normalizable) output.
        return 0.01 * jax.random.normal(k, (1, n), jnp.float32)

    wqkv = s * jax.random.normal(ks[0], (E, 3 * E), jnp.float32)
    bqkv = 0.01 * jax.random.normal(ks[1], (1, 3 * E), jnp.float32)
    # fold 1/sqrt(Dh) into the q projection (init-time, zero runtime cost)
    wqkv = wqkv.at[:, :E].multiply(scale)
    bqkv = bqkv.at[:, :E].multiply(scale)

    return {
        "wqkv": wqkv.astype(jnp.bfloat16),
        "bqkv": bqkv,
        "wo": w(ks[2], (E, E)),
        "bo": bias(ks[3], E),
        "ln1_g": jnp.ones((1, E), jnp.float32),
        "ln1_b": jnp.zeros((1, E), jnp.float32),
        "w1": w(ks[4], (E, ffn)),
        "b1": bias(ks[5], ffn),
        "w2": w(ks[6], (ffn, E)),
        "b2": bias(ks[7], E),
        "ln2_g": jnp.ones((1, E), jnp.float32),
        "ln2_b": jnp.zeros((1, E), jnp.float32),
    }


def init_params(key, img_cfg, txt_cfg):
    E = img_cfg["embed_dim"]
    k_img, k_txt = jax.random.split(key)

    # image encoder
    ks = jax.random.split(k_img, img_cfg["depth"] + 2)
    patch_dim = img_cfg["in_channels"] * img_cfg["patch_size"] ** 2
    num_patches = (img_cfg["img_size"] // img_cfg["patch_size"]) ** 2
    image_params = {
        "patch_w": (0.02 * jax.random.normal(ks[0], (patch_dim, E), jnp.float32)
                    ).astype(jnp.bfloat16),
        "patch_b": 0.01 * jax.random.normal(ks[1], (1, E), jnp.float32),
        "class_token": jnp.zeros((1, 1, E), jnp.bfloat16),            # matches torch.zeros
        "pos_emb": jnp.zeros((1, num_patches + 1, E), jnp.bfloat16),  # matches torch.zeros
        "layers": [_init_layer_params(ks[i + 2], E, img_cfg["ffn_dim"], img_cfg["num_heads"])
                   for i in range(img_cfg["depth"])],
        "ln_g": jnp.ones((1, E), jnp.float32),
        "ln_b": jnp.zeros((1, E), jnp.float32),
    }

    # text encoder (stand-in)
    ks = jax.random.split(k_txt, txt_cfg["depth"] + 2)
    text_params = {
        "tok_emb": 0.02 * jax.random.normal(ks[0], (txt_cfg["vocab"], E), jnp.float32),
        "pos_emb": 0.02 * jax.random.normal(ks[1], (1, txt_cfg["seq_len"], E), jnp.float32),
        "layers": [_init_layer_params(ks[i + 2], E, txt_cfg["ffn_dim"], txt_cfg["num_heads"])
                   for i in range(txt_cfg["depth"])],
        "ln_g": jnp.ones((1, E), jnp.float32),
        "ln_b": jnp.zeros((1, E), jnp.float32),
    }
    return {"image": image_params, "text": text_params}


# ----------------------------------- main -------------------------------------------

if __name__ == "__main__":
    # Small shapes consistent with the module (scaled down from 224/16/768/12/12).
    IMG_CFG = dict(img_size=16, patch_size=8, in_channels=3,
                   embed_dim=32, num_heads=4, depth=2, ffn_dim=64)
    TXT_CFG = dict(vocab=64, seq_len=8, embed_dim=32, num_heads=4, depth=2, ffn_dim=64)

    key = jax.random.PRNGKey(0)
    k_param, k_img, k_txt = jax.random.split(key, 3)

    params = init_params(k_param, IMG_CFG, TXT_CFG)
    images = jax.random.normal(k_img, (2, 3, 16, 16), jnp.float32)           # NCHW
    text = jax.random.randint(k_txt, (2, TXT_CFG["seq_len"]), 0, TXT_CFG["vocab"], jnp.int32)

    fwd = jax.jit(functools.partial(clip_trainer_forward,
                                    img_cfg=IMG_CFG, txt_cfg=TXT_CFG))
    text_features, image_features = fwd(text, images, params)
    jax.block_until_ready((text_features, image_features))

    S_img = (IMG_CFG["img_size"] // IMG_CFG["patch_size"]) ** 2 + 1
    assert text_features.shape == (2, TXT_CFG["seq_len"], TXT_CFG["embed_dim"])
    assert image_features.shape == (2, S_img, IMG_CFG["embed_dim"])
    assert bool(jnp.all(jnp.isfinite(text_features)))
    assert bool(jnp.all(jnp.isfinite(image_features)))
    # rows are unit-norm after the fused F.normalize epilogue
    assert jnp.allclose(jnp.linalg.norm(image_features, axis=-1), 1.0, atol=1e-3)
    assert jnp.allclose(jnp.linalg.norm(text_features, axis=-1), 1.0, atol=1e-3)

    print("KERNEL_OK")
</pallas_src>

<mosaic_0001>
module attributes {stable_mosaic.version = 11 : i64} {
  func.func @_matmul_kernel_1k(%arg0: i32, %arg1: i32, %arg2: memref<8x192xbf16, #tpu.memory_space<vmem>>, %arg3: memref<192x32xbf16, #tpu.memory_space<vmem>>, %arg4: memref<1x32xf32, #tpu.memory_space<vmem>>, %arg5: memref<8x32xbf16, #tpu.memory_space<vmem>>) attributes {dimension_semantics = [#tpu.dimension_semantics<parallel>, #tpu.dimension_semantics<parallel>], iteration_bounds = array<i64: 1, 1>, scalar_prefetch = 0 : i64, scratch_operands = 0 : i64, tpu.core_type = #tpu.core_type<tc>, window_params = [{transform_indices = @transform_0, window_bounds = array<i64: 8, 192>}, {transform_indices = @transform_1, window_bounds = array<i64: 192, 32>}, {transform_indices = @transform_2, window_bounds = array<i64: 1, 32>}, {transform_indices = @transform_3, window_bounds = array<i64: 8, 32>}]} {
    %c0 = arith.constant 0 : index
    %c0_0 = arith.constant 0 : index
    %0 = vector.load %arg2[%c0, %c0_0] : memref<8x192xbf16, #tpu.memory_space<vmem>>, vector<8x192xbf16>
    %c0_1 = arith.constant 0 : index
    %c0_2 = arith.constant 0 : index
    %1 = vector.load %arg3[%c0_1, %c0_2] : memref<192x32xbf16, #tpu.memory_space<vmem>>, vector<192x32xbf16>
    %cst = arith.constant dense<0.000000e+00> : vector<8x32xf32>
    %2 = tpu.matmul %0, %1, %cst {dimension_numbers = #tpu.dot_dimension_numbers<[1], [0], [0], [1], [0, 0, 1, 1], [], []>} : vector<8x192xbf16>, vector<192x32xbf16>, vector<8x32xf32> -> vector<8x32xf32>
    %c0_3 = arith.constant 0 : index
    %c0_4 = arith.constant 0 : index
    %3 = vector.load %arg4[%c0_3, %c0_4] : memref<1x32xf32, #tpu.memory_space<vmem>>, vector<1x32xf32>
    %4 = vector.broadcast %3 : vector<1x32xf32> to vector<8x32xf32>
    %5 = arith.addf %2, %4 : vector<8x32xf32>
    %6 = arith.truncf %5 : vector<8x32xf32> to vector<8x32xbf16>
    %c0_5 = arith.constant 0 : index
    %c0_6 = arith.constant 0 : index
    %7 = vector.load %arg5[%c0_5, %c0_6] : memref<8x32xbf16, #tpu.memory_space<vmem>>, vector<8x32xbf16>
    tpu.vector_store %arg5[%c0_5, %c0_6], %6 {strides = array<i32>} : memref<8x32xbf16, #tpu.memory_space<vmem>>, vector<8x32xbf16>,
    return
  }
  func.func @transform_0(%arg0: i32, %arg1: i32) -> (i32, i32) {
    %c0_i32 = arith.constant 0 : i32
    %c0_i32_0 = arith.constant 0 : i32
    return %arg0, %c0_i32 : i32, i32
  }
  func.func @transform_1(%arg0: i32, %arg1: i32) -> (i32, i32) {
    %c0_i32 = arith.constant 0 : i32
    %c0_i32_0 = arith.constant 0 : i32
    return %c0_i32, %arg1 : i32, i32
  }
  func.func @transform_2(%arg0: i32, %arg1: i32) -> (i32, i32) {
    %c0_i32 = arith.constant 0 : i32
    %c0_i32_0 = arith.constant 0 : i32
    return %c0_i32, %arg1 : i32, i32
  }
  func.func @transform_3(%arg0: i32, %arg1: i32) -> (i32, i32) {
    %c0_i32 = arith.constant 0 : i32
    return %arg0, %arg1 : i32, i32
  }
}

module attributes {stable_mosaic.version = 11 : i64} {
  func.func @_add_ln_kernel(%arg0: i32, %arg1: memref<10x32xbf16, #tpu.memory_space<vmem>>, %arg2: memref<10x32xbf16, #tpu.memory_space<vmem>>, %arg3: memref<1x32xf32, #tpu.memory_space<vmem>>, %arg4: memref<1x32xf32, #tpu.memory_space<vmem>>, %arg5: memref<10x32xbf16, #tpu.memory_space<vmem>>) attributes {dimension_semantics = [#tpu.dimension_semantics<parallel>], iteration_bounds = array<i64: 1>, scalar_prefetch = 0 : i64, scratch_operands = 0 : i64, tpu.core_type = #tpu.core_type<tc>, window_params = [{transform_indices = @transform_0, window_bounds = array<i64: 10, 32>}, {transform_indices = @transform_1, window_bounds = array<i64: 10, 32>}, {pipeline_mode = #tpu.pipeline_mode<synchronous>, transform_indices = @transform_2, window_bounds = array<i64: 1, 32>}, {pipeline_mode = #tpu.pipeline_mode<synchronous>, transform_indices = @transform_3, window_bounds = array<i64: 1, 32>}, {transform_indices = @transform_4, window_bounds = array<i64: 10, 32>}]} {
    %c0 = arith.constant 0 : index
    %c0_0 = arith.constant 0 : index
    %0 = vector.load %arg1[%c0, %c0_0] : memref<10x32xbf16, #tpu.memory_space<vmem>>, vector<10x32xbf16>
    %1 = arith.extf %0 : vector<10x32xbf16> to vector<10x32xf32>
    %c0_1 = arith.constant 0 : index
    %c0_2 = arith.constant 0 : index
    %2 = vector.load %arg2[%c0_1, %c0_2] : memref<10x32xbf16, #tpu.memory_space<vmem>>, vector<10x32xbf16>
    %3 = arith.extf %2 : vector<10x32xbf16> to vector<10x32xf32>
    %4 = arith.addf %1, %3 : vector<10x32xf32>
    %c0_3 = arith.constant 0 : index
    %c0_4 = arith.constant 0 : index
    %5 = vector.load %arg3[%c0_3, %c0_4] : memref<1x32xf32, #tpu.memory_space<vmem>>, vector<1x32xf32>
    %c0_5 = arith.constant 0 : index
    %c0_6 = arith.constant 0 : index
    %6 = vector.load %arg4[%c0_5, %c0_6] : memref<1x32xf32, #tpu.memory_space<vmem>>, vector<1x32xf32>
    %cst = arith.constant dense<0.000000e+00> : vector<10xf32>
    %7 = vector.multi_reduction <add>, %4, %cst [1] : vector<10x32xf32> to vector<10xf32>
    %8 = vector.shape_cast %7 : vector<10xf32> to vector<10x1xf32>
    %cst_7 = arith.constant 3.200000e+01 : f32
    %9 = vector.broadcast %cst_7 : f32 to vector<10x1xf32>
    %10 = arith.divf %8, %9 : vector<10x1xf32>
    %11 = vector.broadcast %10 : vector<10x1xf32> to vector<10x32xf32>
    %12 = arith.subf %4, %11 : vector<10x32xf32>
    %13 = arith.mulf %12, %12 : vector<10x32xf32>
    %cst_8 = arith.constant dense<0.000000e+00> : vector<10xf32>
    %14 = vector.multi_reduction <add>, %13, %cst_8 [1] : vector<10x32xf32> to vector<10xf32>
    %15 = vector.shape_cast %14 : vector<10xf32> to vector<10x1xf32>
    %cst_9 = arith.constant 3.200000e+01 : f32
    %16 = vector.broadcast %cst_9 : f32 to vector<10x1xf32>
    %17 = arith.divf %15, %16 : vector<10x1xf32>
    %cst_10 = arith.constant 9.99999974E-6 : f32
    %18 = vector.broadcast %cst_10 : f32 to vector<10x1xf32>
    %19 = arith.addf %17, %18 : vector<10x1xf32>
    %20 = math.rsqrt %19 : vector<10x1xf32>
    %21 = vector.broadcast %20 : vector<10x1xf32> to vector<10x32xf32>
    %22 = arith.mulf %12, %21 : vector<10x32xf32>
    %23 = vector.broadcast %5 : vector<1x32xf32> to vector<10x32xf32>
    %24 = arith.mulf %22, %23 : vector<10x32xf32>
    %25 = vector.broadcast %6 : vector<1x32xf32> to vector<10x32xf32>
    %26 = arith.addf %24, %25 : vector<10x32xf32>
    %27 = arith.truncf %26 : vector<10x32xf32> to vector<10x32xbf16>
    %c0_11 = arith.constant 0 : index
    %c0_12 = arith.constant 0 : index
    %28 = vector.load %arg5[%c0_11, %c0_12] : memref<10x32xbf16, #tpu.memory_space<vmem>>, vector<10x32xbf16>
    tpu.vector_store %arg5[%c0_11, %c0_12], %27 {strides = array<i32>} : memref<10x32xbf16, #tpu.memory_space<vmem>>, vector<10x32xbf16>,
    return
  }
  func.func @transform_0(%arg0: i32) -> (i32, i32) {
    %c0_i32 = arith.constant 0 : i32
    %c0_i32_0 = arith.constant 0 : i32
    return %arg0, %c0_i32 : i32, i32
  }
  func.func @transform_1(%arg0: i32) -> (i32, i32) {
    %c0_i32 = arith.constant 0 : i32
    %c0_i32_0 = arith.constant 0 : i32
    return %arg0, %c0_i32 : i32, i32
  }
  func.func @transform_2(%arg0: i32) -> (i32, i32) {
    %c0_i32 = arith.constant 0 : i32
    %c0_i32_0 = arith.constant 0 : i32
    %c0_i32_1 = arith.constant 0 : i32
    return %c0_i32, %c0_i32_0 : i32, i32
  }
  func.func @transform_3(%arg0: i32) -> (i32, i32) {
    %c0_i32 = arith.constant 0 : i32
    %c0_i32_0 = arith.constant 0 : i32
    %c0_i32_1 = arith.constant 0 : i32
    return %c0_i32, %c0_i32_0 : i32, i32
  }
  func.func @transform_4(%arg0: i32) -> (i32, i32) {
    %c0_i32 = arith.constant 0 : i32
    %c0_i32_0 = arith.constant 0 : i32
    return %arg0, %c0_i32 : i32, i32
  }
}

module attributes {stable_mosaic.version = 11 : i64} {
  func.func @_matmul_kernel_1k(%arg0: i32, %arg1: i32, %arg2: memref<10x32xbf16, #tpu.memory_space<vmem>>, %arg3: memref<32x96xbf16, #tpu.memory_space<vmem>>, %arg4: memref<1x96xf32, #tpu.memory_space<vmem>>, %arg5: memref<10x96xbf16, #tpu.memory_space<vmem>>) attributes {dimension_semantics = [#tpu.dimension_semantics<parallel>, #tpu.dimension_semantics<parallel>], iteration_bounds = array<i64: 1, 1>, scalar_prefetch = 0 : i64, scratch_operands = 0 : i64, tpu.core_type = #tpu.core_type<tc>, window_params = [{transform_indices = @transform_0, window_bounds = array<i64: 10, 32>}, {transform_indices = @transform_1, window_bounds = array<i64: 32, 96>}, {transform_indices = @transform_2, window_bounds = array<i64: 1, 96>}, {transform_indices = @transform_3, window_bounds = array<i64: 10, 96>}]} {
    %c0 = arith.constant 0 : index
    %c0_0 = arith.constant 0 : index
    %0 = vector.load %arg2[%c0, %c0_0] : memref<10x32xbf16, #tpu.memory_space<vmem>>, vector<10x32xbf16>
    %c0_1 = arith.constant 0 : index
    %c0_2 = arith.constant 0 : index
    %1 = vector.load %arg3[%c0_1, %c0_2] : memref<32x96xbf16, #tpu.memory_space<vmem>>, vector<32x96xbf16>
    %cst = arith.constant dense<0.000000e+00> : vector<10x96xf32>
    %2 = tpu.matmul %0, %1, %cst {dimension_numbers = #tpu.dot_dimension_numbers<[1], [0], [0], [1], [0, 0, 1, 1], [], []>} : vector<10x32xbf16>, vector<32x96xbf16>, vector<10x96xf32> -> vector<10x96xf32>
    %c0_3 = arith.constant 0 : index
    %c0_4 = arith.constant 0 : index
    %3 = vector.load %arg4[%c0_3, %c0_4] : memref<1x96xf32, #tpu.memory_space<vmem>>, vector<1x96xf32>
    %4 = vector.broadcast %3 : vector<1x96xf32> to vector<10x96xf32>
    %5 = arith.addf %2, %4 : vector<10x96xf32>
    %6 = arith.truncf %5 : vector<10x96xf32> to vector<10x96xbf16>
    %c0_5 = arith.constant 0 : index
    %c0_6 = arith.constant 0 : index
    %7 = vector.load %arg5[%c0_5, %c0_6] : memref<10x96xbf16, #tpu.memory_space<vmem>>, vector<10x96xbf16>
    tpu.vector_store %arg5[%c0_5, %c0_6], %6 {strides = array<i32>} : memref<10x96xbf16, #tpu.memory_space<vmem>>, vector<10x96xbf16>,
    return
  }
  func.func @transform_0(%arg0: i32, %arg1: i32) -> (i32, i32) {
    %c0_i32 = arith.constant 0 : i32
    %c0_i32_0 = arith.constant 0 : i32
    return %arg0, %c0_i32 : i32, i32
  }
  func.func @transform_1(%arg0: i32, %arg1: i32) -> (i32, i32) {
    %c0_i32 = arith.constant 0 : i32
    %c0_i32_0 = arith.constant 0 : i32
    return %c0_i32, %arg1 : i32, i32
  }
  func.func @transform_2(%arg0: i32, %arg1: i32) -> (i32, i32) {
    %c0_i32 = arith.constant 0 : i32
    %c0_i32_0 = arith.constant 0 : i32
    return %c0_i32, %arg1 : i32, i32
  }
  func.func @transform_3(%arg0: i32, %arg1: i32) -> (i32, i32) {
    %c0_i32 = arith.constant 0 : i32
    return %arg0, %arg1 : i32, i32
  }
}

module attributes {stable_mosaic.version = 11 : i64} {
  func.func @_mha_kernel(%arg0: i32, %arg1: memref<2x5x96xbf16, #tpu.memory_space<vmem>>, %arg2: memref<32x32xbf16, #tpu.memory_space<vmem>>, %arg3: memref<1x32xf32, #tpu.memory_space<vmem>>, %arg4: memref<2x5x32xbf16, #tpu.memory_space<vmem>>, %arg5: memref<10x32xf32, #tpu.memory_space<vmem>>) attributes {dimension_semantics = [#tpu.dimension_semantics<parallel>], iteration_bounds = array<i64: 1>, scalar_prefetch = 0 : i64, scratch_operands = 1 : i64, tpu.core_type = #tpu.core_type<tc>, window_params = [{transform_indices = @transform_0, window_bounds = array<i64: 2, 5, 96>}, {pipeline_mode = #tpu.pipeline_mode<synchronous>, transform_indices = @transform_1, window_bounds = array<i64: 32, 32>}, {pipeline_mode = #tpu.pipeline_mode<synchronous>, transform_indices = @transform_2, window_bounds = array<i64: 1, 32>}, {transform_indices = @transform_3, window_bounds = array<i64: 2, 5, 32>}]} {
    %c0 = arith.constant 0 : index
    %c0_0 = arith.constant 0 : index
    %c0_1 = arith.constant 0 : index
    %0 = vector.load %arg1[%c0, %c0_0, %c0_1] : memref<2x5x96xbf16, #tpu.memory_space<vmem>>, vector<2x1x96xbf16>
    %1 = vector.shape_cast %0 : vector<2x1x96xbf16> to vector<2x96xbf16>
    %2 = vector.extract_strided_slice %1 {offsets = [0, 0], sizes = [2, 8], strides = [1, 1]} : vector<2x96xbf16> to vector<2x8xbf16>
    %3 = vector.extract_strided_slice %1 {offsets = [0, 32], sizes = [2, 8], strides = [1, 1]} : vector<2x96xbf16> to vector<2x8xbf16>
    %4 = vector.extract_strided_slice %1 {offsets = [0, 64], sizes = [2, 8], strides = [1, 1]} : vector<2x96xbf16> to vector<2x8xbf16>
    %cst = arith.constant dense<0.000000e+00> : vector<2x2xf32>
    %5 = tpu.matmul %2, %3, %cst {dimension_numbers = #tpu.dot_dimension_numbers<[1], [1], [0], [0], [0, 0, 1, 0], [], []>} : vector<2x8xbf16>, vector<2x8xbf16>, vector<2x2xf32> -> vector<2x2xf32>
    %cst_2 = arith.constant dense<0xFF800000> : vector<2xf32>
    %6 = vector.multi_reduction <maximumf>, %5, %cst_2 [1] : vector<2x2xf32> to vector<2xf32>
    %7 = vector.shape_cast %6 : vector<2xf32> to vector<2x1xf32>
    %8 = vector.broadcast %7 : vector<2x1xf32> to vector<2x2xf32>
    %9 = arith.subf %5, %8 : vector<2x2xf32>
    %10 = math.exp %9 : vector<2x2xf32>
    %cst_3 = arith.constant dense<0.000000e+00> : vector<2xf32>
    %11 = vector.multi_reduction <add>, %10, %cst_3 [1] : vector<2x2xf32> to vector<2xf32>
    %12 = vector.shape_cast %11 : vector<2xf32> to vector<2x1xf32>
    %13 = tpu.reciprocal %12 {approx = true} : vector<2x1xf32> -> vector<2x1xf32>
    %14 = vector.broadcast %13 : vector<2x1xf32> to vector<2x2xf32>
    %15 = arith.mulf %10, %14 : vector<2x2xf32>
    %16 = arith.truncf %15 : vector<2x2xf32> to vector<2x2xbf16>
    %cst_4 = arith.constant dense<0.000000e+00> : vector<2x8xf32>
    %17 = tpu.matmul %16, %4, %cst_4 {dimension_numbers = #tpu.dot_dimension_numbers<[1], [0], [0], [1], [0, 0, 1, 1], [], []>} : vector<2x2xbf16>, vector<2x8xbf16>, vector<2x8xf32> -> vector<2x8xf32>
    %c0_5 = arith.constant 0 : index
    %c0_6 = arith.constant 0 : index
    %18 = vector.load %arg5[%c0_5, %c0_6] : memref<10x32xf32, #tpu.memory_space<vmem>>, vector<2x8xf32>
    tpu.vector_store %arg5[%c0_5, %c0_6], %17 {strides = array<i32>} : memref<10x32xf32, #tpu.memory_space<vmem>>, vector<2x8xf32>,
    %19 = vector.extract_strided_slice %1 {offsets = [0, 8], sizes = [2, 8], strides = [1, 1]} : vector<2x96xbf16> to vector<2x8xbf16>
    %20 = vector.extract_strided_slice %1 {offsets = [0, 40], sizes = [2, 8], strides = [1, 1]} : vector<2x96xbf16> to vector<2x8xbf16>
    %21 = vector.extract_strided_slice %1 {offsets = [0, 72], sizes = [2, 8], strides = [1, 1]} : vector<2x96xbf16> to vector<2x8xbf16>
    %cst_7 = arith.constant dense<0.000000e+00> : vector<2x2xf32>
    %22 = tpu.matmul %19, %20, %cst_7 {dimension_numbers = #tpu.dot_dimension_numbers<[1], [1], [0], [0], [0, 0, 1, 0], [], []>} : vector<2x8xbf16>, vector<2x8xbf16>, vector<2x2xf32> -> vector<2x2xf32>
    %cst_8 = arith.constant dense<0xFF800000> : vector<2xf32>
    %23 = vector.multi_reduction <maximumf>, %22, %cst_8 [1] : vector<2x2xf32> to vector<2xf32>
    %24 = vector.shape_cast %23 : vector<2xf32> to vector<2x1xf32>
    %25 = vector.broadcast %24 : vector<2x1xf32> to vector<2x2xf32>
    %26 = arith.subf %22, %25 : vector<2x2xf32>
    %27 = math.exp %26 : vector<2x2xf32>
    %cst_9 = arith.constant dense<0.000000e+00> : vector<2xf32>
    %28 = vector.multi_reduction <add>, %27, %cst_9 [1] : vector<2x2xf32> to vector<2xf32>
    %29 = vector.shape_cast %28 : vector<2xf32> to vector<2x1xf32>
    %30 = tpu.reciprocal %29 {approx = true} : vector<2x1xf32> -> vector<2x1xf32>
    %31 = vector.broadcast %30 : vector<2x1xf32> to vector<2x2xf32>
    %32 = arith.mulf %27, %31 : vector<2x2xf32>
    %33 = arith.truncf %32 : vector<2x2xf32> to vector<2x2xbf16>
    %cst_10 = arith.constant dense<0.000000e+00> : vector<2x8xf32>
    %34 = tpu.matmul %33, %21, %cst_10 {dimension_numbers = #tpu.dot_dimension_numbers<[1], [0], [0], [1], [0, 0, 1, 1], [], []>} : vector<2x2xbf16>, vector<2x8xbf16>, vector<2x8xf32> -> vector<2x8xf32>
    %c0_11 = arith.constant 0 : index
    %c8 = arith.constant 8 : index
    %35 = vector.load %arg5[%c0_11, %c8] : memref<10x32xf32, #tpu.memory_space<vmem>>, vector<2x8xf32>
    tpu.vector_store %arg5[%c0_11, %c8], %34 {strides = array<i32>} : memref<10x32xf32, #tpu.memory_space<vmem>>, vector<2x8xf32>,
    %36 = vector.extract_strided_slice %1 {offsets = [0, 16], sizes = [2, 8], strides = [1, 1]} : vector<2x96xbf16> to vector<2x8xbf16>
    %37 = vector.extract_strided_slice %1 {offsets = [0, 48], sizes = [2, 8], strides = [1, 1]} : vector<2x96xbf16> to vector<2x8xbf16>
    %38 = vector.extract_strided_slice %1 {offsets = [0, 80], sizes = [2, 8], strides = [1, 1]} : vector<2x96xbf16> to vector<2x8xbf16>
    %cst_12 = arith.constant dense<0.000000e+00> : vector<2x2xf32>
    %39 = tpu.matmul %36, %37, %cst_12 {dimension_numbers = #tpu.dot_dimension_numbers<[1], [1], [0], [0], [0, 0, 1, 0], [], []>} : vector<2x8xbf16>, vector<2x8xbf16>, vector<2x2xf32> -> vector<2x2xf32>
    %cst_13 = arith.constant dense<0xFF800000> : vector<2xf32>
    %40 = vector.multi_reduction <maximumf>, %39, %cst_13 [1] : vector<2x2xf32> to vector<2xf32>
    %41 = vector.shape_cast %40 : vector<2xf32> to vector<2x1xf32>
    %42 = vector.broadcast %41 : vector<2x1xf32> to vector<2x2xf32>
    %43 = arith.subf %39, %42 : vector<2x2xf32>
    %44 = math.exp %43 : vector<2x2xf32>
    %cst_14 = arith.constant dense<0.000000e+00> : vector<2xf32>
    %45 = vector.multi_reduction <add>, %44, %cst_14 [1] : vector<2x2xf32> to vector<2xf32>
    %46 = vector.shape_cast %45 : vector<2xf32> to vector<2x1xf32>
    %47 = tpu.reciprocal %46 {approx = true} : vector<2x1xf32> -> vector<2x1xf32>
    %48 = vector.broadcast %47 : vector<2x1xf32> to vector<2x2xf32>
    %49 = arith.mulf %44, %48 : vector<2x2xf32>
    %50 = arith.truncf %49 : vector<2x2xf32> to vector<2x2xbf16>
    %cst_15 = arith.constant dense<0.000000e+00> : vector<2x8xf32>
    %51 = tpu.matmul %50, %38, %cst_15 {dimension_numbers = #tpu.dot_dimension_numbers<[1], [0], [0], [1], [0, 0, 1, 1], [], []>} : vector<2x2xbf16>, vector<2x8xbf16>, vector<2x8xf32> -> vector<2x8xf32>
    %c0_16 = arith.constant 0 : index
    %c16 = arith.constant 16 : index
    %52 = vector.load %arg5[%c0_16, %c16] : memref<10x32xf32, #tpu.memory_space<vmem>>, vector<2x8xf32>
    tpu.vector_store %arg5[%c0_16, %c16], %51 {strides = array<i32>} : memref<10x32xf32, #tpu.memory_space<vmem>>, vector<2x8xf32>,
    %53 = vector.extract_strided_slice %1 {offsets = [0, 24], sizes = [2, 8], strides = [1, 1]} : vector<2x96xbf16> to vector<2x8xbf16>
    %54 = vector.extract_strided_slice %1 {offsets = [0, 56], sizes = [2, 8], strides = [1, 1]} : vector<2x96xbf16> to vector<2x8xbf16>
    %55 = vector.extract_strided_slice %1 {offsets = [0, 88], sizes = [2, 8], strides = [1, 1]} : vector<2x96xbf16> to vector<2x8xbf16>
    %cst_17 = arith.constant dense<0.000000e+00> : vector<2x2xf32>
    %56 = tpu.matmul %53, %54, %cst_17 {dimension_numbers = #tpu.dot_dimension_numbers<[1], [1], [0], [0], [0, 0, 1, 0], [], []>} : vector<2x8xbf16>, vector<2x8xbf16>, vector<2x2xf32> -> vector<2x2xf32>
    %cst_18 = arith.constant dense<0xFF800000> : vector<2xf32>
    %57 = vector.multi_reduction <maximumf>, %56, %cst_18 [1] : vector<2x2xf32> to vector<2xf32>
    %58 = vector.shape_cast %57 : vector<2xf32> to vector<2x1xf32>
    %59 = vector.broadcast %58 : vector<2x1xf32> to vector<2x2xf32>
    %60 = arith.subf %56, %59 : vector<2x2xf32>
    %61 = math.exp %60 : vector<2x2xf32>
    %cst_19 = arith.constant dense<0.000000e+00> : vector<2xf32>
    %62 = vector.multi_reduction <add>, %61, %cst_19 [1] : vector<2x2xf32> to vector<2xf32>
    %63 = vector.shape_cast %62 : vector<2xf32> to vector<2x1xf32>
    %64 = tpu.reciprocal %63 {approx = true} : vector<2x1xf32> -> vector<2x1xf32>
    %65 = vector.broadcast %64 : vector<2x1xf32> to vector<2x2xf32>
    %66 = arith.mulf %61, %65 : vector<2x2xf32>
    %67 = arith.truncf %66 : vector<2x2xf32> to vector<2x2xbf16>
    %cst_20 = arith.constant dense<0.000000e+00> : vector<2x8xf32>
    %68 = tpu.matmul %67, %55, %cst_20 {dimension_numbers = #tpu.dot_dimension_numbers<[1], [0], [0], [1], [0, 0, 1, 1], [], []>} : vector<2x2xbf16>, vector<2x8xbf16>, vector<2x8xf32> -> vector<2x8xf32>
    %c0_21 = arith.constant 0 : index
    %c24 = arith.constant 24 : index
    %69 = vector.load %arg5[%c0_21, %c24] : memref<10x32xf32, #tpu.memory_space<vmem>>, vector<2x8xf32>
    tpu.vector_store %arg5[%c0_21, %c24], %68 {strides = array<i32>} : memref<10x32xf32, #tpu.memory_space<vmem>>, vector<2x8xf32>,
    %c0_22 = arith.constant 0 : index
    %c1 = arith.constant 1 : index
    %c0_23 = arith.constant 0 : index
    %70 = vector.load %arg1[%c0_22, %c1, %c0_23] : memref<2x5x96xbf16, #tpu.memory_space<vmem>>, vector<2x1x96xbf16>
    %71 = vector.shape_cast %70 : vector<2x1x96xbf16> to vector<2x96xbf16>
    %72 = vector.extract_strided_slice %71 {offsets = [0, 0], sizes = [2, 8], strides = [1, 1]} : vector<2x96xbf16> to vector<2x8xbf16>
    %73 = vector.extract_strided_slice %71 {offsets = [0, 32], sizes = [2, 8], strides = [1, 1]} : vector<2x96xbf16> to vector<2x8xbf16>
    %74 = vector.extract_strided_slice %71 {offsets = [0, 64], sizes = [2, 8], strides = [1, 1]} : vector<2x96xbf16> to vector<2x8xbf16>
    %cst_24 = arith.constant dense<0.000000e+00> : vector<2x2xf32>
    %75 = tpu.matmul %72, %73, %cst_24 {dimension_numbers = #tpu.dot_dimension_numbers<[1], [1], [0], [0], [0, 0, 1, 0], [], []>} : vector<2x8xbf16>, vector<2x8xbf16>, vector<2x2xf32> -> vector<2x2xf32>
    %cst_25 = arith.constant dense<0xFF800000> : vector<2xf32>
    %76 = vector.multi_reduction <maximumf>, %75, %cst_25 [1] : vector<2x2xf32> to vector<2xf32>
    %77 = vector.shape_cast %76 : vector<2xf32> to vector<2x1xf32>
    %78 = vector.broadcast %77 : vector<2x1xf32> to vector<2x2xf32>
    %79 = arith.subf %75, %78 : vector<2x2xf32>
    %80 = math.exp %79 : vector<2x2xf32>
    %cst_26 = arith.constant dense<0.000000e+00> : vector<2xf32>
    %81 = vector.multi_reduction <add>, %80, %cst_26 [1] : vector<2x2xf32> to vector<2xf32>
    %82 = vector.shape_cast %81 : vector<2xf32> to vector<2x1xf32>
    %83 = tpu.reciprocal %82 {approx = true} : vector<2x1xf32> -> vector<2x1xf32>
    %84 = vector.broadcast %83 : vector<2x1xf32> to vector<2x2xf32>
    %85 = arith.mulf %80, %84 : vector<2x2xf32>
    %86 = arith.truncf %85 : vector<2x2xf32> to vector<2x2xbf16>
    %cst_27 = arith.constant dense<0.000000e+00> : vector<2x8xf32>
    %87 = tpu.matmul %86, %74, %cst_27 {dimension_numbers = #tpu.dot_dimension_numbers<[1], [0], [0], [1], [0, 0, 1, 1], [], []>} : vector<2x2xbf16>, vector<2x8xbf16>, vector<2x8xf32> -> vector<2x8xf32>
    %c2 = arith.constant 2 : index
    %c0_28 = arith.constant 0 : index
    %88 = vector.load %arg5[%c2, %c0_28] : memref<10x32xf32, #tpu.memory_space<vmem>>, vector<2x8xf32>
    tpu.vector_store %arg5[%c2, %c0_28], %87 {strides = array<i32>} : memref<10x32xf32, #tpu.memory_space<vmem>>, vector<2x8xf32>,
    %89 = vector.extract_strided_slice %71 {offsets = [0, 8], sizes = [2, 8], strides = [1, 1]} : vector<2x96xbf16> to vector<2x8xbf16>
    %90 = vector.extract_strided_slice %71 {offsets = [0, 40], sizes = [2, 8], strides = [1, 1]} : vector<2x96xbf16> to vector<2x8xbf16>
    %91 = vector.extract_strided_slice %71 {offsets = [0, 72], sizes = [2, 8], strides = [1, 1]} : vector<2x96xbf16> to vector<2x8xbf16>
    %cst_29 = arith.constant dense<0.000000e+00> : vector<2x2xf32>
    %92 = tpu.matmul %89, %90, %cst_29 {dimension_numbers = #tpu.dot_dimension_numbers<[1], [1], [0], [0], [0, 0, 1, 0], [], []>} : vector<2x8xbf16>, vector<2x8xbf16>, vector<2x2xf32> -> vector<2x2xf32>
    %cst_30 = arith.constant dense<0xFF800000> : vector<2xf32>
    %93 = vector.multi_reduction <maximumf>, %92, %cst_30 [1] : vector<2x2xf32> to vector<2xf32>
    %94 = vector.shape_cast %93 : vector<2xf32> to vector<2x1xf32>
    %95 = vector.broadcast %94 : vector<2x1xf32> to vector<2x2xf32>
    %96 = arith.subf %92, %95 : vector<2x2xf32>
    %97 = math.exp %96 : vector<2x2xf32>
    %cst_31 = arith.constant dense<0.000000e+00> : vector<2xf32>
    %98 = vector.multi_reduction <add>, %97, %cst_31 [1] : vector<2x2xf32> to vector<2xf32>
    %99 = vector.shape_cast %98 : vector<2xf32> to vector<2x1xf32>
    %100 = tpu.reciprocal %99 {approx = true} : vector<2x1xf32> -> vector<2x1xf32>
    %101 = vector.broadcast %100 : vector<2x1xf32> to vector<2x2xf32>
    %102 = arith.mulf %97, %101 : vector<2x2xf32>
    %103 = arith.truncf %102 : vector<2x2xf32> to vector<2x2xbf16>
    %cst_32 = arith.constant dense<0.000000e+00> : vector<2x8xf32>
    %104 = tpu.matmul %103, %91, %cst_32 {dimension_numbers = #tpu.dot_dimension_numbers<[1], [0], [0], [1], [0, 0, 1, 1], [], []>} : vector<2x2xbf16>, vector<2x8xbf16>, vector<2x8xf32> -> vector<2x8xf32>
    %c2_33 = arith.constant 2 : index
    %c8_34 = arith.constant 8 : index
    %105 = vector.load %arg5[%c2_33, %c8_34] : memref<10x32xf32, #tpu.memory_space<vmem>>, vector<2x8xf32>
    tpu.vector_store %arg5[%c2_33, %c8_34], %104 {strides = array<i32>} : memref<10x32xf32, #tpu.memory_space<vmem>>, vector<2x8xf32>,
    %106 = vector.extract_strided_slice %71 {offsets = [0, 16], sizes = [2, 8], strides = [1, 1]} : vector<2x96xbf16> to vector<2x8xbf16>
    %107 = vector.extract_strided_slice %71 {offsets = [0, 48], sizes = [2, 8], strides = [1, 1]} : vector<2x96xbf16> to vector<2x8xbf16>
    %108 = vector.extract_strided_slice %71 {offsets = [0, 80], sizes = [2, 8], strides = [1, 1]} : vector<2x96xbf16> to vector<2x8xbf16>
    %cst_35 = arith.constant dense<0.000000e+00> : vector<2x2xf32>
    %109 = tpu.matmul %106, %107, %cst_35 {dimension_numbers = #tpu.dot_dimension_numbers<[1], [1], [0], [0], [0, 0, 1, 0], [], []>} : vector<2x8xbf16>, vector<2x8xbf16>, vector<2x2xf32> -> vector<2x2xf32>
    %cst_36 = arith.constant dense<0xFF800000> : vector<2xf32>
    %110 = vector.multi_reduction <maximumf>, %109, %cst_36 [1] : vector<2x2xf32> to vector<2xf32>
    %111 = vector.shape_cast %110 : vector<2xf32> to vector<2x1xf32>
    %112 = vector.broadcast %111 : vector<2x1xf32> to vector<2x2xf32>
    %113 = arith.subf %109, %112 : vector<2x2xf32>
    %114 = math.exp %113 : vector<2x2xf32>
    %cst_37 = arith.constant dense<0.000000e+00> : vector<2xf32>
    %115 = vector.multi_reduction <add>, %114, %cst_37 [1] : vector<2x2xf32> to vector<2xf32>
    %116 = vector.shape_cast %115 : vector<2xf32> to vector<2x1xf32>
    %117 = tpu.reciprocal %116 {approx = true} : vector<2x1xf32> -> vector<2x1xf32>
    %118 = vector.broadcast %117 : vector<2x1xf32> to vector<2x2xf32>
    %119 = arith.mulf %114, %118 : vector<2x2xf32>
    %120 = arith.truncf %119 : vector<2x2xf32> to vector<2x2xbf16>
    %cst_38 = arith.constant dense<0.000000e+00> : vector<2x8xf32>
    %121 = tpu.matmul %120, %108, %cst_38 {dimension_numbers = #tpu.dot_dimension_numbers<[1], [0], [0], [1], [0, 0, 1, 1], [], []>} : vector<2x2xbf16>, vector<2x8xbf16>, vector<2x8xf32> -> vector<2x8xf32>
    %c2_39 = arith.constant 2 : index
    %c16_40 = arith.constant 16 : index
    %122 = vector.load %arg5[%c2_39, %c16_40] : memref<10x32xf32, #tpu.memory_space<vmem>>, vector<2x8xf32>
    tpu.vector_store %arg5[%c2_39, %c16_40], %121 {strides = array<i32>} : memref<10x32xf32, #tpu.memory_space<vmem>>, vector<2x8xf32>,
    %123 = vector.extract_strided_slice %71 {offsets = [0, 24], sizes = [2, 8], strides = [1, 1]} : vector<2x96xbf16> to vector<2x8xbf16>
    %124 = vector.extract_strided_slice %71 {offsets = [0, 56], sizes = [2, 8], strides = [1, 1]} : vector<2x96xbf16> to vector<2x8xbf16>
    %125 = vector.extract_strided_slice %71 {offsets = [0, 88], sizes = [2, 8], strides = [1, 1]} : vector<2x96xbf16> to vector<2x8xbf16>
    %cst_41 = arith.constant dense<0.000000e+00> : vector<2x2xf32>
    %126 = tpu.matmul %123, %124, %cst_41 {dimension_numbers = #tpu.dot_dimension_numbers<[1], [1], [0], [0], [0, 0, 1, 0], [], []>} : vector<2x8xbf16>, vector<2x8xbf16>, vector<2x2xf32> -> vector<2x2xf32>
    %cst_42 = arith.constant dense<0xFF800000> : vector<2xf32>
    %127 = vector.multi_reduction <maximumf>, %126, %cst_42 [1] : vector<2x2xf32> to vector<2xf32>
    %128 = vector.shape_cast %127 : vector<2xf32> to vector<2x1xf32>
    %129 = vector.broadcast %128 : vector<2x1xf32> to vector<2x2xf32>
    %130 = arith.subf %126, %129 : vector<2x2xf32>
    %131 = math.exp %130 : vector<2x2xf32>
    %cst_43 = arith.constant dense<0.000000e+00> : vector<2xf32>
    %132 = vector.multi_reduction <add>, %131, %cst_43 [1] : vector<2x2xf32> to vector<2xf32>
    %133 = vector.shape_cast %132 : vector<2xf32> to vector<2x1xf32>
    %134 = tpu.reciprocal %133 {approx = true} : vector<2x1xf32> -> vector<2x1xf32>
    %135 = vector.broadcast %134 : vector<2x1xf32> to vector<2x2xf32>
    %136 = arith.mulf %131, %135 : vector<2x2xf32>
    %137 = arith.truncf %136 : vector<2x2xf32> to vector<2x2xbf16>
    %cst_44 = arith.constant dense<0.000000e+00> : vector<2x8xf32>
    %138 = tpu.matmul %137, %125, %cst_44 {dimension_numbers = #tpu.dot_dimension_numbers<[1], [0], [0], [1], [0, 0, 1, 1], [], []>} : vector<2x2xbf16>, vector<2x8xbf16>, vector<2x8xf32> -> vector<2x8xf32>
    %c2_45 = arith.constant 2 : index
    %c24_46 = arith.constant 24 : index
    %139 = vector.load %arg5[%c2_45, %c24_46] : memref<10x32xf32, #tpu.memory_space<vmem>>, vector<2x8xf32>
    tpu.vector_store %arg5[%c2_45, %c24_46], %138 {strides = array<i32>} : memref<10x32xf32, #tpu.memory_space<vmem>>, vector<2x8xf32>,
    %c0_47 = arith.constant 0 : index
    %c2_48 = arith.constant 2 : index
    %c0_49 = arith.constant 0 : index
    %140 = vector.load %arg1[%c0_47, %c2_48, %c0_49] : memref<2x5x96xbf16, #tpu.memory_space<vmem>>, vector<2x1x96xbf16>
    %141 = vector.shape_cast %140 : vector<2x1x96xbf16> to vector<2x96xbf16>
    %142 = vector.extract_strided_slice %141 {offsets = [0, 0], sizes = [2, 8], strides = [1, 1]} : vector<2x96xbf16> to vector<2x8xbf16>
    %143 = vector.extract_strided_slice %141 {offsets = [0, 32], sizes = [2, 8], strides = [1, 1]} : vector<2x96xbf16> to vector<2x8xbf16>
    %144 = vector.extract_strided_slice %141 {offsets = [0, 64], sizes = [2, 8], strides = [1, 1]} : vector<2x96xbf16> to vector<2x8xbf16>
    %cst_50 = arith.constant dense<0.000000e+00> : vector<2x2xf32>
    %145 = tpu.matmul %142, %143, %cst_50 {dimension_numbers = #tpu.dot_dimension_numbers<[1], [1], [0], [0], [0, 0, 1, 0], [], []>} : vector<2x8xbf16>, vector<2x8xbf16>, vector<2x2xf32> -> vector<2x2xf32>
    %cst_51 = arith.constant dense<0xFF800000> : vector<2xf32>
    %146 = vector.multi_reduction <maximumf>, %145, %cst_51 [1] : vector<2x2xf32> to vector<2xf32>
    %147 = vector.shape_cast %146 : vector<2xf32> to vector<2x1xf32>
    %148 = vector.broadcast %147 : vector<2x1xf32> to vector<2x2xf32>
    %149 = arith.subf %145, %148 : vector<2x2xf32>
    %150 = math.exp %149 : vector<2x2xf32>
    %cst_52 = arith.constant dense<0.000000e+00> : vector<2xf32>
    %151 = vector.multi_reduction <add>, %150, %cst_52 [1] : vector<2x2xf32> to vector<2xf32>
    %152 = vector.shape_cast %151 : vector<2xf32> to vector<2x1xf32>
    %153 = tpu.reciprocal %152 {approx = true} : vector<2x1xf32> -> vector<2x1xf32>
    %154 = vector.broadcast %153 : vector<2x1xf32> to vector<2x2xf32>
    %155 = arith.mulf %150, %154 : vector<2x2xf32>
    %156 = arith.truncf %155 : vector<2x2xf32> to vector<2x2xbf16>
    %cst_53 = arith.constant dense<0.000000e+00> : vector<2x8xf32>
    %157 = tpu.matmul %156, %144, %cst_53 {dimension_numbers = #tpu.dot_dimension_numbers<[1], [0], [0], [1], [0, 0, 1, 1], [], []>} : vector<2x2xbf16>, vector<2x8xbf16>, vector<2x8xf32> -> vector<2x8xf32>
    %c4 = arith.constant 4 : index
    %c0_54 = arith.constant 0 : index
    %158 = vector.load %arg5[%c4, %c0_54] : memref<10x32xf32, #tpu.memory_space<vmem>>, vector<2x8xf32>
    tpu.vector_store %arg5[%c4, %c0_54], %157 {strides = array<i32>} : memref<10x32xf32, #tpu.memory_space<vmem>>, vector<2x8xf32>,
    %159 = vector.extract_strided_slice %141 {offsets = [0, 8], sizes = [2, 8], strides = [1, 1]} : vector<2x96xbf16> to vector<2x8xbf16>
    %160 = vector.extract_strided_slice %141 {offsets = [0, 40], sizes = [2, 8], strides = [1, 1]} : vector<2x96xbf16> to vector<2x8xbf16>
    %161 = vector.extract_strided_slice %141 {offsets = [0, 72], sizes = [2, 8], strides = [1, 1]} : vector<2x96xbf16> to vector<2x8xbf16>
    %cst_55 = arith.constant dense<0.000000e+00> : vector<2x2xf32>
    %162 = tpu.matmul %159, %160, %cst_55 {dimension_numbers = #tpu.dot_dimension_numbers<[1], [1], [0], [0], [0, 0, 1, 0], [], []>} : vector<2x8xbf16>, vector<2x8xbf16>, vector<2x2xf32> -> vector<2x2xf32>
    %cst_56 = arith.constant dense<0xFF800000> : vector<2xf32>
    %163 = vector.multi_reduction <maximumf>, %162, %cst_56 [1] : vector<2x2xf32> to vector<2xf32>
    %164 = vector.shape_cast %163 : vector<2xf32> to vector<2x1xf32>
    %165 = vector.broadcast %164 : vector<2x1xf32> to vector<2x2xf32>
    %166 = arith.subf %162, %165 : vector<2x2xf32>
    %167 = math.exp %166 : vector<2x2xf32>
    %cst_57 = arith.constant dense<0.000000e+00> : vector<2xf32>
    %168 = vector.multi_reduction <add>, %167, %cst_57 [1] : vector<2x2xf32> to vector<2xf32>
    %169 = vector.shape_cast %168 : vector<2xf32> to vector<2x1xf32>
    %170 = tpu.reciprocal %169 {approx = true} : vector<2x1xf32> -> vector<2x1xf32>
    %171 = vector.broadcast %170 : vector<2x1xf32> to vector<2x2xf32>
    %172 = arith.mulf %167, %171 : vector<2x2xf32>
    %173 = arith.truncf %172 : vector<2x2xf32> to vector<2x2xbf16>
    %cst_58 = arith.constant dense<0.000000e+00> : vector<2x8xf32>
    %174 = tpu.matmul %173, %161, %cst_58 {dimension_numbers = #tpu.dot_dimension_numbers<[1], [0], [0], [1], [0, 0, 1, 1], [], []>} : vector<2x2xbf16>, vector<2x8xbf16>, vector<2x8xf32> -> vector<2x8xf32>
    %c4_59 = arith.constant 4 : index
    %c8_60 = arith.constant 8 : index
    %175 = vector.load %arg5[%c4_59, %c8_60] : memref<10x32xf32, #tpu.memory_space<vmem>>, vector<2x8xf32>
    tpu.vector_store %arg5[%c4_59, %c8_60], %174 {strides = array<i32>} : memref<10x32xf32, #tpu.memory_space<vmem>>, vector<2x8xf32>,
    %176 = vector.extract_strided_slice %141 {offsets = [0, 16], sizes = [2, 8], strides = [1, 1]} : vector<2x96xbf16> to vector<2x8xbf16>
    %177 = vector.extract_strided_slice %141 {offsets = [0, 48], sizes = [2, 8], strides = [1, 1]} : vector<2x96xbf16> to vector<2x8xbf16>
    %178 = vector.extract_strided_slice %141 {offsets = [0, 80], sizes = [2, 8], strides = [1, 1]} : vector<2x96xbf16> to vector<2x8xbf16>
    %cst_61 = arith.constant dense<0.000000e+00> : vector<2x2xf32>
    %179 = tpu.matmul %176, %177, %cst_61 {dimension_numbers = #tpu.dot_dimension_numbers<[1], [1], [0], [0], [0, 0, 1, 0], [], []>} : vector<2x8xbf16>, vector<2x8xbf16>, vector<2x2xf32> -> vector<2x2xf32>
    %cst_62 = arith.constant dense<0xFF800000> : vector<2xf32>
    %180 = vector.multi_reduction <maximumf>, %179, %cst_62 [1] : vector<2x2xf32> to vector<2xf32>
    %181 = vector.shape_cast %180 : vector<2xf32> to vector<2x1xf32>
    %182 = vector.broadcast %181 : vector<2x1xf32> to vector<2x2xf32>
    %183 = arith.subf %179, %182 : vector<2x2xf32>
    %184 = math.exp %183 : vector<2x2xf32>
    %cst_63 = arith.constant dense<0.000000e+00> : vector<2xf32>
    %185 = vector.multi_reduction <add>, %184, %cst_63 [1] : vector<2x2xf32> to vector<2xf32>
    %186 = vector.shape_cast %185 : vector<2xf32> to vector<2x1xf32>
    %187 = tpu.reciprocal %186 {approx = true} : vector<2x1xf32> -> vector<2x1xf32>
    %188 = vector.broadcast %187 : vector<2x1xf32> to vector<2x2xf32>
    %189 = arith.mulf %184, %188 : vector<2x2xf32>
    %190 = arith.truncf %189 : vector<2x2xf32> to vector<2x2xbf16>
    %cst_64 = arith.constant dense<0.000000e+00> : vector<2x8xf32>
    %191 = tpu.matmul %190, %178, %cst_64 {dimension_numbers = #tpu.dot_dimension_numbers<[1], [0], [0], [1], [0, 0, 1, 1], [], []>} : vector<2x2xbf16>, vector<2x8xbf16>, vector<2x8xf32> -> vector<2x8xf32>
    %c4_65 = arith.constant 4 : index
    %c16_66 = arith.constant 16 : index
    %192 = vector.load %arg5[%c4_65, %c16_66] : memref<10x32xf32, #tpu.memory_space<vmem>>, vector<2x8xf32>
    tpu.vector_store %arg5[%c4_65, %c16_66], %191 {strides = array<i32>} : memref<10x32xf32, #tpu.memory_space<vmem>>, vector<2x8xf32>,
    %193 = vector.extract_strided_slice %141 {offsets = [0, 24], sizes = [2, 8], strides = [1, 1]} : vector<2x96xbf16> to vector<2x8xbf16>
    %194 = vector.extract_strided_slice %141 {offsets = [0, 56], sizes = [2, 8], strides = [1, 1]} : vector<2x96xbf16> to vector<2x8xbf16>
    %195 = vector.extract_strided_slice %141 {offsets = [0, 88], sizes = [2, 8], strides = [1, 1]} : vector<2x96xbf16> to vector<2x8xbf16>
    %cst_67 = arith.constant dense<0.000000e+00> : vector<2x2xf32>
    %196 = tpu.matmul %193, %194, %cst_67 {dimension_numbers = #tpu.dot_dimension_numbers<[1], [1], [0], [0], [0, 0, 1, 0], [], []>} : vector<2x8xbf16>, vector<2x8xbf16>, vector<2x2xf32> -> vector<2x2xf32>
    %cst_68 = arith.constant dense<0xFF800000> : vector<2xf32>
    %197 = vector.multi_reduction <maximumf>, %196, %cst_68 [1] : vector<2x2xf32> to vector<2xf32>
    %198 = vector.shape_cast %197 : vector<2xf32> to vector<2x1xf32>
    %199 = vector.broadcast %198 : vector<2x1xf32> to vector<2x2xf32>
    %200 = arith.subf %196, %199 : vector<2x2xf32>
    %201 = math.exp %200 : vector<2x2xf32>
    %cst_69 = arith.constant dense<0.000000e+00> : vector<2xf32>
    %202 = vector.multi_reduction <add>, %201, %cst_69 [1] : vector<2x2xf32> to vector<2xf32>
    %203 = vector.shape_cast %202 : vector<2xf32> to vector<2x1xf32>
    %204 = tpu.reciprocal %203 {approx = true} : vector<2x1xf32> -> vector<2x1xf32>
    %205 = vector.broadcast %204 : vector<2x1xf32> to vector<2x2xf32>
    %206 = arith.mulf %201, %205 : vector<2x2xf32>
    %207 = arith.truncf %206 : vector<2x2xf32> to vector<2x2xbf16>
    %cst_70 = arith.constant dense<0.000000e+00> : vector<2x8xf32>
    %208 = tpu.matmul %207, %195, %cst_70 {dimension_numbers = #tpu.dot_dimension_numbers<[1], [0], [0], [1], [0, 0, 1, 1], [], []>} : vector<2x2xbf16>, vector<2x8xbf16>, vector<2x8xf32> -> vector<2x8xf32>
    %c4_71 = arith.constant 4 : index
    %c24_72 = arith.constant 24 : index
    %209 = vector.load %arg5[%c4_71, %c24_72] : memref<10x32xf32, #tpu.memory_space<vmem>>, vector<2x8xf32>
    tpu.vector_store %arg5[%c4_71, %c24_72], %208 {strides = array<i32>} : memref<10x32xf32, #tpu.memory_space<vmem>>, vector<2x8xf32>,
    %c0_73 = arith.constant 0 : index
    %c3 = arith.constant 3 : index
    %c0_74 = arith.constant 0 : index
    %210 = vector.load %arg1[%c0_73, %c3, %c0_74] : memref<2x5x96xbf16, #tpu.memory_space<vmem>>, vector<2x1x96xbf16>
    %211 = vector.shape_cast %210 : vector<2x1x96xbf16> to vector<2x96xbf16>
    %212 = vector.extract_strided_slice %211 {offsets = [0, 0], sizes = [2, 8], strides = [1, 1]} : vector<2x96xbf16> to vector<2x8xbf16>
    %213 = vector.extract_strided_slice %211 {offsets = [0, 32], sizes = [2, 8], strides = [1, 1]} : vector<2x96xbf16> to vector<2x8xbf16>
    %214 = vector.extract_strided_slice %211 {offsets = [0, 64], sizes = [2, 8], strides = [1, 1]} : vector<2x96xbf16> to vector<2x8xbf16>
    %cst_75 = arith.constant dense<0.000000e+00> : vector<2x2xf32>
    %215 = tpu.matmul %212, %213, %cst_75 {dimension_numbers = #tpu.dot_dimension_numbers<[1], [1], [0], [0], [0, 0, 1, 0], [], []>} : vector<2x8xbf16>, vector<2x8xbf16>, vector<2x2xf32> -> vector<2x2xf32>
    %cst_76 = arith.constant dense<0xFF800000> : vector<2xf32>
    %216 = vector.multi_reduction <maximumf>, %215, %cst_76 [1] : vector<2x2xf32> to vector<2xf32>
    %217 = vector.shape_cast %216 : vector<2xf32> to vector<2x1xf32>
    %218 = vector.broadcast %217 : vector<2x1xf32> to vector<2x2xf32>
    %219 = arith.subf %215, %218 : vector<2x2xf32>
    %220 = math.exp %219 : vector<2x2xf32>
    %cst_77 = arith.constant dense<0.000000e+00> : vector<2xf32>
    %221 = vector.multi_reduction <add>, %220, %cst_77 [1] : vector<2x2xf32> to vector<2xf32>
    %222 = vector.shape_cast %221 : vector<2xf32> to vector<2x1xf32>
    %223 = tpu.reciprocal %222 {approx = true} : vector<2x1xf32> -> vector<2x1xf32>
    %224 = vector.broadcast %223 : vector<2x1xf32> to vector<2x2xf32>
    %225 = arith.mulf %220, %224 : vector<2x2xf32>
    %226 = arith.truncf %225 : vector<2x2xf32> to vector<2x2xbf16>
    %cst_78 = arith.constant dense<0.000000e+00> : vector<2x8xf32>
    %227 = tpu.matmul %226, %214, %cst_78 {dimension_numbers = #tpu.dot_dimension_numbers<[1], [0], [0], [1], [0, 0, 1, 1], [], []>} : vector<2x2xbf16>, vector<2x8xbf16>, vector<2x8xf32> -> vector<2x8xf32>
    %c6 = arith.constant 6 : index
    %c0_79 = arith.constant 0 : index
    %228 = vector.load %arg5[%c6, %c0_79] : memref<10x32xf32, #tpu.memory_space<vmem>>, vector<2x8xf32>
    tpu.vector_store %arg5[%c6, %c0_79], %227 {strides = array<i32>} : memref<10x32xf32, #tpu.memory_space<vmem>>, vector<2x8xf32>,
    %229 = vector.extract_strided_slice %211 {offsets = [0, 8], sizes = [2, 8], strides = [1, 1]} : vector<2x96xbf16> to vector<2x8xbf16>
    %230 = vector.extract_strided_slice %211 {offsets = [0, 40], sizes = [2, 8], strides = [1, 1]} : vector<2x96xbf16> to vector<2x8xbf16>
    %231 = vector.extract_strided_slice %211 {offsets = [0, 72], sizes = [2, 8], strides = [1, 1]} : vector<2x96xbf16> to vector<2x8xbf16>
    %cst_80 = arith.constant dense<0.000000e+00> : vector<2x2xf32>
    %232 = tpu.matmul %229, %230, %cst_80 {dimension_numbers = #tpu.dot_dimension_numbers<[1], [1], [0], [0], [0, 0, 1, 0], [], []>} : vector<2x8xbf16>, vector<2x8xbf16>, vector<2x2xf32> -> vector<2x2xf32>
    %cst_81 = arith.constant dense<0xFF800000> : vector<2xf32>
    %233 = vector.multi_reduction <maximumf>, %232, %cst_81 [1] : vector<2x2xf32> to vector<2xf32>
    %234 = vector.shape_cast %233 : vector<2xf32> to vector<2x1xf32>
    %235 = vector.broadcast %234 : vector<2x1xf32> to vector<2x2xf32>
    %236 = arith.subf %232, %235 : vector<2x2xf32>
    %237 = math.exp %236 : vector<2x2xf32>
    %cst_82 = arith.constant dense<0.000000e+00> : vector<2xf32>
    %238 = vector.multi_reduction <add>, %237, %cst_82 [1] : vector<2x2xf32> to vector<2xf32>
    %239 = vector.shape_cast %238 : vector<2xf32> to vector<2x1xf32>
    %240 = tpu.reciprocal %239 {approx = true} : vector<2x1xf32> -> vector<2x1xf32>
    %241 = vector.broadcast %240 : vector<2x1xf32> to vector<2x2xf32>
    %242 = arith.mulf %237, %241 : vector<2x2xf32>
    %243 = arith.truncf %242 : vector<2x2xf32> to vector<2x2xbf16>
    %cst_83 = arith.constant dense<0.000000e+00> : vector<2x8xf32>
    %244 = tpu.matmul %243, %231, %cst_83 {dimension_numbers = #tpu.dot_dimension_numbers<[1], [0], [0], [1], [0, 0, 1, 1], [], []>} : vector<2x2xbf16>, vector<2x8xbf16>, vector<2x8xf32> -> vector<2x8xf32>
    %c6_84 = arith.constant 6 : index
    %c8_85 = arith.constant 8 : index
    %245 = vector.load %arg5[%c6_84, %c8_85] : memref<10x32xf32, #tpu.memory_space<vmem>>, vector<2x8xf32>
    tpu.vector_store %arg5[%c6_84, %c8_85], %244 {strides = array<i32>} : memref<10x32xf32, #tpu.memory_space<vmem>>, vector<2x8xf32>,
    %246 = vector.extract_strided_slice %211 {offsets = [0, 16], sizes = [2, 8], strides = [1, 1]} : vector<2x96xbf16> to vector<2x8xbf16>
    %247 = vector.extract_strided_slice %211 {offsets = [0, 48], sizes = [2, 8], strides = [1, 1]} : vector<2x96xbf16> to vector<2x8xbf16>
    %248 = vector.extract_strided_slice %211 {offsets = [0, 80], sizes = [2, 8], strides = [1, 1]} : vector<2x96xbf16> to vector<2x8xbf16>
    %cst_86 = arith.constant dense<0.000000e+00> : vector<2x2xf32>
    %249 = tpu.matmul %246, %247, %cst_86 {dimension_numbers = #tpu.dot_dimension_numbers<[1], [1], [0], [0], [0, 0, 1, 0], [], []>} : vector<2x8xbf16>, vector<2x8xbf16>, vector<2x2xf32> -> vector<2x2xf32>
    %cst_87 = arith.constant dense<0xFF800000> : vector<2xf32>
    %250 = vector.multi_reduction <maximumf>, %249, %cst_87 [1] : vector<2x2xf32> to vector<2xf32>
    %251 = vector.shape_cast %250 : vector<2xf32> to vector<2x1xf32>
    %252 = vector.broadcast %251 : vector<2x1xf32> to vector<2x2xf32>
    %253 = arith.subf %249, %252 : vector<2x2xf32>
    %254 = math.exp %253 : vector<2x2xf32>
    %cst_88 = arith.constant dense<0.000000e+00> : vector<2xf32>
    %255 = vector.multi_reduction <add>, %254, %cst_88 [1] : vector<2x2xf32> to vector<2xf32>
    %256 = vector.shape_cast %255 : vector<2xf32> to vector<2x1xf32>
    %257 = tpu.reciprocal %256 {approx = true} : vector<2x1xf32> -> vector<2x1xf32>
    %258 = vector.broadcast %257 : vector<2x1xf32> to vector<2x2xf32>
    %259 = arith.mulf %254, %258 : vector<2x2xf32>
    %260 = arith.truncf %259 : vector<2x2xf32> to vector<2x2xbf16>
    %cst_89 = arith.constant dense<0.000000e+00> : vector<2x8xf32>
    %261 = tpu.matmul %260, %248, %cst_89 {dimension_numbers = #tpu.dot_dimension_numbers<[1], [0], [0], [1], [0, 0, 1, 1], [], []>} : vector<2x2xbf16>, vector<2x8xbf16>, vector<2x8xf32> -> vector<2x8xf32>
    %c6_90 = arith.constant 6 : index
    %c16_91 = arith.constant 16 : index
    %262 = vector.load %arg5[%c6_90, %c16_91] : memref<10x32xf32, #tpu.memory_space<vmem>>, vector<2x8xf32>
    tpu.vector_store %arg5[%c6_90, %c16_91], %261 {strides = array<i32>} : memref<10x32xf32, #tpu.memory_space<vmem>>, vector<2x8xf32>,
    %263 = vector.extract_strided_slice %211 {offsets = [0, 24], sizes = [2, 8], strides = [1, 1]} : vector<2x96xbf16> to vector<2x8xbf16>
    %264 = vector.extract_strided_slice %211 {offsets = [0, 56], sizes = [2, 8], strides = [1, 1]} : vector<2x96xbf16> to vector<2x8xbf16>
    %265 = vector.extract_strided_slice %211 {offsets = [0, 88], sizes = [2, 8], strides = [1, 1]} : vector<2x96xbf16> to vector<2x8xbf16>
    %cst_92 = arith.constant dense<0.000000e+00> : vector<2x2xf32>
    %266 = tpu.matmul %263, %264, %cst_92 {dimension_numbers = #tpu.dot_dimension_numbers<[1], [1], [0], [0], [0, 0, 1, 0], [], []>} : vector<2x8xbf16>, vector<2x8xbf16>, vector<2x2xf32> -> vector<2x2xf32>
    %cst_93 = arith.constant dense<0xFF800000> : vector<2xf32>
    %267 = vector.multi_reduction <maximumf>, %266, %cst_93 [1] : vector<2x2xf32> to vector<2xf32>
    %268 = vector.shape_cast %267 : vector<2xf32> to vector<2x1xf32>
    %269 = vector.broadcast %268 : vector<2x1xf32> to vector<2x2xf32>
    %270 = arith.subf %266, %269 : vector<2x2xf32>
    %271 = math.exp %270 : vector<2x2xf32>
    %cst_94 = arith.constant dense<0.000000e+00> : vector<2xf32>
    %272 = vector.multi_reduction <add>, %271, %cst_94 [1] : vector<2x2xf32> to vector<2xf32>
    %273 = vector.shape_cast %272 : vector<2xf32> to vector<2x1xf32>
    %274 = tpu.reciprocal %273 {approx = true} : vector<2x1xf32> -> vector<2x1xf32>
    %275 = vector.broadcast %274 : vector<2x1xf32> to vector<2x2xf32>
    %276 = arith.mulf %271, %275 : vector<2x2xf32>
    %277 = arith.truncf %276 : vector<2x2xf32> to vector<2x2xbf16>
    %cst_95 = arith.constant dense<0.000000e+00> : vector<2x8xf32>
    %278 = tpu.matmul %277, %265, %cst_95 {dimension_numbers = #tpu.dot_dimension_numbers<[1], [0], [0], [1], [0, 0, 1, 1], [], []>} : vector<2x2xbf16>, vector<2x8xbf16>, vector<2x8xf32> -> vector<2x8xf32>
    %c6_96 = arith.constant 6 : index
    %c24_97 = arith.constant 24 : index
    %279 = vector.load %arg5[%c6_96, %c24_97] : memref<10x32xf32, #tpu.memory_space<vmem>>, vector<2x8xf32>
    tpu.vector_store %arg5[%c6_96, %c24_97], %278 {strides = array<i32>} : memref<10x32xf32, #tpu.memory_space<vmem>>, vector<2x8xf32>,
    %c0_98 = arith.constant 0 : index
    %c4_99 = arith.constant 4 : index
    %c0_100 = arith.constant 0 : index
    %280 = vector.load %arg1[%c0_98, %c4_99, %c0_100] : memref<2x5x96xbf16, #tpu.memory_space<vmem>>, vector<2x1x96xbf16>
    %281 = vector.shape_cast %280 : vector<2x1x96xbf16> to vector<2x96xbf16>
    %282 = vector.extract_strided_slice %281 {offsets = [0, 0], sizes = [2, 8], strides = [1, 1]} : vector<2x96xbf16> to vector<2x8xbf16>
    %283 = vector.extract_strided_slice %281 {offsets = [0, 32], sizes = [2, 8], strides = [1, 1]} : vector<2x96xbf16> to vector<2x8xbf16>
    %284 = vector.extract_strided_slice %281 {offsets = [0, 64], sizes = [2, 8], strides = [1, 1]} : vector<2x96xbf16> to vector<2x8xbf16>
    %cst_101 = arith.constant dense<0.000000e+00> : vector<2x2xf32>
    %285 = tpu.matmul %282, %283, %cst_101 {dimension_numbers = #tpu.dot_dimension_numbers<[1], [1], [0], [0], [0, 0, 1, 0], [], []>} : vector<2x8xbf16>, vector<2x8xbf16>, vector<2x2xf32> -> vector<2x2xf32>
    %cst_102 = arith.constant dense<0xFF800000> : vector<2xf32>
    %286 = vector.multi_reduction <maximumf>, %285, %cst_102 [1] : vector<2x2xf32> to vector<2xf32>
    %287 = vector.shape_cast %286 : vector<2xf32> to vector<2x1xf32>
    %288 = vector.broadcast %287 : vector<2x1xf32> to vector<2x2xf32>
    %289 = arith.subf %285, %288 : vector<2x2xf32>
    %290 = math.exp %289 : vector<2x2xf32>
    %cst_103 = arith.constant dense<0.000000e+00> : vector<2xf32>
    %291 = vector.multi_reduction <add>, %290, %cst_103 [1] : vector<2x2xf32> to vector<2xf32>
    %292 = vector.shape_cast %291 : vector<2xf32> to vector<2x1xf32>
    %293 = tpu.reciprocal %292 {approx = true} : vector<2x1xf32> -> vector<2x1xf32>
    %294 = vector.broadcast %293 : vector<2x1xf32> to vector<2x2xf32>
    %295 = arith.mulf %290, %294 : vector<2x2xf32>
    %296 = arith.truncf %295 : vector<2x2xf32> to vector<2x2xbf16>
    %cst_104 = arith.constant dense<0.000000e+00> : vector<2x8xf32>
    %297 = tpu.matmul %296, %284, %cst_104 {dimension_numbers = #tpu.dot_dimension_numbers<[1], [0], [0], [1], [0, 0, 1, 1], [], []>} : vector<2x2xbf16>, vector<2x8xbf16>, vector<2x8xf32> -> vector<2x8xf32>
    %c8_105 = arith.constant 8 : index
    %c0_106 = arith.constant 0 : index
    %298 = vector.load %arg5[%c8_105, %c0_106] : memref<10x32xf32, #tpu.memory_space<vmem>>, vector<2x8xf32>
    tpu.vector_store %arg5[%c8_105, %c0_106], %297 {strides = array<i32>} : memref<10x32xf32, #tpu.memory_space<vmem>>, vector<2x8xf32>,
    %299 = vector.extract_strided_slice %281 {offsets = [0, 8], sizes = [2, 8], strides = [1, 1]} : vector<2x96xbf16> to vector<2x8xbf16>
    %300 = vector.extract_strided_slice %281 {offsets = [0, 40], sizes = [2, 8], strides = [1, 1]} : vector<2x96xbf16> to vector<2x8xbf16>
    %301 = vector.extract_strided_slice %281 {offsets = [0, 72], sizes = [2, 8], strides = [1, 1]} : vector<2x96xbf16> to vector<2x8xbf16>
    %cst_107 = arith.constant dense<0.000000e+00> : vector<2x2xf32>
    %302 = tpu.matmul %299, %300, %cst_107 {dimension_numbers = #tpu.dot_dimension_numbers<[1], [1], [0], [0], [0, 0, 1, 0], [], []>} : vector<2x8xbf16>, vector<2x8xbf16>, vector<2x2xf32> -> vector<2x2xf32>
    %cst_108 = arith.constant dense<0xFF800000> : vector<2xf32>
    %303 = vector.multi_reduction <maximumf>, %302, %cst_108 [1] : vector<2x2xf32> to vector<2xf32>
    %304 = vector.shape_cast %303 : vector<2xf32> to vector<2x1xf32>
    %305 = vector.broadcast %304 : vector<2x1xf32> to vector<2x2xf32>
    %306 = arith.subf %302, %305 : vector<2x2xf32>
    %307 = math.exp %306 : vector<2x2xf32>
    %cst_109 = arith.constant dense<0.000000e+00> : vector<2xf32>
    %308 = vector.multi_reduction <add>, %307, %cst_109 [1] : vector<2x2xf32> to vector<2xf32>
    %309 = vector.shape_cast %308 : vector<2xf32> to vector<2x1xf32>
    %310 = tpu.reciprocal %309 {approx = true} : vector<2x1xf32> -> vector<2x1xf32>
    %311 = vector.broadcast %310 : vector<2x1xf32> to vector<2x2xf32>
    %312 = arith.mulf %307, %311 : vector<2x2xf32>
    %313 = arith.truncf %312 : vector<2x2xf32> to vector<2x2xbf16>
    %cst_110 = arith.constant dense<0.000000e+00> : vector<2x8xf32>
    %314 = tpu.matmul %313, %301, %cst_110 {dimension_numbers = #tpu.dot_dimension_numbers<[1], [0], [0], [1], [0, 0, 1, 1], [], []>} : vector<2x2xbf16>, vector<2x8xbf16>, vector<2x8xf32> -> vector<2x8xf32>
    %c8_111 = arith.constant 8 : index
    %c8_112 = arith.constant 8 : index
    %315 = vector.load %arg5[%c8_111, %c8_112] : memref<10x32xf32, #tpu.memory_space<vmem>>, vector<2x8xf32>
    tpu.vector_store %arg5[%c8_111, %c8_112], %314 {strides = array<i32>} : memref<10x32xf32, #tpu.memory_space<vmem>>, vector<2x8xf32>,
    %316 = vector.extract_strided_slice %281 {offsets = [0, 16], sizes = [2, 8], strides = [1, 1]} : vector<2x96xbf16> to vector<2x8xbf16>
    %317 = vector.extract_strided_slice %281 {offsets = [0, 48], sizes = [2, 8], strides = [1, 1]} : vector<2x96xbf16> to vector<2x8xbf16>
    %318 = vector.extract_strided_slice %281 {offsets = [0, 80], sizes = [2, 8], strides = [1, 1]} : vector<2x96xbf16> to vector<2x8xbf16>
    %cst_113 = arith.constant dense<0.000000e+00> : vector<2x2xf32>
    %319 = tpu.matmul %316, %317, %cst_113 {dimension_numbers = #tpu.dot_dimension_numbers<[1], [1], [0], [0], [0, 0, 1, 0], [], []>} : vector<2x8xbf16>, vector<2x8xbf16>, vector<2x2xf32> -> vector<2x2xf32>
    %cst_114 = arith.constant dense<0xFF800000> : vector<2xf32>
    %320 = vector.multi_reduction <maximumf>, %319, %cst_114 [1] : vector<2x2xf32> to vector<2xf32>
    %321 = vector.shape_cast %320 : vector<2xf32> to vector<2x1xf32>
    %322 = vector.broadcast %321 : vector<2x1xf32> to vector<2x2xf32>
    %323 = arith.subf %319, %322 : vector<2x2xf32>
    %324 = math.exp %323 : vector<2x2xf32>
    %cst_115 = arith.constant dense<0.000000e+00> : vector<2xf32>
    %325 = vector.multi_reduction <add>, %324, %cst_115 [1] : vector<2x2xf32> to vector<2xf32>
    %326 = vector.shape_cast %325 : vector<2xf32> to vector<2x1xf32>
    %327 = tpu.reciprocal %326 {approx = true} : vector<2x1xf32> -> vector<2x1xf32>
    %328 = vector.broadcast %327 : vector<2x1xf32> to vector<2x2xf32>
    %329 = arith.mulf %324, %328 : vector<2x2xf32>
    %330 = arith.truncf %329 : vector<2x2xf32> to vector<2x2xbf16>
    %cst_116 = arith.constant dense<0.000000e+00> : vector<2x8xf32>
    %331 = tpu.matmul %330, %318, %cst_116 {dimension_numbers = #tpu.dot_dimension_numbers<[1], [0], [0], [1], [0, 0, 1, 1], [], []>} : vector<2x2xbf16>, vector<2x8xbf16>, vector<2x8xf32> -> vector<2x8xf32>
    %c8_117 = arith.constant 8 : index
    %c16_118 = arith.constant 16 : index
    %332 = vector.load %arg5[%c8_117, %c16_118] : memref<10x32xf32, #tpu.memory_space<vmem>>, vector<2x8xf32>
    tpu.vector_store %arg5[%c8_117, %c16_118], %331 {strides = array<i32>} : memref<10x32xf32, #tpu.memory_space<vmem>>, vector<2x8xf32>,
    %333 = vector.extract_strided_slice %281 {offsets = [0, 24], sizes = [2, 8], strides = [1, 1]} : vector<2x96xbf16> to vector<2x8xbf16>
    %334 = vector.extract_strided_slice %281 {offsets = [0, 56], sizes = [2, 8], strides = [1, 1]} : vector<2x96xbf16> to vector<2x8xbf16>
    %335 = vector.extract_strided_slice %281 {offsets = [0, 88], sizes = [2, 8], strides = [1, 1]} : vector<2x96xbf16> to vector<2x8xbf16>
    %cst_119 = arith.constant dense<0.000000e+00> : vector<2x2xf32>
    %336 = tpu.matmul %333, %334, %cst_119 {dimension_numbers = #tpu.dot_dimension_numbers<[1], [1], [0], [0], [0, 0, 1, 0], [], []>} : vector<2x8xbf16>, vector<2x8xbf16>, vector<2x2xf32> -> vector<2x2xf32>
    %cst_120 = arith.constant dense<0xFF800000> : vector<2xf32>
    %337 = vector.multi_reduction <maximumf>, %336, %cst_120 [1] : vector<2x2xf32> to vector<2xf32>
    %338 = vector.shape_cast %337 : vector<2xf32> to vector<2x1xf32>
    %339 = vector.broadcast %338 : vector<2x1xf32> to vector<2x2xf32>
    %340 = arith.subf %336, %339 : vector<2x2xf32>
    %341 = math.exp %340 : vector<2x2xf32>
    %cst_121 = arith.constant dense<0.000000e+00> : vector<2xf32>
    %342 = vector.multi_reduction <add>, %341, %cst_121 [1] : vector<2x2xf32> to vector<2xf32>
    %343 = vector.shape_cast %342 : vector<2xf32> to vector<2x1xf32>
    %344 = tpu.reciprocal %343 {approx = true} : vector<2x1xf32> -> vector<2x1xf32>
    %345 = vector.broadcast %344 : vector<2x1xf32> to vector<2x2xf32>
    %346 = arith.mulf %341, %345 : vector<2x2xf32>
    %347 = arith.truncf %346 : vector<2x2xf32> to vector<2x2xbf16>
    %cst_122 = arith.constant dense<0.000000e+00> : vector<2x8xf32>
    %348 = tpu.matmul %347, %335, %cst_122 {dimension_numbers = #tpu.dot_dimension_numbers<[1], [0], [0], [1], [0, 0, 1, 1], [], []>} : vector<2x2xbf16>, vector<2x8xbf16>, vector<2x8xf32> -> vector<2x8xf32>
    %c8_123 = arith.constant 8 : index
    %c24_124 = arith.constant 24 : index
    %349 = vector.load %arg5[%c8_123, %c24_124] : memref<10x32xf32, #tpu.memory_space<vmem>>, vector<2x8xf32>
    tpu.vector_store %arg5[%c8_123, %c24_124], %348 {strides = array<i32>} : memref<10x32xf32, #tpu.memory_space<vmem>>, vector<2x8xf32>,
    %c0_125 = arith.constant 0 : index
    %c0_126 = arith.constant 0 : index
    %350 = vector.load %arg5[%c0_125, %c0_126] : memref<10x32xf32, #tpu.memory_space<vmem>>, vector<10x32xf32>
    %351 = arith.truncf %350 : vector<10x32xf32> to vector<10x32xbf16>
    %c0_127 = arith.constant 0 : index
    %c0_128 = arith.constant 0 : index
    %352 = vector.load %arg2[%c0_127, %c0_128] : memref<32x32xbf16, #tpu.memory_space<vmem>>, vector<32x32xbf16>
    %cst_129 = arith.constant dense<0.000000e+00> : vector<10x32xf32>
    %353 = tpu.matmul %351, %352, %cst_129 {dimension_numbers = #tpu.dot_dimension_numbers<[1], [0], [0], [1], [0, 0, 1, 1], [], []>} : vector<10x32xbf16>, vector<32x32xbf16>, vector<10x32xf32> -> vector<10x32xf32>
    %c0_130 = arith.constant 0 : index
    %c0_131 = arith.constant 0 : index
    %354 = vector.load %arg3[%c0_130, %c0_131] : memref<1x32xf32, #tpu.memory_space<vmem>>, vector<1x32xf32>
    %355 = vector.broadcast %354 : vector<1x32xf32> to vector<10x32xf32>
    %356 = arith.addf %353, %355 : vector<10x32xf32>
    %357 = vector.extract_strided_slice %356 {offsets = [0, 0], sizes = [2, 32], strides = [1, 1]} : vector<10x32xf32> to vector<2x32xf32>
    %358 = arith.truncf %357 : vector<2x32xf32> to vector<2x32xbf16>
    %c0_132 = arith.constant 0 : index
    %c0_133 = arith.constant 0 : index
    %c0_134 = arith.constant 0 : index
    %359 = vector.load %arg4[%c0_132, %c0_133, %c0_134] : memref<2x5x32xbf16, #tpu.memory_space<vmem>>, vector<2x1x32xbf16>
    %360 = vector.shape_cast %359 : vector<2x1x32xbf16> to vector<2x32xbf16>
    %361 = vector.shape_cast %358 : vector<2x32xbf16> to vector<2x1x32xbf16>
    tpu.vector_store %arg4[%c0_132, %c0_133, %c0_134], %361 {strides = array<i32>} : memref<2x5x32xbf16, #tpu.memory_space<vmem>>, vector<2x1x32xbf16>,
    %362 = vector.extract_strided_slice %356 {offsets = [2, 0], sizes = [2, 32], strides = [1, 1]} : vector<10x32xf32> to vector<2x32xf32>
    %363 = arith.truncf %362 : vector<2x32xf32> to vector<2x32xbf16>
    %c0_135 = arith.constant 0 : index
    %c1_136 = arith.constant 1 : index
    %c0_137 = arith.constant 0 : index
    %364 = vector.load %arg4[%c0_135, %c1_136, %c0_137] : memref<2x5x32xbf16, #tpu.memory_space<vmem>>, vector<2x1x32xbf16>
    %365 = vector.shape_cast %364 : vector<2x1x32xbf16> to vector<2x32xbf16>
    %366 = vector.shape_cast %363 : vector<2x32xbf16> to vector<2x1x32xbf16>
    tpu.vector_store %arg4[%c0_135, %c1_136, %c0_137], %366 {strides = array<i32>} : memref<2x5x32xbf16, #tpu.memory_space<vmem>>, vector<2x1x32xbf16>,
    %367 = vector.extract_strided_slice %356 {offsets = [4, 0], sizes = [2, 32], strides = [1, 1]} : vector<10x32xf32> to vector<2x32xf32>
    %368 = arith.truncf %367 : vector<2x32xf32> to vector<2x32xbf16>
    %c0_138 = arith.constant 0 : index
    %c2_139 = arith.constant 2 : index
    %c0_140 = arith.constant 0 : index
    %369 = vector.load %arg4[%c0_138, %c2_139, %c0_140] : memref<2x5x32xbf16, #tpu.memory_space<vmem>>, vector<2x1x32xbf16>
    %370 = vector.shape_cast %369 : vector<2x1x32xbf16> to vector<2x32xbf16>
    %371 = vector.shape_cast %368 : vector<2x32xbf16> to vector<2x1x32xbf16>
    tpu.vector_store %arg4[%c0_138, %c2_139, %c0_140], %371 {strides = array<i32>} : memref<2x5x32xbf16, #tpu.memory_space<vmem>>, vector<2x1x32xbf16>,
    %372 = vector.extract_strided_slice %356 {offsets = [6, 0], sizes = [2, 32], strides = [1, 1]} : vector<10x32xf32> to vector<2x32xf32>
    %373 = arith.truncf %372 : vector<2x32xf32> to vector<2x32xbf16>
    %c0_141 = arith.constant 0 : index
    %c3_142 = arith.constant 3 : index
    %c0_143 = arith.constant 0 : index
    %374 = vector.load %arg4[%c0_141, %c3_142, %c0_143] : memref<2x5x32xbf16, #tpu.memory_space<vmem>>, vector<2x1x32xbf16>
    %375 = vector.shape_cast %374 : vector<2x1x32xbf16> to vector<2x32xbf16>
    %376 = vector.shape_cast %373 : vector<2x32xbf16> to vector<2x1x32xbf16>
    tpu.vector_store %arg4[%c0_141, %c3_142, %c0_143], %376 {strides = array<i32>} : memref<2x5x32xbf16, #tpu.memory_space<vmem>>, vector<2x1x32xbf16>,
    %377 = vector.extract_strided_slice %356 {offsets = [8, 0], sizes = [2, 32], strides = [1, 1]} : vector<10x32xf32> to vector<2x32xf32>
    %378 = arith.truncf %377 : vector<2x32xf32> to vector<2x32xbf16>
    %c0_144 = arith.constant 0 : index
    %c4_145 = arith.constant 4 : index
    %c0_146 = arith.constant 0 : index
    %379 = vector.load %arg4[%c0_144, %c4_145, %c0_146] : memref<2x5x32xbf16, #tpu.memory_space<vmem>>, vector<2x1x32xbf16>
    %380 = vector.shape_cast %379 : vector<2x1x32xbf16> to vector<2x32xbf16>
    %381 = vector.shape_cast %378 : vector<2x32xbf16> to vector<2x1x32xbf16>
    tpu.vector_store %arg4[%c0_144, %c4_145, %c0_146], %381 {strides = array<i32>} : memref<2x5x32xbf16, #tpu.memory_space<vmem>>, vector<2x1x32xbf16>,
    return
  }
  func.func @transform_0(%arg0: i32) -> (i32, i32, i32) {
    %c0_i32 = arith.constant 0 : i32
    %c0_i32_0 = arith.constant 0 : i32
    %c0_i32_1 = arith.constant 0 : i32
    return %c0_i32, %arg0, %c0_i32_0 : i32, i32, i32
  }
  func.func @transform_1(%arg0: i32) -> (i32, i32) {
    %c0_i32 = arith.constant 0 : i32
    %c0_i32_0 = arith.constant 0 : i32
    %c0_i32_1 = arith.constant 0 : i32
    return %c0_i32, %c0_i32_0 : i32, i32
  }
  func.func @transform_2(%arg0: i32) -> (i32, i32) {
    %c0_i32 = arith.constant 0 : i32
    %c0_i32_0 = arith.constant 0 : i32
    %c0_i32_1 = arith.constant 0 : i32
    return %c0_i32, %c0_i32_0 : i32, i32
  }
  func.func @transform_3(%arg0: i32) -> (i32, i32, i32) {
    %c0_i32 = arith.constant 0 : i32
    %c0_i32_0 = arith.constant 0 : i32
    %c0_i32_1 = arith.constant 0 : i32
    return %c0_i32, %arg0, %c0_i32_0 : i32, i32, i32
  }
}

module attributes {stable_mosaic.version = 11 : i64} {
  func.func @_matmul_kernel_1k(%arg0: i32, %arg1: i32, %arg2: memref<10x32xbf16, #tpu.memory_space<vmem>>, %arg3: memref<32x64xbf16, #tpu.memory_space<vmem>>, %arg4: memref<1x64xf32, #tpu.memory_space<vmem>>, %arg5: memref<10x64xbf16, #tpu.memory_space<vmem>>) attributes {dimension_semantics = [#tpu.dimension_semantics<parallel>, #tpu.dimension_semantics<parallel>], iteration_bounds = array<i64: 1, 1>, scalar_prefetch = 0 : i64, scratch_operands = 0 : i64, tpu.core_type = #tpu.core_type<tc>, window_params = [{transform_indices = @transform_0, window_bounds = array<i64: 10, 32>}, {transform_indices = @transform_1, window_bounds = array<i64: 32, 64>}, {transform_indices = @transform_2, window_bounds = array<i64: 1, 64>}, {transform_indices = @transform_3, window_bounds = array<i64: 10, 64>}]} {
    %c0 = arith.constant 0 : index
    %c0_0 = arith.constant 0 : index
    %0 = vector.load %arg2[%c0, %c0_0] : memref<10x32xbf16, #tpu.memory_space<vmem>>, vector<10x32xbf16>
    %c0_1 = arith.constant 0 : index
    %c0_2 = arith.constant 0 : index
    %1 = vector.load %arg3[%c0_1, %c0_2] : memref<32x64xbf16, #tpu.memory_space<vmem>>, vector<32x64xbf16>
    %cst = arith.constant dense<0.000000e+00> : vector<10x64xf32>
    %2 = tpu.matmul %0, %1, %cst {dimension_numbers = #tpu.dot_dimension_numbers<[1], [0], [0], [1], [0, 0, 1, 1], [], []>} : vector<10x32xbf16>, vector<32x64xbf16>, vector<10x64xf32> -> vector<10x64xf32>
    %c0_3 = arith.constant 0 : index
    %c0_4 = arith.constant 0 : index
    %3 = vector.load %arg4[%c0_3, %c0_4] : memref<1x64xf32, #tpu.memory_space<vmem>>, vector<1x64xf32>
    %4 = vector.broadcast %3 : vector<1x64xf32> to vector<10x64xf32>
    %5 = arith.addf %2, %4 : vector<10x64xf32>
    %cst_5 = arith.constant 0.000000e+00 : f32
    %6 = vector.broadcast %cst_5 : f32 to vector<10x64xf32>
    %7 = arith.maximumf %5, %6 : vector<10x64xf32>
    %8 = arith.truncf %7 : vector<10x64xf32> to vector<10x64xbf16>
    %c0_6 = arith.constant 0 : index
    %c0_7 = arith.constant 0 : index
    %9 = vector.load %arg5[%c0_6, %c0_7] : memref<10x64xbf16, #tpu.memory_space<vmem>>, vector<10x64xbf16>
    tpu.vector_store %arg5[%c0_6, %c0_7], %8 {strides = array<i32>} : memref<10x64xbf16, #tpu.memory_space<vmem>>, vector<10x64xbf16>,
    return
  }
  func.func @transform_0(%arg0: i32, %arg1: i32) -> (i32, i32) {
    %c0_i32 = arith.constant 0 : i32
    %c0_i32_0 = arith.constant 0 : i32
    return %arg0, %c0_i32 : i32, i32
  }
  func.func @transform_1(%arg0: i32, %arg1: i32) -> (i32, i32) {
    %c0_i32 = arith.constant 0 : i32
    %c0_i32_0 = arith.constant 0 : i32
    return %c0_i32, %arg1 : i32, i32
  }
  func.func @transform_2(%arg0: i32, %arg1: i32) -> (i32, i32) {
    %c0_i32 = arith.constant 0 : i32
    %c0_i32_0 = arith.constant 0 : i32
    return %c0_i32, %arg1 : i32, i32
  }
  func.func @transform_3(%arg0: i32, %arg1: i32) -> (i32, i32) {
    %c0_i32 = arith.constant 0 : i32
    return %arg0, %arg1 : i32, i32
  }
}

module attributes {stable_mosaic.version = 11 : i64} {
  func.func @_matmul_kernel_1k(%arg0: i32, %arg1: i32, %arg2: memref<10x64xbf16, #tpu.memory_space<vmem>>, %arg3: memref<64x32xbf16, #tpu.memory_space<vmem>>, %arg4: memref<1x32xf32, #tpu.memory_space<vmem>>, %arg5: memref<10x32xbf16, #tpu.memory_space<vmem>>) attributes {dimension_semantics = [#tpu.dimension_semantics<parallel>, #tpu.dimension_semantics<parallel>], iteration_bounds = array<i64: 1, 1>, scalar_prefetch = 0 : i64, scratch_operands = 0 : i64, tpu.core_type = #tpu.core_type<tc>, window_params = [{transform_indices = @transform_0, window_bounds = array<i64: 10, 64>}, {transform_indices = @transform_1, window_bounds = array<i64: 64, 32>}, {transform_indices = @transform_2, window_bounds = array<i64: 1, 32>}, {transform_indices = @transform_3, window_bounds = array<i64: 10, 32>}]} {
    %c0 = arith.constant 0 : index
    %c0_0 = arith.constant 0 : index
    %0 = vector.load %arg2[%c0, %c0_0] : memref<10x64xbf16, #tpu.memory_space<vmem>>, vector<10x64xbf16>
    %c0_1 = arith.constant 0 : index
    %c0_2 = arith.constant 0 : index
    %1 = vector.load %arg3[%c0_1, %c0_2] : memref<64x32xbf16, #tpu.memory_space<vmem>>, vector<64x32xbf16>
    %cst = arith.constant dense<0.000000e+00> : vector<10x32xf32>
    %2 = tpu.matmul %0, %1, %cst {dimension_numbers = #tpu.dot_dimension_numbers<[1], [0], [0], [1], [0, 0, 1, 1], [], []>} : vector<10x64xbf16>, vector<64x32xbf16>, vector<10x32xf32> -> vector<10x32xf32>
    %c0_3 = arith.constant 0 : index
    %c0_4 = arith.constant 0 : index
    %3 = vector.load %arg4[%c0_3, %c0_4] : memref<1x32xf32, #tpu.memory_space<vmem>>, vector<1x32xf32>
    %4 = vector.broadcast %3 : vector<1x32xf32> to vector<10x32xf32>
    %5 = arith.addf %2, %4 : vector<10x32xf32>
    %6 = arith.truncf %5 : vector<10x32xf32> to vector<10x32xbf16>
    %c0_5 = arith.constant 0 : index
    %c0_6 = arith.constant 0 : index
    %7 = vector.load %arg5[%c0_5, %c0_6] : memref<10x32xbf16, #tpu.memory_space<vmem>>, vector<10x32xbf16>
    tpu.vector_store %arg5[%c0_5, %c0_6], %6 {strides = array<i32>} : memref<10x32xbf16, #tpu.memory_space<vmem>>, vector<10x32xbf16>,
    return
  }
  func.func @transform_0(%arg0: i32, %arg1: i32) -> (i32, i32) {
    %c0_i32 = arith.constant 0 : i32
    %c0_i32_0 = arith.constant 0 : i32
    return %arg0, %c0_i32 : i32, i32
  }
  func.func @transform_1(%arg0: i32, %arg1: i32) -> (i32, i32) {
    %c0_i32 = arith.constant 0 : i32
    %c0_i32_0 = arith.constant 0 : i32
    return %c0_i32, %arg1 : i32, i32
  }
  func.func @transform_2(%arg0: i32, %arg1: i32) -> (i32, i32) {
    %c0_i32 = arith.constant 0 : i32
    %c0_i32_0 = arith.constant 0 : i32
    return %c0_i32, %arg1 : i32, i32
  }
  func.func @transform_3(%arg0: i32, %arg1: i32) -> (i32, i32) {
    %c0_i32 = arith.constant 0 : i32
    return %arg0, %arg1 : i32, i32
  }
}

module attributes {stable_mosaic.version = 11 : i64} {
  func.func @_ln_kernel(%arg0: i32, %arg1: memref<10x32xbf16, #tpu.memory_space<vmem>>, %arg2: memref<1x32xf32, #tpu.memory_space<vmem>>, %arg3: memref<1x32xf32, #tpu.memory_space<vmem>>, %arg4: memref<10x32xf32, #tpu.memory_space<vmem>>) attributes {dimension_semantics = [#tpu.dimension_semantics<parallel>], iteration_bounds = array<i64: 1>, scalar_prefetch = 0 : i64, scratch_operands = 0 : i64, tpu.core_type = #tpu.core_type<tc>, window_params = [{transform_indices = @transform_0, window_bounds = array<i64: 10, 32>}, {pipeline_mode = #tpu.pipeline_mode<synchronous>, transform_indices = @transform_1, window_bounds = array<i64: 1, 32>}, {pipeline_mode = #tpu.pipeline_mode<synchronous>, transform_indices = @transform_2, window_bounds = array<i64: 1, 32>}, {transform_indices = @transform_3, window_bounds = array<i64: 10, 32>}]} {
    %c0 = arith.constant 0 : index
    %c0_0 = arith.constant 0 : index
    %0 = vector.load %arg1[%c0, %c0_0] : memref<10x32xbf16, #tpu.memory_space<vmem>>, vector<10x32xbf16>
    %1 = arith.extf %0 : vector<10x32xbf16> to vector<10x32xf32>
    %c0_1 = arith.constant 0 : index
    %c0_2 = arith.constant 0 : index
    %2 = vector.load %arg2[%c0_1, %c0_2] : memref<1x32xf32, #tpu.memory_space<vmem>>, vector<1x32xf32>
    %c0_3 = arith.constant 0 : index
    %c0_4 = arith.constant 0 : index
    %3 = vector.load %arg3[%c0_3, %c0_4] : memref<1x32xf32, #tpu.memory_space<vmem>>, vector<1x32xf32>
    %cst = arith.constant dense<0.000000e+00> : vector<10xf32>
    %4 = vector.multi_reduction <add>, %1, %cst [1] : vector<10x32xf32> to vector<10xf32>
    %5 = vector.shape_cast %4 : vector<10xf32> to vector<10x1xf32>
    %cst_5 = arith.constant 3.200000e+01 : f32
    %6 = vector.broadcast %cst_5 : f32 to vector<10x1xf32>
    %7 = arith.divf %5, %6 : vector<10x1xf32>
    %8 = vector.broadcast %7 : vector<10x1xf32> to vector<10x32xf32>
    %9 = arith.subf %1, %8 : vector<10x32xf32>
    %10 = arith.mulf %9, %9 : vector<10x32xf32>
    %cst_6 = arith.constant dense<0.000000e+00> : vector<10xf32>
    %11 = vector.multi_reduction <add>, %10, %cst_6 [1] : vector<10x32xf32> to vector<10xf32>
    %12 = vector.shape_cast %11 : vector<10xf32> to vector<10x1xf32>
    %cst_7 = arith.constant 3.200000e+01 : f32
    %13 = vector.broadcast %cst_7 : f32 to vector<10x1xf32>
    %14 = arith.divf %12, %13 : vector<10x1xf32>
    %cst_8 = arith.constant 9.99999974E-6 : f32
    %15 = vector.broadcast %cst_8 : f32 to vector<10x1xf32>
    %16 = arith.addf %14, %15 : vector<10x1xf32>
    %17 = math.rsqrt %16 : vector<10x1xf32>
    %18 = vector.broadcast %17 : vector<10x1xf32> to vector<10x32xf32>
    %19 = arith.mulf %9, %18 : vector<10x32xf32>
    %20 = vector.broadcast %2 : vector<1x32xf32> to vector<10x32xf32>
    %21 = arith.mulf %19, %20 : vector<10x32xf32>
    %22 = vector.broadcast %3 : vector<1x32xf32> to vector<10x32xf32>
    %23 = arith.addf %21, %22 : vector<10x32xf32>
    %24 = arith.mulf %23, %23 : vector<10x32xf32>
    %cst_9 = arith.constant dense<0.000000e+00> : vector<10xf32>
    %25 = vector.multi_reduction <add>, %24, %cst_9 [1] : vector<10x32xf32> to vector<10xf32>
    %26 = vector.shape_cast %25 : vector<10xf32> to vector<10x1xf32>
    %27 = math.sqrt %26 : vector<10x1xf32>
    %cst_10 = arith.constant 9.99999996E-13 : f32
    %28 = vector.broadcast %cst_10 : f32 to vector<10x1xf32>
    %29 = arith.maximumf %27, %28 : vector<10x1xf32>
    %30 = vector.broadcast %29 : vector<10x1xf32> to vector<10x32xf32>
    %31 = arith.divf %23, %30 : vector<10x32xf32>
    %c0_11 = arith.constant 0 : index
    %c0_12 = arith.constant 0 : index
    %32 = vector.load %arg4[%c0_11, %c0_12] : memref<10x32xf32, #tpu.memory_space<vmem>>, vector<10x32xf32>
    tpu.vector_store %arg4[%c0_11, %c0_12], %31 {strides = array<i32>} : memref<10x32xf32, #tpu.memory_space<vmem>>, vector<10x32xf32>,
    return
  }
  func.func @transform_0(%arg0: i32) -> (i32, i32) {
    %c0_i32 = arith.constant 0 : i32
    %c0_i32_0 = arith.constant 0 : i32
    return %arg0, %c0_i32 : i32, i32
  }
  func.func @transform_1(%arg0: i32) -> (i32, i32) {
    %c0_i32 = arith.constant 0 : i32
    %c0_i32_0 = arith.constant 0 : i32
    %c0_i32_1 = arith.constant 0 : i32
    return %c0_i32, %c0_i32_0 : i32, i32
  }
  func.func @transform_2(%arg0: i32) -> (i32, i32) {
    %c0_i32 = arith.constant 0 : i32
    %c0_i32_0 = arith.constant 0 : i32
    %c0_i32_1 = arith.constant 0 : i32
    return %c0_i32, %c0_i32_0 : i32, i32
  }
  func.func @transform_3(%arg0: i32) -> (i32, i32) {
    %c0_i32 = arith.constant 0 : i32
    %c0_i32_0 = arith.constant 0 : i32
    return %arg0, %c0_i32 : i32, i32
  }
}

module attributes {stable_mosaic.version = 11 : i64} {
  func.func @_matmul_kernel_1k(%arg0: i32, %arg1: i32, %arg2: memref<16x32xbf16, #tpu.memory_space<vmem>>, %arg3: memref<32x96xbf16, #tpu.memory_space<vmem>>, %arg4: memref<1x96xf32, #tpu.memory_space<vmem>>, %arg5: memref<16x96xbf16, #tpu.memory_space<vmem>>) attributes {dimension_semantics = [#tpu.dimension_semantics<parallel>, #tpu.dimension_semantics<parallel>], iteration_bounds = array<i64: 1, 1>, scalar_prefetch = 0 : i64, scratch_operands = 0 : i64, tpu.core_type = #tpu.core_type<tc>, window_params = [{transform_indices = @transform_0, window_bounds = array<i64: 16, 32>}, {transform_indices = @transform_1, window_bounds = array<i64: 32, 96>}, {transform_indices = @transform_2, window_bounds = array<i64: 1, 96>}, {transform_indices = @transform_3, window_bounds = array<i64: 16, 96>}]} {
    %c0 = arith.constant 0 : index
    %c0_0 = arith.constant 0 : index
    %0 = vector.load %arg2[%c0, %c0_0] : memref<16x32xbf16, #tpu.memory_space<vmem>>, vector<16x32xbf16>
    %c0_1 = arith.constant 0 : index
    %c0_2 = arith.constant 0 : index
    %1 = vector.load %arg3[%c0_1, %c0_2] : memref<32x96xbf16, #tpu.memory_space<vmem>>, vector<32x96xbf16>
    %cst = arith.constant dense<0.000000e+00> : vector<16x96xf32>
    %2 = tpu.matmul %0, %1, %cst {dimension_numbers = #tpu.dot_dimension_numbers<[1], [0], [0], [1], [0, 0, 1, 1], [], []>} : vector<16x32xbf16>, vector<32x96xbf16>, vector<16x96xf32> -> vector<16x96xf32>
    %c0_3 = arith.constant 0 : index
    %c0_4 = arith.constant 0 : index
    %3 = vector.load %arg4[%c0_3, %c0_4] : memref<1x96xf32, #tpu.memory_space<vmem>>, vector<1x96xf32>
    %4 = vector.broadcast %3 : vector<1x96xf32> to vector<16x96xf32>
    %5 = arith.addf %2, %4 : vector<16x96xf32>
    %6 = arith.truncf %5 : vector<16x96xf32> to vector<16x96xbf16>
    %c0_5 = arith.constant 0 : index
    %c0_6 = arith.constant 0 : index
    %7 = vector.load %arg5[%c0_5, %c0_6] : memref<16x96xbf16, #tpu.memory_space<vmem>>, vector<16x96xbf16>
    tpu.vector_store %arg5[%c0_5, %c0_6], %6 {strides = array<i32>} : memref<16x96xbf16, #tpu.memory_space<vmem>>, vector<16x96xbf16>,
    return
  }
  func.func @transform_0(%arg0: i32, %arg1: i32) -> (i32, i32) {
    %c0_i32 = arith.constant 0 : i32
    %c0_i32_0 = arith.constant 0 : i32
    return %arg0, %c0_i32 : i32, i32
  }
  func.func @transform_1(%arg0: i32, %arg1: i32) -> (i32, i32) {
    %c0_i32 = arith.constant 0 : i32
    %c0_i32_0 = arith.constant 0 : i32
    return %c0_i32, %arg1 : i32, i32
  }
  func.func @transform_2(%arg0: i32, %arg1: i32) -> (i32, i32) {
    %c0_i32 = arith.constant 0 : i32
    %c0_i32_0 = arith.constant 0 : i32
    return %c0_i32, %arg1 : i32, i32
  }
  func.func @transform_3(%arg0: i32, %arg1: i32) -> (i32, i32) {
    %c0_i32 = arith.constant 0 : i32
    return %arg0, %arg1 : i32, i32
  }
}

module attributes {stable_mosaic.version = 11 : i64} {
  func.func @_add_ln_kernel(%arg0: i32, %arg1: memref<16x32xbf16, #tpu.memory_space<vmem>>, %arg2: memref<16x32xbf16, #tpu.memory_space<vmem>>, %arg3: memref<1x32xf32, #tpu.memory_space<vmem>>, %arg4: memref<1x32xf32, #tpu.memory_space<vmem>>, %arg5: memref<16x32xbf16, #tpu.memory_space<vmem>>) attributes {dimension_semantics = [#tpu.dimension_semantics<parallel>], iteration_bounds = array<i64: 1>, scalar_prefetch = 0 : i64, scratch_operands = 0 : i64, tpu.core_type = #tpu.core_type<tc>, window_params = [{transform_indices = @transform_0, window_bounds = array<i64: 16, 32>}, {transform_indices = @transform_1, window_bounds = array<i64: 16, 32>}, {pipeline_mode = #tpu.pipeline_mode<synchronous>, transform_indices = @transform_2, window_bounds = array<i64: 1, 32>}, {pipeline_mode = #tpu.pipeline_mode<synchronous>, transform_indices = @transform_3, window_bounds = array<i64: 1, 32>}, {transform_indices = @transform_4, window_bounds = array<i64: 16, 32>}]} {
    %c0 = arith.constant 0 : index
    %c0_0 = arith.constant 0 : index
    %0 = vector.load %arg1[%c0, %c0_0] : memref<16x32xbf16, #tpu.memory_space<vmem>>, vector<16x32xbf16>
    %1 = arith.extf %0 : vector<16x32xbf16> to vector<16x32xf32>
    %c0_1 = arith.constant 0 : index
    %c0_2 = arith.constant 0 : index
    %2 = vector.load %arg2[%c0_1, %c0_2] : memref<16x32xbf16, #tpu.memory_space<vmem>>, vector<16x32xbf16>
    %3 = arith.extf %2 : vector<16x32xbf16> to vector<16x32xf32>
    %4 = arith.addf %1, %3 : vector<16x32xf32>
    %c0_3 = arith.constant 0 : index
    %c0_4 = arith.constant 0 : index
    %5 = vector.load %arg3[%c0_3, %c0_4] : memref<1x32xf32, #tpu.memory_space<vmem>>, vector<1x32xf32>
    %c0_5 = arith.constant 0 : index
    %c0_6 = arith.constant 0 : index
    %6 = vector.load %arg4[%c0_5, %c0_6] : memref<1x32xf32, #tpu.memory_space<vmem>>, vector<1x32xf32>
    %cst = arith.constant dense<0.000000e+00> : vector<16xf32>
    %7 = vector.multi_reduction <add>, %4, %cst [1] : vector<16x32xf32> to vector<16xf32>
    %8 = vector.shape_cast %7 : vector<16xf32> to vector<16x1xf32>
    %cst_7 = arith.constant 3.200000e+01 : f32
    %9 = vector.broadcast %cst_7 : f32 to vector<16x1xf32>
    %10 = arith.divf %8, %9 : vector<16x1xf32>
    %11 = vector.broadcast %10 : vector<16x1xf32> to vector<16x32xf32>
    %12 = arith.subf %4, %11 : vector<16x32xf32>
    %13 = arith.mulf %12, %12 : vector<16x32xf32>
    %cst_8 = arith.constant dense<0.000000e+00> : vector<16xf32>
    %14 = vector.multi_reduction <add>, %13, %cst_8 [1] : vector<16x32xf32> to vector<16xf32>
    %15 = vector.shape_cast %14 : vector<16xf32> to vector<16x1xf32>
    %cst_9 = arith.constant 3.200000e+01 : f32
    %16 = vector.broadcast %cst_9 : f32 to vector<16x1xf32>
    %17 = arith.divf %15, %16 : vector<16x1xf32>
    %cst_10 = arith.constant 9.99999974E-6 : f32
    %18 = vector.broadcast %cst_10 : f32 to vector<16x1xf32>
    %19 = arith.addf %17, %18 : vector<16x1xf32>
    %20 = math.rsqrt %19 : vector<16x1xf32>
    %21 = vector.broadcast %20 : vector<16x1xf32> to vector<16x32xf32>
    %22 = arith.mulf %12, %21 : vector<16x32xf32>
    %23 = vector.broadcast %5 : vector<1x32xf32> to vector<16x32xf32>
    %24 = arith.mulf %22, %23 : vector<16x32xf32>
    %25 = vector.broadcast %6 : vector<1x32xf32> to vector<16x32xf32>
    %26 = arith.addf %24, %25 : vector<16x32xf32>
    %27 = arith.truncf %26 : vector<16x32xf32> to vector<16x32xbf16>
    %c0_11 = arith.constant 0 : index
    %c0_12 = arith.constant 0 : index
    %28 = vector.load %arg5[%c0_11, %c0_12] : memref<16x32xbf16, #tpu.memory_space<vmem>>, vector<16x32xbf16>
    tpu.vector_store %arg5[%c0_11, %c0_12], %27 {strides = array<i32>} : memref<16x32xbf16, #tpu.memory_space<vmem>>, vector<16x32xbf16>,
    return
  }
  func.func @transform_0(%arg0: i32) -> (i32, i32) {
    %c0_i32 = arith.constant 0 : i32
    %c0_i32_0 = arith.constant 0 : i32
    return %arg0, %c0_i32 : i32, i32
  }
  func.func @transform_1(%arg0: i32) -> (i32, i32) {
    %c0_i32 = arith.constant 0 : i32
    %c0_i32_0 = arith.constant 0 : i32
    return %arg0, %c0_i32 : i32, i32
  }
  func.func @transform_2(%arg0: i32) -> (i32, i32) {
    %c0_i32 = arith.constant 0 : i32
    %c0_i32_0 = arith.constant 0 : i32
    %c0_i32_1 = arith.constant 0 : i32
    return %c0_i32, %c0_i32_0 : i32, i32
  }
  func.func @transform_3(%arg0: i32) -> (i32, i32) {
    %c0_i32 = arith.constant 0 : i32
    %c0_i32_0 = arith.constant 0 : i32
    %c0_i32_1 = arith.constant 0 : i32
    return %c0_i32, %c0_i32_0 : i32, i32
  }
  func.func @transform_4(%arg0: i32) -> (i32, i32) {
    %c0_i32 = arith.constant 0 : i32
    %c0_i32_0 = arith.constant 0 : i32
    return %arg0, %c0_i32 : i32, i32
  }
}

module attributes {stable_mosaic.version = 11 : i64} {
  func.func @_mha_kernel(%arg0: i32, %arg1: memref<2x8x96xbf16, #tpu.memory_space<vmem>>, %arg2: memref<32x32xbf16, #tpu.memory_space<vmem>>, %arg3: memref<1x32xf32, #tpu.memory_space<vmem>>, %arg4: memref<2x8x32xbf16, #tpu.memory_space<vmem>>, %arg5: memref<16x32xf32, #tpu.memory_space<vmem>>) attributes {dimension_semantics = [#tpu.dimension_semantics<parallel>], iteration_bounds = array<i64: 1>, scalar_prefetch = 0 : i64, scratch_operands = 1 : i64, tpu.core_type = #tpu.core_type<tc>, window_params = [{transform_indices = @transform_0, window_bounds = array<i64: 2, 8, 96>}, {pipeline_mode = #tpu.pipeline_mode<synchronous>, transform_indices = @transform_1, window_bounds = array<i64: 32, 32>}, {pipeline_mode = #tpu.pipeline_mode<synchronous>, transform_indices = @transform_2, window_bounds = array<i64: 1, 32>}, {transform_indices = @transform_3, window_bounds = array<i64: 2, 8, 32>}]} {
    %c0 = arith.constant 0 : index
    %c0_0 = arith.constant 0 : index
    %c0_1 = arith.constant 0 : index
    %0 = vector.load %arg1[%c0, %c0_0, %c0_1] : memref<2x8x96xbf16, #tpu.memory_space<vmem>>, vector<2x1x96xbf16>
    %1 = vector.shape_cast %0 : vector<2x1x96xbf16> to vector<2x96xbf16>
    %2 = vector.extract_strided_slice %1 {offsets = [0, 0], sizes = [2, 8], strides = [1, 1]} : vector<2x96xbf16> to vector<2x8xbf16>
    %3 = vector.extract_strided_slice %1 {offsets = [0, 32], sizes = [2, 8], strides = [1, 1]} : vector<2x96xbf16> to vector<2x8xbf16>
    %4 = vector.extract_strided_slice %1 {offsets = [0, 64], sizes = [2, 8], strides = [1, 1]} : vector<2x96xbf16> to vector<2x8xbf16>
    %cst = arith.constant dense<0.000000e+00> : vector<2x2xf32>
    %5 = tpu.matmul %2, %3, %cst {dimension_numbers = #tpu.dot_dimension_numbers<[1], [1], [0], [0], [0, 0, 1, 0], [], []>} : vector<2x8xbf16>, vector<2x8xbf16>, vector<2x2xf32> -> vector<2x2xf32>
    %cst_2 = arith.constant dense<0xFF800000> : vector<2xf32>
    %6 = vector.multi_reduction <maximumf>, %5, %cst_2 [1] : vector<2x2xf32> to vector<2xf32>
    %7 = vector.shape_cast %6 : vector<2xf32> to vector<2x1xf32>
    %8 = vector.broadcast %7 : vector<2x1xf32> to vector<2x2xf32>
    %9 = arith.subf %5, %8 : vector<2x2xf32>
    %10 = math.exp %9 : vector<2x2xf32>
    %cst_3 = arith.constant dense<0.000000e+00> : vector<2xf32>
    %11 = vector.multi_reduction <add>, %10, %cst_3 [1] : vector<2x2xf32> to vector<2xf32>
    %12 = vector.shape_cast %11 : vector<2xf32> to vector<2x1xf32>
    %13 = tpu.reciprocal %12 {approx = true} : vector<2x1xf32> -> vector<2x1xf32>
    %14 = vector.broadcast %13 : vector<2x1xf32> to vector<2x2xf32>
    %15 = arith.mulf %10, %14 : vector<2x2xf32>
    %16 = arith.truncf %15 : vector<2x2xf32> to vector<2x2xbf16>
    %cst_4 = arith.constant dense<0.000000e+00> : vector<2x8xf32>
    %17 = tpu.matmul %16, %4, %cst_4 {dimension_numbers = #tpu.dot_dimension_numbers<[1], [0], [0], [1], [0, 0, 1, 1], [], []>} : vector<2x2xbf16>, vector<2x8xbf16>, vector<2x8xf32> -> vector<2x8xf32>
    %c0_5 = arith.constant 0 : index
    %c0_6 = arith.constant 0 : index
    %18 = vector.load %arg5[%c0_5, %c0_6] : memref<16x32xf32, #tpu.memory_space<vmem>>, vector<2x8xf32>
    tpu.vector_store %arg5[%c0_5, %c0_6], %17 {strides = array<i32>} : memref<16x32xf32, #tpu.memory_space<vmem>>, vector<2x8xf32>,
    %19 = vector.extract_strided_slice %1 {offsets = [0, 8], sizes = [2, 8], strides = [1, 1]} : vector<2x96xbf16> to vector<2x8xbf16>
    %20 = vector.extract_strided_slice %1 {offsets = [0, 40], sizes = [2, 8], strides = [1, 1]} : vector<2x96xbf16> to vector<2x8xbf16>
    %21 = vector.extract_strided_slice %1 {offsets = [0, 72], sizes = [2, 8], strides = [1, 1]} : vector<2x96xbf16> to vector<2x8xbf16>
    %cst_7 = arith.constant dense<0.000000e+00> : vector<2x2xf32>
    %22 = tpu.matmul %19, %20, %cst_7 {dimension_numbers = #tpu.dot_dimension_numbers<[1], [1], [0], [0], [0, 0, 1, 0], [], []>} : vector<2x8xbf16>, vector<2x8xbf16>, vector<2x2xf32> -> vector<2x2xf32>
    %cst_8 = arith.constant dense<0xFF800000> : vector<2xf32>
    %23 = vector.multi_reduction <maximumf>, %22, %cst_8 [1] : vector<2x2xf32> to vector<2xf32>
    %24 = vector.shape_cast %23 : vector<2xf32> to vector<2x1xf32>
    %25 = vector.broadcast %24 : vector<2x1xf32> to vector<2x2xf32>
    %26 = arith.subf %22, %25 : vector<2x2xf32>
    %27 = math.exp %26 : vector<2x2xf32>
    %cst_9 = arith.constant dense<0.000000e+00> : vector<2xf32>
    %28 = vector.multi_reduction <add>, %27, %cst_9 [1] : vector<2x2xf32> to vector<2xf32>
    %29 = vector.shape_cast %28 : vector<2xf32> to vector<2x1xf32>
    %30 = tpu.reciprocal %29 {approx = true} : vector<2x1xf32> -> vector<2x1xf32>
    %31 = vector.broadcast %30 : vector<2x1xf32> to vector<2x2xf32>
    %32 = arith.mulf %27, %31 : vector<2x2xf32>
    %33 = arith.truncf %32 : vector<2x2xf32> to vector<2x2xbf16>
    %cst_10 = arith.constant dense<0.000000e+00> : vector<2x8xf32>
    %34 = tpu.matmul %33, %21, %cst_10 {dimension_numbers = #tpu.dot_dimension_numbers<[1], [0], [0], [1], [0, 0, 1, 1], [], []>} : vector<2x2xbf16>, vector<2x8xbf16>, vector<2x8xf32> -> vector<2x8xf32>
    %c0_11 = arith.constant 0 : index
    %c8 = arith.constant 8 : index
    %35 = vector.load %arg5[%c0_11, %c8] : memref<16x32xf32, #tpu.memory_space<vmem>>, vector<2x8xf32>
    tpu.vector_store %arg5[%c0_11, %c8], %34 {strides = array<i32>} : memref<16x32xf32, #tpu.memory_space<vmem>>, vector<2x8xf32>,
    %36 = vector.extract_strided_slice %1 {offsets = [0, 16], sizes = [2, 8], strides = [1, 1]} : vector<2x96xbf16> to vector<2x8xbf16>
    %37 = vector.extract_strided_slice %1 {offsets = [0, 48], sizes = [2, 8], strides = [1, 1]} : vector<2x96xbf16> to vector<2x8xbf16>
    %38 = vector.extract_strided_slice %1 {offsets = [0, 80], sizes = [2, 8], strides = [1, 1]} : vector<2x96xbf16> to vector<2x8xbf16>
    %cst_12 = arith.constant dense<0.000000e+00> : vector<2x2xf32>
    %39 = tpu.matmul %36, %37, %cst_12 {dimension_numbers = #tpu.dot_dimension_numbers<[1], [1], [0], [0], [0, 0, 1, 0], [], []>} : vector<2x8xbf16>, vector<2x8xbf16>, vector<2x2xf32> -> vector<2x2xf32>
    %cst_13 = arith.constant dense<0xFF800000> : vector<2xf32>
    %40 = vector.multi_reduction <maximumf>, %39, %cst_13 [1] : vector<2x2xf32> to vector<2xf32>
    %41 = vector.shape_cast %40 : vector<2xf32> to vector<2x1xf32>
    %42 = vector.broadcast %41 : vector<2x1xf32> to vector<2x2xf32>
    %43 = arith.subf %39, %42 : vector<2x2xf32>
    %44 = math.exp %43 : vector<2x2xf32>
    %cst_14 = arith.constant dense<0.000000e+00> : vector<2xf32>
    %45 = vector.multi_reduction <add>, %44, %cst_14 [1] : vector<2x2xf32> to vector<2xf32>
    %46 = vector.shape_cast %45 : vector<2xf32> to vector<2x1xf32>
    %47 = tpu.reciprocal %46 {approx = true} : vector<2x1xf32> -> vector<2x1xf32>
    %48 = vector.broadcast %47 : vector<2x1xf32> to vector<2x2xf32>
    %49 = arith.mulf %44, %48 : vector<2x2xf32>
    %50 = arith.truncf %49 : vector<2x2xf32> to vector<2x2xbf16>
    %cst_15 = arith.constant dense<0.000000e+00> : vector<2x8xf32>
    %51 = tpu.matmul %50, %38, %cst_15 {dimension_numbers = #tpu.dot_dimension_numbers<[1], [0], [0], [1], [0, 0, 1, 1], [], []>} : vector<2x2xbf16>, vector<2x8xbf16>, vector<2x8xf32> -> vector<2x8xf32>
    %c0_16 = arith.constant 0 : index
    %c16 = arith.constant 16 : index
    %52 = vector.load %arg5[%c0_16, %c16] : memref<16x32xf32, #tpu.memory_space<vmem>>, vector<2x8xf32>
    tpu.vector_store %arg5[%c0_16, %c16], %51 {strides = array<i32>} : memref<16x32xf32, #tpu.memory_space<vmem>>, vector<2x8xf32>,
    %53 = vector.extract_strided_slice %1 {offsets = [0, 24], sizes = [2, 8], strides = [1, 1]} : vector<2x96xbf16> to vector<2x8xbf16>
    %54 = vector.extract_strided_slice %1 {offsets = [0, 56], sizes = [2, 8], strides = [1, 1]} : vector<2x96xbf16> to vector<2x8xbf16>
    %55 = vector.extract_strided_slice %1 {offsets = [0, 88], sizes = [2, 8], strides = [1, 1]} : vector<2x96xbf16> to vector<2x8xbf16>
    %cst_17 = arith.constant dense<0.000000e+00> : vector<2x2xf32>
    %56 = tpu.matmul %53, %54, %cst_17 {dimension_numbers = #tpu.dot_dimension_numbers<[1], [1], [0], [0], [0, 0, 1, 0], [], []>} : vector<2x8xbf16>, vector<2x8xbf16>, vector<2x2xf32> -> vector<2x2xf32>
    %cst_18 = arith.constant dense<0xFF800000> : vector<2xf32>
    %57 = vector.multi_reduction <maximumf>, %56, %cst_18 [1] : vector<2x2xf32> to vector<2xf32>
    %58 = vector.shape_cast %57 : vector<2xf32> to vector<2x1xf32>
    %59 = vector.broadcast %58 : vector<2x1xf32> to vector<2x2xf32>
    %60 = arith.subf %56, %59 : vector<2x2xf32>
    %61 = math.exp %60 : vector<2x2xf32>
    %cst_19 = arith.constant dense<0.000000e+00> : vector<2xf32>
    %62 = vector.multi_reduction <add>, %61, %cst_19 [1] : vector<2x2xf32> to vector<2xf32>
    %63 = vector.shape_cast %62 : vector<2xf32> to vector<2x1xf32>
    %64 = tpu.reciprocal %63 {approx = true} : vector<2x1xf32> -> vector<2x1xf32>
    %65 = vector.broadcast %64 : vector<2x1xf32> to vector<2x2xf32>
    %66 = arith.mulf %61, %65 : vector<2x2xf32>
    %67 = arith.truncf %66 : vector<2x2xf32> to vector<2x2xbf16>
    %cst_20 = arith.constant dense<0.000000e+00> : vector<2x8xf32>
    %68 = tpu.matmul %67, %55, %cst_20 {dimension_numbers = #tpu.dot_dimension_numbers<[1], [0], [0], [1], [0, 0, 1, 1], [], []>} : vector<2x2xbf16>, vector<2x8xbf16>, vector<2x8xf32> -> vector<2x8xf32>
    %c0_21 = arith.constant 0 : index
    %c24 = arith.constant 24 : index
    %69 = vector.load %arg5[%c0_21, %c24] : memref<16x32xf32, #tpu.memory_space<vmem>>, vector<2x8xf32>
    tpu.vector_store %arg5[%c0_21, %c24], %68 {strides = array<i32>} : memref<16x32xf32, #tpu.memory_space<vmem>>, vector<2x8xf32>,
    %c0_22 = arith.constant 0 : index
    %c1 = arith.constant 1 : index
    %c0_23 = arith.constant 0 : index
    %70 = vector.load %arg1[%c0_22, %c1, %c0_23] : memref<2x8x96xbf16, #tpu.memory_space<vmem>>, vector<2x1x96xbf16>
    %71 = vector.shape_cast %70 : vector<2x1x96xbf16> to vector<2x96xbf16>
    %72 = vector.extract_strided_slice %71 {offsets = [0, 0], sizes = [2, 8], strides = [1, 1]} : vector<2x96xbf16> to vector<2x8xbf16>
    %73 = vector.extract_strided_slice %71 {offsets = [0, 32], sizes = [2, 8], strides = [1, 1]} : vector<2x96xbf16> to vector<2x8xbf16>
    %74 = vector.extract_strided_slice %71 {offsets = [0, 64], sizes = [2, 8], strides = [1, 1]} : vector<2x96xbf16> to vector<2x8xbf16>
    %cst_24 = arith.constant dense<0.000000e+00> : vector<2x2xf32>
    %75 = tpu.matmul %72, %73, %cst_24 {dimension_numbers = #tpu.dot_dimension_numbers<[1], [1], [0], [0], [0, 0, 1, 0], [], []>} : vector<2x8xbf16>, vector<2x8xbf16>, vector<2x2xf32> -> vector<2x2xf32>
    %cst_25 = arith.constant dense<0xFF800000> : vector<2xf32>
    %76 = vector.multi_reduction <maximumf>, %75, %cst_25 [1] : vector<2x2xf32> to vector<2xf32>
    %77 = vector.shape_cast %76 : vector<2xf32> to vector<2x1xf32>
    %78 = vector.broadcast %77 : vector<2x1xf32> to vector<2x2xf32>
    %79 = arith.subf %75, %78 : vector<2x2xf32>
    %80 = math.exp %79 : vector<2x2xf32>
    %cst_26 = arith.constant dense<0.000000e+00> : vector<2xf32>
    %81 = vector.multi_reduction <add>, %80, %cst_26 [1] : vector<2x2xf32> to vector<2xf32>
    %82 = vector.shape_cast %81 : vector<2xf32> to vector<2x1xf32>
    %83 = tpu.reciprocal %82 {approx = true} : vector<2x1xf32> -> vector<2x1xf32>
    %84 = vector.broadcast %83 : vector<2x1xf32> to vector<2x2xf32>
    %85 = arith.mulf %80, %84 : vector<2x2xf32>
    %86 = arith.truncf %85 : vector<2x2xf32> to vector<2x2xbf16>
    %cst_27 = arith.constant dense<0.000000e+00> : vector<2x8xf32>
    %87 = tpu.matmul %86, %74, %cst_27 {dimension_numbers = #tpu.dot_dimension_numbers<[1], [0], [0], [1], [0, 0, 1, 1], [], []>} : vector<2x2xbf16>, vector<2x8xbf16>, vector<2x8xf32> -> vector<2x8xf32>
    %c2 = arith.constant 2 : index
    %c0_28 = arith.constant 0 : index
    %88 = vector.load %arg5[%c2, %c0_28] : memref<16x32xf32, #tpu.memory_space<vmem>>, vector<2x8xf32>
    tpu.vector_store %arg5[%c2, %c0_28], %87 {strides = array<i32>} : memref<16x32xf32, #tpu.memory_space<vmem>>, vector<2x8xf32>,
    %89 = vector.extract_strided_slice %71 {offsets = [0, 8], sizes = [2, 8], strides = [1, 1]} : vector<2x96xbf16> to vector<2x8xbf16>
    %90 = vector.extract_strided_slice %71 {offsets = [0, 40], sizes = [2, 8], strides = [1, 1]} : vector<2x96xbf16> to vector<2x8xbf16>
    %91 = vector.extract_strided_slice %71 {offsets = [0, 72], sizes = [2, 8], strides = [1, 1]} : vector<2x96xbf16> to vector<2x8xbf16>
    %cst_29 = arith.constant dense<0.000000e+00> : vector<2x2xf32>
    %92 = tpu.matmul %89, %90, %cst_29 {dimension_numbers = #tpu.dot_dimension_numbers<[1], [1], [0], [0], [0, 0, 1, 0], [], []>} : vector<2x8xbf16>, vector<2x8xbf16>, vector<2x2xf32> -> vector<2x2xf32>
    %cst_30 = arith.constant dense<0xFF800000> : vector<2xf32>
    %93 = vector.multi_reduction <maximumf>, %92, %cst_30 [1] : vector<2x2xf32> to vector<2xf32>
    %94 = vector.shape_cast %93 : vector<2xf32> to vector<2x1xf32>
    %95 = vector.broadcast %94 : vector<2x1xf32> to vector<2x2xf32>
    %96 = arith.subf %92, %95 : vector<2x2xf32>
    %97 = math.exp %96 : vector<2x2xf32>
    %cst_31 = arith.constant dense<0.000000e+00> : vector<2xf32>
    %98 = vector.multi_reduction <add>, %97, %cst_31 [1] : vector<2x2xf32> to vector<2xf32>
    %99 = vector.shape_cast %98 : vector<2xf32> to vector<2x1xf32>
    %100 = tpu.reciprocal %99 {approx = true} : vector<2x1xf32> -> vector<2x1xf32>
    %101 = vector.broadcast %100 : vector<2x1xf32> to vector<2x2xf32>
    %102 = arith.mulf %97, %101 : vector<2x2xf32>
    %103 = arith.truncf %102 : vector<2x2xf32> to vector<2x2xbf16>
    %cst_32 = arith.constant dense<0.000000e+00> : vector<2x8xf32>
    %104 = tpu.matmul %103, %91, %cst_32 {dimension_numbers = #tpu.dot_dimension_numbers<[1], [0], [0], [1], [0, 0, 1, 1], [], []>} : vector<2x2xbf16>, vector<2x8xbf16>, vector<2x8xf32> -> vector<2x8xf32>
    %c2_33 = arith.constant 2 : index
    %c8_34 = arith.constant 8 : index
    %105 = vector.load %arg5[%c2_33, %c8_34] : memref<16x32xf32, #tpu.memory_space<vmem>>, vector<2x8xf32>
    tpu.vector_store %arg5[%c2_33, %c8_34], %104 {strides = array<i32>} : memref<16x32xf32, #tpu.memory_space<vmem>>, vector<2x8xf32>,
    %106 = vector.extract_strided_slice %71 {offsets = [0, 16], sizes = [2, 8], strides = [1, 1]} : vector<2x96xbf16> to vector<2x8xbf16>
    %107 = vector.extract_strided_slice %71 {offsets = [0, 48], sizes = [2, 8], strides = [1, 1]} : vector<2x96xbf16> to vector<2x8xbf16>
    %108 = vector.extract_strided_slice %71 {offsets = [0, 80], sizes = [2, 8], strides = [1, 1]} : vector<2x96xbf16> to vector<2x8xbf16>
    %cst_35 = arith.constant dense<0.000000e+00> : vector<2x2xf32>
    %109 = tpu.matmul %106, %107, %cst_35 {dimension_numbers = #tpu.dot_dimension_numbers<[1], [1], [0], [0], [0, 0, 1, 0], [], []>} : vector<2x8xbf16>, vector<2x8xbf16>, vector<2x2xf32> -> vector<2x2xf32>
    %cst_36 = arith.constant dense<0xFF800000> : vector<2xf32>
    %110 = vector.multi_reduction <maximumf>, %109, %cst_36 [1] : vector<2x2xf32> to vector<2xf32>
    %111 = vector.shape_cast %110 : vector<2xf32> to vector<2x1xf32>
    %112 = vector.broadcast %111 : vector<2x1xf32> to vector<2x2xf32>
    %113 = arith.subf %109, %112 : vector<2x2xf32>
    %114 = math.exp %113 : vector<2x2xf32>
    %cst_37 = arith.constant dense<0.000000e+00> : vector<2xf32>
    %115 = vector.multi_reduction <add>, %114, %cst_37 [1] : vector<2x2xf32> to vector<2xf32>
    %116 = vector.shape_cast %115 : vector<2xf32> to vector<2x1xf32>
    %117 = tpu.reciprocal %116 {approx = true} : vector<2x1xf32> -> vector<2x1xf32>
    %118 = vector.broadcast %117 : vector<2x1xf32> to vector<2x2xf32>
    %119 = arith.mulf %114, %118 : vector<2x2xf32>
    %120 = arith.truncf %119 : vector<2x2xf32> to vector<2x2xbf16>
    %cst_38 = arith.constant dense<0.000000e+00> : vector<2x8xf32>
    %121 = tpu.matmul %120, %108, %cst_38 {dimension_numbers = #tpu.dot_dimension_numbers<[1], [0], [0], [1], [0, 0, 1, 1], [], []>} : vector<2x2xbf16>, vector<2x8xbf16>, vector<2x8xf32> -> vector<2x8xf32>
    %c2_39 = arith.constant 2 : index
    %c16_40 = arith.constant 16 : index
    %122 = vector.load %arg5[%c2_39, %c16_40] : memref<16x32xf32, #tpu.memory_space<vmem>>, vector<2x8xf32>
    tpu.vector_store %arg5[%c2_39, %c16_40], %121 {strides = array<i32>} : memref<16x32xf32, #tpu.memory_space<vmem>>, vector<2x8xf32>,
    %123 = vector.extract_strided_slice %71 {offsets = [0, 24], sizes = [2, 8], strides = [1, 1]} : vector<2x96xbf16> to vector<2x8xbf16>
    %124 = vector.extract_strided_slice %71 {offsets = [0, 56], sizes = [2, 8], strides = [1, 1]} : vector<2x96xbf16> to vector<2x8xbf16>
    %125 = vector.extract_strided_slice %71 {offsets = [0, 88], sizes = [2, 8], strides = [1, 1]} : vector<2x96xbf16> to vector<2x8xbf16>
    %cst_41 = arith.constant dense<0.000000e+00> : vector<2x2xf32>
    %126 = tpu.matmul %123, %124, %cst_41 {dimension_numbers = #tpu.dot_dimension_numbers<[1], [1], [0], [0], [0, 0, 1, 0], [], []>} : vector<2x8xbf16>, vector<2x8xbf16>, vector<2x2xf32> -> vector<2x2xf32>
    %cst_42 = arith.constant dense<0xFF800000> : vector<2xf32>
    %127 = vector.multi_reduction <maximumf>, %126, %cst_42 [1] : vector<2x2xf32> to vector<2xf32>
    %128 = vector.shape_cast %127 : vector<2xf32> to vector<2x1xf32>
    %129 = vector.broadcast %128 : vector<2x1xf32> to vector<2x2xf32>
    %130 = arith.subf %126, %129 : vector<2x2xf32>
    %131 = math.exp %130 : vector<2x2xf32>
    %cst_43 = arith.constant dense<0.000000e+00> : vector<2xf32>
    %132 = vector.multi_reduction <add>, %131, %cst_43 [1] : vector<2x2xf32> to vector<2xf32>
    %133 = vector.shape_cast %132 : vector<2xf32> to vector<2x1xf32>
    %134 = tpu.reciprocal %133 {approx = true} : vector<2x1xf32> -> vector<2x1xf32>
    %135 = vector.broadcast %134 : vector<2x1xf32> to vector<2x2xf32>
    %136 = arith.mulf %131, %135 : vector<2x2xf32>
    %137 = arith.truncf %136 : vector<2x2xf32> to vector<2x2xbf16>
    %cst_44 = arith.constant dense<0.000000e+00> : vector<2x8xf32>
    %138 = tpu.matmul %137, %125, %cst_44 {dimension_numbers = #tpu.dot_dimension_numbers<[1], [0], [0], [1], [0, 0, 1, 1], [], []>} : vector<2x2xbf16>, vector<2x8xbf16>, vector<2x8xf32> -> vector<2x8xf32>
    %c2_45 = arith.constant 2 : index
    %c24_46 = arith.constant 24 : index
    %139 = vector.load %arg5[%c2_45, %c24_46] : memref<16x32xf32, #tpu.memory_space<vmem>>, vector<2x8xf32>
    tpu.vector_store %arg5[%c2_45, %c24_46], %138 {strides = array<i32>} : memref<16x32xf32, #tpu.memory_space<vmem>>, vector<2x8xf32>,
    %c0_47 = arith.constant 0 : index
    %c2_48 = arith.constant 2 : index
    %c0_49 = arith.constant 0 : index
    %140 = vector.load %arg1[%c0_47, %c2_48, %c0_49] : memref<2x8x96xbf16, #tpu.memory_space<vmem>>, vector<2x1x96xbf16>
    %141 = vector.shape_cast %140 : vector<2x1x96xbf16> to vector<2x96xbf16>
    %142 = vector.extract_strided_slice %141 {offsets = [0, 0], sizes = [2, 8], strides = [1, 1]} : vector<2x96xbf16> to vector<2x8xbf16>
    %143 = vector.extract_strided_slice %141 {offsets = [0, 32], sizes = [2, 8], strides = [1, 1]} : vector<2x96xbf16> to vector<2x8xbf16>
    %144 = vector.extract_strided_slice %141 {offsets = [0, 64], sizes = [2, 8], strides = [1, 1]} : vector<2x96xbf16> to vector<2x8xbf16>
    %cst_50 = arith.constant dense<0.000000e+00> : vector<2x2xf32>
    %145 = tpu.matmul %142, %143, %cst_50 {dimension_numbers = #tpu.dot_dimension_numbers<[1], [1], [0], [0], [0, 0, 1, 0], [], []>} : vector<2x8xbf16>, vector<2x8xbf16>, vector<2x2xf32> -> vector<2x2xf32>
    %cst_51 = arith.constant dense<0xFF800000> : vector<2xf32>
    %146 = vector.multi_reduction <maximumf>, %145, %cst_51 [1] : vector<2x2xf32> to vector<2xf32>
    %147 = vector.shape_cast %146 : vector<2xf32> to vector<2x1xf32>
    %148 = vector.broadcast %147 : vector<2x1xf32> to vector<2x2xf32>
    %149 = arith.subf %145, %148 : vector<2x2xf32>
    %150 = math.exp %149 : vector<2x2xf32>
    %cst_52 = arith.constant dense<0.000000e+00> : vector<2xf32>
    %151 = vector.multi_reduction <add>, %150, %cst_52 [1] : vector<2x2xf32> to vector<2xf32>
    %152 = vector.shape_cast %151 : vector<2xf32> to vector<2x1xf32>
    %153 = tpu.reciprocal %152 {approx = true} : vector<2x1xf32> -> vector<2x1xf32>
    %154 = vector.broadcast %153 : vector<2x1xf32> to vector<2x2xf32>
    %155 = arith.mulf %150, %154 : vector<2x2xf32>
    %156 = arith.truncf %155 : vector<2x2xf32> to vector<2x2xbf16>
    %cst_53 = arith.constant dense<0.000000e+00> : vector<2x8xf32>
    %157 = tpu.matmul %156, %144, %cst_53 {dimension_numbers = #tpu.dot_dimension_numbers<[1], [0], [0], [1], [0, 0, 1, 1], [], []>} : vector<2x2xbf16>, vector<2x8xbf16>, vector<2x8xf32> -> vector<2x8xf32>
    %c4 = arith.constant 4 : index
    %c0_54 = arith.constant 0 : index
    %158 = vector.load %arg5[%c4, %c0_54] : memref<16x32xf32, #tpu.memory_space<vmem>>, vector<2x8xf32>
    tpu.vector_store %arg5[%c4, %c0_54], %157 {strides = array<i32>} : memref<16x32xf32, #tpu.memory_space<vmem>>, vector<2x8xf32>,
    %159 = vector.extract_strided_slice %141 {offsets = [0, 8], sizes = [2, 8], strides = [1, 1]} : vector<2x96xbf16> to vector<2x8xbf16>
    %160 = vector.extract_strided_slice %141 {offsets = [0, 40], sizes = [2, 8], strides = [1, 1]} : vector<2x96xbf16> to vector<2x8xbf16>
    %161 = vector.extract_strided_slice %141 {offsets = [0, 72], sizes = [2, 8], strides = [1, 1]} : vector<2x96xbf16> to vector<2x8xbf16>
    %cst_55 = arith.constant dense<0.000000e+00> : vector<2x2xf32>
    %162 = tpu.matmul %159, %160, %cst_55 {dimension_numbers = #tpu.dot_dimension_numbers<[1], [1], [0], [0], [0, 0, 1, 0], [], []>} : vector<2x8xbf16>, vector<2x8xbf16>, vector<2x2xf32> -> vector<2x2xf32>
    %cst_56 = arith.constant dense<0xFF800000> : vector<2xf32>
    %163 = vector.multi_reduction <maximumf>, %162, %cst_56 [1] : vector<2x2xf32> to vector<2xf32>
    %164 = vector.shape_cast %163 : vector<2xf32> to vector<2x1xf32>
    %165 = vector.broadcast %164 : vector<2x1xf32> to vector<2x2xf32>
    %166 = arith.subf %162, %165 : vector<2x2xf32>
    %167 = math.exp %166 : vector<2x2xf32>
    %cst_57 = arith.constant dense<0.000000e+00> : vector<2xf32>
    %168 = vector.multi_reduction <add>, %167, %cst_57 [1] : vector<2x2xf32> to vector<2xf32>
    %169 = vector.shape_cast %168 : vector<2xf32> to vector<2x1xf32>
    %170 = tpu.reciprocal %169 {approx = true} : vector<2x1xf32> -> vector<2x1xf32>
    %171 = vector.broadcast %170 : vector<2x1xf32> to vector<2x2xf32>
    %172 = arith.mulf %167, %171 : vector<2x2xf32>
    %173 = arith.truncf %172 : vector<2x2xf32> to vector<2x2xbf16>
    %cst_58 = arith.constant dense<0.000000e+00> : vector<2x8xf32>
    %174 = tpu.matmul %173, %161, %cst_58 {dimension_numbers = #tpu.dot_dimension_numbers<[1], [0], [0], [1], [0, 0, 1, 1], [], []>} : vector<2x2xbf16>, vector<2x8xbf16>, vector<2x8xf32> -> vector<2x8xf32>
    %c4_59 = arith.constant 4 : index
    %c8_60 = arith.constant 8 : index
    %175 = vector.load %arg5[%c4_59, %c8_60] : memref<16x32xf32, #tpu.memory_space<vmem>>, vector<2x8xf32>
    tpu.vector_store %arg5[%c4_59, %c8_60], %174 {strides = array<i32>} : memref<16x32xf32, #tpu.memory_space<vmem>>, vector<2x8xf32>,
    %176 = vector.extract_strided_slice %141 {offsets = [0, 16], sizes = [2, 8], strides = [1, 1]} : vector<2x96xbf16> to vector<2x8xbf16>
    %177 = vector.extract_strided_slice %141 {offsets = [0, 48], sizes = [2, 8], strides = [1, 1]} : vector<2x96xbf16> to vector<2x8xbf16>
    %178 = vector.extract_strided_slice %141 {offsets = [0, 80], sizes = [2, 8], strides = [1, 1]} : vector<2x96xbf16> to vector<2x8xbf16>
    %cst_61 = arith.constant dense<0.000000e+00> : vector<2x2xf32>
    %179 = tpu.matmul %176, %177, %cst_61 {dimension_numbers = #tpu.dot_dimension_numbers<[1], [1], [0], [0], [0, 0, 1, 0], [], []>} : vector<2x8xbf16>, vector<2x8xbf16>, vector<2x2xf32> -> vector<2x2xf32>
    %cst_62 = arith.constant dense<0xFF800000> : vector<2xf32>
    %180 = vector.multi_reduction <maximumf>, %179, %cst_62 [1] : vector<2x2xf32> to vector<2xf32>
    %181 = vector.shape_cast %180 : vector<2xf32> to vector<2x1xf32>
    %182 = vector.broadcast %181 : vector<2x1xf32> to vector<2x2xf32>
    %183 = arith.subf %179, %182 : vector<2x2xf32>
    %184 = math.exp %183 : vector<2x2xf32>
    %cst_63 = arith.constant dense<0.000000e+00> : vector<2xf32>
    %185 = vector.multi_reduction <add>, %184, %cst_63 [1] : vector<2x2xf32> to vector<2xf32>
    %186 = vector.shape_cast %185 : vector<2xf32> to vector<2x1xf32>
    %187 = tpu.reciprocal %186 {approx = true} : vector<2x1xf32> -> vector<2x1xf32>
    %188 = vector.broadcast %187 : vector<2x1xf32> to vector<2x2xf32>
    %189 = arith.mulf %184, %188 : vector<2x2xf32>
    %190 = arith.truncf %189 : vector<2x2xf32> to vector<2x2xbf16>
    %cst_64 = arith.constant dense<0.000000e+00> : vector<2x8xf32>
    %191 = tpu.matmul %190, %178, %cst_64 {dimension_numbers = #tpu.dot_dimension_numbers<[1], [0], [0], [1], [0, 0, 1, 1], [], []>} : vector<2x2xbf16>, vector<2x8xbf16>, vector<2x8xf32> -> vector<2x8xf32>
    %c4_65 = arith.constant 4 : index
    %c16_66 = arith.constant 16 : index
    %192 = vector.load %arg5[%c4_65, %c16_66] : memref<16x32xf32, #tpu.memory_space<vmem>>, vector<2x8xf32>
    tpu.vector_store %arg5[%c4_65, %c16_66], %191 {strides = array<i32>} : memref<16x32xf32, #tpu.memory_space<vmem>>, vector<2x8xf32>,
    %193 = vector.extract_strided_slice %141 {offsets = [0, 24], sizes = [2, 8], strides = [1, 1]} : vector<2x96xbf16> to vector<2x8xbf16>
    %194 = vector.extract_strided_slice %141 {offsets = [0, 56], sizes = [2, 8], strides = [1, 1]} : vector<2x96xbf16> to vector<2x8xbf16>
    %195 = vector.extract_strided_slice %141 {offsets = [0, 88], sizes = [2, 8], strides = [1, 1]} : vector<2x96xbf16> to vector<2x8xbf16>
    %cst_67 = arith.constant dense<0.000000e+00> : vector<2x2xf32>
    %196 = tpu.matmul %193, %194, %cst_67 {dimension_numbers = #tpu.dot_dimension_numbers<[1], [1], [0], [0], [0, 0, 1, 0], [], []>} : vector<2x8xbf16>, vector<2x8xbf16>, vector<2x2xf32> -> vector<2x2xf32>
    %cst_68 = arith.constant dense<0xFF800000> : vector<2xf32>
    %197 = vector.multi_reduction <maximumf>, %196, %cst_68 [1] : vector<2x2xf32> to vector<2xf32>
    %198 = vector.shape_cast %197 : vector<2xf32> to vector<2x1xf32>
    %199 = vector.broadcast %198 : vector<2x1xf32> to vector<2x2xf32>
    %200 = arith.subf %196, %199 : vector<2x2xf32>
    %201 = math.exp %200 : vector<2x2xf32>
    %cst_69 = arith.constant dense<0.000000e+00> : vector<2xf32>
    %202 = vector.multi_reduction <add>, %201, %cst_69 [1] : vector<2x2xf32> to vector<2xf32>
    %203 = vector.shape_cast %202 : vector<2xf32> to vector<2x1xf32>
    %204 = tpu.reciprocal %203 {approx = true} : vector<2x1xf32> -> vector<2x1xf32>
    %205 = vector.broadcast %204 : vector<2x1xf32> to vector<2x2xf32>
    %206 = arith.mulf %201, %205 : vector<2x2xf32>
    %207 = arith.truncf %206 : vector<2x2xf32> to vector<2x2xbf16>
    %cst_70 = arith.constant dense<0.000000e+00> : vector<2x8xf32>
    %208 = tpu.matmul %207, %195, %cst_70 {dimension_numbers = #tpu.dot_dimension_numbers<[1], [0], [0], [1], [0, 0, 1, 1], [], []>} : vector<2x2xbf16>, vector<2x8xbf16>, vector<2x8xf32> -> vector<2x8xf32>
    %c4_71 = arith.constant 4 : index
    %c24_72 = arith.constant 24 : index
    %209 = vector.load %arg5[%c4_71, %c24_72] : memref<16x32xf32, #tpu.memory_space<vmem>>, vector<2x8xf32>
    tpu.vector_store %arg5[%c4_71, %c24_72], %208 {strides = array<i32>} : memref<16x32xf32, #tpu.memory_space<vmem>>, vector<2x8xf32>,
    %c0_73 = arith.constant 0 : index
    %c3 = arith.constant 3 : index
    %c0_74 = arith.constant 0 : index
    %210 = vector.load %arg1[%c0_73, %c3, %c0_74] : memref<2x8x96xbf16, #tpu.memory_space<vmem>>, vector<2x1x96xbf16>
    %211 = vector.shape_cast %210 : vector<2x1x96xbf16> to vector<2x96xbf16>
    %212 = vector.extract_strided_slice %211 {offsets = [0, 0], sizes = [2, 8], strides = [1, 1]} : vector<2x96xbf16> to vector<2x8xbf16>
    %213 = vector.extract_strided_slice %211 {offsets = [0, 32], sizes = [2, 8], strides = [1, 1]} : vector<2x96xbf16> to vector<2x8xbf16>
    %214 = vector.extract_strided_slice %211 {offsets = [0, 64], sizes = [2, 8], strides = [1, 1]} : vector<2x96xbf16> to vector<2x8xbf16>
    %cst_75 = arith.constant dense<0.000000e+00> : vector<2x2xf32>
    %215 = tpu.matmul %212, %213, %cst_75 {dimension_numbers = #tpu.dot_dimension_numbers<[1], [1], [0], [0], [0, 0, 1, 0], [], []>} : vector<2x8xbf16>, vector<2x8xbf16>, vector<2x2xf32> -> vector<2x2xf32>
    %cst_76 = arith.constant dense<0xFF800000> : vector<2xf32>
    %216 = vector.multi_reduction <maximumf>, %215, %cst_76 [1] : vector<2x2xf32> to vector<2xf32>
    %217 = vector.shape_cast %216 : vector<2xf32> to vector<2x1xf32>
    %218 = vector.broadcast %217 : vector<2x1xf32> to vector<2x2xf32>
    %219 = arith.subf %215, %218 : vector<2x2xf32>
    %220 = math.exp %219 : vector<2x2xf32>
    %cst_77 = arith.constant dense<0.000000e+00> : vector<2xf32>
    %221 = vector.multi_reduction <add>, %220, %cst_77 [1] : vector<2x2xf32> to vector<2xf32>
    %222 = vector.shape_cast %221 : vector<2xf32> to vector<2x1xf32>
    %223 = tpu.reciprocal %222 {approx = true} : vector<2x1xf32> -> vector<2x1xf32>
    %224 = vector.broadcast %223 : vector<2x1xf32> to vector<2x2xf32>
    %225 = arith.mulf %220, %224 : vector<2x2xf32>
    %226 = arith.truncf %225 : vector<2x2xf32> to vector<2x2xbf16>
    %cst_78 = arith.constant dense<0.000000e+00> : vector<2x8xf32>
    %227 = tpu.matmul %226, %214, %cst_78 {dimension_numbers = #tpu.dot_dimension_numbers<[1], [0], [0], [1], [0, 0, 1, 1], [], []>} : vector<2x2xbf16>, vector<2x8xbf16>, vector<2x8xf32> -> vector<2x8xf32>
    %c6 = arith.constant 6 : index
    %c0_79 = arith.constant 0 : index
    %228 = vector.load %arg5[%c6, %c0_79] : memref<16x32xf32, #tpu.memory_space<vmem>>, vector<2x8xf32>
    tpu.vector_store %arg5[%c6, %c0_79], %227 {strides = array<i32>} : memref<16x32xf32, #tpu.memory_space<vmem>>, vector<2x8xf32>,
    %229 = vector.extract_strided_slice %211 {offsets = [0, 8], sizes = [2, 8], strides = [1, 1]} : vector<2x96xbf16> to vector<2x8xbf16>
    %230 = vector.extract_strided_slice %211 {offsets = [0, 40], sizes = [2, 8], strides = [1, 1]} : vector<2x96xbf16> to vector<2x8xbf16>
    %231 = vector.extract_strided_slice %211 {offsets = [0, 72], sizes = [2, 8], strides = [1, 1]} : vector<2x96xbf16> to vector<2x8xbf16>
    %cst_80 = arith.constant dense<0.000000e+00> : vector<2x2xf32>
    %232 = tpu.matmul %229, %230, %cst_80 {dimension_numbers = #tpu.dot_dimension_numbers<[1], [1], [0], [0], [0, 0, 1, 0], [], []>} : vector<2x8xbf16>, vector<2x8xbf16>, vector<2x2xf32> -> vector<2x2xf32>
    %cst_81 = arith.constant dense<0xFF800000> : vector<2xf32>
    %233 = vector.multi_reduction <maximumf>, %232, %cst_81 [1] : vector<2x2xf32> to vector<2xf32>
    %234 = vector.shape_cast %233 : vector<2xf32> to vector<2x1xf32>
    %235 = vector.broadcast %234 : vector<2x1xf32> to vector<2x2xf32>
    %236 = arith.subf %232, %235 : vector<2x2xf32>
    %237 = math.exp %236 : vector<2x2xf32>
    %cst_82 = arith.constant dense<0.000000e+00> : vector<2xf32>
    %238 = vector.multi_reduction <add>, %237, %cst_82 [1] : vector<2x2xf32> to vector<2xf32>
    %239 = vector.shape_cast %238 : vector<2xf32> to vector<2x1xf32>
    %240 = tpu.reciprocal %239 {approx = true} : vector<2x1xf32> -> vector<2x1xf32>
    %241 = vector.broadcast %240 : vector<2x1xf32> to vector<2x2xf32>
    %242 = arith.mulf %237, %241 : vector<2x2xf32>
    %243 = arith.truncf %242 : vector<2x2xf32> to vector<2x2xbf16>
    %cst_83 = arith.constant dense<0.000000e+00> : vector<2x8xf32>
    %244 = tpu.matmul %243, %231, %cst_83 {dimension_numbers = #tpu.dot_dimension_numbers<[1], [0], [0], [1], [0, 0, 1, 1], [], []>} : vector<2x2xbf16>, vector<2x8xbf16>, vector<2x8xf32> -> vector<2x8xf32>
    %c6_84 = arith.constant 6 : index
    %c8_85 = arith.constant 8 : index
    %245 = vector.load %arg5[%c6_84, %c8_85] : memref<16x32xf32, #tpu.memory_space<vmem>>, vector<2x8xf32>
    tpu.vector_store %arg5[%c6_84, %c8_85], %244 {strides = array<i32>} : memref<16x32xf32, #tpu.memory_space<vmem>>, vector<2x8xf32>,
    %246 = vector.extract_strided_slice %211 {offsets = [0, 16], sizes = [2, 8], strides = [1, 1]} : vector<2x96xbf16> to vector<2x8xbf16>
    %247 = vector.extract_strided_slice %211 {offsets = [0, 48], sizes = [2, 8], strides = [1, 1]} : vector<2x96xbf16> to vector<2x8xbf16>
    %248 = vector.extract_strided_slice %211 {offsets = [0, 80], sizes = [2, 8], strides = [1, 1]} : vector<2x96xbf16> to vector<2x8xbf16>
    %cst_86 = arith.constant dense<0.000000e+00> : vector<2x2xf32>
    %249 = tpu.matmul %246, %247, %cst_86 {dimension_numbers = #tpu.dot_dimension_numbers<[1], [1], [0], [0], [0, 0, 1, 0], [], []>} : vector<2x8xbf16>, vector<2x8xbf16>, vector<2x2xf32> -> vector<2x2xf32>
    %cst_87 = arith.constant dense<0xFF800000> : vector<2xf32>
    %250 = vector.multi_reduction <maximumf>, %249, %cst_87 [1] : vector<2x2xf32> to vector<2xf32>
    %251 = vector.shape_cast %250 : vector<2xf32> to vector<2x1xf32>
    %252 = vector.broadcast %251 : vector<2x1xf32> to vector<2x2xf32>
    %253 = arith.subf %249, %252 : vector<2x2xf32>
    %254 = math.exp %253 : vector<2x2xf32>
    %cst_88 = arith.constant dense<0.000000e+00> : vector<2xf32>
    %255 = vector.multi_reduction <add>, %254, %cst_88 [1] : vector<2x2xf32> to vector<2xf32>
    %256 = vector.shape_cast %255 : vector<2xf32> to vector<2x1xf32>
    %257 = tpu.reciprocal %256 {approx = true} : vector<2x1xf32> -> vector<2x1xf32>
    %258 = vector.broadcast %257 : vector<2x1xf32> to vector<2x2xf32>
    %259 = arith.mulf %254, %258 : vector<2x2xf32>
    %260 = arith.truncf %259 : vector<2x2xf32> to vector<2x2xbf16>
    %cst_89 = arith.constant dense<0.000000e+00> : vector<2x8xf32>
    %261 = tpu.matmul %260, %248, %cst_89 {dimension_numbers = #tpu.dot_dimension_numbers<[1], [0], [0], [1], [0, 0, 1, 1], [], []>} : vector<2x2xbf16>, vector<2x8xbf16>, vector<2x8xf32> -> vector<2x8xf32>
    %c6_90 = arith.constant 6 : index
    %c16_91 = arith.constant 16 : index
    %262 = vector.load %arg5[%c6_90, %c16_91] : memref<16x32xf32, #tpu.memory_space<vmem>>, vector<2x8xf32>
    tpu.vector_store %arg5[%c6_90, %c16_91], %261 {strides = array<i32>} : memref<16x32xf32, #tpu.memory_space<vmem>>, vector<2x8xf32>,
    %263 = vector.extract_strided_slice %211 {offsets = [0, 24], sizes = [2, 8], strides = [1, 1]} : vector<2x96xbf16> to vector<2x8xbf16>
    %264 = vector.extract_strided_slice %211 {offsets = [0, 56], sizes = [2, 8], strides = [1, 1]} : vector<2x96xbf16> to vector<2x8xbf16>
    %265 = vector.extract_strided_slice %211 {offsets = [0, 88], sizes = [2, 8], strides = [1, 1]} : vector<2x96xbf16> to vector<2x8xbf16>
    %cst_92 = arith.constant dense<0.000000e+00> : vector<2x2xf32>
    %266 = tpu.matmul %263, %264, %cst_92 {dimension_numbers = #tpu.dot_dimension_numbers<[1], [1], [0], [0], [0, 0, 1, 0], [], []>} : vector<2x8xbf16>, vector<2x8xbf16>, vector<2x2xf32> -> vector<2x2xf32>
    %cst_93 = arith.constant dense<0xFF800000> : vector<2xf32>
    %267 = vector.multi_reduction <maximumf>, %266, %cst_93 [1] : vector<2x2xf32> to vector<2xf32>
    %268 = vector.shape_cast %267 : vector<2xf32> to vector<2x1xf32>
    %269 = vector.broadcast %268 : vector<2x1xf32> to vector<2x2xf32>
    %270 = arith.subf %266, %269 : vector<2x2xf32>
    %271 = math.exp %270 : vector<2x2xf32>
    %cst_94 = arith.constant dense<0.000000e+00> : vector<2xf32>
    %272 = vector.multi_reduction <add>, %271, %cst_94 [1] : vector<2x2xf32> to vector<2xf32>
    %273 = vector.shape_cast %272 : vector<2xf32> to vector<2x1xf32>
    %274 = tpu.reciprocal %273 {approx = true} : vector<2x1xf32> -> vector<2x1xf32>
    %275 = vector.broadcast %274 : vector<2x1xf32> to vector<2x2xf32>
    %276 = arith.mulf %271, %275 : vector<2x2xf32>
    %277 = arith.truncf %276 : vector<2x2xf32> to vector<2x2xbf16>
    %cst_95 = arith.constant dense<0.000000e+00> : vector<2x8xf32>
    %278 = tpu.matmul %277, %265, %cst_95 {dimension_numbers = #tpu.dot_dimension_numbers<[1], [0], [0], [1], [0, 0, 1, 1], [], []>} : vector<2x2xbf16>, vector<2x8xbf16>, vector<2x8xf32> -> vector<2x8xf32>
    %c6_96 = arith.constant 6 : index
    %c24_97 = arith.constant 24 : index
    %279 = vector.load %arg5[%c6_96, %c24_97] : memref<16x32xf32, #tpu.memory_space<vmem>>, vector<2x8xf32>
    tpu.vector_store %arg5[%c6_96, %c24_97], %278 {strides = array<i32>} : memref<16x32xf32, #tpu.memory_space<vmem>>, vector<2x8xf32>,
    %c0_98 = arith.constant 0 : index
    %c4_99 = arith.constant 4 : index
    %c0_100 = arith.constant 0 : index
    %280 = vector.load %arg1[%c0_98, %c4_99, %c0_100] : memref<2x8x96xbf16, #tpu.memory_space<vmem>>, vector<2x1x96xbf16>
    %281 = vector.shape_cast %280 : vector<2x1x96xbf16> to vector<2x96xbf16>
    %282 = vector.extract_strided_slice %281 {offsets = [0, 0], sizes = [2, 8], strides = [1, 1]} : vector<2x96xbf16> to vector<2x8xbf16>
    %283 = vector.extract_strided_slice %281 {offsets = [0, 32], sizes = [2, 8], strides = [1, 1]} : vector<2x96xbf16> to vector<2x8xbf16>
    %284 = vector.extract_strided_slice %281 {offsets = [0, 64], sizes = [2, 8], strides = [1, 1]} : vector<2x96xbf16> to vector<2x8xbf16>
    %cst_101 = arith.constant dense<0.000000e+00> : vector<2x2xf32>
    %285 = tpu.matmul %282, %283, %cst_101 {dimension_numbers = #tpu.dot_dimension_numbers<[1], [1], [0], [0], [0, 0, 1, 0], [], []>} : vector<2x8xbf16>, vector<2x8xbf16>, vector<2x2xf32> -> vector<2x2xf32>
    %cst_102 = arith.constant dense<0xFF800000> : vector<2xf32>
    %286 = vector.multi_reduction <maximumf>, %285, %cst_102 [1] : vector<2x2xf32> to vector<2xf32>
    %287 = vector.shape_cast %286 : vector<2xf32> to vector<2x1xf32>
    %288 = vector.broadcast %287 : vector<2x1xf32> to vector<2x2xf32>
    %289 = arith.subf %285, %288 : vector<2x2xf32>
    %290 = math.exp %289 : vector<2x2xf32>
    %cst_103 = arith.constant dense<0.000000e+00> : vector<2xf32>
    %291 = vector.multi_reduction <add>, %290, %cst_103 [1] : vector<2x2xf32> to vector<2xf32>
    %292 = vector.shape_cast %291 : vector<2xf32> to vector<2x1xf32>
    %293 = tpu.reciprocal %292 {approx = true} : vector<2x1xf32> -> vector<2x1xf32>
    %294 = vector.broadcast %293 : vector<2x1xf32> to vector<2x2xf32>
    %295 = arith.mulf %290, %294 : vector<2x2xf32>
    %296 = arith.truncf %295 : vector<2x2xf32> to vector<2x2xbf16>
    %cst_104 = arith.constant dense<0.000000e+00> : vector<2x8xf32>
    %297 = tpu.matmul %296, %284, %cst_104 {dimension_numbers = #tpu.dot_dimension_numbers<[1], [0], [0], [1], [0, 0, 1, 1], [], []>} : vector<2x2xbf16>, vector<2x8xbf16>, vector<2x8xf32> -> vector<2x8xf32>
    %c8_105 = arith.constant 8 : index
    %c0_106 = arith.constant 0 : index
    %298 = vector.load %arg5[%c8_105, %c0_106] : memref<16x32xf32, #tpu.memory_space<vmem>>, vector<2x8xf32>
    tpu.vector_store %arg5[%c8_105, %c0_106], %297 {strides = array<i32>} : memref<16x32xf32, #tpu.memory_space<vmem>>, vector<2x8xf32>,
    %299 = vector.extract_strided_slice %281 {offsets = [0, 8], sizes = [2, 8], strides = [1, 1]} : vector<2x96xbf16> to vector<2x8xbf16>
    %300 = vector.extract_strided_slice %281 {offsets = [0, 40], sizes = [2, 8], strides = [1, 1]} : vector<2x96xbf16> to vector<2x8xbf16>
    %301 = vector.extract_strided_slice %281 {offsets = [0, 72], sizes = [2, 8], strides = [1, 1]} : vector<2x96xbf16> to vector<2x8xbf16>
    %cst_107 = arith.constant dense<0.000000e+00> : vector<2x2xf32>
    %302 = tpu.matmul %299, %300, %cst_107 {dimension_numbers = #tpu.dot_dimension_numbers<[1], [1], [0], [0], [0, 0, 1, 0], [], []>} : vector<2x8xbf16>, vector<2x8xbf16>, vector<2x2xf32> -> vector<2x2xf32>
    %cst_108 = arith.constant dense<0xFF800000> : vector<2xf32>
    %303 = vector.multi_reduction <maximumf>, %302, %cst_108 [1] : vector<2x2xf32> to vector<2xf32>
    %304 = vector.shape_cast %303 : vector<2xf32> to vector<2x1xf32>
    %305 = vector.broadcast %304 : vector<2x1xf32> to vector<2x2xf32>
    %306 = arith.subf %302, %305 : vector<2x2xf32>
    %307 = math.exp %306 : vector<2x2xf32>
    %cst_109 = arith.constant dense<0.000000e+00> : vector<2xf32>
    %308 = vector.multi_reduction <add>, %307, %cst_109 [1] : vector<2x2xf32> to vector<2xf32>
    %309 = vector.shape_cast %308 : vector<2xf32> to vector<2x1xf32>
    %310 = tpu.reciprocal %309 {approx = true} : vector<2x1xf32> -> vector<2x1xf32>
    %311 = vector.broadcast %310 : vector<2x1xf32> to vector<2x2xf32>
    %312 = arith.mulf %307, %311 : vector<2x2xf32>
    %313 = arith.truncf %312 : vector<2x2xf32> to vector<2x2xbf16>
    %cst_110 = arith.constant dense<0.000000e+00> : vector<2x8xf32>
    %314 = tpu.matmul %313, %301, %cst_110 {dimension_numbers = #tpu.dot_dimension_numbers<[1], [0], [0], [1], [0, 0, 1, 1], [], []>} : vector<2x2xbf16>, vector<2x8xbf16>, vector<2x8xf32> -> vector<2x8xf32>
    %c8_111 = arith.constant 8 : index
    %c8_112 = arith.constant 8 : index
    %315 = vector.load %arg5[%c8_111, %c8_112] : memref<16x32xf32, #tpu.memory_space<vmem>>, vector<2x8xf32>
    tpu.vector_store %arg5[%c8_111, %c8_112], %314 {strides = array<i32>} : memref<16x32xf32, #tpu.memory_space<vmem>>, vector<2x8xf32>,
    %316 = vector.extract_strided_slice %281 {offsets = [0, 16], sizes = [2, 8], strides = [1, 1]} : vector<2x96xbf16> to vector<2x8xbf16>
    %317 = vector.extract_strided_slice %281 {offsets = [0, 48], sizes = [2, 8], strides = [1, 1]} : vector<2x96xbf16> to vector<2x8xbf16>
    %318 = vector.extract_strided_slice %281 {offsets = [0, 80], sizes = [2, 8], strides = [1, 1]} : vector<2x96xbf16> to vector<2x8xbf16>
    %cst_113 = arith.constant dense<0.000000e+00> : vector<2x2xf32>
    %319 = tpu.matmul %316, %317, %cst_113 {dimension_numbers = #tpu.dot_dimension_numbers<[1], [1], [0], [0], [0, 0, 1, 0], [], []>} : vector<2x8xbf16>, vector<2x8xbf16>, vector<2x2xf32> -> vector<2x2xf32>
    %cst_114 = arith.constant dense<0xFF800000> : vector<2xf32>
    %320 = vector.multi_reduction <maximumf>, %319, %cst_114 [1] : vector<2x2xf32> to vector<2xf32>
    %321 = vector.shape_cast %320 : vector<2xf32> to vector<2x1xf32>
    %322 = vector.broadcast %321 : vector<2x1xf32> to vector<2x2xf32>
    %323 = arith.subf %319, %322 : vector<2x2xf32>
    %324 = math.exp %323 : vector<2x2xf32>
    %cst_115 = arith.constant dense<0.000000e+00> : vector<2xf32>
    %325 = vector.multi_reduction <add>, %324, %cst_115 [1] : vector<2x2xf32> to vector<2xf32>
    %326 = vector.shape_cast %325 : vector<2xf32> to vector<2x1xf32>
    %327 = tpu.reciprocal %326 {approx = true} : vector<2x1xf32> -> vector<2x1xf32>
    %328 = vector.broadcast %327 : vector<2x1xf32> to vector<2x2xf32>
    %329 = arith.mulf %324, %328 : vector<2x2xf32>
    %330 = arith.truncf %329 : vector<2x2xf32> to vector<2x2xbf16>
    %cst_116 = arith.constant dense<0.000000e+00> : vector<2x8xf32>
    %331 = tpu.matmul %330, %318, %cst_116 {dimension_numbers = #tpu.dot_dimension_numbers<[1], [0], [0], [1], [0, 0, 1, 1], [], []>} : vector<2x2xbf16>, vector<2x8xbf16>, vector<2x8xf32> -> vector<2x8xf32>
    %c8_117 = arith.constant 8 : index
    %c16_118 = arith.constant 16 : index
    %332 = vector.load %arg5[%c8_117, %c16_118] : memref<16x32xf32, #tpu.memory_space<vmem>>, vector<2x8xf32>
    tpu.vector_store %arg5[%c8_117, %c16_118], %331 {strides = array<i32>} : memref<16x32xf32, #tpu.memory_space<vmem>>, vector<2x8xf32>,
    %333 = vector.extract_strided_slice %281 {offsets = [0, 24], sizes = [2, 8], strides = [1, 1]} : vector<2x96xbf16> to vector<2x8xbf16>
    %334 = vector.extract_strided_slice %281 {offsets = [0, 56], sizes = [2, 8], strides = [1, 1]} : vector<2x96xbf16> to vector<2x8xbf16>
    %335 = vector.extract_strided_slice %281 {offsets = [0, 88], sizes = [2, 8], strides = [1, 1]} : vector<2x96xbf16> to vector<2x8xbf16>
    %cst_119 = arith.constant dense<0.000000e+00> : vector<2x2xf32>
    %336 = tpu.matmul %333, %334, %cst_119 {dimension_numbers = #tpu.dot_dimension_numbers<[1], [1], [0], [0], [0, 0, 1, 0], [], []>} : vector<2x8xbf16>, vector<2x8xbf16>, vector<2x2xf32> -> vector<2x2xf32>
    %cst_120 = arith.constant dense<0xFF800000> : vector<2xf32>
    %337 = vector.multi_reduction <maximumf>, %336, %cst_120 [1] : vector<2x2xf32> to vector<2xf32>
    %338 = vector.shape_cast %337 : vector<2xf32> to vector<2x1xf32>
    %339 = vector.broadcast %338 : vector<2x1xf32> to vector<2x2xf32>
    %340 = arith.subf %336, %339 : vector<2x2xf32>
    %341 = math.exp %340 : vector<2x2xf32>
    %cst_121 = arith.constant dense<0.000000e+00> : vector<2xf32>
    %342 = vector.multi_reduction <add>, %341, %cst_121 [1] : vector<2x2xf32> to vector<2xf32>
    %343 = vector.shape_cast %342 : vector<2xf32> to vector<2x1xf32>
    %344 = tpu.reciprocal %343 {approx = true} : vector<2x1xf32> -> vector<2x1xf32>
    %345 = vector.broadcast %344 : vector<2x1xf32> to vector<2x2xf32>
    %346 = arith.mulf %341, %345 : vector<2x2xf32>
    %347 = arith.truncf %346 : vector<2x2xf32> to vector<2x2xbf16>
    %cst_122 = arith.constant dense<0.000000e+00> : vector<2x8xf32>
    %348 = tpu.matmul %347, %335, %cst_122 {dimension_numbers = #tpu.dot_dimension_numbers<[1], [0], [0], [1], [0, 0, 1, 1], [], []>} : vector<2x2xbf16>, vector<2x8xbf16>, vector<2x8xf32> -> vector<2x8xf32>
    %c8_123 = arith.constant 8 : index
    %c24_124 = arith.constant 24 : index
    %349 = vector.load %arg5[%c8_123, %c24_124] : memref<16x32xf32, #tpu.memory_space<vmem>>, vector<2x8xf32>
    tpu.vector_store %arg5[%c8_123, %c24_124], %348 {strides = array<i32>} : memref<16x32xf32, #tpu.memory_space<vmem>>, vector<2x8xf32>,
    %c0_125 = arith.constant 0 : index
    %c5 = arith.constant 5 : index
    %c0_126 = arith.constant 0 : index
    %350 = vector.load %arg1[%c0_125, %c5, %c0_126] : memref<2x8x96xbf16, #tpu.memory_space<vmem>>, vector<2x1x96xbf16>
    %351 = vector.shape_cast %350 : vector<2x1x96xbf16> to vector<2x96xbf16>
    %352 = vector.extract_strided_slice %351 {offsets = [0, 0], sizes = [2, 8], strides = [1, 1]} : vector<2x96xbf16> to vector<2x8xbf16>
    %353 = vector.extract_strided_slice %351 {offsets = [0, 32], sizes = [2, 8], strides = [1, 1]} : vector<2x96xbf16> to vector<2x8xbf16>
    %354 = vector.extract_strided_slice %351 {offsets = [0, 64], sizes = [2, 8], strides = [1, 1]} : vector<2x96xbf16> to vector<2x8xbf16>
    %cst_127 = arith.constant dense<0.000000e+00> : vector<2x2xf32>
    %355 = tpu.matmul %352, %353, %cst_127 {dimension_numbers = #tpu.dot_dimension_numbers<[1], [1], [0], [0], [0, 0, 1, 0], [], []>} : vector<2x8xbf16>, vector<2x8xbf16>, vector<2x2xf32> -> vector<2x2xf32>
    %cst_128 = arith.constant dense<0xFF800000> : vector<2xf32>
    %356 = vector.multi_reduction <maximumf>, %355, %cst_128 [1] : vector<2x2xf32> to vector<2xf32>
    %357 = vector.shape_cast %356 : vector<2xf32> to vector<2x1xf32>
    %358 = vector.broadcast %357 : vector<2x1xf32> to vector<2x2xf32>
    %359 = arith.subf %355, %358 : vector<2x2xf32>
    %360 = math.exp %359 : vector<2x2xf32>
    %cst_129 = arith.constant dense<0.000000e+00> : vector<2xf32>
    %361 = vector.multi_reduction <add>, %360, %cst_129 [1] : vector<2x2xf32> to vector<2xf32>
    %362 = vector.shape_cast %361 : vector<2xf32> to vector<2x1xf32>
    %363 = tpu.reciprocal %362 {approx = true} : vector<2x1xf32> -> vector<2x1xf32>
    %364 = vector.broadcast %363 : vector<2x1xf32> to vector<2x2xf32>
    %365 = arith.mulf %360, %364 : vector<2x2xf32>
    %366 = arith.truncf %365 : vector<2x2xf32> to vector<2x2xbf16>
    %cst_130 = arith.constant dense<0.000000e+00> : vector<2x8xf32>
    %367 = tpu.matmul %366, %354, %cst_130 {dimension_numbers = #tpu.dot_dimension_numbers<[1], [0], [0], [1], [0, 0, 1, 1], [], []>} : vector<2x2xbf16>, vector<2x8xbf16>, vector<2x8xf32> -> vector<2x8xf32>
    %c10 = arith.constant 10 : index
    %c0_131 = arith.constant 0 : index
    %368 = vector.load %arg5[%c10, %c0_131] : memref<16x32xf32, #tpu.memory_space<vmem>>, vector<2x8xf32>
    tpu.vector_store %arg5[%c10, %c0_131], %367 {strides = array<i32>} : memref<16x32xf32, #tpu.memory_space<vmem>>, vector<2x8xf32>,
    %369 = vector.extract_strided_slice %351 {offsets = [0, 8], sizes = [2, 8], strides = [1, 1]} : vector<2x96xbf16> to vector<2x8xbf16>
    %370 = vector.extract_strided_slice %351 {offsets = [0, 40], sizes = [2, 8], strides = [1, 1]} : vector<2x96xbf16> to vector<2x8xbf16>
    %371 = vector.extract_strided_slice %351 {offsets = [0, 72], sizes = [2, 8], strides = [1, 1]} : vector<2x96xbf16> to vector<2x8xbf16>
    %cst_132 = arith.constant dense<0.000000e+00> : vector<2x2xf32>
    %372 = tpu.matmul %369, %370, %cst_132 {dimension_numbers = #tpu.dot_dimension_numbers<[1], [1], [0], [0], [0, 0, 1, 0], [], []>} : vector<2x8xbf16>, vector<2x8xbf16>, vector<2x2xf32> -> vector<2x2xf32>
    %cst_133 = arith.constant dense<0xFF800000> : vector<2xf32>
    %373 = vector.multi_reduction <maximumf>, %372, %cst_133 [1] : vector<2x2xf32> to vector<2xf32>
    %374 = vector.shape_cast %373 : vector<2xf32> to vector<2x1xf32>
    %375 = vector.broadcast %374 : vector<2x1xf32> to vector<2x2xf32>
    %376 = arith.subf %372, %375 : vector<2x2xf32>
    %377 = math.exp %376 : vector<2x2xf32>
    %cst_134 = arith.constant dense<0.000000e+00> : vector<2xf32>
    %378 = vector.multi_reduction <add>, %377, %cst_134 [1] : vector<2x2xf32> to vector<2xf32>
    %379 = vector.shape_cast %378 : vector<2xf32> to vector<2x1xf32>
    %380 = tpu.reciprocal %379 {approx = true} : vector<2x1xf32> -> vector<2x1xf32>
    %381 = vector.broadcast %380 : vector<2x1xf32> to vector<2x2xf32>
    %382 = arith.mulf %377, %381 : vector<2x2xf32>
    %383 = arith.truncf %382 : vector<2x2xf32> to vector<2x2xbf16>
    %cst_135 = arith.constant dense<0.000000e+00> : vector<2x8xf32>
    %384 = tpu.matmul %383, %371, %cst_135 {dimension_numbers = #tpu.dot_dimension_numbers<[1], [0], [0], [1], [0, 0, 1, 1], [], []>} : vector<2x2xbf16>, vector<2x8xbf16>, vector<2x8xf32> -> vector<2x8xf32>
    %c10_136 = arith.constant 10 : index
    %c8_137 = arith.constant 8 : index
    %385 = vector.load %arg5[%c10_136, %c8_137] : memref<16x32xf32, #tpu.memory_space<vmem>>, vector<2x8xf32>
    tpu.vector_store %arg5[%c10_136, %c8_137], %384 {strides = array<i32>} : memref<16x32xf32, #tpu.memory_space<vmem>>, vector<2x8xf32>,
    %386 = vector.extract_strided_slice %351 {offsets = [0, 16], sizes = [2, 8], strides = [1, 1]} : vector<2x96xbf16> to vector<2x8xbf16>
    %387 = vector.extract_strided_slice %351 {offsets = [0, 48], sizes = [2, 8], strides = [1, 1]} : vector<2x96xbf16> to vector<2x8xbf16>
    %388 = vector.extract_strided_slice %351 {offsets = [0, 80], sizes = [2, 8], strides = [1, 1]} : vector<2x96xbf16> to vector<2x8xbf16>
    %cst_138 = arith.constant dense<0.000000e+00> : vector<2x2xf32>
    %389 = tpu.matmul %386, %387, %cst_138 {dimension_numbers = #tpu.dot_dimension_numbers<[1], [1], [0], [0], [0, 0, 1, 0], [], []>} : vector<2x8xbf16>, vector<2x8xbf16>, vector<2x2xf32> -> vector<2x2xf32>
    %cst_139 = arith.constant dense<0xFF800000> : vector<2xf32>
    %390 = vector.multi_reduction <maximumf>, %389, %cst_139 [1] : vector<2x2xf32> to vector<2xf32>
    %391 = vector.shape_cast %390 : vector<2xf32> to vector<2x1xf32>
    %392 = vector.broadcast %391 : vector<2x1xf32> to vector<2x2xf32>
    %393 = arith.subf %389, %392 : vector<2x2xf32>
    %394 = math.exp %393 : vector<2x2xf32>
    %cst_140 = arith.constant dense<0.000000e+00> : vector<2xf32>
    %395 = vector.multi_reduction <add>, %394, %cst_140 [1] : vector<2x2xf32> to vector<2xf32>
    %396 = vector.shape_cast %395 : vector<2xf32> to vector<2x1xf32>
    %397 = tpu.reciprocal %396 {approx = true} : vector<2x1xf32> -> vector<2x1xf32>
    %398 = vector.broadcast %397 : vector<2x1xf32> to vector<2x2xf32>
    %399 = arith.mulf %394, %398 : vector<2x2xf32>
    %400 = arith.truncf %399 : vector<2x2xf32> to vector<2x2xbf16>
    %cst_141 = arith.constant dense<0.000000e+00> : vector<2x8xf32>
    %401 = tpu.matmul %400, %388, %cst_141 {dimension_numbers = #tpu.dot_dimension_numbers<[1], [0], [0], [1], [0, 0, 1, 1], [], []>} : vector<2x2xbf16>, vector<2x8xbf16>, vector<2x8xf32> -> vector<2x8xf32>
    %c10_142 = arith.constant 10 : index
    %c16_143 = arith.constant 16 : index
    %402 = vector.load %arg5[%c10_142, %c16_143] : memref<16x32xf32, #tpu.memory_space<vmem>>, vector<2x8xf32>
    tpu.vector_store %arg5[%c10_142, %c16_143], %401 {strides = array<i32>} : memref<16x32xf32, #tpu.memory_space<vmem>>, vector<2x8xf32>,
    %403 = vector.extract_strided_slice %351 {offsets = [0, 24], sizes = [2, 8], strides = [1, 1]} : vector<2x96xbf16> to vector<2x8xbf16>
    %404 = vector.extract_strided_slice %351 {offsets = [0, 56], sizes = [2, 8], strides = [1, 1]} : vector<2x96xbf16> to vector<2x8xbf16>
    %405 = vector.extract_strided_slice %351 {offsets = [0, 88], sizes = [2, 8], strides = [1, 1]} : vector<2x96xbf16> to vector<2x8xbf16>
    %cst_144 = arith.constant dense<0.000000e+00> : vector<2x2xf32>
    %406 = tpu.matmul %403, %404, %cst_144 {dimension_numbers = #tpu.dot_dimension_numbers<[1], [1], [0], [0], [0, 0, 1, 0], [], []>} : vector<2x8xbf16>, vector<2x8xbf16>, vector<2x2xf32> -> vector<2x2xf32>
    %cst_145 = arith.constant dense<0xFF800000> : vector<2xf32>
    %407 = vector.multi_reduction <maximumf>, %406, %cst_145 [1] : vector<2x2xf32> to vector<2xf32>
    %408 = vector.shape_cast %407 : vector<2xf32> to vector<2x1xf32>
    %409 = vector.broadcast %408 : vector<2x1xf32> to vector<2x2xf32>
    %410 = arith.subf %406, %409 : vector<2x2xf32>
    %411 = math.exp %410 : vector<2x2xf32>
    %cst_146 = arith.constant dense<0.000000e+00> : vector<2xf32>
    %412 = vector.multi_reduction <add>, %411, %cst_146 [1] : vector<2x2xf32> to vector<2xf32>
    %413 = vector.shape_cast %412 : vector<2xf32> to vector<2x1xf32>
    %414 = tpu.reciprocal %413 {approx = true} : vector<2x1xf32> -> vector<2x1xf32>
    %415 = vector.broadcast %414 : vector<2x1xf32> to vector<2x2xf32>
    %416 = arith.mulf %411, %415 : vector<2x2xf32>
    %417 = arith.truncf %416 : vector<2x2xf32> to vector<2x2xbf16>
    %cst_147 = arith.constant dense<0.000000e+00> : vector<2x8xf32>
    %418 = tpu.matmul %417, %405, %cst_147 {dimension_numbers = #tpu.dot_dimension_numbers<[1], [0], [0], [1], [0, 0, 1, 1], [], []>} : vector<2x2xbf16>, vector<2x8xbf16>, vector<2x8xf32> -> vector<2x8xf32>
    %c10_148 = arith.constant 10 : index
    %c24_149 = arith.constant 24 : index
    %419 = vector.load %arg5[%c10_148, %c24_149] : memref<16x32xf32, #tpu.memory_space<vmem>>, vector<2x8xf32>
    tpu.vector_store %arg5[%c10_148, %c24_149], %418 {strides = array<i32>} : memref<16x32xf32, #tpu.memory_space<vmem>>, vector<2x8xf32>,
    %c0_150 = arith.constant 0 : index
    %c6_151 = arith.constant 6 : index
    %c0_152 = arith.constant 0 : index
    %420 = vector.load %arg1[%c0_150, %c6_151, %c0_152] : memref<2x8x96xbf16, #tpu.memory_space<vmem>>, vector<2x1x96xbf16>
    %421 = vector.shape_cast %420 : vector<2x1x96xbf16> to vector<2x96xbf16>
    %422 = vector.extract_strided_slice %421 {offsets = [0, 0], sizes = [2, 8], strides = [1, 1]} : vector<2x96xbf16> to vector<2x8xbf16>
    %423 = vector.extract_strided_slice %421 {offsets = [0, 32], sizes = [2, 8], strides = [1, 1]} : vector<2x96xbf16> to vector<2x8xbf16>
    %424 = vector.extract_strided_slice %421 {offsets = [0, 64], sizes = [2, 8], strides = [1, 1]} : vector<2x96xbf16> to vector<2x8xbf16>
    %cst_153 = arith.constant dense<0.000000e+00> : vector<2x2xf32>
    %425 = tpu.matmul %422, %423, %cst_153 {dimension_numbers = #tpu.dot_dimension_numbers<[1], [1], [0], [0], [0, 0, 1, 0], [], []>} : vector<2x8xbf16>, vector<2x8xbf16>, vector<2x2xf32> -> vector<2x2xf32>
    %cst_154 = arith.constant dense<0xFF800000> : vector<2xf32>
    %426 = vector.multi_reduction <maximumf>, %425, %cst_154 [1] : vector<2x2xf32> to vector<2xf32>
    %427 = vector.shape_cast %426 : vector<2xf32> to vector<2x1xf32>
    %428 = vector.broadcast %427 : vector<2x1xf32> to vector<2x2xf32>
    %429 = arith.subf %425, %428 : vector<2x2xf32>
    %430 = math.exp %429 : vector<2x2xf32>
    %cst_155 = arith.constant dense<0.000000e+00> : vector<2xf32>
    %431 = vector.multi_reduction <add>, %430, %cst_155 [1] : vector<2x2xf32> to vector<2xf32>
    %432 = vector.shape_cast %431 : vector<2xf32> to vector<2x1xf32>
    %433 = tpu.reciprocal %432 {approx = true} : vector<2x1xf32> -> vector<2x1xf32>
    %434 = vector.broadcast %433 : vector<2x1xf32> to vector<2x2xf32>
    %435 = arith.mulf %430, %434 : vector<2x2xf32>
    %436 = arith.truncf %435 : vector<2x2xf32> to vector<2x2xbf16>
    %cst_156 = arith.constant dense<0.000000e+00> : vector<2x8xf32>
    %437 = tpu.matmul %436, %424, %cst_156 {dimension_numbers = #tpu.dot_dimension_numbers<[1], [0], [0], [1], [0, 0, 1, 1], [], []>} : vector<2x2xbf16>, vector<2x8xbf16>, vector<2x8xf32> -> vector<2x8xf32>
    %c12 = arith.constant 12 : index
    %c0_157 = arith.constant 0 : index
    %438 = vector.load %arg5[%c12, %c0_157] : memref<16x32xf32, #tpu.memory_space<vmem>>, vector<2x8xf32>
    tpu.vector_store %arg5[%c12, %c0_157], %437 {strides = array<i32>} : memref<16x32xf32, #tpu.memory_space<vmem>>, vector<2x8xf32>,
    %439 = vector.extract_strided_slice %421 {offsets = [0, 8], sizes = [2, 8], strides = [1, 1]} : vector<2x96xbf16> to vector<2x8xbf16>
    %440 = vector.extract_strided_slice %421 {offsets = [0, 40], sizes = [2, 8], strides = [1, 1]} : vector<2x96xbf16> to vector<2x8xbf16>
    %441 = vector.extract_strided_slice %421 {offsets = [0, 72], sizes = [2, 8], strides = [1, 1]} : vector<2x96xbf16> to vector<2x8xbf16>
    %cst_158 = arith.constant dense<0.000000e+00> : vector<2x2xf32>
    %442 = tpu.matmul %439, %440, %cst_158 {dimension_numbers = #tpu.dot_dimension_numbers<[1], [1], [0], [0], [0, 0, 1, 0], [], []>} : vector<2x8xbf16>, vector<2x8xbf16>, vector<2x2xf32> -> vector<2x2xf32>
    %cst_159 = arith.constant dense<0xFF800000> : vector<2xf32>
    %443 = vector.multi_reduction <maximumf>, %442, %cst_159 [1] : vector<2x2xf32> to vector<2xf32>
    %444 = vector.shape_cast %443 : vector<2xf32> to vector<2x1xf32>
    %445 = vector.broadcast %444 : vector<2x1xf32> to vector<2x2xf32>
    %446 = arith.subf %442, %445 : vector<2x2xf32>
    %447 = math.exp %446 : vector<2x2xf32>
    %cst_160 = arith.constant dense<0.000000e+00> : vector<2xf32>
    %448 = vector.multi_reduction <add>, %447, %cst_160 [1] : vector<2x2xf32> to vector<2xf32>
    %449 = vector.shape_cast %448 : vector<2xf32> to vector<2x1xf32>
    %450 = tpu.reciprocal %449 {approx = true} : vector<2x1xf32> -> vector<2x1xf32>
    %451 = vector.broadcast %450 : vector<2x1xf32> to vector<2x2xf32>
    %452 = arith.mulf %447, %451 : vector<2x2xf32>
    %453 = arith.truncf %452 : vector<2x2xf32> to vector<2x2xbf16>
    %cst_161 = arith.constant dense<0.000000e+00> : vector<2x8xf32>
    %454 = tpu.matmul %453, %441, %cst_161 {dimension_numbers = #tpu.dot_dimension_numbers<[1], [0], [0], [1], [0, 0, 1, 1], [], []>} : vector<2x2xbf16>, vector<2x8xbf16>, vector<2x8xf32> -> vector<2x8xf32>
    %c12_162 = arith.constant 12 : index
    %c8_163 = arith.constant 8 : index
    %455 = vector.load %arg5[%c12_162, %c8_163] : memref<16x32xf32, #tpu.memory_space<vmem>>, vector<2x8xf32>
    tpu.vector_store %arg5[%c12_162, %c8_163], %454 {strides = array<i32>} : memref<16x32xf32, #tpu.memory_space<vmem>>, vector<2x8xf32>,
    %456 = vector.extract_strided_slice %421 {offsets = [0, 16], sizes = [2, 8], strides = [1, 1]} : vector<2x96xbf16> to vector<2x8xbf16>
    %457 = vector.extract_strided_slice %421 {offsets = [0, 48], sizes = [2, 8], strides = [1, 1]} : vector<2x96xbf16> to vector<2x8xbf16>
    %458 = vector.extract_strided_slice %421 {offsets = [0, 80], sizes = [2, 8], strides = [1, 1]} : vector<2x96xbf16> to vector<2x8xbf16>
    %cst_164 = arith.constant dense<0.000000e+00> : vector<2x2xf32>
    %459 = tpu.matmul %456, %457, %cst_164 {dimension_numbers = #tpu.dot_dimension_numbers<[1], [1], [0], [0], [0, 0, 1, 0], [], []>} : vector<2x8xbf16>, vector<2x8xbf16>, vector<2x2xf32> -> vector<2x2xf32>
    %cst_165 = arith.constant dense<0xFF800000> : vector<2xf32>
    %460 = vector.multi_reduction <maximumf>, %459, %cst_165 [1] : vector<2x2xf32> to vector<2xf32>
    %461 = vector.shape_cast %460 : vector<2xf32> to vector<2x1xf32>
    %462 = vector.broadcast %461 : vector<2x1xf32> to vector<2x2xf32>
    %463 = arith.subf %459, %462 : vector<2x2xf32>
    %464 = math.exp %463 : vector<2x2xf32>
    %cst_166 = arith.constant dense<0.000000e+00> : vector<2xf32>
    %465 = vector.multi_reduction <add>, %464, %cst_166 [1] : vector<2x2xf32> to vector<2xf32>
    %466 = vector.shape_cast %465 : vector<2xf32> to vector<2x1xf32>
    %467 = tpu.reciprocal %466 {approx = true} : vector<2x1xf32> -> vector<2x1xf32>
    %468 = vector.broadcast %467 : vector<2x1xf32> to vector<2x2xf32>
    %469 = arith.mulf %464, %468 : vector<2x2xf32>
    %470 = arith.truncf %469 : vector<2x2xf32> to vector<2x2xbf16>
    %cst_167 = arith.constant dense<0.000000e+00> : vector<2x8xf32>
    %471 = tpu.matmul %470, %458, %cst_167 {dimension_numbers = #tpu.dot_dimension_numbers<[1], [0], [0], [1], [0, 0, 1, 1], [], []>} : vector<2x2xbf16>, vector<2x8xbf16>, vector<2x8xf32> -> vector<2x8xf32>
    %c12_168 = arith.constant 12 : index
    %c16_169 = arith.constant 16 : index
    %472 = vector.load %arg5[%c12_168, %c16_169] : memref<16x32xf32, #tpu.memory_space<vmem>>, vector<2x8xf32>
    tpu.vector_store %arg5[%c12_168, %c16_169], %471 {strides = array<i32>} : memref<16x32xf32, #tpu.memory_space<vmem>>, vector<2x8xf32>,
    %473 = vector.extract_strided_slice %421 {offsets = [0, 24], sizes = [2, 8], strides = [1, 1]} : vector<2x96xbf16> to vector<2x8xbf16>
    %474 = vector.extract_strided_slice %421 {offsets = [0, 56], sizes = [2, 8], strides = [1, 1]} : vector<2x96xbf16> to vector<2x8xbf16>
    %475 = vector.extract_strided_slice %421 {offsets = [0, 88], sizes = [2, 8], strides = [1, 1]} : vector<2x96xbf16> to vector<2x8xbf16>
    %cst_170 = arith.constant dense<0.000000e+00> : vector<2x2xf32>
    %476 = tpu.matmul %473, %474, %cst_170 {dimension_numbers = #tpu.dot_dimension_numbers<[1], [1], [0], [0], [0, 0, 1, 0], [], []>} : vector<2x8xbf16>, vector<2x8xbf16>, vector<2x2xf32> -> vector<2x2xf32>
    %cst_171 = arith.constant dense<0xFF800000> : vector<2xf32>
    %477 = vector.multi_reduction <maximumf>, %476, %cst_171 [1] : vector<2x2xf32> to vector<2xf32>
    %478 = vector.shape_cast %477 : vector<2xf32> to vector<2x1xf32>
    %479 = vector.broadcast %478 : vector<2x1xf32> to vector<2x2xf32>
    %480 = arith.subf %476, %479 : vector<2x2xf32>
    %481 = math.exp %480 : vector<2x2xf32>
    %cst_172 = arith.constant dense<0.000000e+00> : vector<2xf32>
    %482 = vector.multi_reduction <add>, %481, %cst_172 [1] : vector<2x2xf32> to vector<2xf32>
    %483 = vector.shape_cast %482 : vector<2xf32> to vector<2x1xf32>
    %484 = tpu.reciprocal %483 {approx = true} : vector<2x1xf32> -> vector<2x1xf32>
    %485 = vector.broadcast %484 : vector<2x1xf32> to vector<2x2xf32>
    %486 = arith.mulf %481, %485 : vector<2x2xf32>
    %487 = arith.truncf %486 : vector<2x2xf32> to vector<2x2xbf16>
    %cst_173 = arith.constant dense<0.000000e+00> : vector<2x8xf32>
    %488 = tpu.matmul %487, %475, %cst_173 {dimension_numbers = #tpu.dot_dimension_numbers<[1], [0], [0], [1], [0, 0, 1, 1], [], []>} : vector<2x2xbf16>, vector<2x8xbf16>, vector<2x8xf32> -> vector<2x8xf32>
    %c12_174 = arith.constant 12 : index
    %c24_175 = arith.constant 24 : index
    %489 = vector.load %arg5[%c12_174, %c24_175] : memref<16x32xf32, #tpu.memory_space<vmem>>, vector<2x8xf32>
    tpu.vector_store %arg5[%c12_174, %c24_175], %488 {strides = array<i32>} : memref<16x32xf32, #tpu.memory_space<vmem>>, vector<2x8xf32>,
    %c0_176 = arith.constant 0 : index
    %c7 = arith.constant 7 : index
    %c0_177 = arith.constant 0 : index
    %490 = vector.load %arg1[%c0_176, %c7, %c0_177] : memref<2x8x96xbf16, #tpu.memory_space<vmem>>, vector<2x1x96xbf16>
    %491 = vector.shape_cast %490 : vector<2x1x96xbf16> to vector<2x96xbf16>
    %492 = vector.extract_strided_slice %491 {offsets = [0, 0], sizes = [2, 8], strides = [1, 1]} : vector<2x96xbf16> to vector<2x8xbf16>
    %493 = vector.extract_strided_slice %491 {offsets = [0, 32], sizes = [2, 8], strides = [1, 1]} : vector<2x96xbf16> to vector<2x8xbf16>
    %494 = vector.extract_strided_slice %491 {offsets = [0, 64], sizes = [2, 8], strides = [1, 1]} : vector<2x96xbf16> to vector<2x8xbf16>
    %cst_178 = arith.constant dense<0.000000e+00> : vector<2x2xf32>
    %495 = tpu.matmul %492, %493, %cst_178 {dimension_numbers = #tpu.dot_dimension_numbers<[1], [1], [0], [0], [0, 0, 1, 0], [], []>} : vector<2x8xbf16>, vector<2x8xbf16>, vector<2x2xf32> -> vector<2x2xf32>
    %cst_179 = arith.constant dense<0xFF800000> : vector<2xf32>
    %496 = vector.multi_reduction <maximumf>, %495, %cst_179 [1] : vector<2x2xf32> to vector<2xf32>
    %497 = vector.shape_cast %496 : vector<2xf32> to vector<2x1xf32>
    %498 = vector.broadcast %497 : vector<2x1xf32> to vector<2x2xf32>
    %499 = arith.subf %495, %498 : vector<2x2xf32>
    %500 = math.exp %499 : vector<2x2xf32>
    %cst_180 = arith.constant dense<0.000000e+00> : vector<2xf32>
    %501 = vector.multi_reduction <add>, %500, %cst_180 [1] : vector<2x2xf32> to vector<2xf32>
    %502 = vector.shape_cast %501 : vector<2xf32> to vector<2x1xf32>
    %503 = tpu.reciprocal %502 {approx = true} : vector<2x1xf32> -> vector<2x1xf32>
    %504 = vector.broadcast %503 : vector<2x1xf32> to vector<2x2xf32>
    %505 = arith.mulf %500, %504 : vector<2x2xf32>
    %506 = arith.truncf %505 : vector<2x2xf32> to vector<2x2xbf16>
    %cst_181 = arith.constant dense<0.000000e+00> : vector<2x8xf32>
    %507 = tpu.matmul %506, %494, %cst_181 {dimension_numbers = #tpu.dot_dimension_numbers<[1], [0], [0], [1], [0, 0, 1, 1], [], []>} : vector<2x2xbf16>, vector<2x8xbf16>, vector<2x8xf32> -> vector<2x8xf32>
    %c14 = arith.constant 14 : index
    %c0_182 = arith.constant 0 : index
    %508 = vector.load %arg5[%c14, %c0_182] : memref<16x32xf32, #tpu.memory_space<vmem>>, vector<2x8xf32>
    tpu.vector_store %arg5[%c14, %c0_182], %507 {strides = array<i32>} : memref<16x32xf32, #tpu.memory_space<vmem>>, vector<2x8xf32>,
    %509 = vector.extract_strided_slice %491 {offsets = [0, 8], sizes = [2, 8], strides = [1, 1]} : vector<2x96xbf16> to vector<2x8xbf16>
    %510 = vector.extract_strided_slice %491 {offsets = [0, 40], sizes = [2, 8], strides = [1, 1]} : vector<2x96xbf16> to vector<2x8xbf16>
    %511 = vector.extract_strided_slice %491 {offsets = [0, 72], sizes = [2, 8], strides = [1, 1]} : vector<2x96xbf16> to vector<2x8xbf16>
    %cst_183 = arith.constant dense<0.000000e+00> : vector<2x2xf32>
    %512 = tpu.matmul %509, %510, %cst_183 {dimension_numbers = #tpu.dot_dimension_numbers<[1], [1], [0], [0], [0, 0, 1, 0], [], []>} : vector<2x8xbf16>, vector<2x8xbf16>, vector<2x2xf32> -> vector<2x2xf32>
    %cst_184 = arith.constant dense<0xFF800000> : vector<2xf32>
    %513 = vector.multi_reduction <maximumf>, %512, %cst_184 [1] : vector<2x2xf32> to vector<2xf32>
    %514 = vector.shape_cast %513 : vector<2xf32> to vector<2x1xf32>
    %515 = vector.broadcast %514 : vector<2x1xf32> to vector<2x2xf32>
    %516 = arith.subf %512, %515 : vector<2x2xf32>
    %517 = math.exp %516 : vector<2x2xf32>
    %cst_185 = arith.constant dense<0.000000e+00> : vector<2xf32>
    %518 = vector.multi_reduction <add>, %517, %cst_185 [1] : vector<2x2xf32> to vector<2xf32>
    %519 = vector.shape_cast %518 : vector<2xf32> to vector<2x1xf32>
    %520 = tpu.reciprocal %519 {approx = true} : vector<2x1xf32> -> vector<2x1xf32>
    %521 = vector.broadcast %520 : vector<2x1xf32> to vector<2x2xf32>
    %522 = arith.mulf %517, %521 : vector<2x2xf32>
    %523 = arith.truncf %522 : vector<2x2xf32> to vector<2x2xbf16>
    %cst_186 = arith.constant dense<0.000000e+00> : vector<2x8xf32>
    %524 = tpu.matmul %523, %511, %cst_186 {dimension_numbers = #tpu.dot_dimension_numbers<[1], [0], [0], [1], [0, 0, 1, 1], [], []>} : vector<2x2xbf16>, vector<2x8xbf16>, vector<2x8xf32> -> vector<2x8xf32>
    %c14_187 = arith.constant 14 : index
    %c8_188 = arith.constant 8 : index
    %525 = vector.load %arg5[%c14_187, %c8_188] : memref<16x32xf32, #tpu.memory_space<vmem>>, vector<2x8xf32>
    tpu.vector_store %arg5[%c14_187, %c8_188], %524 {strides = array<i32>} : memref<16x32xf32, #tpu.memory_space<vmem>>, vector<2x8xf32>,
    %526 = vector.extract_strided_slice %491 {offsets = [0, 16], sizes = [2, 8], strides = [1, 1]} : vector<2x96xbf16> to vector<2x8xbf16>
    %527 = vector.extract_strided_slice %491 {offsets = [0, 48], sizes = [2, 8], strides = [1, 1]} : vector<2x96xbf16> to vector<2x8xbf16>
    %528 = vector.extract_strided_slice %491 {offsets = [0, 80], sizes = [2, 8], strides = [1, 1]} : vector<2x96xbf16> to vector<2x8xbf16>
    %cst_189 = arith.constant dense<0.000000e+00> : vector<2x2xf32>
    %529 = tpu.matmul %526, %527, %cst_189 {dimension_numbers = #tpu.dot_dimension_numbers<[1], [1], [0], [0], [0, 0, 1, 0], [], []>} : vector<2x8xbf16>, vector<2x8xbf16>, vector<2x2xf32> -> vector<2x2xf32>
    %cst_190 = arith.constant dense<0xFF800000> : vector<2xf32>
    %530 = vector.multi_reduction <maximumf>, %529, %cst_190 [1] : vector<2x2xf32> to vector<2xf32>
    %531 = vector.shape_cast %530 : vector<2xf32> to vector<2x1xf32>
    %532 = vector.broadcast %531 : vector<2x1xf32> to vector<2x2xf32>
    %533 = arith.subf %529, %532 : vector<2x2xf32>
    %534 = math.exp %533 : vector<2x2xf32>
    %cst_191 = arith.constant dense<0.000000e+00> : vector<2xf32>
    %535 = vector.multi_reduction <add>, %534, %cst_191 [1] : vector<2x2xf32> to vector<2xf32>
    %536 = vector.shape_cast %535 : vector<2xf32> to vector<2x1xf32>
    %537 = tpu.reciprocal %536 {approx = true} : vector<2x1xf32> -> vector<2x1xf32>
    %538 = vector.broadcast %537 : vector<2x1xf32> to vector<2x2xf32>
    %539 = arith.mulf %534, %538 : vector<2x2xf32>
    %540 = arith.truncf %539 : vector<2x2xf32> to vector<2x2xbf16>
    %cst_192 = arith.constant dense<0.000000e+00> : vector<2x8xf32>
    %541 = tpu.matmul %540, %528, %cst_192 {dimension_numbers = #tpu.dot_dimension_numbers<[1], [0], [0], [1], [0, 0, 1, 1], [], []>} : vector<2x2xbf16>, vector<2x8xbf16>, vector<2x8xf32> -> vector<2x8xf32>
    %c14_193 = arith.constant 14 : index
    %c16_194 = arith.constant 16 : index
    %542 = vector.load %arg5[%c14_193, %c16_194] : memref<16x32xf32, #tpu.memory_space<vmem>>, vector<2x8xf32>
    tpu.vector_store %arg5[%c14_193, %c16_194], %541 {strides = array<i32>} : memref<16x32xf32, #tpu.memory_space<vmem>>, vector<2x8xf32>,
    %543 = vector.extract_strided_slice %491 {offsets = [0, 24], sizes = [2, 8], strides = [1, 1]} : vector<2x96xbf16> to vector<2x8xbf16>
    %544 = vector.extract_strided_slice %491 {offsets = [0, 56], sizes = [2, 8], strides = [1, 1]} : vector<2x96xbf16> to vector<2x8xbf16>
    %545 = vector.extract_strided_slice %491 {offsets = [0, 88], sizes = [2, 8], strides = [1, 1]} : vector<2x96xbf16> to vector<2x8xbf16>
    %cst_195 = arith.constant dense<0.000000e+00> : vector<2x2xf32>
    %546 = tpu.matmul %543, %544, %cst_195 {dimension_numbers = #tpu.dot_dimension_numbers<[1], [1], [0], [0], [0, 0, 1, 0], [], []>} : vector<2x8xbf16>, vector<2x8xbf16>, vector<2x2xf32> -> vector<2x2xf32>
    %cst_196 = arith.constant dense<0xFF800000> : vector<2xf32>
    %547 = vector.multi_reduction <maximumf>, %546, %cst_196 [1] : vector<2x2xf32> to vector<2xf32>
    %548 = vector.shape_cast %547 : vector<2xf32> to vector<2x1xf32>
    %549 = vector.broadcast %548 : vector<2x1xf32> to vector<2x2xf32>
    %550 = arith.subf %546, %549 : vector<2x2xf32>
    %551 = math.exp %550 : vector<2x2xf32>
    %cst_197 = arith.constant dense<0.000000e+00> : vector<2xf32>
    %552 = vector.multi_reduction <add>, %551, %cst_197 [1] : vector<2x2xf32> to vector<2xf32>
    %553 = vector.shape_cast %552 : vector<2xf32> to vector<2x1xf32>
    %554 = tpu.reciprocal %553 {approx = true} : vector<2x1xf32> -> vector<2x1xf32>
    %555 = vector.broadcast %554 : vector<2x1xf32> to vector<2x2xf32>
    %556 = arith.mulf %551, %555 : vector<2x2xf32>
    %557 = arith.truncf %556 : vector<2x2xf32> to vector<2x2xbf16>
    %cst_198 = arith.constant dense<0.000000e+00> : vector<2x8xf32>
    %558 = tpu.matmul %557, %545, %cst_198 {dimension_numbers = #tpu.dot_dimension_numbers<[1], [0], [0], [1], [0, 0, 1, 1], [], []>} : vector<2x2xbf16>, vector<2x8xbf16>, vector<2x8xf32> -> vector<2x8xf32>
    %c14_199 = arith.constant 14 : index
    %c24_200 = arith.constant 24 : index
    %559 = vector.load %arg5[%c14_199, %c24_200] : memref<16x32xf32, #tpu.memory_space<vmem>>, vector<2x8xf32>
    tpu.vector_store %arg5[%c14_199, %c24_200], %558 {strides = array<i32>} : memref<16x32xf32, #tpu.memory_space<vmem>>, vector<2x8xf32>,
    %c0_201 = arith.constant 0 : index
    %c0_202 = arith.constant 0 : index
    %560 = vector.load %arg5[%c0_201, %c0_202] : memref<16x32xf32, #tpu.memory_space<vmem>>, vector<16x32xf32>
    %561 = arith.truncf %560 : vector<16x32xf32> to vector<16x32xbf16>
    %c0_203 = arith.constant 0 : index
    %c0_204 = arith.constant 0 : index
    %562 = vector.load %arg2[%c0_203, %c0_204] : memref<32x32xbf16, #tpu.memory_space<vmem>>, vector<32x32xbf16>
    %cst_205 = arith.constant dense<0.000000e+00> : vector<16x32xf32>
    %563 = tpu.matmul %561, %562, %cst_205 {dimension_numbers = #tpu.dot_dimension_numbers<[1], [0], [0], [1], [0, 0, 1, 1], [], []>} : vector<16x32xbf16>, vector<32x32xbf16>, vector<16x32xf32> -> vector<16x32xf32>
    %c0_206 = arith.constant 0 : index
    %c0_207 = arith.constant 0 : index
    %564 = vector.load %arg3[%c0_206, %c0_207] : memref<1x32xf32, #tpu.memory_space<vmem>>, vector<1x32xf32>
    %565 = vector.broadcast %564 : vector<1x32xf32> to vector<16x32xf32>
    %566 = arith.addf %563, %565 : vector<16x32xf32>
    %567 = vector.extract_strided_slice %566 {offsets = [0, 0], sizes = [2, 32], strides = [1, 1]} : vector<16x32xf32> to vector<2x32xf32>
    %568 = arith.truncf %567 : vector<2x32xf32> to vector<2x32xbf16>
    %c0_208 = arith.constant 0 : index
    %c0_209 = arith.constant 0 : index
    %c0_210 = arith.constant 0 : index
    %569 = vector.load %arg4[%c0_208, %c0_209, %c0_210] : memref<2x8x32xbf16, #tpu.memory_space<vmem>>, vector<2x1x32xbf16>
    %570 = vector.shape_cast %569 : vector<2x1x32xbf16> to vector<2x32xbf16>
    %571 = vector.shape_cast %568 : vector<2x32xbf16> to vector<2x1x32xbf16>
    tpu.vector_store %arg4[%c0_208, %c0_209, %c0_210], %571 {strides = array<i32>} : memref<2x8x32xbf16, #tpu.memory_space<vmem>>, vector<2x1x32xbf16>,
    %572 = vector.extract_strided_slice %566 {offsets = [2, 0], sizes = [2, 32], strides = [1, 1]} : vector<16x32xf32> to vector<2x32xf32>
    %573 = arith.truncf %572 : vector<2x32xf32> to vector<2x32xbf16>
    %c0_211 = arith.constant 0 : index
    %c1_212 = arith.constant 1 : index
    %c0_213 = arith.constant 0 : index
    %574 = vector.load %arg4[%c0_211, %c1_212, %c0_213] : memref<2x8x32xbf16, #tpu.memory_space<vmem>>, vector<2x1x32xbf16>
    %575 = vector.shape_cast %574 : vector<2x1x32xbf16> to vector<2x32xbf16>
    %576 = vector.shape_cast %573 : vector<2x32xbf16> to vector<2x1x32xbf16>
    tpu.vector_store %arg4[%c0_211, %c1_212, %c0_213], %576 {strides = array<i32>} : memref<2x8x32xbf16, #tpu.memory_space<vmem>>, vector<2x1x32xbf16>,
    %577 = vector.extract_strided_slice %566 {offsets = [4, 0], sizes = [2, 32], strides = [1, 1]} : vector<16x32xf32> to vector<2x32xf32>
    %578 = arith.truncf %577 : vector<2x32xf32> to vector<2x32xbf16>
    %c0_214 = arith.constant 0 : index
    %c2_215 = arith.constant 2 : index
    %c0_216 = arith.constant 0 : index
    %579 = vector.load %arg4[%c0_214, %c2_215, %c0_216] : memref<2x8x32xbf16, #tpu.memory_space<vmem>>, vector<2x1x32xbf16>
    %580 = vector.shape_cast %579 : vector<2x1x32xbf16> to vector<2x32xbf16>
    %581 = vector.shape_cast %578 : vector<2x32xbf16> to vector<2x1x32xbf16>
    tpu.vector_store %arg4[%c0_214, %c2_215, %c0_216], %581 {strides = array<i32>} : memref<2x8x32xbf16, #tpu.memory_space<vmem>>, vector<2x1x32xbf16>,
    %582 = vector.extract_strided_slice %566 {offsets = [6, 0], sizes = [2, 32], strides = [1, 1]} : vector<16x32xf32> to vector<2x32xf32>
    %583 = arith.truncf %582 : vector<2x32xf32> to vector<2x32xbf16>
    %c0_217 = arith.constant 0 : index
    %c3_218 = arith.constant 3 : index
    %c0_219 = arith.constant 0 : index
    %584 = vector.load %arg4[%c0_217, %c3_218, %c0_219] : memref<2x8x32xbf16, #tpu.memory_space<vmem>>, vector<2x1x32xbf16>
    %585 = vector.shape_cast %584 : vector<2x1x32xbf16> to vector<2x32xbf16>
    %586 = vector.shape_cast %583 : vector<2x32xbf16> to vector<2x1x32xbf16>
    tpu.vector_store %arg4[%c0_217, %c3_218, %c0_219], %586 {strides = array<i32>} : memref<2x8x32xbf16, #tpu.memory_space<vmem>>, vector<2x1x32xbf16>,
    %587 = vector.extract_strided_slice %566 {offsets = [8, 0], sizes = [2, 32], strides = [1, 1]} : vector<16x32xf32> to vector<2x32xf32>
    %588 = arith.truncf %587 : vector<2x32xf32> to vector<2x32xbf16>
    %c0_220 = arith.constant 0 : index
    %c4_221 = arith.constant 4 : index
    %c0_222 = arith.constant 0 : index
    %589 = vector.load %arg4[%c0_220, %c4_221, %c0_222] : memref<2x8x32xbf16, #tpu.memory_space<vmem>>, vector<2x1x32xbf16>
    %590 = vector.shape_cast %589 : vector<2x1x32xbf16> to vector<2x32xbf16>
    %591 = vector.shape_cast %588 : vector<2x32xbf16> to vector<2x1x32xbf16>
    tpu.vector_store %arg4[%c0_220, %c4_221, %c0_222], %591 {strides = array<i32>} : memref<2x8x32xbf16, #tpu.memory_space<vmem>>, vector<2x1x32xbf16>,
    %592 = vector.extract_strided_slice %566 {offsets = [10, 0], sizes = [2, 32], strides = [1, 1]} : vector<16x32xf32> to vector<2x32xf32>
    %593 = arith.truncf %592 : vector<2x32xf32> to vector<2x32xbf16>
    %c0_223 = arith.constant 0 : index
    %c5_224 = arith.constant 5 : index
    %c0_225 = arith.constant 0 : index
    %594 = vector.load %arg4[%c0_223, %c5_224, %c0_225] : memref<2x8x32xbf16, #tpu.memory_space<vmem>>, vector<2x1x32xbf16>
    %595 = vector.shape_cast %594 : vector<2x1x32xbf16> to vector<2x32xbf16>
    %596 = vector.shape_cast %593 : vector<2x32xbf16> to vector<2x1x32xbf16>
    tpu.vector_store %arg4[%c0_223, %c5_224, %c0_225], %596 {strides = array<i32>} : memref<2x8x32xbf16, #tpu.memory_space<vmem>>, vector<2x1x32xbf16>,
    %597 = vector.extract_strided_slice %566 {offsets = [12, 0], sizes = [2, 32], strides = [1, 1]} : vector<16x32xf32> to vector<2x32xf32>
    %598 = arith.truncf %597 : vector<2x32xf32> to vector<2x32xbf16>
    %c0_226 = arith.constant 0 : index
    %c6_227 = arith.constant 6 : index
    %c0_228 = arith.constant 0 : index
    %599 = vector.load %arg4[%c0_226, %c6_227, %c0_228] : memref<2x8x32xbf16, #tpu.memory_space<vmem>>, vector<2x1x32xbf16>
    %600 = vector.shape_cast %599 : vector<2x1x32xbf16> to vector<2x32xbf16>
    %601 = vector.shape_cast %598 : vector<2x32xbf16> to vector<2x1x32xbf16>
    tpu.vector_store %arg4[%c0_226, %c6_227, %c0_228], %601 {strides = array<i32>} : memref<2x8x32xbf16, #tpu.memory_space<vmem>>, vector<2x1x32xbf16>,
    %602 = vector.extract_strided_slice %566 {offsets = [14, 0], sizes = [2, 32], strides = [1, 1]} : vector<16x32xf32> to vector<2x32xf32>
    %603 = arith.truncf %602 : vector<2x32xf32> to vector<2x32xbf16>
    %c0_229 = arith.constant 0 : index
    %c7_230 = arith.constant 7 : index
    %c0_231 = arith.constant 0 : index
    %604 = vector.load %arg4[%c0_229, %c7_230, %c0_231] : memref<2x8x32xbf16, #tpu.memory_space<vmem>>, vector<2x1x32xbf16>
    %605 = vector.shape_cast %604 : vector<2x1x32xbf16> to vector<2x32xbf16>
    %606 = vector.shape_cast %603 : vector<2x32xbf16> to vector<2x1x32xbf16>
    tpu.vector_store %arg4[%c0_229, %c7_230, %c0_231], %606 {strides = array<i32>} : memref<2x8x32xbf16, #tpu.memory_space<vmem>>, vector<2x1x32xbf16>,
    return
  }
  func.func @transform_0(%arg0: i32) -> (i32, i32, i32) {
    %c0_i32 = arith.constant 0 : i32
    %c0_i32_0 = arith.constant 0 : i32
    %c0_i32_1 = arith.constant 0 : i32
    return %c0_i32, %arg0, %c0_i32_0 : i32, i32, i32
  }
  func.func @transform_1(%arg0: i32) -> (i32, i32) {
    %c0_i32 = arith.constant 0 : i32
    %c0_i32_0 = arith.constant 0 : i32
    %c0_i32_1 = arith.constant 0 : i32
    return %c0_i32, %c0_i32_0 : i32, i32
  }
  func.func @transform_2(%arg0: i32) -> (i32, i32) {
    %c0_i32 = arith.constant 0 : i32
    %c0_i32_0 = arith.constant 0 : i32
    %c0_i32_1 = arith.constant 0 : i32
    return %c0_i32, %c0_i32_0 : i32, i32
  }
  func.func @transform_3(%arg0: i32) -> (i32, i32, i32) {
    %c0_i32 = arith.constant 0 : i32
    %c0_i32_0 = arith.constant 0 : i32
    %c0_i32_1 = arith.constant 0 : i32
    return %c0_i32, %arg0, %c0_i32_0 : i32, i32, i32
  }
}

module attributes {stable_mosaic.version = 11 : i64} {
  func.func @_matmul_kernel_1k(%arg0: i32, %arg1: i32, %arg2: memref<16x32xbf16, #tpu.memory_space<vmem>>, %arg3: memref<32x64xbf16, #tpu.memory_space<vmem>>, %arg4: memref<1x64xf32, #tpu.memory_space<vmem>>, %arg5: memref<16x64xbf16, #tpu.memory_space<vmem>>) attributes {dimension_semantics = [#tpu.dimension_semantics<parallel>, #tpu.dimension_semantics<parallel>], iteration_bounds = array<i64: 1, 1>, scalar_prefetch = 0 : i64, scratch_operands = 0 : i64, tpu.core_type = #tpu.core_type<tc>, window_params = [{transform_indices = @transform_0, window_bounds = array<i64: 16, 32>}, {transform_indices = @transform_1, window_bounds = array<i64: 32, 64>}, {transform_indices = @transform_2, window_bounds = array<i64: 1, 64>}, {transform_indices = @transform_3, window_bounds = array<i64: 16, 64>}]} {
    %c0 = arith.constant 0 : index
    %c0_0 = arith.constant 0 : index
    %0 = vector.load %arg2[%c0, %c0_0] : memref<16x32xbf16, #tpu.memory_space<vmem>>, vector<16x32xbf16>
    %c0_1 = arith.constant 0 : index
    %c0_2 = arith.constant 0 : index
    %1 = vector.load %arg3[%c0_1, %c0_2] : memref<32x64xbf16, #tpu.memory_space<vmem>>, vector<32x64xbf16>
    %cst = arith.constant dense<0.000000e+00> : vector<16x64xf32>
    %2 = tpu.matmul %0, %1, %cst {dimension_numbers = #tpu.dot_dimension_numbers<[1], [0], [0], [1], [0, 0, 1, 1], [], []>} : vector<16x32xbf16>, vector<32x64xbf16>, vector<16x64xf32> -> vector<16x64xf32>
    %c0_3 = arith.constant 0 : index
    %c0_4 = arith.constant 0 : index
    %3 = vector.load %arg4[%c0_3, %c0_4] : memref<1x64xf32, #tpu.memory_space<vmem>>, vector<1x64xf32>
    %4 = vector.broadcast %3 : vector<1x64xf32> to vector<16x64xf32>
    %5 = arith.addf %2, %4 : vector<16x64xf32>
    %cst_5 = arith.constant 0.000000e+00 : f32
    %6 = vector.broadcast %cst_5 : f32 to vector<16x64xf32>
    %7 = arith.maximumf %5, %6 : vector<16x64xf32>
    %8 = arith.truncf %7 : vector<16x64xf32> to vector<16x64xbf16>
    %c0_6 = arith.constant 0 : index
    %c0_7 = arith.constant 0 : index
    %9 = vector.load %arg5[%c0_6, %c0_7] : memref<16x64xbf16, #tpu.memory_space<vmem>>, vector<16x64xbf16>
    tpu.vector_store %arg5[%c0_6, %c0_7], %8 {strides = array<i32>} : memref<16x64xbf16, #tpu.memory_space<vmem>>, vector<16x64xbf16>,
    return
  }
  func.func @transform_0(%arg0: i32, %arg1: i32) -> (i32, i32) {
    %c0_i32 = arith.constant 0 : i32
    %c0_i32_0 = arith.constant 0 : i32
    return %arg0, %c0_i32 : i32, i32
  }
  func.func @transform_1(%arg0: i32, %arg1: i32) -> (i32, i32) {
    %c0_i32 = arith.constant 0 : i32
    %c0_i32_0 = arith.constant 0 : i32
    return %c0_i32, %arg1 : i32, i32
  }
  func.func @transform_2(%arg0: i32, %arg1: i32) -> (i32, i32) {
    %c0_i32 = arith.constant 0 : i32
    %c0_i32_0 = arith.constant 0 : i32
    return %c0_i32, %arg1 : i32, i32
  }
  func.func @transform_3(%arg0: i32, %arg1: i32) -> (i32, i32) {
    %c0_i32 = arith.constant 0 : i32
    return %arg0, %arg1 : i32, i32
  }
}

module attributes {stable_mosaic.version = 11 : i64} {
  func.func @_ln_kernel(%arg0: i32, %arg1: memref<16x32xbf16, #tpu.memory_space<vmem>>, %arg2: memref<1x32xf32, #tpu.memory_space<vmem>>, %arg3: memref<1x32xf32, #tpu.memory_space<vmem>>, %arg4: memref<16x32xf32, #tpu.memory_space<vmem>>) attributes {dimension_semantics = [#tpu.dimension_semantics<parallel>], iteration_bounds = array<i64: 1>, scalar_prefetch = 0 : i64, scratch_operands = 0 : i64, tpu.core_type = #tpu.core_type<tc>, window_params = [{transform_indices = @transform_0, window_bounds = array<i64: 16, 32>}, {pipeline_mode = #tpu.pipeline_mode<synchronous>, transform_indices = @transform_1, window_bounds = array<i64: 1, 32>}, {pipeline_mode = #tpu.pipeline_mode<synchronous>, transform_indices = @transform_2, window_bounds = array<i64: 1, 32>}, {transform_indices = @transform_3, window_bounds = array<i64: 16, 32>}]} {
    %c0 = arith.constant 0 : index
    %c0_0 = arith.constant 0 : index
    %0 = vector.load %arg1[%c0, %c0_0] : memref<16x32xbf16, #tpu.memory_space<vmem>>, vector<16x32xbf16>
    %1 = arith.extf %0 : vector<16x32xbf16> to vector<16x32xf32>
    %c0_1 = arith.constant 0 : index
    %c0_2 = arith.constant 0 : index
    %2 = vector.load %arg2[%c0_1, %c0_2] : memref<1x32xf32, #tpu.memory_space<vmem>>, vector<1x32xf32>
    %c0_3 = arith.constant 0 : index
    %c0_4 = arith.constant 0 : index
    %3 = vector.load %arg3[%c0_3, %c0_4] : memref<1x32xf32, #tpu.memory_space<vmem>>, vector<1x32xf32>
    %cst = arith.constant dense<0.000000e+00> : vector<16xf32>
    %4 = vector.multi_reduction <add>, %1, %cst [1] : vector<16x32xf32> to vector<16xf32>
    %5 = vector.shape_cast %4 : vector<16xf32> to vector<16x1xf32>
    %cst_5 = arith.constant 3.200000e+01 : f32
    %6 = vector.broadcast %cst_5 : f32 to vector<16x1xf32>
    %7 = arith.divf %5, %6 : vector<16x1xf32>
    %8 = vector.broadcast %7 : vector<16x1xf32> to vector<16x32xf32>
    %9 = arith.subf %1, %8 : vector<16x32xf32>
    %10 = arith.mulf %9, %9 : vector<16x32xf32>
    %cst_6 = arith.constant dense<0.000000e+00> : vector<16xf32>
    %11 = vector.multi_reduction <add>, %10, %cst_6 [1] : vector<16x32xf32> to vector<16xf32>
    %12 = vector.shape_cast %11 : vector<16xf32> to vector<16x1xf32>
    %cst_7 = arith.constant 3.200000e+01 : f32
    %13 = vector.broadcast %cst_7 : f32 to vector<16x1xf32>
    %14 = arith.divf %12, %13 : vector<16x1xf32>
    %cst_8 = arith.constant 9.99999974E-6 : f32
    %15 = vector.broadcast %cst_8 : f32 to vector<16x1xf32>
    %16 = arith.addf %14, %15 : vector<16x1xf32>
    %17 = math.rsqrt %16 : vector<16x1xf32>
    %18 = vector.broadcast %17 : vector<16x1xf32> to vector<16x32xf32>
    %19 = arith.mulf %9, %18 : vector<16x32xf32>
    %20 = vector.broadcast %2 : vector<1x32xf32> to vector<16x32xf32>
    %21 = arith.mulf %19, %20 : vector<16x32xf32>
    %22 = vector.broadcast %3 : vector<1x32xf32> to vector<16x32xf32>
    %23 = arith.addf %21, %22 : vector<16x32xf32>
    %24 = arith.mulf %23, %23 : vector<16x32xf32>
    %cst_9 = arith.constant dense<0.000000e+00> : vector<16xf32>
    %25 = vector.multi_reduction <add>, %24, %cst_9 [1] : vector<16x32xf32> to vector<16xf32>
    %26 = vector.shape_cast %25 : vector<16xf32> to vector<16x1xf32>
    %27 = math.sqrt %26 : vector<16x1xf32>
    %cst_10 = arith.constant 9.99999996E-13 : f32
    %28 = vector.broadcast %cst_10 : f32 to vector<16x1xf32>
    %29 = arith.maximumf %27, %28 : vector<16x1xf32>
    %30 = vector.broadcast %29 : vector<16x1xf32> to vector<16x32xf32>
    %31 = arith.divf %23, %30 : vector<16x32xf32>
    %c0_11 = arith.constant 0 : index
    %c0_12 = arith.constant 0 : index
    %32 = vector.load %arg4[%c0_11, %c0_12] : memref<16x32xf32, #tpu.memory_space<vmem>>, vector<16x32xf32>
    tpu.vector_store %arg4[%c0_11, %c0_12], %31 {strides = array<i32>} : memref<16x32xf32, #tpu.memory_space<vmem>>, vector<16x32xf32>,
    return
  }
  func.func @transform_0(%arg0: i32) -> (i32, i32) {
    %c0_i32 = arith.constant 0 : i32
    %c0_i32_0 = arith.constant 0 : i32
    return %arg0, %c0_i32 : i32, i32
  }
  func.func @transform_1(%arg0: i32) -> (i32, i32) {
    %c0_i32 = arith.constant 0 : i32
    %c0_i32_0 = arith.constant 0 : i32
    %c0_i32_1 = arith.constant 0 : i32
    return %c0_i32, %c0_i32_0 : i32, i32
  }
  func.func @transform_2(%arg0: i32) -> (i32, i32) {
    %c0_i32 = arith.constant 0 : i32
    %c0_i32_0 = arith.constant 0 : i32
    %c0_i32_1 = arith.constant 0 : i32
    return %c0_i32, %c0_i32_0 : i32, i32
  }
  func.func @transform_3(%arg0: i32) -> (i32, i32) {
    %c0_i32 = arith.constant 0 : i32
    %c0_i32_0 = arith.constant 0 : i32
    return %arg0, %c0_i32 : i32, i32
  }
}

module attributes {stable_mosaic.version = 11 : i64} {
  func.func @_matmul_kernel_1k(%arg0: i32, %arg1: i32, %arg2: memref<16x64xbf16, #tpu.memory_space<vmem>>, %arg3: memref<64x32xbf16, #tpu.memory_space<vmem>>, %arg4: memref<1x32xf32, #tpu.memory_space<vmem>>, %arg5: memref<16x32xbf16, #tpu.memory_space<vmem>>) attributes {dimension_semantics = [#tpu.dimension_semantics<parallel>, #tpu.dimension_semantics<parallel>], iteration_bounds = array<i64: 1, 1>, scalar_prefetch = 0 : i64, scratch_operands = 0 : i64, tpu.core_type = #tpu.core_type<tc>, window_params = [{transform_indices = @transform_0, window_bounds = array<i64: 16, 64>}, {transform_indices = @transform_1, window_bounds = array<i64: 64, 32>}, {transform_indices = @transform_2, window_bounds = array<i64: 1, 32>}, {transform_indices = @transform_3, window_bounds = array<i64: 16, 32>}]} {
    %c0 = arith.constant 0 : index
    %c0_0 = arith.constant 0 : index
    %0 = vector.load %arg2[%c0, %c0_0] : memref<16x64xbf16, #tpu.memory_space<vmem>>, vector<16x64xbf16>
    %c0_1 = arith.constant 0 : index
    %c0_2 = arith.constant 0 : index
    %1 = vector.load %arg3[%c0_1, %c0_2] : memref<64x32xbf16, #tpu.memory_space<vmem>>, vector<64x32xbf16>
    %cst = arith.constant dense<0.000000e+00> : vector<16x32xf32>
    %2 = tpu.matmul %0, %1, %cst {dimension_numbers = #tpu.dot_dimension_numbers<[1], [0], [0], [1], [0, 0, 1, 1], [], []>} : vector<16x64xbf16>, vector<64x32xbf16>, vector<16x32xf32> -> vector<16x32xf32>
    %c0_3 = arith.constant 0 : index
    %c0_4 = arith.constant 0 : index
    %3 = vector.load %arg4[%c0_3, %c0_4] : memref<1x32xf32, #tpu.memory_space<vmem>>, vector<1x32xf32>
    %4 = vector.broadcast %3 : vector<1x32xf32> to vector<16x32xf32>
    %5 = arith.addf %2, %4 : vector<16x32xf32>
    %6 = arith.truncf %5 : vector<16x32xf32> to vector<16x32xbf16>
    %c0_5 = arith.constant 0 : index
    %c0_6 = arith.constant 0 : index
    %7 = vector.load %arg5[%c0_5, %c0_6] : memref<16x32xbf16, #tpu.memory_space<vmem>>, vector<16x32xbf16>
    tpu.vector_store %arg5[%c0_5, %c0_6], %6 {strides = array<i32>} : memref<16x32xbf16, #tpu.memory_space<vmem>>, vector<16x32xbf16>,
    return
  }
  func.func @transform_0(%arg0: i32, %arg1: i32) -> (i32, i32) {
    %c0_i32 = arith.constant 0 : i32
    %c0_i32_0 = arith.constant 0 : i32
    return %arg0, %c0_i32 : i32, i32
  }
  func.func @transform_1(%arg0: i32, %arg1: i32) -> (i32, i32) {
    %c0_i32 = arith.constant 0 : i32
    %c0_i32_0 = arith.constant 0 : i32
    return %c0_i32, %arg1 : i32, i32
  }
  func.func @transform_2(%arg0: i32, %arg1: i32) -> (i32, i32) {
    %c0_i32 = arith.constant 0 : i32
    %c0_i32_0 = arith.constant 0 : i32
    return %c0_i32, %arg1 : i32, i32
  }
  func.func @transform_3(%arg0: i32, %arg1: i32) -> (i32, i32) {
    %c0_i32 = arith.constant 0 : i32
    return %arg0, %arg1 : i32, i32
  }
}

</mosaic_0001>

<llo_original>
// kernel: clip_trainer_forward.41
$region0: #{clip_trainer_forward.41}
  #allocation0 [shape = 'u32[]', space=smem, size = 0x4, offset = 0x4, fixed_abs, tag = 'smem constant byte address 0x4 - core index']
  #allocation1 [shape = 'u32[72,128]{1,0:T(1,128)}', space=vmem, size = 0x9000, scoped, tag = 'internal scratch']
  %s0 = inlined_call_operand.vmem [shape: bf16[10,32], index: 0, kind: input, shape index: {}]
  %s1 = inlined_call_operand.vmem [shape: bf16[32,96], index: 1, kind: input, shape index: {}]
  %s2 = inlined_call_operand.vmem [shape: f32[1,96], index: 2, kind: input, shape index: {}]
  %s3 = inlined_call_operand.vmem [shape: bf16[10,96], index: 3, kind: output, shape index: {}]
  %s4 = sld [smem:[#allocation0]]
  $region22: #{clip_trainer_forward.41} parent=0
    _
  %s6 = ssub.s32 1, %s4
  %s7 = scalar_select 0, %s6, %s4
  // Predicated region
  $region2: #{clip_trainer_forward.41} parent=0 // pred_check
    _
  $region3: #{clip_trainer_forward.41} parent=0 // pred_check_branch
    %9 = sbr.rel (0) target = $region5
  $region4: #{clip_trainer_forward.41} parent=0 // pred_region
    _
  $region5: #{clip_trainer_forward.41} parent=0 // pred_fallthru
    _
  // Predicated region
  $region6: #{clip_trainer_forward.41} parent=0 // pred_check
    _
  $region7: #{clip_trainer_forward.41} parent=0 // pred_check_branch
    %11 = sbr.rel (0) target = $region9
  $region8: #{clip_trainer_forward.41} parent=0 // pred_region
    _
  $region9: #{clip_trainer_forward.41} parent=0 // pred_fallthru
    _
  // Predicated region
  $region10: #{clip_trainer_forward.41} parent=0 // pred_check
    _
  $region11: #{clip_trainer_forward.41} parent=0 // pred_check_branch
    %13 = sbr.rel (0) target = $region13
  $region12: #{clip_trainer_forward.41} parent=0 // pred_region
    _
  $region13: #{clip_trainer_forward.41} parent=0 // pred_fallthru
    _
  %v15 = vld [vmem:[%s0] sm:$0xf]
  %v16 = vld [vmem:[%s0 + $0x4] sm:$0x1]
  %v17 = vld [vmem:[%s1] sm:$0xf]
  %v18 = vld [vmem:[%s1 + $0x4] sm:$0xf]
  %v19 = vld [vmem:[%s1 + $0x8] sm:$0xf]
  %v20 = vld [vmem:[%s1 + $0xc] sm:$0xf]
  %v21 = vld [vmem:[%s2] sm:$0x1]
  %v23 = vperm.slane %v21, 0
  %v27 = vunpack.c.l.b16 %v15
  %v28 = vunpack.c.l.b16 %v16
  %v29 = vpack.c.b16 %v28, %v27
  %v34 = vunpack.c.l.b16 %v17
  %v35 = vunpack.c.l.b16 %v18
  %v36 = vunpack.c.l.b16 %v19
  %v37 = vunpack.c.l.b16 %v20
  %v38 = vpack.c.b16 %v35, %v34
  %v39 = vpack.c.b16 %v37, %v36
  %vm42 = vcmask 261120
  %v44 = vsel %vm42, %v29, 0
  %46 = vmatpush.bf16.msra.mxu0 0
  %47 = vmatpush.bf16.msra.mxu0 0
  %48 = vmatpush.bf16.msra.mxu0 0
  %49 = vmatpush.bf16.msra.mxu0 0
  %50 = vmatpush.bf16.msra.mxu0 0
  %51 = vmatpush.bf16.msra.mxu0 0
  %52 = vmatpush.bf16.msra.mxu0 %v39
  %53 = vmatpush.bf16.msra.mxu0 %v38
  %54 = vmatmul.bf16.gmra.mxu0 %v44
  %v55 = vpop.f32.mrf.mxu0
  %v56 = vadd.f32 %v23, %v55
  %v57 = vpop.f32.mrf.mxu0
  %v58 = vadd.f32 %v23, %v57
  %59 = vdwg.mxu0
  %v60 = vpack.c.bf16 %v56, %v56
  %v61 = vpack.c.bf16 %v58, %v58
  %vm62 = vcmask 781312
  %63 = vst.msk [vmem:[%s3] sm:$0xf] %vm62, %v60
  %vm64 = vcmask 778240
  %65 = vst.msk [vmem:[%s3 + $0x4] sm:$0x1] %vm64, %v61
  // Predicated region
  $region14: #{clip_trainer_forward.41} parent=0 // pred_check
    _
  $region15: #{clip_trainer_forward.41} parent=0 // pred_check_branch
    %67 = sbr.rel (0) target = $region17
  $region16: #{clip_trainer_forward.41} parent=0 // pred_region
    _
  $region17: #{clip_trainer_forward.41} parent=0 // pred_fallthru
    _
  // Predicated region
  $region18: #{clip_trainer_forward.41} parent=0 // pred_check
    _
  $region19: #{clip_trainer_forward.41} parent=0 // pred_check_branch
    %69 = sbr.rel (0) target = $region21
  $region20: #{clip_trainer_forward.41} parent=0 // pred_region
    _
  $region21: #{clip_trainer_forward.41} parent=0 // pred_fallthru
    _

// kernel: clip_trainer_forward.43
$region0: #{clip_trainer_forward.43}
  #allocation0 [shape = 'u32[]', space=smem, size = 0x4, offset = 0x4, fixed_abs, tag = 'smem constant byte address 0x4 - core index']
  #allocation1 [shape = 'u32[72,128]{1,0:T(1,128)}', space=vmem, size = 0x9000, scoped, tag = 'internal scratch']
  %s0 = inlined_call_operand.vmem [shape: bf16[10,32], index: 0, kind: input, shape index: {}]
  %s1 = inlined_call_operand.vmem [shape: bf16[10,32], index: 1, kind: input, shape index: {}]
  %s2 = inlined_call_operand.vmem [shape: f32[1,32], index: 2, kind: input, shape index: {}]
  %s3 = inlined_call_operand.vmem [shape: f32[1,32], index: 3, kind: input, shape index: {}]
  %s4 = inlined_call_operand.vmem [shape: bf16[10,32], index: 4, kind: output, shape index: {}]
  %s5 = sld [smem:[#allocation0]]
  $region26: #{clip_trainer_forward.43} parent=0
    _
  %s7 = ssub.s32 1, %s5
  %s8 = scalar_select 0, %s7, %s5
  // Predicated region
  $region2: #{clip_trainer_forward.43} parent=0 // pred_check
    _
  $region3: #{clip_trainer_forward.43} parent=0 // pred_check_branch
    %10 = sbr.rel (0) target = $region5
  $region4: #{clip_trainer_forward.43} parent=0 // pred_region
    _
  $region5: #{clip_trainer_forward.43} parent=0 // pred_fallthru
    _
  // Predicated region
  $region6: #{clip_trainer_forward.43} parent=0 // pred_check
    _
  $region7: #{clip_trainer_forward.43} parent=0 // pred_check_branch
    %12 = sbr.rel (0) target = $region9
  $region8: #{clip_trainer_forward.43} parent=0 // pred_region
    _
  $region9: #{clip_trainer_forward.43} parent=0 // pred_fallthru
    _
  // Predicated region
  $region10: #{clip_trainer_forward.43} parent=0 // pred_check
    _
  $region11: #{clip_trainer_forward.43} parent=0 // pred_check_branch
    %14 = sbr.rel (0) target = $region13
  $region12: #{clip_trainer_forward.43} parent=0 // pred_region
    _
  $region13: #{clip_trainer_forward.43} parent=0 // pred_fallthru
    _
  // Predicated region
  $region14: #{clip_trainer_forward.43} parent=0 // pred_check
    _
  $region15: #{clip_trainer_forward.43} parent=0 // pred_check_branch
    %16 = sbr.rel (0) target = $region17
  $region16: #{clip_trainer_forward.43} parent=0 // pred_region
    _
  $region17: #{clip_trainer_forward.43} parent=0 // pred_fallthru
    _
  %v17 = vld [vmem:[%s0] sm:$0xf]
  %v18 = vld [vmem:[%s0 + $0x4] sm:$0x1]
  %v19 = vunpack.c.l.bf16 %v17
  %v20 = vunpack.c.l.bf16 %v18
  %v21 = vld [vmem:[%s1] sm:$0xf]
  %v22 = vld [vmem:[%s1 + $0x4] sm:$0x1]
  %v23 = vunpack.c.l.bf16 %v21
  %v24 = vunpack.c.l.bf16 %v22
  %v25 = vadd.f32 %v19, %v23
  %v26 = vadd.f32 %v20, %v24
  %v27 = vld [vmem:[%s2] sm:$0x1]
  %v28 = vld [vmem:[%s3] sm:$0x1]
  %vm29 = vcmask 261120
  %v30 = vsel %vm29, %v25, 0.0
  %31 = vadd.xlane.f32.xlu0 %v30
  %v32 = vpop.xlane.xlu0 %31
  %vm33 = vcmask 254976
  %v34 = vsel %vm33, %v26, 0.0
  %35 = vadd.xlane.f32.xlu0 %v34
  %v36 = vpop.xlane.xlu0 %35
  %v37 = vrcp.pop 32.0
  %v38 = vmul.f32 32.0, %v37
  %v39 = vsub.f32 1.0, %v38
  %v40 = vmul.f32 %v37, %v39
  %v41 = vadd.f32 %v37, %v40
  %vm42 = vweird.f32 %v37
  %v43 = vsel %vm42, %v37, %v41
  %v44 = vmul.f32 %v32, %v43
  %v45 = vmul.f32 %v36, %v43
  %v46 = vsub.f32 %v25, %v44
  %v47 = vsub.f32 %v26, %v45
  %v48 = vmul.f32 %v46, %v46
  %v49 = vmul.f32 %v47, %v47
  %v50 = vsel %vm29, %v48, 0.0
  %51 = vadd.xlane.f32.xlu0 %v50
  %v52 = vpop.xlane.xlu0 %51
  %v53 = vsel %vm33, %v49, 0.0
  %54 = vadd.xlane.f32.xlu0 %v53
  %v55 = vpop.xlane.xlu0 %54
  %v56 = vmul.f32 %v52, %v43
  %v57 = vmul.f32 %v55, %v43
  %v58 = vadd.f32 %v56, 1e-05
  %v59 = vadd.f32 %v57, 1e-05
  %v60 = vrsqrt.pop %v58
  %v61 = vmul.f32 %v60, %v58
  %v62 = vmul.f32 %v61, %v60
  %v63 = vmul.f32 0.5, %v62
  %v64 = vsub.f32 1.5, %v63
  %v65 = vmul.f32 %v60, %v64
  %vm66 = vweird.f32 %v58
  %vm67 = vweird.f32 %v60
  %vm68 = vmor %vm66, %vm67
  %v69 = vsel %vm68, %v60, %v65
  %v70 = vrsqrt.pop %v59
  %v71 = vmul.f32 %v70, %v59
  %v72 = vmul.f32 %v71, %v70
  %v73 = vmul.f32 0.5, %v72
  %v74 = vsub.f32 1.5, %v73
  %v75 = vmul.f32 %v70, %v74
  %vm76 = vweird.f32 %v59
  %vm77 = vweird.f32 %v70
  %vm78 = vmor %vm76, %vm77
  %v79 = vsel %vm78, %v70, %v75
  %v80 = vmul.f32 %v46, %v69
  %v81 = vmul.f32 %v47, %v79
  %v83 = vperm.slane %v27, 0
  %v85 = vmul.f32 %v80, %v83
  %v86 = vmul.f32 %v81, %v83
  %v88 = vperm.slane %v28, 0
  %v90 = vadd.f32 %v85, %v88
  %v91 = vadd.f32 %v86, %v88
  %v92 = vpack.c.bf16 %v90, %v90
  %v93 = vpack.c.bf16 %v91, %v91
  %vm94 = vcmask 257024
  %95 = vst.msk [vmem:[%s4] sm:$0xf] %vm94, %v92
  %vm96 = vcmask 253952
  %97 = vst.msk [vmem:[%s4 + $0x4] sm:$0x1] %vm96, %v93
  // Predicated region
  $region18: #{clip_trainer_forward.43} parent=0 // pred_check
    _
  $region19: #{clip_trainer_forward.43} parent=0 // pred_check_branch
    %99 = sbr.rel (0) target = $region21
  $region20: #{clip_trainer_forward.43} parent=0 // pred_region
    _
  $region21: #{clip_trainer_forward.43} parent=0 // pred_fallthru
    _
  // Predicated region
  $region22: #{clip_trainer_forward.43} parent=0 // pred_check
    _
  $region23: #{clip_trainer_forward.43} parent=0 // pred_check_branch
    %101 = sbr.rel (0) target = $region25
  $region24: #{clip_trainer_forward.43} parent=0 // pred_region
    _
  $region25: #{clip_trainer_forward.43} parent=0 // pred_fallthru
    _

// kernel: clip_trainer_forward.40
$region0: #{clip_trainer_forward.40}
  #allocation0 [shape = 'u32[]', space=smem, size = 0x4, offset = 0x4, fixed_abs, tag = 'smem constant byte address 0x4 - core index']
  #allocation1 [shape = 'u32[72,128]{1,0:T(1,128)}', space=vmem, size = 0x9000, scoped, tag = 'internal scratch']
  %s0 = inlined_call_operand.vmem [shape: bf16[8,192], index: 0, kind: input, shape index: {}]
  %s1 = inlined_call_operand.vmem [shape: bf16[192,32], index: 1, kind: input, shape index: {}]
  %s2 = inlined_call_operand.vmem [shape: f32[1,32], index: 2, kind: input, shape index: {}]
  %s3 = inlined_call_operand.vmem [shape: bf16[8,32], index: 3, kind: output, shape index: {}]
  %s4 = sld [smem:[#allocation0]]
  $region22: #{clip_trainer_forward.40} parent=0
    _
  %s6 = ssub.s32 1, %s4
  %s7 = scalar_select 0, %s6, %s4
  // Predicated region
  $region2: #{clip_trainer_forward.40} parent=0 // pred_check
    _
  $region3: #{clip_trainer_forward.40} parent=0 // pred_check_branch
    %9 = sbr.rel (0) target = $region5
  $region4: #{clip_trainer_forward.40} parent=0 // pred_region
    _
  $region5: #{clip_trainer_forward.40} parent=0 // pred_fallthru
    _
  // Predicated region
  $region6: #{clip_trainer_forward.40} parent=0 // pred_check
    _
  $region7: #{clip_trainer_forward.40} parent=0 // pred_check_branch
    %11 = sbr.rel (0) target = $region9
  $region8: #{clip_trainer_forward.40} parent=0 // pred_region
    _
  $region9: #{clip_trainer_forward.40} parent=0 // pred_fallthru
    _
  // Predicated region
  $region10: #{clip_trainer_forward.40} parent=0 // pred_check
    _
  $region11: #{clip_trainer_forward.40} parent=0 // pred_check_branch
    %13 = sbr.rel (0) target = $region13
  $region12: #{clip_trainer_forward.40} parent=0 // pred_region
    _
  $region13: #{clip_trainer_forward.40} parent=0 // pred_fallthru
    _
  %v15 = vld [vmem:[%s0] sm:$0xff]
  %v16 = vld [vmem:[%s1] sm:$0xf]
  %v17 = vld [vmem:[%s1 + $0x4] sm:$0xf]
  %v18 = vld [vmem:[%s1 + $0x8] sm:$0xf]
  %v19 = vld [vmem:[%s1 + $0xc] sm:$0xf]
  %v20 = vld [vmem:[%s1 + $0x10] sm:$0xf]
  %v21 = vld [vmem:[%s1 + $0x14] sm:$0xf]
  %v22 = vld [vmem:[%s1 + $0x18] sm:$0xf]
  %v23 = vld [vmem:[%s1 + $0x1c] sm:$0xf]
  %v24 = vld [vmem:[%s1 + $0x20] sm:$0xf]
  %v25 = vld [vmem:[%s1 + $0x24] sm:$0xf]
  %v26 = vld [vmem:[%s1 + $0x28] sm:$0xf]
  %v27 = vld [vmem:[%s1 + $0x2c] sm:$0xf]
  %v28 = vld [vmem:[%s1 + $0x30] sm:$0xf]
  %v29 = vld [vmem:[%s1 + $0x34] sm:$0xf]
  %v30 = vld [vmem:[%s1 + $0x38] sm:$0xf]
  %v31 = vld [vmem:[%s1 + $0x3c] sm:$0xf]
  %v32 = vld [vmem:[%s1 + $0x40] sm:$0xf]
  %v33 = vld [vmem:[%s1 + $0x44] sm:$0xf]
  %v34 = vld [vmem:[%s1 + $0x48] sm:$0xf]
  %v35 = vld [vmem:[%s1 + $0x4c] sm:$0xf]
  %v36 = vld [vmem:[%s1 + $0x50] sm:$0xf]
  %v37 = vld [vmem:[%s1 + $0x54] sm:$0xf]
  %v38 = vld [vmem:[%s1 + $0x58] sm:$0xf]
  %v39 = vld [vmem:[%s1 + $0x5c] sm:$0xf]
  %v40 = vld [vmem:[%s2] sm:$0x1]
  %v42 = vperm.slane %v40, 0
  %v45 = vunpack.c.l.b16 %v15
  %v46 = vunpack.c.h.b16 %v15
  %v47 = vpack.c.b16 %v45, %v45
  %v48 = vpack.c.b16 %v46, %v46
  %v74 = vunpack.c.l.b16 %v16
  %v75 = vunpack.c.l.b16 %v17
  %v76 = vunpack.c.l.b16 %v18
  %v77 = vunpack.c.l.b16 %v19
  %v78 = vunpack.c.l.b16 %v20
  %v79 = vunpack.c.l.b16 %v21
  %v80 = vunpack.c.l.b16 %v22
  %v81 = vunpack.c.l.b16 %v23
  %v82 = vunpack.c.l.b16 %v24
  %v83 = vunpack.c.l.b16 %v25
  %v84 = vunpack.c.l.b16 %v26
  %v85 = vunpack.c.l.b16 %v27
  %v86 = vunpack.c.l.b16 %v28
  %v87 = vunpack.c.l.b16 %v29
  %v88 = vunpack.c.l.b16 %v30
  %v89 = vunpack.c.l.b16 %v31
  %v90 = vunpack.c.l.b16 %v32
  %v91 = vunpack.c.l.b16 %v33
  %v92 = vunpack.c.l.b16 %v34
  %v93 = vunpack.c.l.b16 %v35
  %v94 = vunpack.c.l.b16 %v36
  %v95 = vunpack.c.l.b16 %v37
  %v96 = vunpack.c.l.b16 %v38
  %v97 = vunpack.c.l.b16 %v39
  %v98 = vpack.c.b16 %v75, %v74
  %v99 = vpack.c.b16 %v77, %v76
  %v100 = vpack.c.b16 %v79, %v78
  %v101 = vpack.c.b16 %v81, %v80
  %v102 = vpack.c.b16 %v83, %v82
  %v103 = vpack.c.b16 %v85, %v84
  %v104 = vpack.c.b16 %v87, %v86
  %v105 = vpack.c.b16 %v89, %v88
  %v106 = vpack.c.b16 %v91, %v90
  %v107 = vpack.c.b16 %v93, %v92
  %v108 = vpack.c.b16 %v95, %v94
  %v109 = vpack.c.b16 %v97, %v96
  %vm122 = vcmask 523264
  %v124 = vsel %vm122, %v48, 0
  %126 = vmatpush.bf16.msra.mxu0 %v105
  %127 = vmatpush.bf16.msra.mxu0 %v104
  %128 = vmatpush.bf16.msra.mxu0 %v103
  %129 = vmatpush.bf16.msra.mxu0 %v102
  %130 = vmatpush.bf16.msra.mxu0 %v101
  %131 = vmatpush.bf16.msra.mxu0 %v100
  %132 = vmatpush.bf16.msra.mxu0 %v99
  %133 = vmatpush.bf16.msra.mxu0 %v98
  %134 = vmatmul.bf16.gmra.mxu0 %v47
  %v135 = vpop.f32.mrf.mxu0
  %v136 = vadd.f32 %v42, %v135
  %v137 = vpop.f32.mrf.mxu0
  %138 = vdwg.mxu0
  %139 = vmatpush.bf16.msra.mxu0 0
  %140 = vmatpush.bf16.msra.mxu0 0
  %141 = vmatpush.bf16.msra.mxu0 0
  %142 = vmatpush.bf16.msra.mxu0 0
  %143 = vmatpush.bf16.msra.mxu0 %v109
  %144 = vmatpush.bf16.msra.mxu0 %v108
  %145 = vmatpush.bf16.msra.mxu0 %v107
  %146 = vmatpush.bf16.msra.mxu0 %v106
  %147 = vmatmul.bf16.gmra.mxu0 %v124
  %v148 = vpop.f32.mrf.mxu0
  %v149 = vadd.f32 %v136, %v148
  %v150 = vpop.f32.mrf.mxu0
  %151 = vdwg.mxu0
  %v152 = vpack.c.bf16 %v149, %v149
  %vm153 = vcmask 257024
  %154 = vst.msk [vmem:[%s3] sm:$0xf] %vm153, %v152
  // Predicated region
  $region14: #{clip_trainer_forward.40} parent=0 // pred_check
    _
  $region15: #{clip_trainer_forward.40} parent=0 // pred_check_branch
    %156 = sbr.rel (0) target = $region17
  $region16: #{clip_trainer_forward.40} parent=0 // pred_region
    _
  $region17: #{clip_trainer_forward.40} parent=0 // pred_fallthru
    _
  // Predicated region
  $region18: #{clip_trainer_forward.40} parent=0 // pred_check
    _
  $region19: #{clip_trainer_forward.40} parent=0 // pred_check_branch
    %158 = sbr.rel (0) target = $region21
  $region20: #{clip_trainer_forward.40} parent=0 // pred_region
    _
  $region21: #{clip_trainer_forward.40} parent=0 // pred_fallthru
    _

// kernel: clip_trainer_forward.44
$region0: #{clip_trainer_forward.44}
  #allocation0 [shape = 'u32[]', space=smem, size = 0x4, offset = 0x4, fixed_abs, tag = 'smem constant byte address 0x4 - core index']
  #allocation1 [shape = 'u32[72,128]{1,0:T(1,128)}', space=vmem, size = 0x9000, scoped, tag = 'internal scratch']
  %s0 = inlined_call_operand.vmem [shape: bf16[10,32], index: 0, kind: input, shape index: {}]
  %s1 = inlined_call_operand.vmem [shape: bf16[32,64], index: 1, kind: input, shape index: {}]
  %s2 = inlined_call_operand.vmem [shape: f32[1,64], index: 2, kind: input, shape index: {}]
  %s3 = inlined_call_operand.vmem [shape: bf16[10,64], index: 3, kind: output, shape index: {}]
  %s4 = sld [smem:[#allocation0]]
  $region22: #{clip_trainer_forward.44} parent=0
    _
  %s6 = ssub.s32 1, %s4
  %s7 = scalar_select 0, %s6, %s4
  // Predicated region
  $region2: #{clip_trainer_forward.44} parent=0 // pred_check
    _
  $region3: #{clip_trainer_forward.44} parent=0 // pred_check_branch
    %9 = sbr.rel (0) target = $region5
  $region4: #{clip_trainer_forward.44} parent=0 // pred_region
    _
  $region5: #{clip_trainer_forward.44} parent=0 // pred_fallthru
    _
  // Predicated region
  $region6: #{clip_trainer_forward.44} parent=0 // pred_check
    _
  $region7: #{clip_trainer_forward.44} parent=0 // pred_check_branch
    %11 = sbr.rel (0) target = $region9
  $region8: #{clip_trainer_forward.44} parent=0 // pred_region
    _
  $region9: #{clip_trainer_forward.44} parent=0 // pred_fallthru
    _
  // Predicated region
  $region10: #{clip_trainer_forward.44} parent=0 // pred_check
    _
  $region11: #{clip_trainer_forward.44} parent=0 // pred_check_branch
    %13 = sbr.rel (0) target = $region13
  $region12: #{clip_trainer_forward.44} parent=0 // pred_region
    _
  $region13: #{clip_trainer_forward.44} parent=0 // pred_fallthru
    _
  %v15 = vld [vmem:[%s0] sm:$0xf]
  %v16 = vld [vmem:[%s0 + $0x4] sm:$0x1]
  %v17 = vld [vmem:[%s1] sm:$0xf]
  %v18 = vld [vmem:[%s1 + $0x4] sm:$0xf]
  %v19 = vld [vmem:[%s1 + $0x8] sm:$0xf]
  %v20 = vld [vmem:[%s1 + $0xc] sm:$0xf]
  %v21 = vld [vmem:[%s2] sm:$0x1]
  %v23 = vperm.slane %v21, 0
  %v27 = vunpack.c.l.b16 %v15
  %v28 = vunpack.c.l.b16 %v16
  %v29 = vpack.c.b16 %v28, %v27
  %v34 = vunpack.c.l.b16 %v17
  %v35 = vunpack.c.l.b16 %v18
  %v36 = vunpack.c.l.b16 %v19
  %v37 = vunpack.c.l.b16 %v20
  %v38 = vpack.c.b16 %v35, %v34
  %v39 = vpack.c.b16 %v37, %v36
  %vm42 = vcmask 261120
  %v44 = vsel %vm42, %v29, 0
  %46 = vmatpush.bf16.msra.mxu0 0
  %47 = vmatpush.bf16.msra.mxu0 0
  %48 = vmatpush.bf16.msra.mxu0 0
  %49 = vmatpush.bf16.msra.mxu0 0
  %50 = vmatpush.bf16.msra.mxu0 0
  %51 = vmatpush.bf16.msra.mxu0 0
  %52 = vmatpush.bf16.msra.mxu0 %v39
  %53 = vmatpush.bf16.msra.mxu0 %v38
  %54 = vmatmul.bf16.gmra.mxu0 %v44
  %v55 = vpop.f32.mrf.mxu0
  %v56 = vadd.f32 %v23, %v55
  %v57 = vpop.f32.mrf.mxu0
  %v58 = vadd.f32 %v23, %v57
  %59 = vdwg.mxu0
  %v60 = vmax.f32 %v56, 0.0
  %v61 = vmax.f32 %v58, 0.0
  %v62 = vpack.c.bf16 %v60, %v60
  %v63 = vpack.c.bf16 %v61, %v61
  %vm64 = vcmask 519168
  %65 = vst.msk [vmem:[%s3] sm:$0xf] %vm64, %v62
  %vm66 = vcmask 516096
  %67 = vst.msk [vmem:[%s3 + $0x4] sm:$0x1] %vm66, %v63
  // Predicated region
  $region14: #{clip_trainer_forward.44} parent=0 // pred_check
    _
  $region15: #{clip_trainer_forward.44} parent=0 // pred_check_branch
    %69 = sbr.rel (0) target = $region17
  $region16: #{clip_trainer_forward.44} parent=0 // pred_region
    _
  $region17: #{clip_trainer_forward.44} parent=0 // pred_fallthru
    _
  // Predicated region
  $region18: #{clip_trainer_forward.44} parent=0 // pred_check
    _
  $region19: #{clip_trainer_forward.44} parent=0 // pred_check_branch
    %71 = sbr.rel (0) target = $region21
  $region20: #{clip_trainer_forward.44} parent=0 // pred_region
    _
  $region21: #{clip_trainer_forward.44} parent=0 // pred_fallthru
    _

// kernel: clip_trainer_forward.45
$region0: #{clip_trainer_forward.45}
  #allocation0 [shape = 'u32[]', space=smem, size = 0x4, offset = 0x4, fixed_abs, tag = 'smem constant byte address 0x4 - core index']
  #allocation1 [shape = 'u32[72,128]{1,0:T(1,128)}', space=vmem, size = 0x9000, scoped, tag = 'internal scratch']
  %s0 = inlined_call_operand.vmem [shape: bf16[10,64], index: 0, kind: input, shape index: {}]
  %s1 = inlined_call_operand.vmem [shape: bf16[64,32], index: 1, kind: input, shape index: {}]
  %s2 = inlined_call_operand.vmem [shape: f32[1,32], index: 2, kind: input, shape index: {}]
  %s3 = inlined_call_operand.vmem [shape: bf16[10,32], index: 3, kind: output, shape index: {}]
  %s4 = sld [smem:[#allocation0]]
  $region22: #{clip_trainer_forward.45} parent=0
    _
  %s6 = ssub.s32 1, %s4
  %s7 = scalar_select 0, %s6, %s4
  // Predicated region
  $region2: #{clip_trainer_forward.45} parent=0 // pred_check
    _
  $region3: #{clip_trainer_forward.45} parent=0 // pred_check_branch
    %9 = sbr.rel (0) target = $region5
  $region4: #{clip_trainer_forward.45} parent=0 // pred_region
    _
  $region5: #{clip_trainer_forward.45} parent=0 // pred_fallthru
    _
  // Predicated region
  $region6: #{clip_trainer_forward.45} parent=0 // pred_check
    _
  $region7: #{clip_trainer_forward.45} parent=0 // pred_check_branch
    %11 = sbr.rel (0) target = $region9
  $region8: #{clip_trainer_forward.45} parent=0 // pred_region
    _
  $region9: #{clip_trainer_forward.45} parent=0 // pred_fallthru
    _
  // Predicated region
  $region10: #{clip_trainer_forward.45} parent=0 // pred_check
    _
  $region11: #{clip_trainer_forward.45} parent=0 // pred_check_branch
    %13 = sbr.rel (0) target = $region13
  $region12: #{clip_trainer_forward.45} parent=0 // pred_region
    _
  $region13: #{clip_trainer_forward.45} parent=0 // pred_fallthru
    _
  %v15 = vld [vmem:[%s0] sm:$0xf]
  %v16 = vld [vmem:[%s0 + $0x4] sm:$0x1]
  %v17 = vld [vmem:[%s1] sm:$0xf]
  %v18 = vld [vmem:[%s1 + $0x4] sm:$0xf]
  %v19 = vld [vmem:[%s1 + $0x8] sm:$0xf]
  %v20 = vld [vmem:[%s1 + $0xc] sm:$0xf]
  %v21 = vld [vmem:[%s1 + $0x10] sm:$0xf]
  %v22 = vld [vmem:[%s1 + $0x14] sm:$0xf]
  %v23 = vld [vmem:[%s1 + $0x18] sm:$0xf]
  %v24 = vld [vmem:[%s1 + $0x1c] sm:$0xf]
  %v25 = vld [vmem:[%s2] sm:$0x1]
  %v27 = vperm.slane %v25, 0
  %v31 = vunpack.c.l.b16 %v15
  %v32 = vunpack.c.l.b16 %v16
  %v33 = vpack.c.b16 %v32, %v31
  %v42 = vunpack.c.l.b16 %v17
  %v43 = vunpack.c.l.b16 %v18
  %v44 = vunpack.c.l.b16 %v19
  %v45 = vunpack.c.l.b16 %v20
  %v46 = vunpack.c.l.b16 %v21
  %v47 = vunpack.c.l.b16 %v22
  %v48 = vunpack.c.l.b16 %v23
  %v49 = vunpack.c.l.b16 %v24
  %v50 = vpack.c.b16 %v43, %v42
  %v51 = vpack.c.b16 %v45, %v44
  %v52 = vpack.c.b16 %v47, %v46
  %v53 = vpack.c.b16 %v49, %v48
  %vm58 = vcmask 523264
  %v60 = vsel %vm58, %v33, 0
  %62 = vmatpush.bf16.msra.mxu0 0
  %63 = vmatpush.bf16.msra.mxu0 0
  %64 = vmatpush.bf16.msra.mxu0 0
  %65 = vmatpush.bf16.msra.mxu0 0
  %66 = vmatpush.bf16.msra.mxu0 %v53
  %67 = vmatpush.bf16.msra.mxu0 %v52
  %68 = vmatpush.bf16.msra.mxu0 %v51
  %69 = vmatpush.bf16.msra.mxu0 %v50
  %70 = vmatmul.bf16.gmra.mxu0 %v60
  %v71 = vpop.f32.mrf.mxu0
  %v72 = vadd.f32 %v27, %v71
  %v73 = vpop.f32.mrf.mxu0
  %v74 = vadd.f32 %v27, %v73
  %75 = vdwg.mxu0
  %v76 = vpack.c.bf16 %v72, %v72
  %v77 = vpack.c.bf16 %v74, %v74
  %vm78 = vcmask 257024
  %79 = vst.msk [vmem:[%s3] sm:$0xf] %vm78, %v76
  %vm80 = vcmask 253952
  %81 = vst.msk [vmem:[%s3 + $0x4] sm:$0x1] %vm80, %v77
  // Predicated region
  $region14: #{clip_trainer_forward.45} parent=0 // pred_check
    _
  $region15: #{clip_trainer_forward.45} parent=0 // pred_check_branch
    %83 = sbr.rel (0) target = $region17
  $region16: #{clip_trainer_forward.45} parent=0 // pred_region
    _
  $region17: #{clip_trainer_forward.45} parent=0 // pred_fallthru
    _
  // Predicated region
  $region18: #{clip_trainer_forward.45} parent=0 // pred_check
    _
  $region19: #{clip_trainer_forward.45} parent=0 // pred_check_branch
    %85 = sbr.rel (0) target = $region21
  $region20: #{clip_trainer_forward.45} parent=0 // pred_region
    _
  $region21: #{clip_trainer_forward.45} parent=0 // pred_fallthru
    _

// kernel: clip_trainer_forward.53
$region0: #{clip_trainer_forward.53}
  #allocation0 [shape = 'u32[]', space=smem, size = 0x4, offset = 0x4, fixed_abs, tag = 'smem constant byte address 0x4 - core index']
  #allocation1 [shape = 'u32[72,128]{1,0:T(1,128)}', space=vmem, size = 0x9000, scoped, tag = 'internal scratch']
  %s0 = inlined_call_operand.vmem [shape: bf16[10,32], index: 0, kind: input, shape index: {}]
  %s1 = inlined_call_operand.vmem [shape: f32[1,32], index: 1, kind: input, shape index: {}]
  %s2 = inlined_call_operand.vmem [shape: f32[1,32], index: 2, kind: input, shape index: {}]
  %s3 = inlined_call_operand.vmem [shape: f32[10,32], index: 3, kind: output, shape index: {}]
  %s4 = sld [smem:[#allocation0]]
  $region22: #{clip_trainer_forward.53} parent=0
    _
  %s6 = ssub.s32 1, %s4
  %s7 = scalar_select 0, %s6, %s4
  // Predicated region
  $region2: #{clip_trainer_forward.53} parent=0 // pred_check
    _
  $region3: #{clip_trainer_forward.53} parent=0 // pred_check_branch
    %9 = sbr.rel (0) target = $region5
  $region4: #{clip_trainer_forward.53} parent=0 // pred_region
    _
  $region5: #{clip_trainer_forward.53} parent=0 // pred_fallthru
    _
  // Predicated region
  $region6: #{clip_trainer_forward.53} parent=0 // pred_check
    _
  $region7: #{clip_trainer_forward.53} parent=0 // pred_check_branch
    %11 = sbr.rel (0) target = $region9
  $region8: #{clip_trainer_forward.53} parent=0 // pred_region
    _
  $region9: #{clip_trainer_forward.53} parent=0 // pred_fallthru
    _
  // Predicated region
  $region10: #{clip_trainer_forward.53} parent=0 // pred_check
    _
  $region11: #{clip_trainer_forward.53} parent=0 // pred_check_branch
    %13 = sbr.rel (0) target = $region13
  $region12: #{clip_trainer_forward.53} parent=0 // pred_region
    _
  $region13: #{clip_trainer_forward.53} parent=0 // pred_fallthru
    _
  %v14 = vld [vmem:[%s0] sm:$0xf]
  %v15 = vld [vmem:[%s0 + $0x4] sm:$0x1]
  %v16 = vunpack.c.l.bf16 %v14
  %v17 = vunpack.c.l.bf16 %v15
  %v18 = vld [vmem:[%s1] sm:$0x1]
  %v19 = vld [vmem:[%s2] sm:$0x1]
  %vm20 = vcmask 261120
  %v21 = vsel %vm20, %v16, 0.0
  %22 = vadd.xlane.f32.xlu0 %v21
  %v23 = vpop.xlane.xlu0 %22
  %vm24 = vcmask 254976
  %v25 = vsel %vm24, %v17, 0.0
  %26 = vadd.xlane.f32.xlu0 %v25
  %v27 = vpop.xlane.xlu0 %26
  %v28 = vrcp.pop 32.0
  %v29 = vmul.f32 32.0, %v28
  %v30 = vsub.f32 1.0, %v29
  %v31 = vmul.f32 %v28, %v30
  %v32 = vadd.f32 %v28, %v31
  %vm33 = vweird.f32 %v28
  %v34 = vsel %vm33, %v28, %v32
  %v35 = vmul.f32 %v23, %v34
  %v36 = vmul.f32 %v27, %v34
  %v37 = vsub.f32 %v16, %v35
  %v38 = vsub.f32 %v17, %v36
  %v39 = vmul.f32 %v37, %v37
  %v40 = vmul.f32 %v38, %v38
  %v41 = vsel %vm20, %v39, 0.0
  %42 = vadd.xlane.f32.xlu0 %v41
  %v43 = vpop.xlane.xlu0 %42
  %v44 = vsel %vm24, %v40, 0.0
  %45 = vadd.xlane.f32.xlu0 %v44
  %v46 = vpop.xlane.xlu0 %45
  %v47 = vmul.f32 %v43, %v34
  %v48 = vmul.f32 %v46, %v34
  %v49 = vadd.f32 %v47, 1e-05
  %v50 = vadd.f32 %v48, 1e-05
  %v51 = vrsqrt.pop %v49
  %v52 = vmul.f32 %v51, %v49
  %v53 = vmul.f32 %v52, %v51
  %v54 = vmul.f32 0.5, %v53
  %v55 = vsub.f32 1.5, %v54
  %v56 = vmul.f32 %v51, %v55
  %vm57 = vweird.f32 %v49
  %vm58 = vweird.f32 %v51
  %vm59 = vmor %vm57, %vm58
  %v60 = vsel %vm59, %v51, %v56
  %v61 = vrsqrt.pop %v50
  %v62 = vmul.f32 %v61, %v50
  %v63 = vmul.f32 %v62, %v61
  %v64 = vmul.f32 0.5, %v63
  %v65 = vsub.f32 1.5, %v64
  %v66 = vmul.f32 %v61, %v65
  %vm67 = vweird.f32 %v50
  %vm68 = vweird.f32 %v61
  %vm69 = vmor %vm67, %vm68
  %v70 = vsel %vm69, %v61, %v66
  %v71 = vmul.f32 %v37, %v60
  %v72 = vmul.f32 %v38, %v70
  %v74 = vperm.slane %v18, 0
  %v76 = vmul.f32 %v71, %v74
  %v77 = vmul.f32 %v72, %v74
  %v79 = vperm.slane %v19, 0
  %v81 = vadd.f32 %v76, %v79
  %v82 = vadd.f32 %v77, %v79
  %v83 = vmul.f32 %v81, %v81
  %v84 = vmul.f32 %v82, %v82
  %v85 = vsel %vm20, %v83, 0.0
  %86 = vadd.xlane.f32.xlu0 %v85
  %v87 = vpop.xlane.xlu0 %86
  %v88 = vsel %vm24, %v84, 0.0
  %89 = vadd.xlane.f32.xlu0 %v88
  %v90 = vpop.xlane.xlu0 %89
  %v91 = vrsqrt.pop %v87
  %v92 = vmul.f32 %v91, %v87
  %v93 = vmul.f32 %v92, %v91
  %v94 = vmul.f32 0.5, %v93
  %v95 = vsub.f32 1.5, %v94
  %v96 = vmul.f32 %v91, %v95
  %v97 = vmul.f32 %v87, %v96
  %vm98 = vcmp.eq.f32.partialorder %v87, inf
  %v99 = vsel %vm98, %v87, %v97
  %vm100 = vcmp.eq.f32.partialorder %v87, 0.0
  %v101 = vand.u32 %v87, 2147483648
  %v102 = vsel %vm100, %v101, %v99
  %v103 = vrsqrt.pop %v90
  %v104 = vmul.f32 %v103, %v90
  %v105 = vmul.f32 %v104, %v103
  %v106 = vmul.f32 0.5, %v105
  %v107 = vsub.f32 1.5, %v106
  %v108 = vmul.f32 %v103, %v107
  %v109 = vmul.f32 %v90, %v108
  %vm110 = vcmp.eq.f32.partialorder %v90, inf
  %v111 = vsel %vm110, %v90, %v109
  %vm112 = vcmp.eq.f32.partialorder %v90, 0.0
  %v113 = vand.u32 %v90, 2147483648
  %v114 = vsel %vm112, %v113, %v111
  %v115 = vmax.f32 %v102, 1e-12
  %v116 = vmax.f32 %v114, 1e-12
  %v117 = vrcp.pop %v115
  %v118 = vmul.f32 %v115, %v117
  %v119 = vsub.f32 1.0, %v118
  %v120 = vmul.f32 %v117, %v119
  %v121 = vadd.f32 %v117, %v120
  %vm122 = vweird.f32 %v115
  %vm123 = vweird.f32 %v117
  %vm124 = vmor %vm122, %vm123
  %v125 = vsel %vm124, %v117, %v121
  %v126 = vand.u32 2147483647, %v115
  %vm127 = vcmp.eq.f32.partialorder %v126, 8.507059e+37
  %v128 = vand.u32 %v115, 2147483648
  %v129 = vor.u32 1.1754944e-38, %v128
  %v130 = vsel %vm127, %v129, %v125
  %v131 = vmul.f32 %v81, %v130
  %v132 = vrcp.pop %v116
  %v133 = vmul.f32 %v116, %v132
  %v134 = vsub.f32 1.0, %v133
  %v135 = vmul.f32 %v132, %v134
  %v136 = vadd.f32 %v132, %v135
  %vm137 = vweird.f32 %v116
  %vm138 = vweird.f32 %v132
  %vm139 = vmor %vm137, %vm138
  %v140 = vsel %vm139, %v132, %v136
  %v141 = vand.u32 2147483647, %v116
  %vm142 = vcmp.eq.f32.partialorder %v141, 8.507059e+37
  %v143 = vand.u32 %v116, 2147483648
  %v144 = vor.u32 1.1754944e-38, %v143
  %v145 = vsel %vm142, %v144, %v140
  %v146 = vmul.f32 %v82, %v145
  %147 = vst.msk [vmem:[%s3] sm:$0xff] %vm20, %v131
  %148 = vst.msk [vmem:[%s3 + $0x8] sm:$0x3] %vm24, %v146
  // Predicated region
  $region14: #{clip_trainer_forward.53} parent=0 // pred_check
    _
  $region15: #{clip_trainer_forward.53} parent=0 // pred_check_branch
    %150 = sbr.rel (0) target = $region17
  $region16: #{clip_trainer_forward.53} parent=0 // pred_region
    _
  $region17: #{clip_trainer_forward.53} parent=0 // pred_fallthru
    _
  // Predicated region
  $region18: #{clip_trainer_forward.53} parent=0 // pred_check
    _
  $region19: #{clip_trainer_forward.53} parent=0 // pred_check_branch
    %152 = sbr.rel (0) target = $region21
  $region20: #{clip_trainer_forward.53} parent=0 // pred_region
    _
  $region21: #{clip_trainer_forward.53} parent=0 // pred_fallthru
    _

// kernel: clip_trainer_forward.42
$region0: #{clip_trainer_forward.42}
  #allocation0 [shape = 'u32[]', space=smem, size = 0x4, offset = 0x4, fixed_abs, tag = 'smem constant byte address 0x4 - core index']
  #allocation1 [shape = 'u32[72,128]{1,0:T(1,128)}', space=vmem, size = 0x9000, scoped, tag = 'internal scratch']
  #allocation2 [shape = 'f32[10,32]{1,0:T(8,128)}', space=vmem, size = 0x2000, scoped, tag = 'scratch operand']
  %s0 = inlined_call_operand.vmem [shape: bf16[2,5,96], index: 0, kind: input, shape index: {}]
  %s1 = inlined_call_operand.vmem [shape: bf16[32,32], index: 1, kind: input, shape index: {}]
  %s2 = inlined_call_operand.vmem [shape: f32[1,32], index: 2, kind: input, shape index: {}]
  %s3 = inlined_call_operand.vmem [shape: bf16[2,5,32], index: 3, kind: output, shape index: {}]
  %s4 = sld [smem:[#allocation0]]
  $region22: #{clip_trainer_forward.42} parent=0
    _
  %s6 = ssub.s32 1, %s4
  %s7 = scalar_select 0, %s6, %s4
  // Predicated region
  $region2: #{clip_trainer_forward.42} parent=0 // pred_check
    _
  $region3: #{clip_trainer_forward.42} parent=0 // pred_check_branch
    %9 = sbr.rel (0) target = $region5
  $region4: #{clip_trainer_forward.42} parent=0 // pred_region
    _
  $region5: #{clip_trainer_forward.42} parent=0 // pred_fallthru
    _
  // Predicated region
  $region6: #{clip_trainer_forward.42} parent=0 // pred_check
    _
  $region7: #{clip_trainer_forward.42} parent=0 // pred_check_branch
    %11 = sbr.rel (0) target = $region9
  $region8: #{clip_trainer_forward.42} parent=0 // pred_region
    _
  $region9: #{clip_trainer_forward.42} parent=0 // pred_fallthru
    _
  // Predicated region
  $region10: #{clip_trainer_forward.42} parent=0 // pred_check
    _
  $region11: #{clip_trainer_forward.42} parent=0 // pred_check_branch
    %13 = sbr.rel (0) target = $region13
  $region12: #{clip_trainer_forward.42} parent=0 // pred_region
    _
  $region13: #{clip_trainer_forward.42} parent=0 // pred_fallthru
    _
  %v15 = vld [vmem:[%s0] sm:$0x1]
  %v16 = vld [vmem:[%s0 + $0x4] sm:$0x1]
  %v19 = vunpack.c.l.b16 %v15
  %v20 = vunpack.c.l.b16 %v16
  %v21 = vpack.c.b16 %v19, %v19
  %v22 = vpack.c.b16 %v20, %v20
  %v23 = vunpack.c.l.b16 %v21
  %v24 = vunpack.c.l.b16 %v22
  %v25 = vrot.slane %v24, 7
  %vm26 = vcmask 1041409
  %v27 = vsel %vm26, %v25, %v23
  %v28 = vpack.c.b16 %v27, %v27
  %29 = vrot.lane.b32.xlu0 %v28, 96
  %v30 = vpop.permute.xlu0 %29
  %vm31 = vcmask 64512
  %v33 = vsel %vm31, %v28, 0
  %v36 = vsel %vm31, %v30, 0
  %38 = vmatpush.bf16.xpose.msra.mxu0 0
  %39 = vmatpush.bf16.xpose.msra.mxu0 0
  %40 = vmatpush.bf16.xpose.msra.mxu0 0
  %41 = vmatpush.bf16.xpose.msra.mxu0 0
  %42 = vmatpush.bf16.xpose.msra.mxu0 0
  %43 = vmatpush.bf16.xpose.msra.mxu0 0
  %44 = vmatpush.bf16.xpose.msra.mxu0 0
  %45 = vmatpush.bf16.xpose.msra.mxu0 %v36
  %46 = vmatmul.bf16.gmra.mxu0 %v33
  %v47 = vpop.f32.mrf.mxu0
  %v48 = vadd.f32 0.0, %v47
  %v49 = vpop.f32.mrf.mxu0
  %50 = vdwg.mxu0
  %vm51 = vcmask 9216
  %v52 = vsel %vm51, %v48, -inf
  %53 = vmax.xlane.f32.xlu0 %v52
  %v54 = vpop.xlane.xlu0 %53
  %v55 = vsub.f32 %v48, %v54
  %v56 = vmul.f32 %v55, 1.442695
  %v57 = vpow.pop %v56
  %v58 = vsel %vm51, %v57, 0.0
  %59 = vadd.xlane.f32.xlu0 %v58
  %v60 = vpop.xlane.xlu0 %59
  %v61 = vrcp.pop %v60
  %v62 = vmul.f32 %v57, %v61
  %v63 = vpack.c.bf16 %v62, %v62
  %64 = vrot.lane.b32.xlu0 %v28, 64
  %v65 = vpop.permute.xlu0 %64
  %vm66 = vcmask 15360
  %v68 = vsel %vm66, %v63, 0
  %vm70 = vcmask 1040384
  %v72 = vsel %vm70, %v65, 0
  %74 = vmatpush.bf16.msra.mxu0 0
  %75 = vmatpush.bf16.msra.mxu0 0
  %76 = vmatpush.bf16.msra.mxu0 0
  %77 = vmatpush.bf16.msra.mxu0 0
  %78 = vmatpush.bf16.msra.mxu0 0
  %79 = vmatpush.bf16.msra.mxu0 0
  %80 = vmatpush.bf16.msra.mxu0 0
  %81 = vmatpush.bf16.msra.mxu0 %v72
  %82 = vmatmul.bf16.gmra.mxu0 %v68
  %v83 = vpop.f32.mrf.mxu0
  %v84 = vadd.f32 0.0, %v83
  %v85 = vpop.f32.mrf.mxu0
  %86 = vdwg.mxu0
  %vm87 = vcmask 58368
  %88 = vst.msk [vmem:[#allocation2] sm:$0x3] %vm87, %v84
  %89 = vrot.lane.b32.xlu0 %v28, 120
  %v90 = vpop.permute.xlu0 %89
  %91 = vrot.lane.b32.xlu0 %v28, 88
  %v92 = vpop.permute.xlu0 %91
  %v94 = vsel %vm31, %v90, 0
  %v97 = vsel %vm31, %v92, 0
  %99 = vmatpush.bf16.xpose.msra.mxu0 0
  %100 = vmatpush.bf16.xpose.msra.mxu0 0
  %101 = vmatpush.bf16.xpose.msra.mxu0 0
  %102 = vmatpush.bf16.xpose.msra.mxu0 0
  %103 = vmatpush.bf16.xpose.msra.mxu0 0
  %104 = vmatpush.bf16.xpose.msra.mxu0 0
  %105 = vmatpush.bf16.xpose.msra.mxu0 0
  %106 = vmatpush.bf16.xpose.msra.mxu0 %v97
  %107 = vmatmul.bf16.gmra.mxu0 %v94
  %v108 = vpop.f32.mrf.mxu0
  %v109 = vadd.f32 0.0, %v108
  %v110 = vpop.f32.mrf.mxu0
  %111 = vdwg.mxu0
  %v112 = vsel %vm51, %v109, -inf
  %113 = vmax.xlane.f32.xlu0 %v112
  %v114 = vpop.xlane.xlu0 %113
  %v115 = vsub.f32 %v109, %v114
  %v116 = vmul.f32 %v115, 1.442695
  %v117 = vpow.pop %v116
  %v118 = vsel %vm51, %v117, 0.0
  %119 = vadd.xlane.f32.xlu0 %v118
  %v120 = vpop.xlane.xlu0 %119
  %v121 = vrcp.pop %v120
  %v122 = vmul.f32 %v117, %v121
  %v123 = vpack.c.bf16 %v122, %v122
  %124 = vrot.lane.b32.xlu0 %v28, 56
  %v125 = vpop.permute.xlu0 %124
  %v127 = vsel %vm66, %v123, 0
  %v130 = vsel %vm70, %v125, 0
  %132 = vmatpush.bf16.msra.mxu0 0
  %133 = vmatpush.bf16.msra.mxu0 0
  %134 = vmatpush.bf16.msra.mxu0 0
  %135 = vmatpush.bf16.msra.mxu0 0
  %136 = vmatpush.bf16.msra.mxu0 0
  %137 = vmatpush.bf16.msra.mxu0 0
  %138 = vmatpush.bf16.msra.mxu0 0
  %139 = vmatpush.bf16.msra.mxu0 %v130
  %140 = vmatmul.bf16.gmra.mxu0 %v127
  %v141 = vpop.f32.mrf.mxu0
  %v142 = vadd.f32 0.0, %v141
  %v143 = vpop.f32.mrf.mxu0
  %144 = vdwg.mxu0
  %146 = vrot.lane.b32.xlu0 %v142, 8
  %v147 = vpop.permute.xlu0 %146
  %vm149 = vcmask 123968
  %150 = vst.msk [vmem:[#allocation2] sm:$0x3] %vm149, %v147
  %151 = vrot.lane.b32.xlu0 %v28, 112
  %v152 = vpop.permute.xlu0 %151
  %153 = vrot.lane.b32.xlu0 %v28, 80
  %v154 = vpop.permute.xlu0 %153
  %v156 = vsel %vm31, %v152, 0
  %v159 = vsel %vm31, %v154, 0
  %161 = vmatpush.bf16.xpose.msra.mxu0 0
  %162 = vmatpush.bf16.xpose.msra.mxu0 0
  %163 = vmatpush.bf16.xpose.msra.mxu0 0
  %164 = vmatpush.bf16.xpose.msra.mxu0 0
  %165 = vmatpush.bf16.xpose.msra.mxu0 0
  %166 = vmatpush.bf16.xpose.msra.mxu0 0
  %167 = vmatpush.bf16.xpose.msra.mxu0 0
  %168 = vmatpush.bf16.xpose.msra.mxu0 %v159
  %169 = vmatmul.bf16.gmra.mxu0 %v156
  %v170 = vpop.f32.mrf.mxu0
  %v171 = vadd.f32 0.0, %v170
  %v172 = vpop.f32.mrf.mxu0
  %173 = vdwg.mxu0
  %v174 = vsel %vm51, %v171, -inf
  %175 = vmax.xlane.f32.xlu0 %v174
  %v176 = vpop.xlane.xlu0 %175
  %v177 = vsub.f32 %v171, %v176
  %v178 = vmul.f32 %v177, 1.442695
  %v179 = vpow.pop %v178
  %v180 = vsel %vm51, %v179, 0.0
  %181 = vadd.xlane.f32.xlu0 %v180
  %v182 = vpop.xlane.xlu0 %181
  %v183 = vrcp.pop %v182
  %v184 = vmul.f32 %v179, %v183
  %v185 = vpack.c.bf16 %v184, %v184
  %186 = vrot.lane.b32.xlu0 %v28, 48
  %v187 = vpop.permute.xlu0 %186
  %v189 = vsel %vm66, %v185, 0
  %v192 = vsel %vm70, %v187, 0
  %194 = vmatpush.bf16.msra.mxu0 0
  %195 = vmatpush.bf16.msra.mxu0 0
  %196 = vmatpush.bf16.msra.mxu0 0
  %197 = vmatpush.bf16.msra.mxu0 0
  %198 = vmatpush.bf16.msra.mxu0 0
  %199 = vmatpush.bf16.msra.mxu0 0
  %200 = vmatpush.bf16.msra.mxu0 0
  %201 = vmatpush.bf16.msra.mxu0 %v192
  %202 = vmatmul.bf16.gmra.mxu0 %v189
  %v203 = vpop.f32.mrf.mxu0
  %v204 = vadd.f32 0.0, %v203
  %v205 = vpop.f32.mrf.mxu0
  %206 = vdwg.mxu0
  %208 = vrot.lane.b32.xlu0 %v204, 16
  %v209 = vpop.permute.xlu0 %208
  %vm211 = vcmask 189568
  %212 = vst.msk [vmem:[#allocation2] sm:$0x3] %vm211, %v209
  %213 = vrot.lane.b32.xlu0 %v28, 104
  %v214 = vpop.permute.xlu0 %213
  %215 = vrot.lane.b32.xlu0 %v28, 72
  %v216 = vpop.permute.xlu0 %215
  %v218 = vsel %vm31, %v214, 0
  %v221 = vsel %vm31, %v216, 0
  %223 = vmatpush.bf16.xpose.msra.mxu0 0
  %224 = vmatpush.bf16.xpose.msra.mxu0 0
  %225 = vmatpush.bf16.xpose.msra.mxu0 0
  %226 = vmatpush.bf16.xpose.msra.mxu0 0
  %227 = vmatpush.bf16.xpose.msra.mxu0 0
  %228 = vmatpush.bf16.xpose.msra.mxu0 0
  %229 = vmatpush.bf16.xpose.msra.mxu0 0
  %230 = vmatpush.bf16.xpose.msra.mxu0 %v221
  %231 = vmatmul.bf16.gmra.mxu0 %v218
  %v232 = vpop.f32.mrf.mxu0
  %v233 = vadd.f32 0.0, %v232
  %v234 = vpop.f32.mrf.mxu0
  %235 = vdwg.mxu0
  %v236 = vsel %vm51, %v233, -inf
  %237 = vmax.xlane.f32.xlu0 %v236
  %v238 = vpop.xlane.xlu0 %237
  %v239 = vsub.f32 %v233, %v238
  %v240 = vmul.f32 %v239, 1.442695
  %v241 = vpow.pop %v240
  %v242 = vsel %vm51, %v241, 0.0
  %243 = vadd.xlane.f32.xlu0 %v242
  %v244 = vpop.xlane.xlu0 %243
  %v245 = vrcp.pop %v244
  %v246 = vmul.f32 %v241, %v245
  %v247 = vpack.c.bf16 %v246, %v246
  %248 = vrot.lane.b32.xlu0 %v28, 40
  %v249 = vpop.permute.xlu0 %248
  %v251 = vsel %vm66, %v247, 0
  %v254 = vsel %vm70, %v249, 0
  %256 = vmatpush.bf16.msra.mxu0 0
  %257 = vmatpush.bf16.msra.mxu0 0
  %258 = vmatpush.bf16.msra.mxu0 0
  %259 = vmatpush.bf16.msra.mxu0 0
  %260 = vmatpush.bf16.msra.mxu0 0
  %261 = vmatpush.bf16.msra.mxu0 0
  %262 = vmatpush.bf16.msra.mxu0 0
  %263 = vmatpush.bf16.msra.mxu0 %v254
  %264 = vmatmul.bf16.gmra.mxu0 %v251
  %v265 = vpop.f32.mrf.mxu0
  %v266 = vadd.f32 0.0, %v265
  %v267 = vpop.f32.mrf.mxu0
  %268 = vdwg.mxu0
  %270 = vrot.lane.b32.xlu0 %v266, 24
  %v271 = vpop.permute.xlu0 %270
  %vm273 = vcmask 255168
  %274 = vst.msk [vmem:[#allocation2] sm:$0x3] %vm273, %v271
  %v275 = vld [vmem:[%s0] sm:$0x1]
  %v276 = vld [vmem:[%s0 + $0x4] sm:$0x1]
  %v279 = vunpack.c.l.b16 %v275
  %v280 = vunpack.c.l.b16 %v276
  %v281 = vpack.c.b16 %v279, %v279
  %v282 = vpack.c.b16 %v280, %v280
  %v283 = vunpack.c.l.b16 %v281
  %v284 = vunpack.c.l.b16 %v282
  %v285 = vrot.slane %v283, 1
  %v286 = vsel %vm26, %v284, %v285
  %v287 = vpack.c.b16 %v286, %v286
  %288 = vrot.lane.b32.xlu0 %v287, 96
  %v289 = vpop.permute.xlu0 %288
  %v291 = vsel %vm31, %v287, 0
  %v294 = vsel %vm31, %v289, 0
  %296 = vmatpush.bf16.xpose.msra.mxu0 0
  %297 = vmatpush.bf16.xpose.msra.mxu0 0
  %298 = vmatpush.bf16.xpose.msra.mxu0 0
  %299 = vmatpush.bf16.xpose.msra.mxu0 0
  %300 = vmatpush.bf16.xpose.msra.mxu0 0
  %301 = vmatpush.bf16.xpose.msra.mxu0 0
  %302 = vmatpush.bf16.xpose.msra.mxu0 0
  %303 = vmatpush.bf16.xpose.msra.mxu0 %v294
  %304 = vmatmul.bf16.gmra.mxu0 %v291
  %v305 = vpop.f32.mrf.mxu0
  %v306 = vadd.f32 0.0, %v305
  %v307 = vpop.f32.mrf.mxu0
  %308 = vdwg.mxu0
  %v309 = vsel %vm51, %v306, -inf
  %310 = vmax.xlane.f32.xlu0 %v309
  %v311 = vpop.xlane.xlu0 %310
  %v312 = vsub.f32 %v306, %v311
  %v313 = vmul.f32 %v312, 1.442695
  %v314 = vpow.pop %v313
  %v315 = vsel %vm51, %v314, 0.0
  %316 = vadd.xlane.f32.xlu0 %v315
  %v317 = vpop.xlane.xlu0 %316
  %v318 = vrcp.pop %v317
  %v319 = vmul.f32 %v314, %v318
  %v320 = vpack.c.bf16 %v319, %v319
  %321 = vrot.lane.b32.xlu0 %v287, 64
  %v322 = vpop.permute.xlu0 %321
  %v324 = vsel %vm66, %v320, 0
  %v327 = vsel %vm70, %v322, 0
  %329 = vmatpush.bf16.msra.mxu0 0
  %330 = vmatpush.bf16.msra.mxu0 0
  %331 = vmatpush.bf16.msra.mxu0 0
  %332 = vmatpush.bf16.msra.mxu0 0
  %333 = vmatpush.bf16.msra.mxu0 0
  %334 = vmatpush.bf16.msra.mxu0 0
  %335 = vmatpush.bf16.msra.mxu0 0
  %336 = vmatpush.bf16.msra.mxu0 %v327
  %337 = vmatmul.bf16.gmra.mxu0 %v324
  %v338 = vpop.f32.mrf.mxu0
  %v339 = vadd.f32 0.0, %v338
  %v340 = vpop.f32.mrf.mxu0
  %341 = vdwg.mxu0
  %342 = vst.msk [vmem:[#allocation2 + $0x2] sm:$0x3] %vm87, %v339
  %343 = vrot.lane.b32.xlu0 %v287, 120
  %v344 = vpop.permute.xlu0 %343
  %345 = vrot.lane.b32.xlu0 %v287, 88
  %v346 = vpop.permute.xlu0 %345
  %v348 = vsel %vm31, %v344, 0
  %v351 = vsel %vm31, %v346, 0
  %353 = vmatpush.bf16.xpose.msra.mxu0 0
  %354 = vmatpush.bf16.xpose.msra.mxu0 0
  %355 = vmatpush.bf16.xpose.msra.mxu0 0
  %356 = vmatpush.bf16.xpose.msra.mxu0 0
  %357 = vmatpush.bf16.xpose.msra.mxu0 0
  %358 = vmatpush.bf16.xpose.msra.mxu0 0
  %359 = vmatpush.bf16.xpose.msra.mxu0 0
  %360 = vmatpush.bf16.xpose.msra.mxu0 %v351
  %361 = vmatmul.bf16.gmra.mxu0 %v348
  %v362 = vpop.f32.mrf.mxu0
  %v363 = vadd.f32 0.0, %v362
  %v364 = vpop.f32.mrf.mxu0
  %365 = vdwg.mxu0
  %v366 = vsel %vm51, %v363, -inf
  %367 = vmax.xlane.f32.xlu0 %v366
  %v368 = vpop.xlane.xlu0 %367
  %v369 = vsub.f32 %v363, %v368
  %v370 = vmul.f32 %v369, 1.442695
  %v371 = vpow.pop %v370
  %v372 = vsel %vm51, %v371, 0.0
  %373 = vadd.xlane.f32.xlu0 %v372
  %v374 = vpop.xlane.xlu0 %373
  %v375 = vrcp.pop %v374
  %v376 = vmul.f32 %v371, %v375
  %v377 = vpack.c.bf16 %v376, %v376
  %378 = vrot.lane.b32.xlu0 %v287, 56
  %v379 = vpop.permute.xlu0 %378
  %v381 = vsel %vm66, %v377, 0
  %v384 = vsel %vm70, %v379, 0
  %386 = vmatpush.bf16.msra.mxu0 0
  %387 = vmatpush.bf16.msra.mxu0 0
  %388 = vmatpush.bf16.msra.mxu0 0
  %389 = vmatpush.bf16.msra.mxu0 0
  %390 = vmatpush.bf16.msra.mxu0 0
  %391 = vmatpush.bf16.msra.mxu0 0
  %392 = vmatpush.bf16.msra.mxu0 0
  %393 = vmatpush.bf16.msra.mxu0 %v384
  %394 = vmatmul.bf16.gmra.mxu0 %v381
  %v395 = vpop.f32.mrf.mxu0
  %v396 = vadd.f32 0.0, %v395
  %v397 = vpop.f32.mrf.mxu0
  %398 = vdwg.mxu0
  %400 = vrot.lane.b32.xlu0 %v396, 8
  %v401 = vpop.permute.xlu0 %400
  %403 = vst.msk [vmem:[#allocation2 + $0x2] sm:$0x3] %vm149, %v401
  %404 = vrot.lane.b32.xlu0 %v287, 112
  %v405 = vpop.permute.xlu0 %404
  %406 = vrot.lane.b32.xlu0 %v287, 80
  %v407 = vpop.permute.xlu0 %406
  %v409 = vsel %vm31, %v405, 0
  %v412 = vsel %vm31, %v407, 0
  %414 = vmatpush.bf16.xpose.msra.mxu0 0
  %415 = vmatpush.bf16.xpose.msra.mxu0 0
  %416 = vmatpush.bf16.xpose.msra.mxu0 0
  %417 = vmatpush.bf16.xpose.msra.mxu0 0
  %418 = vmatpush.bf16.xpose.msra.mxu0 0
  %419 = vmatpush.bf16.xpose.msra.mxu0 0
  %420 = vmatpush.bf16.xpose.msra.mxu0 0
  %421 = vmatpush.bf16.xpose.msra.mxu0 %v412
  %422 = vmatmul.bf16.gmra.mxu0 %v409
  %v423 = vpop.f32.mrf.mxu0
  %v424 = vadd.f32 0.0, %v423
  %v425 = vpop.f32.mrf.mxu0
  %426 = vdwg.mxu0
  %v427 = vsel %vm51, %v424, -inf
  %428 = vmax.xlane.f32.xlu0 %v427
  %v429 = vpop.xlane.xlu0 %428
  %v430 = vsub.f32 %v424, %v429
  %v431 = vmul.f32 %v430, 1.442695
  %v432 = vpow.pop %v431
  %v433 = vsel %vm51, %v432, 0.0
  %434 = vadd.xlane.f32.xlu0 %v433
  %v435 = vpop.xlane.xlu0 %434
  %v436 = vrcp.pop %v435
  %v437 = vmul.f32 %v432, %v436
  %v438 = vpack.c.bf16 %v437, %v437
  %439 = vrot.lane.b32.xlu0 %v287, 48
  %v440 = vpop.permute.xlu0 %439
  %v442 = vsel %vm66, %v438, 0
  %v445 = vsel %vm70, %v440, 0
  %447 = vmatpush.bf16.msra.mxu0 0
  %448 = vmatpush.bf16.msra.mxu0 0
  %449 = vmatpush.bf16.msra.mxu0 0
  %450 = vmatpush.bf16.msra.mxu0 0
  %451 = vmatpush.bf16.msra.mxu0 0
  %452 = vmatpush.bf16.msra.mxu0 0
  %453 = vmatpush.bf16.msra.mxu0 0
  %454 = vmatpush.bf16.msra.mxu0 %v445
  %455 = vmatmul.bf16.gmra.mxu0 %v442
  %v456 = vpop.f32.mrf.mxu0
  %v457 = vadd.f32 0.0, %v456
  %v458 = vpop.f32.mrf.mxu0
  %459 = vdwg.mxu0
  %461 = vrot.lane.b32.xlu0 %v457, 16
  %v462 = vpop.permute.xlu0 %461
  %464 = vst.msk [vmem:[#allocation2 + $0x2] sm:$0x3] %vm211, %v462
  %465 = vrot.lane.b32.xlu0 %v287, 104
  %v466 = vpop.permute.xlu0 %465
  %467 = vrot.lane.b32.xlu0 %v287, 72
  %v468 = vpop.permute.xlu0 %467
  %v470 = vsel %vm31, %v466, 0
  %v473 = vsel %vm31, %v468, 0
  %475 = vmatpush.bf16.xpose.msra.mxu0 0
  %476 = vmatpush.bf16.xpose.msra.mxu0 0
  %477 = vmatpush.bf16.xpose.msra.mxu0 0
  %478 = vmatpush.bf16.xpose.msra.mxu0 0
  %479 = vmatpush.bf16.xpose.msra.mxu0 0
  %480 = vmatpush.bf16.xpose.msra.mxu0 0
  %481 = vmatpush.bf16.xpose.msra.mxu0 0
  %482 = vmatpush.bf16.xpose.msra.mxu0 %v473
  %483 = vmatmul.bf16.gmra.mxu0 %v470
  %v484 = vpop.f32.mrf.mxu0
  %v485 = vadd.f32 0.0, %v484
  %v486 = vpop.f32.mrf.mxu0
  %487 = vdwg.mxu0
  %v488 = vsel %vm51, %v485, -inf
  %489 = vmax.xlane.f32.xlu0 %v488
  %v490 = vpop.xlane.xlu0 %489
  %v491 = vsub.f32 %v485, %v490
  %v492 = vmul.f32 %v491, 1.442695
  %v493 = vpow.pop %v492
  %v494 = vsel %vm51, %v493, 0.0
  %495 = vadd.xlane.f32.xlu0 %v494
  %v496 = vpop.xlane.xlu0 %495
  %v497 = vrcp.pop %v496
  %v498 = vmul.f32 %v493, %v497
  %v499 = vpack.c.bf16 %v498, %v498
  %500 = vrot.lane.b32.xlu0 %v287, 40
  %v501 = vpop.permute.xlu0 %500
  %v503 = vsel %vm66, %v499, 0
  %v506 = vsel %vm70, %v501, 0
  %508 = vmatpush.bf16.msra.mxu0 0
  %509 = vmatpush.bf16.msra.mxu0 0
  %510 = vmatpush.bf16.msra.mxu0 0
  %511 = vmatpush.bf16.msra.mxu0 0
  %512 = vmatpush.bf16.msra.mxu0 0
  %513 = vmatpush.bf16.msra.mxu0 0
  %514 = vmatpush.bf16.msra.mxu0 0
  %515 = vmatpush.bf16.msra.mxu0 %v506
  %516 = vmatmul.bf16.gmra.mxu0 %v503
  %v517 = vpop.f32.mrf.mxu0
  %v518 = vadd.f32 0.0, %v517
  %v519 = vpop.f32.mrf.mxu0
  %520 = vdwg.mxu0
  %522 = vrot.lane.b32.xlu0 %v518, 24
  %v523 = vpop.permute.xlu0 %522
  %525 = vst.msk [vmem:[#allocation2 + $0x2] sm:$0x3] %vm273, %v523
  %v526 = vld [vmem:[%s0] sm:$0x2]
  %v527 = vld [vmem:[%s0 + $0x4] sm:$0x2]
  %v530 = vunpack.c.l.b16 %v526
  %v531 = vunpack.c.l.b16 %v527
  %v532 = vpack.c.b16 %v530, %v530
  %v533 = vpack.c.b16 %v531, %v531
  %v534 = vunpack.c.l.b16 %v532
  %v535 = vunpack.c.l.b16 %v533
  %v536 = vrot.slane %v534, 2
  %v537 = vrot.slane %v535, 1
  %v538 = vsel %vm26, %v537, %v536
  %v539 = vpack.c.b16 %v538, %v538
  %540 = vrot.lane.b32.xlu0 %v539, 96
  %v541 = vpop.permute.xlu0 %540
  %v543 = vsel %vm31, %v539, 0
  %v546 = vsel %vm31, %v541, 0
  %548 = vmatpush.bf16.xpose.msra.mxu0 0
  %549 = vmatpush.bf16.xpose.msra.mxu0 0
  %550 = vmatpush.bf16.xpose.msra.mxu0 0
  %551 = vmatpush.bf16.xpose.msra.mxu0 0
  %552 = vmatpush.bf16.xpose.msra.mxu0 0
  %553 = vmatpush.bf16.xpose.msra.mxu0 0
  %554 = vmatpush.bf16.xpose.msra.mxu0 0
  %555 = vmatpush.bf16.xpose.msra.mxu0 %v546
  %556 = vmatmul.bf16.gmra.mxu0 %v543
  %v557 = vpop.f32.mrf.mxu0
  %v558 = vadd.f32 0.0, %v557
  %v559 = vpop.f32.mrf.mxu0
  %560 = vdwg.mxu0
  %v561 = vsel %vm51, %v558, -inf
  %562 = vmax.xlane.f32.xlu0 %v561
  %v563 = vpop.xlane.xlu0 %562
  %v564 = vsub.f32 %v558, %v563
  %v565 = vmul.f32 %v564, 1.442695
  %v566 = vpow.pop %v565
  %v567 = vsel %vm51, %v566, 0.0
  %568 = vadd.xlane.f32.xlu0 %v567
  %v569 = vpop.xlane.xlu0 %568
  %v570 = vrcp.pop %v569
  %v571 = vmul.f32 %v566, %v570
  %v572 = vpack.c.bf16 %v571, %v571
  %573 = vrot.lane.b32.xlu0 %v539, 64
  %v574 = vpop.permute.xlu0 %573
  %v576 = vsel %vm66, %v572, 0
  %v579 = vsel %vm70, %v574, 0
  %581 = vmatpush.bf16.msra.mxu0 0
  %582 = vmatpush.bf16.msra.mxu0 0
  %583 = vmatpush.bf16.msra.mxu0 0
  %584 = vmatpush.bf16.msra.mxu0 0
  %585 = vmatpush.bf16.msra.mxu0 0
  %586 = vmatpush.bf16.msra.mxu0 0
  %587 = vmatpush.bf16.msra.mxu0 0
  %588 = vmatpush.bf16.msra.mxu0 %v579
  %589 = vmatmul.bf16.gmra.mxu0 %v576
  %v590 = vpop.f32.mrf.mxu0
  %v591 = vadd.f32 0.0, %v590
  %v592 = vpop.f32.mrf.mxu0
  %593 = vdwg.mxu0
  %594 = vst.msk [vmem:[#allocation2 + $0x4] sm:$0x3] %vm87, %v591
  %595 = vrot.lane.b32.xlu0 %v539, 120
  %v596 = vpop.permute.xlu0 %595
  %597 = vrot.lane.b32.xlu0 %v539, 88
  %v598 = vpop.permute.xlu0 %597
  %v600 = vsel %vm31, %v596, 0
  %v603 = vsel %vm31, %v598, 0
  %605 = vmatpush.bf16.xpose.msra.mxu0 0
  %606 = vmatpush.bf16.xpose.msra.mxu0 0
  %607 = vmatpush.bf16.xpose.msra.mxu0 0
  %608 = vmatpush.bf16.xpose.msra.mxu0 0
  %609 = vmatpush.bf16.xpose.msra.mxu0 0
  %610 = vmatpush.bf16.xpose.msra.mxu0 0
  %611 = vmatpush.bf16.xpose.msra.mxu0 0
  %612 = vmatpush.bf16.xpose.msra.mxu0 %v603
  %613 = vmatmul.bf16.gmra.mxu0 %v600
  %v614 = vpop.f32.mrf.mxu0
  %v615 = vadd.f32 0.0, %v614
  %v616 = vpop.f32.mrf.mxu0
  %617 = vdwg.mxu0
  %v618 = vsel %vm51, %v615, -inf
  %619 = vmax.xlane.f32.xlu0 %v618
  %v620 = vpop.xlane.xlu0 %619
  %v621 = vsub.f32 %v615, %v620
  %v622 = vmul.f32 %v621, 1.442695
  %v623 = vpow.pop %v622
  %v624 = vsel %vm51, %v623, 0.0
  %625 = vadd.xlane.f32.xlu0 %v624
  %v626 = vpop.xlane.xlu0 %625
  %v627 = vrcp.pop %v626
  %v628 = vmul.f32 %v623, %v627
  %v629 = vpack.c.bf16 %v628, %v628
  %630 = vrot.lane.b32.xlu0 %v539, 56
  %v631 = vpop.permute.xlu0 %630
  %v633 = vsel %vm66, %v629, 0
  %v636 = vsel %vm70, %v631, 0
  %638 = vmatpush.bf16.msra.mxu0 0
  %639 = vmatpush.bf16.msra.mxu0 0
  %640 = vmatpush.bf16.msra.mxu0 0
  %641 = vmatpush.bf16.msra.mxu0 0
  %642 = vmatpush.bf16.msra.mxu0 0
  %643 = vmatpush.bf16.msra.mxu0 0
  %644 = vmatpush.bf16.msra.mxu0 0
  %645 = vmatpush.bf16.msra.mxu0 %v636
  %646 = vmatmul.bf16.gmra.mxu0 %v633
  %v647 = vpop.f32.mrf.mxu0
  %v648 = vadd.f32 0.0, %v647
  %v649 = vpop.f32.mrf.mxu0
  %650 = vdwg.mxu0
  %652 = vrot.lane.b32.xlu0 %v648, 8
  %v653 = vpop.permute.xlu0 %652
  %655 = vst.msk [vmem:[#allocation2 + $0x4] sm:$0x3] %vm149, %v653
  %656 = vrot.lane.b32.xlu0 %v539, 112
  %v657 = vpop.permute.xlu0 %656
  %658 = vrot.lane.b32.xlu0 %v539, 80
  %v659 = vpop.permute.xlu0 %658
  %v661 = vsel %vm31, %v657, 0
  %v664 = vsel %vm31, %v659, 0
  %666 = vmatpush.bf16.xpose.msra.mxu0 0
  %667 = vmatpush.bf16.xpose.msra.mxu0 0
  %668 = vmatpush.bf16.xpose.msra.mxu0 0
  %669 = vmatpush.bf16.xpose.msra.mxu0 0
  %670 = vmatpush.bf16.xpose.msra.mxu0 0
  %671 = vmatpush.bf16.xpose.msra.mxu0 0
  %672 = vmatpush.bf16.xpose.msra.mxu0 0
  %673 = vmatpush.bf16.xpose.msra.mxu0 %v664
  %674 = vmatmul.bf16.gmra.mxu0 %v661
  %v675 = vpop.f32.mrf.mxu0
  %v676 = vadd.f32 0.0, %v675
  %v677 = vpop.f32.mrf.mxu0
  %678 = vdwg.mxu0
  %v679 = vsel %vm51, %v676, -inf
  %680 = vmax.xlane.f32.xlu0 %v679
  %v681 = vpop.xlane.xlu0 %680
  %v682 = vsub.f32 %v676, %v681
  %v683 = vmul.f32 %v682, 1.442695
  %v684 = vpow.pop %v683
  %v685 = vsel %vm51, %v684, 0.0
  %686 = vadd.xlane.f32.xlu0 %v685
  %v687 = vpop.xlane.xlu0 %686
  %v688 = vrcp.pop %v687
  %v689 = vmul.f32 %v684, %v688
  %v690 = vpack.c.bf16 %v689, %v689
  %691 = vrot.lane.b32.xlu0 %v539, 48
  %v692 = vpop.permute.xlu0 %691
  %v694 = vsel %vm66, %v690, 0
  %v697 = vsel %vm70, %v692, 0
  %699 = vmatpush.bf16.msra.mxu0 0
  %700 = vmatpush.bf16.msra.mxu0 0
  %701 = vmatpush.bf16.msra.mxu0 0
  %702 = vmatpush.bf16.msra.mxu0 0
  %703 = vmatpush.bf16.msra.mxu0 0
  %704 = vmatpush.bf16.msra.mxu0 0
  %705 = vmatpush.bf16.msra.mxu0 0
  %706 = vmatpush.bf16.msra.mxu0 %v697
  %707 = vmatmul.bf16.gmra.mxu0 %v694
  %v708 = vpop.f32.mrf.mxu0
  %v709 = vadd.f32 0.0, %v708
  %v710 = vpop.f32.mrf.mxu0
  %711 = vdwg.mxu0
  %713 = vrot.lane.b32.xlu0 %v709, 16
  %v714 = vpop.permute.xlu0 %713
  %716 = vst.msk [vmem:[#allocation2 + $0x4] sm:$0x3] %vm211, %v714
  %717 = vrot.lane.b32.xlu0 %v539, 104
  %v718 = vpop.permute.xlu0 %717
  %719 = vrot.lane.b32.xlu0 %v539, 72
  %v720 = vpop.permute.xlu0 %719
  %v722 = vsel %vm31, %v718, 0
  %v725 = vsel %vm31, %v720, 0
  %727 = vmatpush.bf16.xpose.msra.mxu0 0
  %728 = vmatpush.bf16.xpose.msra.mxu0 0
  %729 = vmatpush.bf16.xpose.msra.mxu0 0
  %730 = vmatpush.bf16.xpose.msra.mxu0 0
  %731 = vmatpush.bf16.xpose.msra.mxu0 0
  %732 = vmatpush.bf16.xpose.msra.mxu0 0
  %733 = vmatpush.bf16.xpose.msra.mxu0 0
  %734 = vmatpush.bf16.xpose.msra.mxu0 %v725
  %735 = vmatmul.bf16.gmra.mxu0 %v722
  %v736 = vpop.f32.mrf.mxu0
  %v737 = vadd.f32 0.0, %v736
  %v738 = vpop.f32.mrf.mxu0
  %739 = vdwg.mxu0
  %v740 = vsel %vm51, %v737, -inf
  %741 = vmax.xlane.f32.xlu0 %v740
  %v742 = vpop.xlane.xlu0 %741
  %v743 = vsub.f32 %v737, %v742
  %v744 = vmul.f32 %v743, 1.442695
  %v745 = vpow.pop %v744
  %v746 = vsel %vm51, %v745, 0.0
  %747 = vadd.xlane.f32.xlu0 %v746
  %v748 = vpop.xlane.xlu0 %747
  %v749 = vrcp.pop %v748
  %v750 = vmul.f32 %v745, %v749
  %v751 = vpack.c.bf16 %v750, %v750
  %752 = vrot.lane.b32.xlu0 %v539, 40
  %v753 = vpop.permute.xlu0 %752
  %v755 = vsel %vm66, %v751, 0
  %v758 = vsel %vm70, %v753, 0
  %760 = vmatpush.bf16.msra.mxu0 0
  %761 = vmatpush.bf16.msra.mxu0 0
  %762 = vmatpush.bf16.msra.mxu0 0
  %763 = vmatpush.bf16.msra.mxu0 0
  %764 = vmatpush.bf16.msra.mxu0 0
  %765 = vmatpush.bf16.msra.mxu0 0
  %766 = vmatpush.bf16.msra.mxu0 0
  %767 = vmatpush.bf16.msra.mxu0 %v758
  %768 = vmatmul.bf16.gmra.mxu0 %v755
  %v769 = vpop.f32.mrf.mxu0
  %v770 = vadd.f32 0.0, %v769
  %v771 = vpop.f32.mrf.mxu0
  %772 = vdwg.mxu0
  %774 = vrot.lane.b32.xlu0 %v770, 24
  %v775 = vpop.permute.xlu0 %774
  %777 = vst.msk [vmem:[#allocation2 + $0x4] sm:$0x3] %vm273, %v775
  %v778 = vld [vmem:[%s0] sm:$0x2]
  %v779 = vld [vmem:[%s0 + $0x4] sm:$0x2]
  %v782 = vunpack.c.l.b16 %v778
  %v783 = vunpack.c.l.b16 %v779
  %v784 = vpack.c.b16 %v782, %v782
  %v785 = vpack.c.b16 %v783, %v783
  %v786 = vunpack.c.l.b16 %v784
  %v787 = vunpack.c.l.b16 %v785
  %v788 = vrot.slane %v786, 3
  %v789 = vrot.slane %v787, 2
  %v790 = vsel %vm26, %v789, %v788
  %v791 = vpack.c.b16 %v790, %v790
  %792 = vrot.lane.b32.xlu0 %v791, 96
  %v793 = vpop.permute.xlu0 %792
  %v795 = vsel %vm31, %v791, 0
  %v798 = vsel %vm31, %v793, 0
  %800 = vmatpush.bf16.xpose.msra.mxu0 0
  %801 = vmatpush.bf16.xpose.msra.mxu0 0
  %802 = vmatpush.bf16.xpose.msra.mxu0 0
  %803 = vmatpush.bf16.xpose.msra.mxu0 0
  %804 = vmatpush.bf16.xpose.msra.mxu0 0
  %805 = vmatpush.bf16.xpose.msra.mxu0 0
  %806 = vmatpush.bf16.xpose.msra.mxu0 0
  %807 = vmatpush.bf16.xpose.msra.mxu0 %v798
  %808 = vmatmul.bf16.gmra.mxu0 %v795
  %v809 = vpop.f32.mrf.mxu0
  %v810 = vadd.f32 0.0, %v809
  %v811 = vpop.f32.mrf.mxu0
  %812 = vdwg.mxu0
  %v813 = vsel %vm51, %v810, -inf
  %814 = vmax.xlane.f32.xlu0 %v813
  %v815 = vpop.xlane.xlu0 %814
  %v816 = vsub.f32 %v810, %v815
  %v817 = vmul.f32 %v816, 1.442695
  %v818 = vpow.pop %v817
  %v819 = vsel %vm51, %v818, 0.0
  %820 = vadd.xlane.f32.xlu0 %v819
  %v821 = vpop.xlane.xlu0 %820
  %v822 = vrcp.pop %v821
  %v823 = vmul.f32 %v818, %v822
  %v824 = vpack.c.bf16 %v823, %v823
  %825 = vrot.lane.b32.xlu0 %v791, 64
  %v826 = vpop.permute.xlu0 %825
  %v828 = vsel %vm66, %v824, 0
  %v831 = vsel %vm70, %v826, 0
  %833 = vmatpush.bf16.msra.mxu0 0
  %834 = vmatpush.bf16.msra.mxu0 0
  %835 = vmatpush.bf16.msra.mxu0 0
  %836 = vmatpush.bf16.msra.mxu0 0
  %837 = vmatpush.bf16.msra.mxu0 0
  %838 = vmatpush.bf16.msra.mxu0 0
  %839 = vmatpush.bf16.msra.mxu0 0
  %840 = vmatpush.bf16.msra.mxu0 %v831
  %841 = vmatmul.bf16.gmra.mxu0 %v828
  %v842 = vpop.f32.mrf.mxu0
  %v843 = vadd.f32 0.0, %v842
  %v844 = vpop.f32.mrf.mxu0
  %845 = vdwg.mxu0
  %846 = vst.msk [vmem:[#allocation2 + $0x6] sm:$0x3] %vm87, %v843
  %847 = vrot.lane.b32.xlu0 %v791, 120
  %v848 = vpop.permute.xlu0 %847
  %849 = vrot.lane.b32.xlu0 %v791, 88
  %v850 = vpop.permute.xlu0 %849
  %v852 = vsel %vm31, %v848, 0
  %v855 = vsel %vm31, %v850, 0
  %857 = vmatpush.bf16.xpose.msra.mxu0 0
  %858 = vmatpush.bf16.xpose.msra.mxu0 0
  %859 = vmatpush.bf16.xpose.msra.mxu0 0
  %860 = vmatpush.bf16.xpose.msra.mxu0 0
  %861 = vmatpush.bf16.xpose.msra.mxu0 0
  %862 = vmatpush.bf16.xpose.msra.mxu0 0
  %863 = vmatpush.bf16.xpose.msra.mxu0 0
  %864 = vmatpush.bf16.xpose.msra.mxu0 %v855
  %865 = vmatmul.bf16.gmra.mxu0 %v852
  %v866 = vpop.f32.mrf.mxu0
  %v867 = vadd.f32 0.0, %v866
  %v868 = vpop.f32.mrf.mxu0
  %869 = vdwg.mxu0
  %v870 = vsel %vm51, %v867, -inf
  %871 = vmax.xlane.f32.xlu0 %v870
  %v872 = vpop.xlane.xlu0 %871
  %v873 = vsub.f32 %v867, %v872
  %v874 = vmul.f32 %v873, 1.442695
  %v875 = vpow.pop %v874
  %v876 = vsel %vm51, %v875, 0.0
  %877 = vadd.xlane.f32.xlu0 %v876
  %v878 = vpop.xlane.xlu0 %877
  %v879 = vrcp.pop %v878
  %v880 = vmul.f32 %v875, %v879
  %v881 = vpack.c.bf16 %v880, %v880
  %882 = vrot.lane.b32.xlu0 %v791, 56
  %v883 = vpop.permute.xlu0 %882
  %v885 = vsel %vm66, %v881, 0
  %v888 = vsel %vm70, %v883, 0
  %890 = vmatpush.bf16.msra.mxu0 0
  %891 = vmatpush.bf16.msra.mxu0 0
  %892 = vmatpush.bf16.msra.mxu0 0
  %893 = vmatpush.bf16.msra.mxu0 0
  %894 = vmatpush.bf16.msra.mxu0 0
  %895 = vmatpush.bf16.msra.mxu0 0
  %896 = vmatpush.bf16.msra.mxu0 0
  %897 = vmatpush.bf16.msra.mxu0 %v888
  %898 = vmatmul.bf16.gmra.mxu0 %v885
  %v899 = vpop.f32.mrf.mxu0
  %v900 = vadd.f32 0.0, %v899
  %v901 = vpop.f32.mrf.mxu0
  %902 = vdwg.mxu0
  %904 = vrot.lane.b32.xlu0 %v900, 8
  %v905 = vpop.permute.xlu0 %904
  %907 = vst.msk [vmem:[#allocation2 + $0x6] sm:$0x3] %vm149, %v905
  %908 = vrot.lane.b32.xlu0 %v791, 112
  %v909 = vpop.permute.xlu0 %908
  %910 = vrot.lane.b32.xlu0 %v791, 80
  %v911 = vpop.permute.xlu0 %910
  %v913 = vsel %vm31, %v909, 0
  %v916 = vsel %vm31, %v911, 0
  %918 = vmatpush.bf16.xpose.msra.mxu0 0
  %919 = vmatpush.bf16.xpose.msra.mxu0 0
  %920 = vmatpush.bf16.xpose.msra.mxu0 0
  %921 = vmatpush.bf16.xpose.msra.mxu0 0
  %922 = vmatpush.bf16.xpose.msra.mxu0 0
  %923 = vmatpush.bf16.xpose.msra.mxu0 0
  %924 = vmatpush.bf16.xpose.msra.mxu0 0
  %925 = vmatpush.bf16.xpose.msra.mxu0 %v916
  %926 = vmatmul.bf16.gmra.mxu0 %v913
  %v927 = vpop.f32.mrf.mxu0
  %v928 = vadd.f32 0.0, %v927
  %v929 = vpop.f32.mrf.mxu0
  %930 = vdwg.mxu0
  %v931 = vsel %vm51, %v928, -inf
  %932 = vmax.xlane.f32.xlu0 %v931
  %v933 = vpop.xlane.xlu0 %932
  %v934 = vsub.f32 %v928, %v933
  %v935 = vmul.f32 %v934, 1.442695
  %v936 = vpow.pop %v935
  %v937 = vsel %vm51, %v936, 0.0
  %938 = vadd.xlane.f32.xlu0 %v937
  %v939 = vpop.xlane.xlu0 %938
  %v940 = vrcp.pop %v939
  %v941 = vmul.f32 %v936, %v940
  %v942 = vpack.c.bf16 %v941, %v941
  %943 = vrot.lane.b32.xlu0 %v791, 48
  %v944 = vpop.permute.xlu0 %943
  %v946 = vsel %vm66, %v942, 0
  %v949 = vsel %vm70, %v944, 0
  %951 = vmatpush.bf16.msra.mxu0 0
  %952 = vmatpush.bf16.msra.mxu0 0
  %953 = vmatpush.bf16.msra.mxu0 0
  %954 = vmatpush.bf16.msra.mxu0 0
  %955 = vmatpush.bf16.msra.mxu0 0
  %956 = vmatpush.bf16.msra.mxu0 0
  %957 = vmatpush.bf16.msra.mxu0 0
  %958 = vmatpush.bf16.msra.mxu0 %v949
  %959 = vmatmul.bf16.gmra.mxu0 %v946
  %v960 = vpop.f32.mrf.mxu0
  %v961 = vadd.f32 0.0, %v960
  %v962 = vpop.f32.mrf.mxu0
  %963 = vdwg.mxu0
  %965 = vrot.lane.b32.xlu0 %v961, 16
  %v966 = vpop.permute.xlu0 %965
  %968 = vst.msk [vmem:[#allocation2 + $0x6] sm:$0x3] %vm211, %v966
  %969 = vrot.lane.b32.xlu0 %v791, 104
  %v970 = vpop.permute.xlu0 %969
  %971 = vrot.lane.b32.xlu0 %v791, 72
  %v972 = vpop.permute.xlu0 %971
  %v974 = vsel %vm31, %v970, 0
  %v977 = vsel %vm31, %v972, 0
  %979 = vmatpush.bf16.xpose.msra.mxu0 0
  %980 = vmatpush.bf16.xpose.msra.mxu0 0
  %981 = vmatpush.bf16.xpose.msra.mxu0 0
  %982 = vmatpush.bf16.xpose.msra.mxu0 0
  %983 = vmatpush.bf16.xpose.msra.mxu0 0
  %984 = vmatpush.bf16.xpose.msra.mxu0 0
  %985 = vmatpush.bf16.xpose.msra.mxu0 0
  %986 = vmatpush.bf16.xpose.msra.mxu0 %v977
  %987 = vmatmul.bf16.gmra.mxu0 %v974
  %v988 = vpop.f32.mrf.mxu0
  %v989 = vadd.f32 0.0, %v988
  %v990 = vpop.f32.mrf.mxu0
  %991 = vdwg.mxu0
  %v992 = vsel %vm51, %v989, -inf
  %993 = vmax.xlane.f32.xlu0 %v992
  %v994 = vpop.xlane.xlu0 %993
  %v995 = vsub.f32 %v989, %v994
  %v996 = vmul.f32 %v995, 1.442695
  %v997 = vpow.pop %v996
  %v998 = vsel %vm51, %v997, 0.0
  %999 = vadd.xlane.f32.xlu0 %v998
  %v1000 = vpop.xlane.xlu0 %999
  %v1001 = vrcp.pop %v1000
  %v1002 = vmul.f32 %v997, %v1001
  %v1003 = vpack.c.bf16 %v1002, %v1002
  %1004 = vrot.lane.b32.xlu0 %v791, 40
  %v1005 = vpop.permute.xlu0 %1004
  %v1007 = vsel %vm66, %v1003, 0
  %v1010 = vsel %vm70, %v1005, 0
  %1012 = vmatpush.bf16.msra.mxu0 0
  %1013 = vmatpush.bf16.msra.mxu0 0
  %1014 = vmatpush.bf16.msra.mxu0 0
  %1015 = vmatpush.bf16.msra.mxu0 0
  %1016 = vmatpush.bf16.msra.mxu0 0
  %1017 = vmatpush.bf16.msra.mxu0 0
  %1018 = vmatpush.bf16.msra.mxu0 0
  %1019 = vmatpush.bf16.msra.mxu0 %v1010
  %1020 = vmatmul.bf16.gmra.mxu0 %v1007
  %v1021 = vpop.f32.mrf.mxu0
  %v1022 = vadd.f32 0.0, %v1021
  %v1023 = vpop.f32.mrf.mxu0
  %1024 = vdwg.mxu0
  %1026 = vrot.lane.b32.xlu0 %v1022, 24
  %v1027 = vpop.permute.xlu0 %1026
  %1029 = vst.msk [vmem:[#allocation2 + $0x6] sm:$0x3] %vm273, %v1027
  %v1030 = vld [vmem:[%s0] sm:$0x4]
  %v1031 = vld [vmem:[%s0 + $0x4] sm:$0x4]
  %v1034 = vunpack.c.l.b16 %v1030
  %v1035 = vunpack.c.l.b16 %v1031
  %v1036 = vpack.c.b16 %v1034, %v1034
  %v1037 = vpack.c.b16 %v1035, %v1035
  %v1038 = vunpack.c.l.b16 %v1036
  %v1039 = vunpack.c.l.b16 %v1037
  %v1040 = vrot.slane %v1038, 4
  %v1041 = vrot.slane %v1039, 3
  %v1042 = vsel %vm26, %v1041, %v1040
  %v1043 = vpack.c.b16 %v1042, %v1042
  %1044 = vrot.lane.b32.xlu0 %v1043, 96
  %v1045 = vpop.permute.xlu0 %1044
  %v1047 = vsel %vm31, %v1043, 0
  %v1050 = vsel %vm31, %v1045, 0
  %1052 = vmatpush.bf16.xpose.msra.mxu0 0
  %1053 = vmatpush.bf16.xpose.msra.mxu0 0
  %1054 = vmatpush.bf16.xpose.msra.mxu0 0
  %1055 = vmatpush.bf16.xpose.msra.mxu0 0
  %1056 = vmatpush.bf16.xpose.msra.mxu0 0
  %1057 = vmatpush.bf16.xpose.msra.mxu0 0
  %1058 = vmatpush.bf16.xpose.msra.mxu0 0
  %1059 = vmatpush.bf16.xpose.msra.mxu0 %v1050
  %1060 = vmatmul.bf16.gmra.mxu0 %v1047
  %v1061 = vpop.f32.mrf.mxu0
  %v1062 = vadd.f32 0.0, %v1061
  %v1063 = vpop.f32.mrf.mxu0
  %1064 = vdwg.mxu0
  %v1065 = vsel %vm51, %v1062, -inf
  %1066 = vmax.xlane.f32.xlu0 %v1065
  %v1067 = vpop.xlane.xlu0 %1066
  %v1068 = vsub.f32 %v1062, %v1067
  %v1069 = vmul.f32 %v1068, 1.442695
  %v1070 = vpow.pop %v1069
  %v1071 = vsel %vm51, %v1070, 0.0
  %1072 = vadd.xlane.f32.xlu0 %v1071
  %v1073 = vpop.xlane.xlu0 %1072
  %v1074 = vrcp.pop %v1073
  %v1075 = vmul.f32 %v1070, %v1074
  %v1076 = vpack.c.bf16 %v1075, %v1075
  %1077 = vrot.lane.b32.xlu0 %v1043, 64
  %v1078 = vpop.permute.xlu0 %1077
  %v1080 = vsel %vm66, %v1076, 0
  %v1083 = vsel %vm70, %v1078, 0
  %1085 = vmatpush.bf16.msra.mxu0 0
  %1086 = vmatpush.bf16.msra.mxu0 0
  %1087 = vmatpush.bf16.msra.mxu0 0
  %1088 = vmatpush.bf16.msra.mxu0 0
  %1089 = vmatpush.bf16.msra.mxu0 0
  %1090 = vmatpush.bf16.msra.mxu0 0
  %1091 = vmatpush.bf16.msra.mxu0 0
  %1092 = vmatpush.bf16.msra.mxu0 %v1083
  %1093 = vmatmul.bf16.gmra.mxu0 %v1080
  %v1094 = vpop.f32.mrf.mxu0
  %v1095 = vadd.f32 0.0, %v1094
  %v1096 = vpop.f32.mrf.mxu0
  %1097 = vdwg.mxu0
  %1098 = vst.msk [vmem:[#allocation2 + $0x8] sm:$0x3] %vm87, %v1095
  %1099 = vrot.lane.b32.xlu0 %v1043, 120
  %v1100 = vpop.permute.xlu0 %1099
  %1101 = vrot.lane.b32.xlu0 %v1043, 88
  %v1102 = vpop.permute.xlu0 %1101
  %v1104 = vsel %vm31, %v1100, 0
  %v1107 = vsel %vm31, %v1102, 0
  %1109 = vmatpush.bf16.xpose.msra.mxu0 0
  %1110 = vmatpush.bf16.xpose.msra.mxu0 0
  %1111 = vmatpush.bf16.xpose.msra.mxu0 0
  %1112 = vmatpush.bf16.xpose.msra.mxu0 0
  %1113 = vmatpush.bf16.xpose.msra.mxu0 0
  %1114 = vmatpush.bf16.xpose.msra.mxu0 0
  %1115 = vmatpush.bf16.xpose.msra.mxu0 0
  %1116 = vmatpush.bf16.xpose.msra.mxu0 %v1107
  %1117 = vmatmul.bf16.gmra.mxu0 %v1104
  %v1118 = vpop.f32.mrf.mxu0
  %v1119 = vadd.f32 0.0, %v1118
  %v1120 = vpop.f32.mrf.mxu0
  %1121 = vdwg.mxu0
  %v1122 = vsel %vm51, %v1119, -inf
  %1123 = vmax.xlane.f32.xlu0 %v1122
  %v1124 = vpop.xlane.xlu0 %1123
  %v1125 = vsub.f32 %v1119, %v1124
  %v1126 = vmul.f32 %v1125, 1.442695
  %v1127 = vpow.pop %v1126
  %v1128 = vsel %vm51, %v1127, 0.0
  %1129 = vadd.xlane.f32.xlu0 %v1128
  %v1130 = vpop.xlane.xlu0 %1129
  %v1131 = vrcp.pop %v1130
  %v1132 = vmul.f32 %v1127, %v1131
  %v1133 = vpack.c.bf16 %v1132, %v1132
  %1134 = vrot.lane.b32.xlu0 %v1043, 56
  %v1135 = vpop.permute.xlu0 %1134
  %v1137 = vsel %vm66, %v1133, 0
  %v1140 = vsel %vm70, %v1135, 0
  %1142 = vmatpush.bf16.msra.mxu0 0
  %1143 = vmatpush.bf16.msra.mxu0 0
  %1144 = vmatpush.bf16.msra.mxu0 0
  %1145 = vmatpush.bf16.msra.mxu0 0
  %1146 = vmatpush.bf16.msra.mxu0 0
  %1147 = vmatpush.bf16.msra.mxu0 0
  %1148 = vmatpush.bf16.msra.mxu0 0
  %1149 = vmatpush.bf16.msra.mxu0 %v1140
  %1150 = vmatmul.bf16.gmra.mxu0 %v1137
  %v1151 = vpop.f32.mrf.mxu0
  %v1152 = vadd.f32 0.0, %v1151
  %v1153 = vpop.f32.mrf.mxu0
  %1154 = vdwg.mxu0
  %1156 = vrot.lane.b32.xlu0 %v1152, 8
  %v1157 = vpop.permute.xlu0 %1156
  %1159 = vst.msk [vmem:[#allocation2 + $0x8] sm:$0x3] %vm149, %v1157
  %1160 = vrot.lane.b32.xlu0 %v1043, 112
  %v1161 = vpop.permute.xlu0 %1160
  %1162 = vrot.lane.b32.xlu0 %v1043, 80
  %v1163 = vpop.permute.xlu0 %1162
  %v1165 = vsel %vm31, %v1161, 0
  %v1168 = vsel %vm31, %v1163, 0
  %1170 = vmatpush.bf16.xpose.msra.mxu0 0
  %1171 = vmatpush.bf16.xpose.msra.mxu0 0
  %1172 = vmatpush.bf16.xpose.msra.mxu0 0
  %1173 = vmatpush.bf16.xpose.msra.mxu0 0
  %1174 = vmatpush.bf16.xpose.msra.mxu0 0
  %1175 = vmatpush.bf16.xpose.msra.mxu0 0
  %1176 = vmatpush.bf16.xpose.msra.mxu0 0
  %1177 = vmatpush.bf16.xpose.msra.mxu0 %v1168
  %1178 = vmatmul.bf16.gmra.mxu0 %v1165
  %v1179 = vpop.f32.mrf.mxu0
  %v1180 = vadd.f32 0.0, %v1179
  %v1181 = vpop.f32.mrf.mxu0
  %1182 = vdwg.mxu0
  %v1183 = vsel %vm51, %v1180, -inf
  %1184 = vmax.xlane.f32.xlu0 %v1183
  %v1185 = vpop.xlane.xlu0 %1184
  %v1186 = vsub.f32 %v1180, %v1185
  %v1187 = vmul.f32 %v1186, 1.442695
  %v1188 = vpow.pop %v1187
  %v1189 = vsel %vm51, %v1188, 0.0
  %1190 = vadd.xlane.f32.xlu0 %v1189
  %v1191 = vpop.xlane.xlu0 %1190
  %v1192 = vrcp.pop %v1191
  %v1193 = vmul.f32 %v1188, %v1192
  %v1194 = vpack.c.bf16 %v1193, %v1193
  %1195 = vrot.lane.b32.xlu0 %v1043, 48
  %v1196 = vpop.permute.xlu0 %1195
  %v1198 = vsel %vm66, %v1194, 0
  %v1201 = vsel %vm70, %v1196, 0
  %1203 = vmatpush.bf16.msra.mxu0 0
  %1204 = vmatpush.bf16.msra.mxu0 0
  %1205 = vmatpush.bf16.msra.mxu0 0
  %1206 = vmatpush.bf16.msra.mxu0 0
  %1207 = vmatpush.bf16.msra.mxu0 0
  %1208 = vmatpush.bf16.msra.mxu0 0
  %1209 = vmatpush.bf16.msra.mxu0 0
  %1210 = vmatpush.bf16.msra.mxu0 %v1201
  %1211 = vmatmul.bf16.gmra.mxu0 %v1198
  %v1212 = vpop.f32.mrf.mxu0
  %v1213 = vadd.f32 0.0, %v1212
  %v1214 = vpop.f32.mrf.mxu0
  %1215 = vdwg.mxu0
  %1217 = vrot.lane.b32.xlu0 %v1213, 16
  %v1218 = vpop.permute.xlu0 %1217
  %1220 = vst.msk [vmem:[#allocation2 + $0x8] sm:$0x3] %vm211, %v1218
  %1221 = vrot.lane.b32.xlu0 %v1043, 104
  %v1222 = vpop.permute.xlu0 %1221
  %1223 = vrot.lane.b32.xlu0 %v1043, 72
  %v1224 = vpop.permute.xlu0 %1223
  %v1226 = vsel %vm31, %v1222, 0
  %v1229 = vsel %vm31, %v1224, 0
  %1231 = vmatpush.bf16.xpose.msra.mxu0 0
  %1232 = vmatpush.bf16.xpose.msra.mxu0 0
  %1233 = vmatpush.bf16.xpose.msra.mxu0 0
  %1234 = vmatpush.bf16.xpose.msra.mxu0 0
  %1235 = vmatpush.bf16.xpose.msra.mxu0 0
  %1236 = vmatpush.bf16.xpose.msra.mxu0 0
  %1237 = vmatpush.bf16.xpose.msra.mxu0 0
  %1238 = vmatpush.bf16.xpose.msra.mxu0 %v1229
  %1239 = vmatmul.bf16.gmra.mxu0 %v1226
  %v1240 = vpop.f32.mrf.mxu0
  %v1241 = vadd.f32 0.0, %v1240
  %v1242 = vpop.f32.mrf.mxu0
  %1243 = vdwg.mxu0
  %v1244 = vsel %vm51, %v1241, -inf
  %1245 = vmax.xlane.f32.xlu0 %v1244
  %v1246 = vpop.xlane.xlu0 %1245
  %v1247 = vsub.f32 %v1241, %v1246
  %v1248 = vmul.f32 %v1247, 1.442695
  %v1249 = vpow.pop %v1248
  %v1250 = vsel %vm51, %v1249, 0.0
  %1251 = vadd.xlane.f32.xlu0 %v1250
  %v1252 = vpop.xlane.xlu0 %1251
  %v1253 = vrcp.pop %v1252
  %v1254 = vmul.f32 %v1249, %v1253
  %v1255 = vpack.c.bf16 %v1254, %v1254
  %1256 = vrot.lane.b32.xlu0 %v1043, 40
  %v1257 = vpop.permute.xlu0 %1256
  %v1259 = vsel %vm66, %v1255, 0
  %v1262 = vsel %vm70, %v1257, 0
  %1264 = vmatpush.bf16.msra.mxu0 0
  %1265 = vmatpush.bf16.msra.mxu0 0
  %1266 = vmatpush.bf16.msra.mxu0 0
  %1267 = vmatpush.bf16.msra.mxu0 0
  %1268 = vmatpush.bf16.msra.mxu0 0
  %1269 = vmatpush.bf16.msra.mxu0 0
  %1270 = vmatpush.bf16.msra.mxu0 0
  %1271 = vmatpush.bf16.msra.mxu0 %v1262
  %1272 = vmatmul.bf16.gmra.mxu0 %v1259
  %v1273 = vpop.f32.mrf.mxu0
  %v1274 = vadd.f32 0.0, %v1273
  %v1275 = vpop.f32.mrf.mxu0
  %1276 = vdwg.mxu0
  %1278 = vrot.lane.b32.xlu0 %v1274, 24
  %v1279 = vpop.permute.xlu0 %1278
  %1281 = vst.msk [vmem:[#allocation2 + $0x8] sm:$0x3] %vm273, %v1279
  %v1282 = vld [vmem:[#allocation2] sm:$0xff]
  %v1283 = vld [vmem:[#allocation2 + $0x8] sm:$0x3]
  %v1284 = vpack.c.bf16 %v1283, %v1282
  %v1285 = vld [vmem:[%s1] sm:$0xf]
  %v1286 = vld [vmem:[%s1 + $0x4] sm:$0xf]
  %v1287 = vld [vmem:[%s1 + $0x8] sm:$0xf]
  %v1288 = vld [vmem:[%s1 + $0xc] sm:$0xf]
  %v1289 = vld [vmem:[%s2] sm:$0x1]
  %v1291 = vperm.slane %v1289, 0
  %v1297 = vunpack.c.l.b16 %v1285
  %v1298 = vunpack.c.l.b16 %v1286
  %v1299 = vunpack.c.l.b16 %v1287
  %v1300 = vunpack.c.l.b16 %v1288
  %v1301 = vpack.c.b16 %v1298, %v1297
  %v1302 = vpack.c.b16 %v1300, %v1299
  %vm1305 = vcmask 261120
  %v1307 = vsel %vm1305, %v1284, 0
  %1309 = vmatpush.bf16.msra.mxu0 0
  %1310 = vmatpush.bf16.msra.mxu0 0
  %1311 = vmatpush.bf16.msra.mxu0 0
  %1312 = vmatpush.bf16.msra.mxu0 0
  %1313 = vmatpush.bf16.msra.mxu0 0
  %1314 = vmatpush.bf16.msra.mxu0 0
  %1315 = vmatpush.bf16.msra.mxu0 %v1302
  %1316 = vmatpush.bf16.msra.mxu0 %v1301
  %1317 = vmatmul.bf16.gmra.mxu0 %v1307
  %v1318 = vpop.f32.mrf.mxu0
  %v1319 = vadd.f32 %v1291, %v1318
  %v1320 = vpop.f32.mrf.mxu0
  %v1321 = vadd.f32 %v1291, %v1320
  %1322 = vdwg.mxu0
  %v1323 = vpack.c.bf16 %v1319, %v1319
  %v1325 = vrot.slane %v1323, 3
  %v1328 = vsel %vm70, %v1323, %v1325
  %v1330 = vunpack.i.l.s16 %v1328
  %v1331 = vunpack.i.h.s16 %v1328
  %v1332 = vpack.i.b16 %v1330, %v1330
  %v1333 = vpack.i.b16 %v1331, %v1331
  %v1335 = vunpack.c.l.s4 286326784
  %v1336 = vunpack.c.0.s8 %v1335
  %v1337 = vperm.slane %v1332, %v1336
  %v1339 = vunpack.c.l.s4 286326784
  %v1340 = vunpack.c.0.s8 %v1339
  %v1341 = vperm.slane %v1333, %v1340
  %vm1344 = vcmask 253952
  %vm1345 = vsmask.f32 256
  %vm1346 = vmand %vm1344, %vm1345
  %v1347 = vld [vmem:[%s3] sm:$0x1]
  %v1348 = vsel %vm1346, %v1337, %v1347
  %1349 = vst [vmem:[%s3] sm:$0x1] %v1348
  %v1350 = vld [vmem:[%s3 + $0x4] sm:$0x1]
  %v1351 = vsel %vm1346, %v1341, %v1350
  %1352 = vst [vmem:[%s3 + $0x4] sm:$0x1] %v1351
  %1353 = vst [vmem:[#allocation1] sm:$0xff] %v1323
  %s1354 = scalar_lea.vmem [#allocation1], 1
  %v1355 = vld [vmem:[%s1354] ss:$4 sm:$0xff]
  %v1357 = vunpack.i.l.s16 %v1355
  %v1358 = vunpack.i.h.s16 %v1355
  %v1359 = vpack.i.b16 %v1357, %v1357
  %v1360 = vpack.i.b16 %v1358, %v1358
  %v1362 = vunpack.c.l.s4 286326784
  %v1363 = vunpack.c.0.s8 %v1362
  %v1364 = vperm.slane %v1359, %v1363
  %v1366 = vunpack.c.l.s4 286326784
  %v1367 = vunpack.c.0.s8 %v1366
  %v1368 = vperm.slane %v1360, %v1367
  %vm1371 = vsmask.f32 7938
  %vm1372 = vmand %vm1344, %vm1371
  %v1373 = vld [vmem:[%s3] sm:$0x1]
  %v1374 = vsel %vm1372, %v1364, %v1373
  %1375 = vst [vmem:[%s3] sm:$0x1] %v1374
  %v1376 = vld [vmem:[%s3 + $0x4] sm:$0x1]
  %v1377 = vsel %vm1372, %v1368, %v1376
  %1378 = vst [vmem:[%s3 + $0x4] sm:$0x1] %v1377
  %1379 = vst [vmem:[#allocation1] sm:$0xff] %v1323
  %s1380 = scalar_lea.vmem [#allocation1], 2
  %v1381 = vld [vmem:[%s1380] ss:$4 sm:$0xff]
  %v1383 = vunpack.i.l.s16 %v1381
  %v1384 = vunpack.i.h.s16 %v1381
  %v1385 = vpack.i.b16 %v1383, %v1383
  %v1386 = vpack.i.b16 %v1384, %v1384
  %v1388 = vunpack.c.l.s4 286326784
  %v1389 = vunpack.c.0.s8 %v1388
  %v1390 = vperm.slane %v1385, %v1389
  %v1392 = vunpack.c.l.s4 286326784
  %v1393 = vunpack.c.0.s8 %v1392
  %v1394 = vperm.slane %v1386, %v1393
  %vm1397 = vcmask 254977
  %vm1398 = vsmask.f32 1280
  %vm1399 = vmand %vm1397, %vm1398
  %v1400 = vld [vmem:[%s3] sm:$0x2]
  %v1401 = vsel %vm1399, %v1390, %v1400
  %1402 = vst [vmem:[%s3] sm:$0x2] %v1401
  %v1403 = vld [vmem:[%s3 + $0x4] sm:$0x2]
  %v1404 = vsel %vm1399, %v1394, %v1403
  %1405 = vst [vmem:[%s3 + $0x4] sm:$0x2] %v1404
  %1406 = vst [vmem:[#allocation1] sm:$0xff] %v1323
  %s1407 = scalar_lea.vmem [#allocation1], 3
  %v1408 = vld [vmem:[%s1407] ss:$4 sm:$0xff]
  %v1410 = vunpack.i.l.s16 %v1408
  %v1411 = vunpack.i.h.s16 %v1408
  %v1412 = vpack.i.b16 %v1410, %v1410
  %v1413 = vpack.i.b16 %v1411, %v1411
  %v1415 = vunpack.c.l.s4 286326784
  %v1416 = vunpack.c.0.s8 %v1415
  %v1417 = vperm.slane %v1412, %v1416
  %v1419 = vunpack.c.l.s4 286326784
  %v1420 = vunpack.c.0.s8 %v1419
  %v1421 = vperm.slane %v1413, %v1420
  %vm1424 = vsmask.f32 7942
  %vm1425 = vmand %vm1397, %vm1424
  %v1426 = vld [vmem:[%s3] sm:$0x2]
  %v1427 = vsel %vm1425, %v1417, %v1426
  %1428 = vst [vmem:[%s3] sm:$0x2] %v1427
  %v1429 = vld [vmem:[%s3 + $0x4] sm:$0x2]
  %v1430 = vsel %vm1425, %v1421, %v1429
  %1431 = vst [vmem:[%s3 + $0x4] sm:$0x2] %v1430
  %v1432 = vpack.c.bf16 %v1321, %v1321
  %v1434 = vrot.slane %v1432, 3
  %v1437 = vsel %vm70, %v1432, %v1434
  %v1439 = vunpack.i.l.s16 %v1437
  %v1440 = vunpack.i.h.s16 %v1437
  %v1441 = vpack.i.b16 %v1439, %v1439
  %v1442 = vpack.i.b16 %v1440, %v1440
  %v1444 = vunpack.c.l.s4 286326784
  %v1445 = vunpack.c.0.s8 %v1444
  %v1446 = vperm.slane %v1441, %v1445
  %v1448 = vunpack.c.l.s4 286326784
  %v1449 = vunpack.c.0.s8 %v1448
  %v1450 = vperm.slane %v1442, %v1449
  %vm1453 = vcmask 256002
  %vm1454 = vsmask.f32 2304
  %vm1455 = vmand %vm1453, %vm1454
  %v1456 = vld [vmem:[%s3] sm:$0x4]
  %v1457 = vsel %vm1455, %v1446, %v1456
  %1458 = vst [vmem:[%s3] sm:$0x4] %v1457
  %v1459 = vld [vmem:[%s3 + $0x4] sm:$0x4]
  %v1460 = vsel %vm1455, %v1450, %v1459
  %1461 = vst [vmem:[%s3 + $0x4] sm:$0x4] %v1460
  // Predicated region
  $region14: #{clip_trainer_forward.42} parent=0 // pred_check
    _
  $region15: #{clip_trainer_forward.42} parent=0 // pred_check_branch
    %1463 = sbr.rel (0) target = $region17
  $region16: #{clip_trainer_forward.42} parent=0 // pred_region
    _
  $region17: #{clip_trainer_forward.42} parent=0 // pred_fallthru
    _
  // Predicated region
  $region18: #{clip_trainer_forward.42} parent=0 // pred_check
    _
  $region19: #{clip_trainer_forward.42} parent=0 // pred_check_branch
    %1465 = sbr.rel (0) target = $region21
  $region20: #{clip_trainer_forward.42} parent=0 // pred_region
    _
  $region21: #{clip_trainer_forward.42} parent=0 // pred_fallthru
    _

// kernel: clip_trainer_forward.27
$region0: #{clip_trainer_forward.27}
  #allocation0 [shape = 'u32[]', space=smem, size = 0x4, offset = 0x4, fixed_abs, tag = 'smem constant byte address 0x4 - core index']
  #allocation1 [shape = 'u32[72,128]{1,0:T(1,128)}', space=vmem, size = 0x9000, scoped, tag = 'internal scratch']
  %s0 = inlined_call_operand.vmem [shape: bf16[16,32], index: 0, kind: input, shape index: {}]
  %s1 = inlined_call_operand.vmem [shape: bf16[32,96], index: 1, kind: input, shape index: {}]
  %s2 = inlined_call_operand.vmem [shape: f32[1,96], index: 2, kind: input, shape index: {}]
  %s3 = inlined_call_operand.vmem [shape: bf16[16,96], index: 3, kind: output, shape index: {}]
  %s4 = sld [smem:[#allocation0]]
  $region22: #{clip_trainer_forward.27} parent=0
    _
  %s6 = ssub.s32 1, %s4
  %s7 = scalar_select 0, %s6, %s4
  // Predicated region
  $region2: #{clip_trainer_forward.27} parent=0 // pred_check
    _
  $region3: #{clip_trainer_forward.27} parent=0 // pred_check_branch
    %9 = sbr.rel (0) target = $region5
  $region4: #{clip_trainer_forward.27} parent=0 // pred_region
    _
  $region5: #{clip_trainer_forward.27} parent=0 // pred_fallthru
    _
  // Predicated region
  $region6: #{clip_trainer_forward.27} parent=0 // pred_check
    _
  $region7: #{clip_trainer_forward.27} parent=0 // pred_check_branch
    %11 = sbr.rel (0) target = $region9
  $region8: #{clip_trainer_forward.27} parent=0 // pred_region
    _
  $region9: #{clip_trainer_forward.27} parent=0 // pred_fallthru
    _
  // Predicated region
  $region10: #{clip_trainer_forward.27} parent=0 // pred_check
    _
  $region11: #{clip_trainer_forward.27} parent=0 // pred_check_branch
    %13 = sbr.rel (0) target = $region13
  $region12: #{clip_trainer_forward.27} parent=0 // pred_region
    _
  $region13: #{clip_trainer_forward.27} parent=0 // pred_fallthru
    _
  %v15 = vld [vmem:[%s0] sm:$0xf]
  %v16 = vld [vmem:[%s0 + $0x4] sm:$0xf]
  %v17 = vld [vmem:[%s1] sm:$0xf]
  %v18 = vld [vmem:[%s1 + $0x4] sm:$0xf]
  %v19 = vld [vmem:[%s1 + $0x8] sm:$0xf]
  %v20 = vld [vmem:[%s1 + $0xc] sm:$0xf]
  %v21 = vld [vmem:[%s2] sm:$0x1]
  %v23 = vperm.slane %v21, 0
  %v27 = vunpack.c.l.b16 %v15
  %v28 = vunpack.c.l.b16 %v16
  %v29 = vpack.c.b16 %v28, %v27
  %v34 = vunpack.c.l.b16 %v17
  %v35 = vunpack.c.l.b16 %v18
  %v36 = vunpack.c.l.b16 %v19
  %v37 = vunpack.c.l.b16 %v20
  %v38 = vpack.c.b16 %v35, %v34
  %v39 = vpack.c.b16 %v37, %v36
  %vm42 = vcmask 261120
  %v44 = vsel %vm42, %v29, 0
  %46 = vmatpush.bf16.msra.mxu0 0
  %47 = vmatpush.bf16.msra.mxu0 0
  %48 = vmatpush.bf16.msra.mxu0 0
  %49 = vmatpush.bf16.msra.mxu0 0
  %50 = vmatpush.bf16.msra.mxu0 0
  %51 = vmatpush.bf16.msra.mxu0 0
  %52 = vmatpush.bf16.msra.mxu0 %v39
  %53 = vmatpush.bf16.msra.mxu0 %v38
  %54 = vmatmul.bf16.gmra.mxu0 %v44
  %v55 = vpop.f32.mrf.mxu0
  %v56 = vadd.f32 %v23, %v55
  %v57 = vpop.f32.mrf.mxu0
  %v58 = vadd.f32 %v23, %v57
  %59 = vdwg.mxu0
  %v60 = vpack.c.bf16 %v56, %v56
  %v61 = vpack.c.bf16 %v58, %v58
  %vm62 = vcmask 781312
  %63 = vst.msk [vmem:[%s3] sm:$0xf] %vm62, %v60
  %64 = vst.msk [vmem:[%s3 + $0x4] sm:$0xf] %vm62, %v61
  // Predicated region
  $region14: #{clip_trainer_forward.27} parent=0 // pred_check
    _
  $region15: #{clip_trainer_forward.27} parent=0 // pred_check_branch
    %66 = sbr.rel (0) target = $region17
  $region16: #{clip_trainer_forward.27} parent=0 // pred_region
    _
  $region17: #{clip_trainer_forward.27} parent=0 // pred_fallthru
    _
  // Predicated region
  $region18: #{clip_trainer_forward.27} parent=0 // pred_check
    _
  $region19: #{clip_trainer_forward.27} parent=0 // pred_check_branch
    %68 = sbr.rel (0) target = $region21
  $region20: #{clip_trainer_forward.27} parent=0 // pred_region
    _
  $region21: #{clip_trainer_forward.27} parent=0 // pred_fallthru
    _

// kernel: clip_trainer_forward.29
$region0: #{clip_trainer_forward.29}
  #allocation0 [shape = 'u32[]', space=smem, size = 0x4, offset = 0x4, fixed_abs, tag = 'smem constant byte address 0x4 - core index']
  #allocation1 [shape = 'u32[72,128]{1,0:T(1,128)}', space=vmem, size = 0x9000, scoped, tag = 'internal scratch']
  %s0 = inlined_call_operand.vmem [shape: bf16[16,32], index: 0, kind: input, shape index: {}]
  %s1 = inlined_call_operand.vmem [shape: bf16[16,32], index: 1, kind: input, shape index: {}]
  %s2 = inlined_call_operand.vmem [shape: f32[1,32], index: 2, kind: input, shape index: {}]
  %s3 = inlined_call_operand.vmem [shape: f32[1,32], index: 3, kind: input, shape index: {}]
  %s4 = inlined_call_operand.vmem [shape: bf16[16,32], index: 4, kind: output, shape index: {}]
  %s5 = sld [smem:[#allocation0]]
  $region26: #{clip_trainer_forward.29} parent=0
    _
  %s7 = ssub.s32 1, %s5
  %s8 = scalar_select 0, %s7, %s5
  // Predicated region
  $region2: #{clip_trainer_forward.29} parent=0 // pred_check
    _
  $region3: #{clip_trainer_forward.29} parent=0 // pred_check_branch
    %10 = sbr.rel (0) target = $region5
  $region4: #{clip_trainer_forward.29} parent=0 // pred_region
    _
  $region5: #{clip_trainer_forward.29} parent=0 // pred_fallthru
    _
  // Predicated region
  $region6: #{clip_trainer_forward.29} parent=0 // pred_check
    _
  $region7: #{clip_trainer_forward.29} parent=0 // pred_check_branch
    %12 = sbr.rel (0) target = $region9
  $region8: #{clip_trainer_forward.29} parent=0 // pred_region
    _
  $region9: #{clip_trainer_forward.29} parent=0 // pred_fallthru
    _
  // Predicated region
  $region10: #{clip_trainer_forward.29} parent=0 // pred_check
    _
  $region11: #{clip_trainer_forward.29} parent=0 // pred_check_branch
    %14 = sbr.rel (0) target = $region13
  $region12: #{clip_trainer_forward.29} parent=0 // pred_region
    _
  $region13: #{clip_trainer_forward.29} parent=0 // pred_fallthru
    _
  // Predicated region
  $region14: #{clip_trainer_forward.29} parent=0 // pred_check
    _
  $region15: #{clip_trainer_forward.29} parent=0 // pred_check_branch
    %16 = sbr.rel (0) target = $region17
  $region16: #{clip_trainer_forward.29} parent=0 // pred_region
    _
  $region17: #{clip_trainer_forward.29} parent=0 // pred_fallthru
    _
  %v17 = vld [vmem:[%s0] sm:$0xf]
  %v18 = vld [vmem:[%s0 + $0x4] sm:$0xf]
  %v19 = vunpack.c.l.bf16 %v17
  %v20 = vunpack.c.l.bf16 %v18
  %v21 = vld [vmem:[%s1] sm:$0xf]
  %v22 = vld [vmem:[%s1 + $0x4] sm:$0xf]
  %v23 = vunpack.c.l.bf16 %v21
  %v24 = vunpack.c.l.bf16 %v22
  %v25 = vadd.f32 %v19, %v23
  %v26 = vadd.f32 %v20, %v24
  %v27 = vld [vmem:[%s2] sm:$0x1]
  %v28 = vld [vmem:[%s3] sm:$0x1]
  %vm29 = vcmask 261120
  %v30 = vsel %vm29, %v25, 0.0
  %31 = vadd.xlane.f32.xlu0 %v30
  %v32 = vpop.xlane.xlu0 %31
  %v33 = vsel %vm29, %v26, 0.0
  %34 = vadd.xlane.f32.xlu0 %v33
  %v35 = vpop.xlane.xlu0 %34
  %v36 = vrcp.pop 32.0
  %v37 = vmul.f32 32.0, %v36
  %v38 = vsub.f32 1.0, %v37
  %v39 = vmul.f32 %v36, %v38
  %v40 = vadd.f32 %v36, %v39
  %vm41 = vweird.f32 %v36
  %v42 = vsel %vm41, %v36, %v40
  %v43 = vmul.f32 %v32, %v42
  %v44 = vmul.f32 %v35, %v42
  %v45 = vsub.f32 %v25, %v43
  %v46 = vsub.f32 %v26, %v44
  %v47 = vmul.f32 %v45, %v45
  %v48 = vmul.f32 %v46, %v46
  %v49 = vsel %vm29, %v47, 0.0
  %50 = vadd.xlane.f32.xlu0 %v49
  %v51 = vpop.xlane.xlu0 %50
  %v52 = vsel %vm29, %v48, 0.0
  %53 = vadd.xlane.f32.xlu0 %v52
  %v54 = vpop.xlane.xlu0 %53
  %v55 = vmul.f32 %v51, %v42
  %v56 = vmul.f32 %v54, %v42
  %v57 = vadd.f32 %v55, 1e-05
  %v58 = vadd.f32 %v56, 1e-05
  %v59 = vrsqrt.pop %v57
  %v60 = vmul.f32 %v59, %v57
  %v61 = vmul.f32 %v60, %v59
  %v62 = vmul.f32 0.5, %v61
  %v63 = vsub.f32 1.5, %v62
  %v64 = vmul.f32 %v59, %v63
  %vm65 = vweird.f32 %v57
  %vm66 = vweird.f32 %v59
  %vm67 = vmor %vm65, %vm66
  %v68 = vsel %vm67, %v59, %v64
  %v69 = vrsqrt.pop %v58
  %v70 = vmul.f32 %v69, %v58
  %v71 = vmul.f32 %v70, %v69
  %v72 = vmul.f32 0.5, %v71
  %v73 = vsub.f32 1.5, %v72
  %v74 = vmul.f32 %v69, %v73
  %vm75 = vweird.f32 %v58
  %vm76 = vweird.f32 %v69
  %vm77 = vmor %vm75, %vm76
  %v78 = vsel %vm77, %v69, %v74
  %v79 = vmul.f32 %v45, %v68
  %v80 = vmul.f32 %v46, %v78
  %v82 = vperm.slane %v27, 0
  %v84 = vmul.f32 %v79, %v82
  %v85 = vmul.f32 %v80, %v82
  %v87 = vperm.slane %v28, 0
  %v89 = vadd.f32 %v84, %v87
  %v90 = vadd.f32 %v85, %v87
  %v91 = vpack.c.bf16 %v89, %v89
  %v92 = vpack.c.bf16 %v90, %v90
  %vm93 = vcmask 257024
  %94 = vst.msk [vmem:[%s4] sm:$0xf] %vm93, %v91
  %95 = vst.msk [vmem:[%s4 + $0x4] sm:$0xf] %vm93, %v92
  // Predicated region
  $region18: #{clip_trainer_forward.29} parent=0 // pred_check
    _
  $region19: #{clip_trainer_forward.29} parent=0 // pred_check_branch
    %97 = sbr.rel (0) target = $region21
  $region20: #{clip_trainer_forward.29} parent=0 // pred_region
    _
  $region21: #{clip_trainer_forward.29} parent=0 // pred_fallthru
    _
  // Predicated region
  $region22: #{clip_trainer_forward.29} parent=0 // pred_check
    _
  $region23: #{clip_trainer_forward.29} parent=0 // pred_check_branch
    %99 = sbr.rel (0) target = $region25
  $region24: #{clip_trainer_forward.29} parent=0 // pred_region
    _
  $region25: #{clip_trainer_forward.29} parent=0 // pred_fallthru
    _

// kernel: clip_trainer_forward.30
$region0: #{clip_trainer_forward.30}
  #allocation0 [shape = 'u32[]', space=smem, size = 0x4, offset = 0x4, fixed_abs, tag = 'smem constant byte address 0x4 - core index']
  #allocation1 [shape = 'u32[72,128]{1,0:T(1,128)}', space=vmem, size = 0x9000, scoped, tag = 'internal scratch']
  %s0 = inlined_call_operand.vmem [shape: bf16[16,32], index: 0, kind: input, shape index: {}]
  %s1 = inlined_call_operand.vmem [shape: bf16[32,64], index: 1, kind: input, shape index: {}]
  %s2 = inlined_call_operand.vmem [shape: f32[1,64], index: 2, kind: input, shape index: {}]
  %s3 = inlined_call_operand.vmem [shape: bf16[16,64], index: 3, kind: output, shape index: {}]
  %s4 = sld [smem:[#allocation0]]
  $region22: #{clip_trainer_forward.30} parent=0
    _
  %s6 = ssub.s32 1, %s4
  %s7 = scalar_select 0, %s6, %s4
  // Predicated region
  $region2: #{clip_trainer_forward.30} parent=0 // pred_check
    _
  $region3: #{clip_trainer_forward.30} parent=0 // pred_check_branch
    %9 = sbr.rel (0) target = $region5
  $region4: #{clip_trainer_forward.30} parent=0 // pred_region
    _
  $region5: #{clip_trainer_forward.30} parent=0 // pred_fallthru
    _
  // Predicated region
  $region6: #{clip_trainer_forward.30} parent=0 // pred_check
    _
  $region7: #{clip_trainer_forward.30} parent=0 // pred_check_branch
    %11 = sbr.rel (0) target = $region9
  $region8: #{clip_trainer_forward.30} parent=0 // pred_region
    _
  $region9: #{clip_trainer_forward.30} parent=0 // pred_fallthru
    _
  // Predicated region
  $region10: #{clip_trainer_forward.30} parent=0 // pred_check
    _
  $region11: #{clip_trainer_forward.30} parent=0 // pred_check_branch
    %13 = sbr.rel (0) target = $region13
  $region12: #{clip_trainer_forward.30} parent=0 // pred_region
    _
  $region13: #{clip_trainer_forward.30} parent=0 // pred_fallthru
    _
  %v15 = vld [vmem:[%s0] sm:$0xf]
  %v16 = vld [vmem:[%s0 + $0x4] sm:$0xf]
  %v17 = vld [vmem:[%s1] sm:$0xf]
  %v18 = vld [vmem:[%s1 + $0x4] sm:$0xf]
  %v19 = vld [vmem:[%s1 + $0x8] sm:$0xf]
  %v20 = vld [vmem:[%s1 + $0xc] sm:$0xf]
  %v21 = vld [vmem:[%s2] sm:$0x1]
  %v23 = vperm.slane %v21, 0
  %v27 = vunpack.c.l.b16 %v15
  %v28 = vunpack.c.l.b16 %v16
  %v29 = vpack.c.b16 %v28, %v27
  %v34 = vunpack.c.l.b16 %v17
  %v35 = vunpack.c.l.b16 %v18
  %v36 = vunpack.c.l.b16 %v19
  %v37 = vunpack.c.l.b16 %v20
  %v38 = vpack.c.b16 %v35, %v34
  %v39 = vpack.c.b16 %v37, %v36
  %vm42 = vcmask 261120
  %v44 = vsel %vm42, %v29, 0
  %46 = vmatpush.bf16.msra.mxu0 0
  %47 = vmatpush.bf16.msra.mxu0 0
  %48 = vmatpush.bf16.msra.mxu0 0
  %49 = vmatpush.bf16.msra.mxu0 0
  %50 = vmatpush.bf16.msra.mxu0 0
  %51 = vmatpush.bf16.msra.mxu0 0
  %52 = vmatpush.bf16.msra.mxu0 %v39
  %53 = vmatpush.bf16.msra.mxu0 %v38
  %54 = vmatmul.bf16.gmra.mxu0 %v44
  %v55 = vpop.f32.mrf.mxu0
  %v56 = vadd.f32 %v23, %v55
  %v57 = vpop.f32.mrf.mxu0
  %v58 = vadd.f32 %v23, %v57
  %59 = vdwg.mxu0
  %v60 = vmax.f32 %v56, 0.0
  %v61 = vmax.f32 %v58, 0.0
  %v62 = vpack.c.bf16 %v60, %v60
  %v63 = vpack.c.bf16 %v61, %v61
  %vm64 = vcmask 519168
  %65 = vst.msk [vmem:[%s3] sm:$0xf] %vm64, %v62
  %66 = vst.msk [vmem:[%s3 + $0x4] sm:$0xf] %vm64, %v63
  // Predicated region
  $region14: #{clip_trainer_forward.30} parent=0 // pred_check
    _
  $region15: #{clip_trainer_forward.30} parent=0 // pred_check_branch
    %68 = sbr.rel (0) target = $region17
  $region16: #{clip_trainer_forward.30} parent=0 // pred_region
    _
  $region17: #{clip_trainer_forward.30} parent=0 // pred_fallthru
    _
  // Predicated region
  $region18: #{clip_trainer_forward.30} parent=0 // pred_check
    _
  $region19: #{clip_trainer_forward.30} parent=0 // pred_check_branch
    %70 = sbr.rel (0) target = $region21
  $region20: #{clip_trainer_forward.30} parent=0 // pred_region
    _
  $region21: #{clip_trainer_forward.30} parent=0 // pred_fallthru
    _

// kernel: clip_trainer_forward.39
$region0: #{clip_trainer_forward.39}
  #allocation0 [shape = 'u32[]', space=smem, size = 0x4, offset = 0x4, fixed_abs, tag = 'smem constant byte address 0x4 - core index']
  #allocation1 [shape = 'u32[72,128]{1,0:T(1,128)}', space=vmem, size = 0x9000, scoped, tag = 'internal scratch']
  %s0 = inlined_call_operand.vmem [shape: bf16[16,32], index: 0, kind: input, shape index: {}]
  %s1 = inlined_call_operand.vmem [shape: f32[1,32], index: 1, kind: input, shape index: {}]
  %s2 = inlined_call_operand.vmem [shape: f32[1,32], index: 2, kind: input, shape index: {}]
  %s3 = inlined_call_operand.hbm [shape: f32[16,32], index: 3, kind: output, shape index: {}]
  %s4 = sld [smem:[#allocation0]]
  $region22: #{clip_trainer_forward.39} parent=0
    _
  %s6 = ssub.s32 1, %s4
  %s7 = scalar_select 0, %s6, %s4
  $region1: #{clip_trainer_forward.39} parent=0
    #allocation2 [shape = 'u8[8192]{0}', space=vmem, size = 0x2000, scoped, tag = 'output window, operand 0, single buffered']
    #allocation3 [shape = 's32[1]{0}', space=sflag, size = 0x4, scoped, tag = 'scoped memory for clip_trainer_forward.39']
    %8 = vsyncpa [#allocation3], 0
    // Predicated region
    $region2: #{clip_trainer_forward.39} parent=1 // pred_check
      _
    $region3: #{clip_trainer_forward.39} parent=1 // pred_check_branch
      %10 = sbr.rel (0) target = $region5
    $region4: #{clip_trainer_forward.39} parent=1 // pred_region
      _
    $region5: #{clip_trainer_forward.39} parent=1 // pred_fallthru
      _
    // Predicated region
    $region6: #{clip_trainer_forward.39} parent=1 // pred_check
      _
    $region7: #{clip_trainer_forward.39} parent=1 // pred_check_branch
      %12 = sbr.rel (0) target = $region9
    $region8: #{clip_trainer_forward.39} parent=1 // pred_region
      _
    $region9: #{clip_trainer_forward.39} parent=1 // pred_fallthru
      _
    // Predicated region
    $region10: #{clip_trainer_forward.39} parent=1 // pred_check
      _
    $region11: #{clip_trainer_forward.39} parent=1 // pred_check_branch
      %14 = sbr.rel (0) target = $region13
    $region12: #{clip_trainer_forward.39} parent=1 // pred_region
      _
    $region13: #{clip_trainer_forward.39} parent=1 // pred_fallthru
      _
    %v15 = vld [vmem:[%s0] sm:$0xf]
    %v16 = vld [vmem:[%s0 + $0x4] sm:$0xf]
    %v17 = vunpack.c.l.bf16 %v15
    %v18 = vunpack.c.l.bf16 %v16
    %v19 = vld [vmem:[%s1] sm:$0x1]
    %v20 = vld [vmem:[%s2] sm:$0x1]
    %vm21 = vcmask 261120
    %v22 = vsel %vm21, %v17, 0.0
    %23 = vadd.xlane.f32.xlu0 %v22
    %v24 = vpop.xlane.xlu0 %23
    %v25 = vsel %vm21, %v18, 0.0
    %26 = vadd.xlane.f32.xlu0 %v25
    %v27 = vpop.xlane.xlu0 %26
    %v28 = vrcp.pop 32.0
    %v29 = vmul.f32 32.0, %v28
    %v30 = vsub.f32 1.0, %v29
    %v31 = vmul.f32 %v28, %v30
    %v32 = vadd.f32 %v28, %v31
    %vm33 = vweird.f32 %v28
    %v34 = vsel %vm33, %v28, %v32
    %v35 = vmul.f32 %v24, %v34
    %v36 = vmul.f32 %v27, %v34
    %v37 = vsub.f32 %v17, %v35
    %v38 = vsub.f32 %v18, %v36
    %v39 = vmul.f32 %v37, %v37
    %v40 = vmul.f32 %v38, %v38
    %v41 = vsel %vm21, %v39, 0.0
    %42 = vadd.xlane.f32.xlu0 %v41
    %v43 = vpop.xlane.xlu0 %42
    %v44 = vsel %vm21, %v40, 0.0
    %45 = vadd.xlane.f32.xlu0 %v44
    %v46 = vpop.xlane.xlu0 %45
    %v47 = vmul.f32 %v43, %v34
    %v48 = vmul.f32 %v46, %v34
    %v49 = vadd.f32 %v47, 1e-05
    %v50 = vadd.f32 %v48, 1e-05
    %v51 = vrsqrt.pop %v49
    %v52 = vmul.f32 %v51, %v49
    %v53 = vmul.f32 %v52, %v51
    %v54 = vmul.f32 0.5, %v53
    %v55 = vsub.f32 1.5, %v54
    %v56 = vmul.f32 %v51, %v55
    %vm57 = vweird.f32 %v49
    %vm58 = vweird.f32 %v51
    %vm59 = vmor %vm57, %vm58
    %v60 = vsel %vm59, %v51, %v56
    %v61 = vrsqrt.pop %v50
    %v62 = vmul.f32 %v61, %v50
    %v63 = vmul.f32 %v62, %v61
    %v64 = vmul.f32 0.5, %v63
    %v65 = vsub.f32 1.5, %v64
    %v66 = vmul.f32 %v61, %v65
    %vm67 = vweird.f32 %v50
    %vm68 = vweird.f32 %v61
    %vm69 = vmor %vm67, %vm68
    %v70 = vsel %vm69, %v61, %v66
    %v71 = vmul.f32 %v37, %v60
    %v72 = vmul.f32 %v38, %v70
    %v74 = vperm.slane %v19, 0
    %v76 = vmul.f32 %v71, %v74
    %v77 = vmul.f32 %v72, %v74
    %v79 = vperm.slane %v20, 0
    %v81 = vadd.f32 %v76, %v79
    %v82 = vadd.f32 %v77, %v79
    %v83 = vmul.f32 %v81, %v81
    %v84 = vmul.f32 %v82, %v82
    %v85 = vsel %vm21, %v83, 0.0
    %86 = vadd.xlane.f32.xlu0 %v85
    %v87 = vpop.xlane.xlu0 %86
    %v88 = vsel %vm21, %v84, 0.0
    %89 = vadd.xlane.f32.xlu0 %v88
    %v90 = vpop.xlane.xlu0 %89
    %v91 = vrsqrt.pop %v87
    %v92 = vmul.f32 %v91, %v87
    %v93 = vmul.f32 %v92, %v91
    %v94 = vmul.f32 0.5, %v93
    %v95 = vsub.f32 1.5, %v94
    %v96 = vmul.f32 %v91, %v95
    %v97 = vmul.f32 %v87, %v96
    %vm98 = vcmp.eq.f32.partialorder %v87, inf
    %v99 = vsel %vm98, %v87, %v97
    %vm100 = vcmp.eq.f32.partialorder %v87, 0.0
    %v101 = vand.u32 %v87, 2147483648
    %v102 = vsel %vm100, %v101, %v99
    %v103 = vrsqrt.pop %v90
    %v104 = vmul.f32 %v103, %v90
    %v105 = vmul.f32 %v104, %v103
    %v106 = vmul.f32 0.5, %v105
    %v107 = vsub.f32 1.5, %v106
    %v108 = vmul.f32 %v103, %v107
    %v109 = vmul.f32 %v90, %v108
    %vm110 = vcmp.eq.f32.partialorder %v90, inf
    %v111 = vsel %vm110, %v90, %v109
    %vm112 = vcmp.eq.f32.partialorder %v90, 0.0
    %v113 = vand.u32 %v90, 2147483648
    %v114 = vsel %vm112, %v113, %v111
    %v115 = vmax.f32 %v102, 1e-12
    %v116 = vmax.f32 %v114, 1e-12
    %v117 = vrcp.pop %v115
    %v118 = vmul.f32 %v115, %v117
    %v119 = vsub.f32 1.0, %v118
    %v120 = vmul.f32 %v117, %v119
    %v121 = vadd.f32 %v117, %v120
    %vm122 = vweird.f32 %v115
    %vm123 = vweird.f32 %v117
    %vm124 = vmor %vm122, %vm123
    %v125 = vsel %vm124, %v117, %v121
    %v126 = vand.u32 2147483647, %v115
    %vm127 = vcmp.eq.f32.partialorder %v126, 8.507059e+37
    %v128 = vand.u32 %v115, 2147483648
    %v129 = vor.u32 1.1754944e-38, %v128
    %v130 = vsel %vm127, %v129, %v125
    %v131 = vmul.f32 %v81, %v130
    %v132 = vrcp.pop %v116
    %v133 = vmul.f32 %v116, %v132
    %v134 = vsub.f32 1.0, %v133
    %v135 = vmul.f32 %v132, %v134
    %v136 = vadd.f32 %v132, %v135
    %vm137 = vweird.f32 %v116
    %vm138 = vweird.f32 %v132
    %vm139 = vmor %vm137, %vm138
    %v140 = vsel %vm139, %v132, %v136
    %v141 = vand.u32 2147483647, %v116
    %vm142 = vcmp.eq.f32.partialorder %v141, 8.507059e+37
    %v143 = vand.u32 %v116, 2147483648
    %v144 = vor.u32 1.1754944e-38, %v143
    %v145 = vsel %vm142, %v144, %v140
    %v146 = vmul.f32 %v82, %v145
    %147 = vst.msk [vmem:[#allocation2] sm:$0xff] %vm21, %v131
    %148 = vst.msk [vmem:[#allocation2 + $0x8] sm:$0xff] %vm21, %v146
    // Predicated region
    $region14: #{clip_trainer_forward.39} parent=1 // pred_check
      _
    $region15: #{clip_trainer_forward.39} parent=1 // pred_check_branch
      %150 = sbr.rel (0) target = $region17
    $region16: #{clip_trainer_forward.39} parent=1 // pred_region
      %152 = vsyncadd [#allocation3], 0
      %s153 = sshll.u32 [#allocation2], 4
      %s154 = int_to_ptr.vmem [resolvable:$true] %s153
      %s155 = sshll.u32 %s3, 4
      %s156 = int_to_ptr.hbm [resolvable:$true] %s155
      %161 = dma.vmem_to_hbm [thread:$0]  %s154, 256, %s156, [#allocation3], 128, 128, 8
    $region17: #{clip_trainer_forward.39} parent=1 // pred_fallthru
      _
    // Predicated region
    $region18: #{clip_trainer_forward.39} parent=1 // pred_check
      _
    $region19: #{clip_trainer_forward.39} parent=1 // pred_check_branch
      %163 = sbr.rel (0) target = $region21
    $region20: #{clip_trainer_forward.39} parent=1 // pred_region
      %165 = dma.done [#allocation3], 256
    $region21: #{clip_trainer_forward.39} parent=1 // pred_fallthru
      _
    %166 = vsyncpa [#allocation3], 1

// kernel: clip_trainer_forward.31
$region0: #{clip_trainer_forward.31}
  #allocation0 [shape = 'u32[]', space=smem, size = 0x4, offset = 0x4, fixed_abs, tag = 'smem constant byte address 0x4 - core index']
  #allocation1 [shape = 'u32[72,128]{1,0:T(1,128)}', space=vmem, size = 0x9000, scoped, tag = 'internal scratch']
  %s0 = inlined_call_operand.vmem [shape: bf16[16,64], index: 0, kind: input, shape index: {}]
  %s1 = inlined_call_operand.vmem [shape: bf16[64,32], index: 1, kind: input, shape index: {}]
  %s2 = inlined_call_operand.vmem [shape: f32[1,32], index: 2, kind: input, shape index: {}]
  %s3 = inlined_call_operand.vmem [shape: bf16[16,32], index: 3, kind: output, shape index: {}]
  %s4 = sld [smem:[#allocation0]]
  $region22: #{clip_trainer_forward.31} parent=0
    _
  %s6 = ssub.s32 1, %s4
  %s7 = scalar_select 0, %s6, %s4
  // Predicated region
  $region2: #{clip_trainer_forward.31} parent=0 // pred_check
    _
  $region3: #{clip_trainer_forward.31} parent=0 // pred_check_branch
    %9 = sbr.rel (0) target = $region5
  $region4: #{clip_trainer_forward.31} parent=0 // pred_region
    _
  $region5: #{clip_trainer_forward.31} parent=0 // pred_fallthru
    _
  // Predicated region
  $region6: #{clip_trainer_forward.31} parent=0 // pred_check
    _
  $region7: #{clip_trainer_forward.31} parent=0 // pred_check_branch
    %11 = sbr.rel (0) target = $region9
  $region8: #{clip_trainer_forward.31} parent=0 // pred_region
    _
  $region9: #{clip_trainer_forward.31} parent=0 // pred_fallthru
    _
  // Predicated region
  $region10: #{clip_trainer_forward.31} parent=0 // pred_check
    _
  $region11: #{clip_trainer_forward.31} parent=0 // pred_check_branch
    %13 = sbr.rel (0) target = $region13
  $region12: #{clip_trainer_forward.31} parent=0 // pred_region
    _
  $region13: #{clip_trainer_forward.31} parent=0 // pred_fallthru
    _
  %v15 = vld [vmem:[%s0] sm:$0xf]
  %v16 = vld [vmem:[%s0 + $0x4] sm:$0xf]
  %v17 = vld [vmem:[%s1] sm:$0xf]
  %v18 = vld [vmem:[%s1 + $0x4] sm:$0xf]
  %v19 = vld [vmem:[%s1 + $0x8] sm:$0xf]
  %v20 = vld [vmem:[%s1 + $0xc] sm:$0xf]
  %v21 = vld [vmem:[%s1 + $0x10] sm:$0xf]
  %v22 = vld [vmem:[%s1 + $0x14] sm:$0xf]
  %v23 = vld [vmem:[%s1 + $0x18] sm:$0xf]
  %v24 = vld [vmem:[%s1 + $0x1c] sm:$0xf]
  %v25 = vld [vmem:[%s2] sm:$0x1]
  %v27 = vperm.slane %v25, 0
  %v31 = vunpack.c.l.b16 %v15
  %v32 = vunpack.c.l.b16 %v16
  %v33 = vpack.c.b16 %v32, %v31
  %v42 = vunpack.c.l.b16 %v17
  %v43 = vunpack.c.l.b16 %v18
  %v44 = vunpack.c.l.b16 %v19
  %v45 = vunpack.c.l.b16 %v20
  %v46 = vunpack.c.l.b16 %v21
  %v47 = vunpack.c.l.b16 %v22
  %v48 = vunpack.c.l.b16 %v23
  %v49 = vunpack.c.l.b16 %v24
  %v50 = vpack.c.b16 %v43, %v42
  %v51 = vpack.c.b16 %v45, %v44
  %v52 = vpack.c.b16 %v47, %v46
  %v53 = vpack.c.b16 %v49, %v48
  %vm58 = vcmask 523264
  %v60 = vsel %vm58, %v33, 0
  %62 = vmatpush.bf16.msra.mxu0 0
  %63 = vmatpush.bf16.msra.mxu0 0
  %64 = vmatpush.bf16.msra.mxu0 0
  %65 = vmatpush.bf16.msra.mxu0 0
  %66 = vmatpush.bf16.msra.mxu0 %v53
  %67 = vmatpush.bf16.msra.mxu0 %v52
  %68 = vmatpush.bf16.msra.mxu0 %v51
  %69 = vmatpush.bf16.msra.mxu0 %v50
  %70 = vmatmul.bf16.gmra.mxu0 %v60
  %v71 = vpop.f32.mrf.mxu0
  %v72 = vadd.f32 %v27, %v71
  %v73 = vpop.f32.mrf.mxu0
  %v74 = vadd.f32 %v27, %v73
  %75 = vdwg.mxu0
  %v76 = vpack.c.bf16 %v72, %v72
  %v77 = vpack.c.bf16 %v74, %v74
  %vm78 = vcmask 257024
  %79 = vst.msk [vmem:[%s3] sm:$0xf] %vm78, %v76
  %80 = vst.msk [vmem:[%s3 + $0x4] sm:$0xf] %vm78, %v77
  // Predicated region
  $region14: #{clip_trainer_forward.31} parent=0 // pred_check
    _
  $region15: #{clip_trainer_forward.31} parent=0 // pred_check_branch
    %82 = sbr.rel (0) target = $region17
  $region16: #{clip_trainer_forward.31} parent=0 // pred_region
    _
  $region17: #{clip_trainer_forward.31} parent=0 // pred_fallthru
    _
  // Predicated region
  $region18: #{clip_trainer_forward.31} parent=0 // pred_check
    _
  $region19: #{clip_trainer_forward.31} parent=0 // pred_check_branch
    %84 = sbr.rel (0) target = $region21
  $region20: #{clip_trainer_forward.31} parent=0 // pred_region
    _
  $region21: #{clip_trainer_forward.31} parent=0 // pred_fallthru
    _

// kernel: clip_trainer_forward.28
$region0: #{clip_trainer_forward.28}
  #allocation0 [shape = 'u32[]', space=smem, size = 0x4, offset = 0x4, fixed_abs, tag = 'smem constant byte address 0x4 - core index']
  #allocation1 [shape = 'u32[72,128]{1,0:T(1,128)}', space=vmem, size = 0x9000, scoped, tag = 'internal scratch']
  #allocation2 [shape = 'f32[16,32]{1,0:T(8,128)}', space=vmem, size = 0x2000, scoped, tag = 'scratch operand']
  %s0 = inlined_call_operand.vmem [shape: bf16[2,8,96], index: 0, kind: input, shape index: {}]
  %s1 = inlined_call_operand.vmem [shape: bf16[32,32], index: 1, kind: input, shape index: {}]
  %s2 = inlined_call_operand.vmem [shape: f32[1,32], index: 2, kind: input, shape index: {}]
  %s3 = inlined_call_operand.vmem [shape: bf16[2,8,32], index: 3, kind: output, shape index: {}]
  %s4 = sld [smem:[#allocation0]]
  $region22: #{clip_trainer_forward.28} parent=0
    _
  %s6 = ssub.s32 1, %s4
  %s7 = scalar_select 0, %s6, %s4
  // Predicated region
  $region2: #{clip_trainer_forward.28} parent=0 // pred_check
    _
  $region3: #{clip_trainer_forward.28} parent=0 // pred_check_branch
    %9 = sbr.rel (0) target = $region5
  $region4: #{clip_trainer_forward.28} parent=0 // pred_region
    _
  $region5: #{clip_trainer_forward.28} parent=0 // pred_fallthru
    _
  // Predicated region
  $region6: #{clip_trainer_forward.28} parent=0 // pred_check
    _
  $region7: #{clip_trainer_forward.28} parent=0 // pred_check_branch
    %11 = sbr.rel (0) target = $region9
  $region8: #{clip_trainer_forward.28} parent=0 // pred_region
    _
  $region9: #{clip_trainer_forward.28} parent=0 // pred_fallthru
    _
  // Predicated region
  $region10: #{clip_trainer_forward.28} parent=0 // pred_check
    _
  $region11: #{clip_trainer_forward.28} parent=0 // pred_check_branch
    %13 = sbr.rel (0) target = $region13
  $region12: #{clip_trainer_forward.28} parent=0 // pred_region
    _
  $region13: #{clip_trainer_forward.28} parent=0 // pred_fallthru
    _
  %v15 = vld [vmem:[%s0] sm:$0x1]
  %v16 = vld [vmem:[%s0 + $0x4] sm:$0x1]
  %v19 = vunpack.c.l.b16 %v15
  %v20 = vunpack.c.l.b16 %v16
  %v21 = vpack.c.b16 %v19, %v19
  %v22 = vpack.c.b16 %v20, %v20
  %v23 = vunpack.c.l.b16 %v21
  %v24 = vunpack.c.l.b16 %v22
  %v25 = vrot.slane %v24, 7
  %vm26 = vcmask 1041409
  %v27 = vsel %vm26, %v25, %v23
  %v28 = vpack.c.b16 %v27, %v27
  %29 = vrot.lane.b32.xlu0 %v28, 96
  %v30 = vpop.permute.xlu0 %29
  %vm31 = vcmask 64512
  %v33 = vsel %vm31, %v28, 0
  %v36 = vsel %vm31, %v30, 0
  %38 = vmatpush.bf16.xpose.msra.mxu0 0
  %39 = vmatpush.bf16.xpose.msra.mxu0 0
  %40 = vmatpush.bf16.xpose.msra.mxu0 0
  %41 = vmatpush.bf16.xpose.msra.mxu0 0
  %42 = vmatpush.bf16.xpose.msra.mxu0 0
  %43 = vmatpush.bf16.xpose.msra.mxu0 0
  %44 = vmatpush.bf16.xpose.msra.mxu0 0
  %45 = vmatpush.bf16.xpose.msra.mxu0 %v36
  %46 = vmatmul.bf16.gmra.mxu0 %v33
  %v47 = vpop.f32.mrf.mxu0
  %v48 = vadd.f32 0.0, %v47
  %v49 = vpop.f32.mrf.mxu0
  %50 = vdwg.mxu0
  %vm51 = vcmask 9216
  %v52 = vsel %vm51, %v48, -inf
  %53 = vmax.xlane.f32.xlu0 %v52
  %v54 = vpop.xlane.xlu0 %53
  %v55 = vsub.f32 %v48, %v54
  %v56 = vmul.f32 %v55, 1.442695
  %v57 = vpow.pop %v56
  %v58 = vsel %vm51, %v57, 0.0
  %59 = vadd.xlane.f32.xlu0 %v58
  %v60 = vpop.xlane.xlu0 %59
  %v61 = vrcp.pop %v60
  %v62 = vmul.f32 %v57, %v61
  %v63 = vpack.c.bf16 %v62, %v62
  %64 = vrot.lane.b32.xlu0 %v28, 64
  %v65 = vpop.permute.xlu0 %64
  %vm66 = vcmask 15360
  %v68 = vsel %vm66, %v63, 0
  %vm70 = vcmask 1040384
  %v72 = vsel %vm70, %v65, 0
  %74 = vmatpush.bf16.msra.mxu0 0
  %75 = vmatpush.bf16.msra.mxu0 0
  %76 = vmatpush.bf16.msra.mxu0 0
  %77 = vmatpush.bf16.msra.mxu0 0
  %78 = vmatpush.bf16.msra.mxu0 0
  %79 = vmatpush.bf16.msra.mxu0 0
  %80 = vmatpush.bf16.msra.mxu0 0
  %81 = vmatpush.bf16.msra.mxu0 %v72
  %82 = vmatmul.bf16.gmra.mxu0 %v68
  %v83 = vpop.f32.mrf.mxu0
  %v84 = vadd.f32 0.0, %v83
  %v85 = vpop.f32.mrf.mxu0
  %86 = vdwg.mxu0
  %vm87 = vcmask 58368
  %88 = vst.msk [vmem:[#allocation2] sm:$0x3] %vm87, %v84
  %89 = vrot.lane.b32.xlu0 %v28, 120
  %v90 = vpop.permute.xlu0 %89
  %91 = vrot.lane.b32.xlu0 %v28, 88
  %v92 = vpop.permute.xlu0 %91
  %v94 = vsel %vm31, %v90, 0
  %v97 = vsel %vm31, %v92, 0
  %99 = vmatpush.bf16.xpose.msra.mxu0 0
  %100 = vmatpush.bf16.xpose.msra.mxu0 0
  %101 = vmatpush.bf16.xpose.msra.mxu0 0
  %102 = vmatpush.bf16.xpose.msra.mxu0 0
  %103 = vmatpush.bf16.xpose.msra.mxu0 0
  %104 = vmatpush.bf16.xpose.msra.mxu0 0
  %105 = vmatpush.bf16.xpose.msra.mxu0 0
  %106 = vmatpush.bf16.xpose.msra.mxu0 %v97
  %107 = vmatmul.bf16.gmra.mxu0 %v94
  %v108 = vpop.f32.mrf.mxu0
  %v109 = vadd.f32 0.0, %v108
  %v110 = vpop.f32.mrf.mxu0
  %111 = vdwg.mxu0
  %v112 = vsel %vm51, %v109, -inf
  %113 = vmax.xlane.f32.xlu0 %v112
  %v114 = vpop.xlane.xlu0 %113
  %v115 = vsub.f32 %v109, %v114
  %v116 = vmul.f32 %v115, 1.442695
  %v117 = vpow.pop %v116
  %v118 = vsel %vm51, %v117, 0.0
  %119 = vadd.xlane.f32.xlu0 %v118
  %v120 = vpop.xlane.xlu0 %119
  %v121 = vrcp.pop %v120
  %v122 = vmul.f32 %v117, %v121
  %v123 = vpack.c.bf16 %v122, %v122
  %124 = vrot.lane.b32.xlu0 %v28, 56
  %v125 = vpop.permute.xlu0 %124
  %v127 = vsel %vm66, %v123, 0
  %v130 = vsel %vm70, %v125, 0
  %132 = vmatpush.bf16.msra.mxu0 0
  %133 = vmatpush.bf16.msra.mxu0 0
  %134 = vmatpush.bf16.msra.mxu0 0
  %135 = vmatpush.bf16.msra.mxu0 0
  %136 = vmatpush.bf16.msra.mxu0 0
  %137 = vmatpush.bf16.msra.mxu0 0
  %138 = vmatpush.bf16.msra.mxu0 0
  %139 = vmatpush.bf16.msra.mxu0 %v130
  %140 = vmatmul.bf16.gmra.mxu0 %v127
  %v141 = vpop.f32.mrf.mxu0
  %v142 = vadd.f32 0.0, %v141
  %v143 = vpop.f32.mrf.mxu0
  %144 = vdwg.mxu0
  %146 = vrot.lane.b32.xlu0 %v142, 8
  %v147 = vpop.permute.xlu0 %146
  %vm149 = vcmask 123968
  %150 = vst.msk [vmem:[#allocation2] sm:$0x3] %vm149, %v147
  %151 = vrot.lane.b32.xlu0 %v28, 112
  %v152 = vpop.permute.xlu0 %151
  %153 = vrot.lane.b32.xlu0 %v28, 80
  %v154 = vpop.permute.xlu0 %153
  %v156 = vsel %vm31, %v152, 0
  %v159 = vsel %vm31, %v154, 0
  %161 = vmatpush.bf16.xpose.msra.mxu0 0
  %162 = vmatpush.bf16.xpose.msra.mxu0 0
  %163 = vmatpush.bf16.xpose.msra.mxu0 0
  %164 = vmatpush.bf16.xpose.msra.mxu0 0
  %165 = vmatpush.bf16.xpose.msra.mxu0 0
  %166 = vmatpush.bf16.xpose.msra.mxu0 0
  %167 = vmatpush.bf16.xpose.msra.mxu0 0
  %168 = vmatpush.bf16.xpose.msra.mxu0 %v159
  %169 = vmatmul.bf16.gmra.mxu0 %v156
  %v170 = vpop.f32.mrf.mxu0
  %v171 = vadd.f32 0.0, %v170
  %v172 = vpop.f32.mrf.mxu0
  %173 = vdwg.mxu0
  %v174 = vsel %vm51, %v171, -inf
  %175 = vmax.xlane.f32.xlu0 %v174
  %v176 = vpop.xlane.xlu0 %175
  %v177 = vsub.f32 %v171, %v176
  %v178 = vmul.f32 %v177, 1.442695
  %v179 = vpow.pop %v178
  %v180 = vsel %vm51, %v179, 0.0
  %181 = vadd.xlane.f32.xlu0 %v180
  %v182 = vpop.xlane.xlu0 %181
  %v183 = vrcp.pop %v182
  %v184 = vmul.f32 %v179, %v183
  %v185 = vpack.c.bf16 %v184, %v184
  %186 = vrot.lane.b32.xlu0 %v28, 48
  %v187 = vpop.permute.xlu0 %186
  %v189 = vsel %vm66, %v185, 0
  %v192 = vsel %vm70, %v187, 0
  %194 = vmatpush.bf16.msra.mxu0 0
  %195 = vmatpush.bf16.msra.mxu0 0
  %196 = vmatpush.bf16.msra.mxu0 0
  %197 = vmatpush.bf16.msra.mxu0 0
  %198 = vmatpush.bf16.msra.mxu0 0
  %199 = vmatpush.bf16.msra.mxu0 0
  %200 = vmatpush.bf16.msra.mxu0 0
  %201 = vmatpush.bf16.msra.mxu0 %v192
  %202 = vmatmul.bf16.gmra.mxu0 %v189
  %v203 = vpop.f32.mrf.mxu0
  %v204 = vadd.f32 0.0, %v203
  %v205 = vpop.f32.mrf.mxu0
  %206 = vdwg.mxu0
  %208 = vrot.lane.b32.xlu0 %v204, 16
  %v209 = vpop.permute.xlu0 %208
  %vm211 = vcmask 189568
  %212 = vst.msk [vmem:[#allocation2] sm:$0x3] %vm211, %v209
  %213 = vrot.lane.b32.xlu0 %v28, 104
  %v214 = vpop.permute.xlu0 %213
  %215 = vrot.lane.b32.xlu0 %v28, 72
  %v216 = vpop.permute.xlu0 %215
  %v218 = vsel %vm31, %v214, 0
  %v221 = vsel %vm31, %v216, 0
  %223 = vmatpush.bf16.xpose.msra.mxu0 0
  %224 = vmatpush.bf16.xpose.msra.mxu0 0
  %225 = vmatpush.bf16.xpose.msra.mxu0 0
  %226 = vmatpush.bf16.xpose.msra.mxu0 0
  %227 = vmatpush.bf16.xpose.msra.mxu0 0
  %228 = vmatpush.bf16.xpose.msra.mxu0 0
  %229 = vmatpush.bf16.xpose.msra.mxu0 0
  %230 = vmatpush.bf16.xpose.msra.mxu0 %v221
  %231 = vmatmul.bf16.gmra.mxu0 %v218
  %v232 = vpop.f32.mrf.mxu0
  %v233 = vadd.f32 0.0, %v232
  %v234 = vpop.f32.mrf.mxu0
  %235 = vdwg.mxu0
  %v236 = vsel %vm51, %v233, -inf
  %237 = vmax.xlane.f32.xlu0 %v236
  %v238 = vpop.xlane.xlu0 %237
  %v239 = vsub.f32 %v233, %v238
  %v240 = vmul.f32 %v239, 1.442695
  %v241 = vpow.pop %v240
  %v242 = vsel %vm51, %v241, 0.0
  %243 = vadd.xlane.f32.xlu0 %v242
  %v244 = vpop.xlane.xlu0 %243
  %v245 = vrcp.pop %v244
  %v246 = vmul.f32 %v241, %v245
  %v247 = vpack.c.bf16 %v246, %v246
  %248 = vrot.lane.b32.xlu0 %v28, 40
  %v249 = vpop.permute.xlu0 %248
  %v251 = vsel %vm66, %v247, 0
  %v254 = vsel %vm70, %v249, 0
  %256 = vmatpush.bf16.msra.mxu0 0
  %257 = vmatpush.bf16.msra.mxu0 0
  %258 = vmatpush.bf16.msra.mxu0 0
  %259 = vmatpush.bf16.msra.mxu0 0
  %260 = vmatpush.bf16.msra.mxu0 0
  %261 = vmatpush.bf16.msra.mxu0 0
  %262 = vmatpush.bf16.msra.mxu0 0
  %263 = vmatpush.bf16.msra.mxu0 %v254
  %264 = vmatmul.bf16.gmra.mxu0 %v251
  %v265 = vpop.f32.mrf.mxu0
  %v266 = vadd.f32 0.0, %v265
  %v267 = vpop.f32.mrf.mxu0
  %268 = vdwg.mxu0
  %270 = vrot.lane.b32.xlu0 %v266, 24
  %v271 = vpop.permute.xlu0 %270
  %vm273 = vcmask 255168
  %274 = vst.msk [vmem:[#allocation2] sm:$0x3] %vm273, %v271
  %v275 = vld [vmem:[%s0] sm:$0x1]
  %v276 = vld [vmem:[%s0 + $0x4] sm:$0x1]
  %v279 = vunpack.c.l.b16 %v275
  %v280 = vunpack.c.l.b16 %v276
  %v281 = vpack.c.b16 %v279, %v279
  %v282 = vpack.c.b16 %v280, %v280
  %v283 = vunpack.c.l.b16 %v281
  %v284 = vunpack.c.l.b16 %v282
  %v285 = vrot.slane %v283, 1
  %v286 = vsel %vm26, %v284, %v285
  %v287 = vpack.c.b16 %v286, %v286
  %288 = vrot.lane.b32.xlu0 %v287, 96
  %v289 = vpop.permute.xlu0 %288
  %v291 = vsel %vm31, %v287, 0
  %v294 = vsel %vm31, %v289, 0
  %296 = vmatpush.bf16.xpose.msra.mxu0 0
  %297 = vmatpush.bf16.xpose.msra.mxu0 0
  %298 = vmatpush.bf16.xpose.msra.mxu0 0
  %299 = vmatpush.bf16.xpose.msra.mxu0 0
  %300 = vmatpush.bf16.xpose.msra.mxu0 0
  %301 = vmatpush.bf16.xpose.msra.mxu0 0
  %302 = vmatpush.bf16.xpose.msra.mxu0 0
  %303 = vmatpush.bf16.xpose.msra.mxu0 %v294
  %304 = vmatmul.bf16.gmra.mxu0 %v291
  %v305 = vpop.f32.mrf.mxu0
  %v306 = vadd.f32 0.0, %v305
  %v307 = vpop.f32.mrf.mxu0
  %308 = vdwg.mxu0
  %v309 = vsel %vm51, %v306, -inf
  %310 = vmax.xlane.f32.xlu0 %v309
  %v311 = vpop.xlane.xlu0 %310
  %v312 = vsub.f32 %v306, %v311
  %v313 = vmul.f32 %v312, 1.442695
  %v314 = vpow.pop %v313
  %v315 = vsel %vm51, %v314, 0.0
  %316 = vadd.xlane.f32.xlu0 %v315
  %v317 = vpop.xlane.xlu0 %316
  %v318 = vrcp.pop %v317
  %v319 = vmul.f32 %v314, %v318
  %v320 = vpack.c.bf16 %v319, %v319
  %321 = vrot.lane.b32.xlu0 %v287, 64
  %v322 = vpop.permute.xlu0 %321
  %v324 = vsel %vm66, %v320, 0
  %v327 = vsel %vm70, %v322, 0
  %329 = vmatpush.bf16.msra.mxu0 0
  %330 = vmatpush.bf16.msra.mxu0 0
  %331 = vmatpush.bf16.msra.mxu0 0
  %332 = vmatpush.bf16.msra.mxu0 0
  %333 = vmatpush.bf16.msra.mxu0 0
  %334 = vmatpush.bf16.msra.mxu0 0
  %335 = vmatpush.bf16.msra.mxu0 0
  %336 = vmatpush.bf16.msra.mxu0 %v327
  %337 = vmatmul.bf16.gmra.mxu0 %v324
  %v338 = vpop.f32.mrf.mxu0
  %v339 = vadd.f32 0.0, %v338
  %v340 = vpop.f32.mrf.mxu0
  %341 = vdwg.mxu0
  %342 = vst.msk [vmem:[#allocation2 + $0x2] sm:$0x3] %vm87, %v339
  %343 = vrot.lane.b32.xlu0 %v287, 120
  %v344 = vpop.permute.xlu0 %343
  %345 = vrot.lane.b32.xlu0 %v287, 88
  %v346 = vpop.permute.xlu0 %345
  %v348 = vsel %vm31, %v344, 0
  %v351 = vsel %vm31, %v346, 0
  %353 = vmatpush.bf16.xpose.msra.mxu0 0
  %354 = vmatpush.bf16.xpose.msra.mxu0 0
  %355 = vmatpush.bf16.xpose.msra.mxu0 0
  %356 = vmatpush.bf16.xpose.msra.mxu0 0
  %357 = vmatpush.bf16.xpose.msra.mxu0 0
  %358 = vmatpush.bf16.xpose.msra.mxu0 0
  %359 = vmatpush.bf16.xpose.msra.mxu0 0
  %360 = vmatpush.bf16.xpose.msra.mxu0 %v351
  %361 = vmatmul.bf16.gmra.mxu0 %v348
  %v362 = vpop.f32.mrf.mxu0
  %v363 = vadd.f32 0.0, %v362
  %v364 = vpop.f32.mrf.mxu0
  %365 = vdwg.mxu0
  %v366 = vsel %vm51, %v363, -inf
  %367 = vmax.xlane.f32.xlu0 %v366
  %v368 = vpop.xlane.xlu0 %367
  %v369 = vsub.f32 %v363, %v368
  %v370 = vmul.f32 %v369, 1.442695
  %v371 = vpow.pop %v370
  %v372 = vsel %vm51, %v371, 0.0
  %373 = vadd.xlane.f32.xlu0 %v372
  %v374 = vpop.xlane.xlu0 %373
  %v375 = vrcp.pop %v374
  %v376 = vmul.f32 %v371, %v375
  %v377 = vpack.c.bf16 %v376, %v376
  %378 = vrot.lane.b32.xlu0 %v287, 56
  %v379 = vpop.permute.xlu0 %378
  %v381 = vsel %vm66, %v377, 0
  %v384 = vsel %vm70, %v379, 0
  %386 = vmatpush.bf16.msra.mxu0 0
  %387 = vmatpush.bf16.msra.mxu0 0
  %388 = vmatpush.bf16.msra.mxu0 0
  %389 = vmatpush.bf16.msra.mxu0 0
  %390 = vmatpush.bf16.msra.mxu0 0
  %391 = vmatpush.bf16.msra.mxu0 0
  %392 = vmatpush.bf16.msra.mxu0 0
  %393 = vmatpush.bf16.msra.mxu0 %v384
  %394 = vmatmul.bf16.gmra.mxu0 %v381
  %v395 = vpop.f32.mrf.mxu0
  %v396 = vadd.f32 0.0, %v395
  %v397 = vpop.f32.mrf.mxu0
  %398 = vdwg.mxu0
  %400 = vrot.lane.b32.xlu0 %v396, 8
  %v401 = vpop.permute.xlu0 %400
  %403 = vst.msk [vmem:[#allocation2 + $0x2] sm:$0x3] %vm149, %v401
  %404 = vrot.lane.b32.xlu0 %v287, 112
  %v405 = vpop.permute.xlu0 %404
  %406 = vrot.lane.b32.xlu0 %v287, 80
  %v407 = vpop.permute.xlu0 %406
  %v409 = vsel %vm31, %v405, 0
  %v412 = vsel %vm31, %v407, 0
  %414 = vmatpush.bf16.xpose.msra.mxu0 0
  %415 = vmatpush.bf16.xpose.msra.mxu0 0
  %416 = vmatpush.bf16.xpose.msra.mxu0 0
  %417 = vmatpush.bf16.xpose.msra.mxu0 0
  %418 = vmatpush.bf16.xpose.msra.mxu0 0
  %419 = vmatpush.bf16.xpose.msra.mxu0 0
  %420 = vmatpush.bf16.xpose.msra.mxu0 0
  %421 = vmatpush.bf16.xpose.msra.mxu0 %v412
  %422 = vmatmul.bf16.gmra.mxu0 %v409
  %v423 = vpop.f32.mrf.mxu0
  %v424 = vadd.f32 0.0, %v423
  %v425 = vpop.f32.mrf.mxu0
  %426 = vdwg.mxu0
  %v427 = vsel %vm51, %v424, -inf
  %428 = vmax.xlane.f32.xlu0 %v427
  %v429 = vpop.xlane.xlu0 %428
  %v430 = vsub.f32 %v424, %v429
  %v431 = vmul.f32 %v430, 1.442695
  %v432 = vpow.pop %v431
  %v433 = vsel %vm51, %v432, 0.0
  %434 = vadd.xlane.f32.xlu0 %v433
  %v435 = vpop.xlane.xlu0 %434
  %v436 = vrcp.pop %v435
  %v437 = vmul.f32 %v432, %v436
  %v438 = vpack.c.bf16 %v437, %v437
  %439 = vrot.lane.b32.xlu0 %v287, 48
  %v440 = vpop.permute.xlu0 %439
  %v442 = vsel %vm66, %v438, 0
  %v445 = vsel %vm70, %v440, 0
  %447 = vmatpush.bf16.msra.mxu0 0
  %448 = vmatpush.bf16.msra.mxu0 0
  %449 = vmatpush.bf16.msra.mxu0 0
  %450 = vmatpush.bf16.msra.mxu0 0
  %451 = vmatpush.bf16.msra.mxu0 0
  %452 = vmatpush.bf16.msra.mxu0 0
  %453 = vmatpush.bf16.msra.mxu0 0
  %454 = vmatpush.bf16.msra.mxu0 %v445
  %455 = vmatmul.bf16.gmra.mxu0 %v442
  %v456 = vpop.f32.mrf.mxu0
  %v457 = vadd.f32 0.0, %v456
  %v458 = vpop.f32.mrf.mxu0
  %459 = vdwg.mxu0
  %461 = vrot.lane.b32.xlu0 %v457, 16
  %v462 = vpop.permute.xlu0 %461
  %464 = vst.msk [vmem:[#allocation2 + $0x2] sm:$0x3] %vm211, %v462
  %465 = vrot.lane.b32.xlu0 %v287, 104
  %v466 = vpop.permute.xlu0 %465
  %467 = vrot.lane.b32.xlu0 %v287, 72
  %v468 = vpop.permute.xlu0 %467
  %v470 = vsel %vm31, %v466, 0
  %v473 = vsel %vm31, %v468, 0
  %475 = vmatpush.bf16.xpose.msra.mxu0 0
  %476 = vmatpush.bf16.xpose.msra.mxu0 0
  %477 = vmatpush.bf16.xpose.msra.mxu0 0
  %478 = vmatpush.bf16.xpose.msra.mxu0 0
  %479 = vmatpush.bf16.xpose.msra.mxu0 0
  %480 = vmatpush.bf16.xpose.msra.mxu0 0
  %481 = vmatpush.bf16.xpose.msra.mxu0 0
  %482 = vmatpush.bf16.xpose.msra.mxu0 %v473
  %483 = vmatmul.bf16.gmra.mxu0 %v470
  %v484 = vpop.f32.mrf.mxu0
  %v485 = vadd.f32 0.0, %v484
  %v486 = vpop.f32.mrf.mxu0
  %487 = vdwg.mxu0
  %v488 = vsel %vm51, %v485, -inf
  %489 = vmax.xlane.f32.xlu0 %v488
  %v490 = vpop.xlane.xlu0 %489
  %v491 = vsub.f32 %v485, %v490
  %v492 = vmul.f32 %v491, 1.442695
  %v493 = vpow.pop %v492
  %v494 = vsel %vm51, %v493, 0.0
  %495 = vadd.xlane.f32.xlu0 %v494
  %v496 = vpop.xlane.xlu0 %495
  %v497 = vrcp.pop %v496
  %v498 = vmul.f32 %v493, %v497
  %v499 = vpack.c.bf16 %v498, %v498
  %500 = vrot.lane.b32.xlu0 %v287, 40
  %v501 = vpop.permute.xlu0 %500
  %v503 = vsel %vm66, %v499, 0
  %v506 = vsel %vm70, %v501, 0
  %508 = vmatpush.bf16.msra.mxu0 0
  %509 = vmatpush.bf16.msra.mxu0 0
  %510 = vmatpush.bf16.msra.mxu0 0
  %511 = vmatpush.bf16.msra.mxu0 0
  %512 = vmatpush.bf16.msra.mxu0 0
  %513 = vmatpush.bf16.msra.mxu0 0
  %514 = vmatpush.bf16.msra.mxu0 0
  %515 = vmatpush.bf16.msra.mxu0 %v506
  %516 = vmatmul.bf16.gmra.mxu0 %v503
  %v517 = vpop.f32.mrf.mxu0
  %v518 = vadd.f32 0.0, %v517
  %v519 = vpop.f32.mrf.mxu0
  %520 = vdwg.mxu0
  %522 = vrot.lane.b32.xlu0 %v518, 24
  %v523 = vpop.permute.xlu0 %522
  %525 = vst.msk [vmem:[#allocation2 + $0x2] sm:$0x3] %vm273, %v523
  %v526 = vld [vmem:[%s0] sm:$0x2]
  %v527 = vld [vmem:[%s0 + $0x4] sm:$0x2]
  %v530 = vunpack.c.l.b16 %v526
  %v531 = vunpack.c.l.b16 %v527
  %v532 = vpack.c.b16 %v530, %v530
  %v533 = vpack.c.b16 %v531, %v531
  %v534 = vunpack.c.l.b16 %v532
  %v535 = vunpack.c.l.b16 %v533
  %v536 = vrot.slane %v534, 2
  %v537 = vrot.slane %v535, 1
  %v538 = vsel %vm26, %v537, %v536
  %v539 = vpack.c.b16 %v538, %v538
  %540 = vrot.lane.b32.xlu0 %v539, 96
  %v541 = vpop.permute.xlu0 %540
  %v543 = vsel %vm31, %v539, 0
  %v546 = vsel %vm31, %v541, 0
  %548 = vmatpush.bf16.xpose.msra.mxu0 0
  %549 = vmatpush.bf16.xpose.msra.mxu0 0
  %550 = vmatpush.bf16.xpose.msra.mxu0 0
  %551 = vmatpush.bf16.xpose.msra.mxu0 0
  %552 = vmatpush.bf16.xpose.msra.mxu0 0
  %553 = vmatpush.bf16.xpose.msra.mxu0 0
  %554 = vmatpush.bf16.xpose.msra.mxu0 0
  %555 = vmatpush.bf16.xpose.msra.mxu0 %v546
  %556 = vmatmul.bf16.gmra.mxu0 %v543
  %v557 = vpop.f32.mrf.mxu0
  %v558 = vadd.f32 0.0, %v557
  %v559 = vpop.f32.mrf.mxu0
  %560 = vdwg.mxu0
  %v561 = vsel %vm51, %v558, -inf
  %562 = vmax.xlane.f32.xlu0 %v561
  %v563 = vpop.xlane.xlu0 %562
  %v564 = vsub.f32 %v558, %v563
  %v565 = vmul.f32 %v564, 1.442695
  %v566 = vpow.pop %v565
  %v567 = vsel %vm51, %v566, 0.0
  %568 = vadd.xlane.f32.xlu0 %v567
  %v569 = vpop.xlane.xlu0 %568
  %v570 = vrcp.pop %v569
  %v571 = vmul.f32 %v566, %v570
  %v572 = vpack.c.bf16 %v571, %v571
  %573 = vrot.lane.b32.xlu0 %v539, 64
  %v574 = vpop.permute.xlu0 %573
  %v576 = vsel %vm66, %v572, 0
  %v579 = vsel %vm70, %v574, 0
  %581 = vmatpush.bf16.msra.mxu0 0
  %582 = vmatpush.bf16.msra.mxu0 0
  %583 = vmatpush.bf16.msra.mxu0 0
  %584 = vmatpush.bf16.msra.mxu0 0
  %585 = vmatpush.bf16.msra.mxu0 0
  %586 = vmatpush.bf16.msra.mxu0 0
  %587 = vmatpush.bf16.msra.mxu0 0
  %588 = vmatpush.bf16.msra.mxu0 %v579
  %589 = vmatmul.bf16.gmra.mxu0 %v576
  %v590 = vpop.f32.mrf.mxu0
  %v591 = vadd.f32 0.0, %v590
  %v592 = vpop.f32.mrf.mxu0
  %593 = vdwg.mxu0
  %594 = vst.msk [vmem:[#allocation2 + $0x4] sm:$0x3] %vm87, %v591
  %595 = vrot.lane.b32.xlu0 %v539, 120
  %v596 = vpop.permute.xlu0 %595
  %597 = vrot.lane.b32.xlu0 %v539, 88
  %v598 = vpop.permute.xlu0 %597
  %v600 = vsel %vm31, %v596, 0
  %v603 = vsel %vm31, %v598, 0
  %605 = vmatpush.bf16.xpose.msra.mxu0 0
  %606 = vmatpush.bf16.xpose.msra.mxu0 0
  %607 = vmatpush.bf16.xpose.msra.mxu0 0
  %608 = vmatpush.bf16.xpose.msra.mxu0 0
  %609 = vmatpush.bf16.xpose.msra.mxu0 0
  %610 = vmatpush.bf16.xpose.msra.mxu0 0
  %611 = vmatpush.bf16.xpose.msra.mxu0 0
  %612 = vmatpush.bf16.xpose.msra.mxu0 %v603
  %613 = vmatmul.bf16.gmra.mxu0 %v600
  %v614 = vpop.f32.mrf.mxu0
  %v615 = vadd.f32 0.0, %v614
  %v616 = vpop.f32.mrf.mxu0
  %617 = vdwg.mxu0
  %v618 = vsel %vm51, %v615, -inf
  %619 = vmax.xlane.f32.xlu0 %v618
  %v620 = vpop.xlane.xlu0 %619
  %v621 = vsub.f32 %v615, %v620
  %v622 = vmul.f32 %v621, 1.442695
  %v623 = vpow.pop %v622
  %v624 = vsel %vm51, %v623, 0.0
  %625 = vadd.xlane.f32.xlu0 %v624
  %v626 = vpop.xlane.xlu0 %625
  %v627 = vrcp.pop %v626
  %v628 = vmul.f32 %v623, %v627
  %v629 = vpack.c.bf16 %v628, %v628
  %630 = vrot.lane.b32.xlu0 %v539, 56
  %v631 = vpop.permute.xlu0 %630
  %v633 = vsel %vm66, %v629, 0
  %v636 = vsel %vm70, %v631, 0
  %638 = vmatpush.bf16.msra.mxu0 0
  %639 = vmatpush.bf16.msra.mxu0 0
  %640 = vmatpush.bf16.msra.mxu0 0
  %641 = vmatpush.bf16.msra.mxu0 0
  %642 = vmatpush.bf16.msra.mxu0 0
  %643 = vmatpush.bf16.msra.mxu0 0
  %644 = vmatpush.bf16.msra.mxu0 0
  %645 = vmatpush.bf16.msra.mxu0 %v636
  %646 = vmatmul.bf16.gmra.mxu0 %v633
  %v647 = vpop.f32.mrf.mxu0
  %v648 = vadd.f32 0.0, %v647
  %v649 = vpop.f32.mrf.mxu0
  %650 = vdwg.mxu0
  %652 = vrot.lane.b32.xlu0 %v648, 8
  %v653 = vpop.permute.xlu0 %652
  %655 = vst.msk [vmem:[#allocation2 + $0x4] sm:$0x3] %vm149, %v653
  %656 = vrot.lane.b32.xlu0 %v539, 112
  %v657 = vpop.permute.xlu0 %656
  %658 = vrot.lane.b32.xlu0 %v539, 80
  %v659 = vpop.permute.xlu0 %658
  %v661 = vsel %vm31, %v657, 0
  %v664 = vsel %vm31, %v659, 0
  %666 = vmatpush.bf16.xpose.msra.mxu0 0
  %667 = vmatpush.bf16.xpose.msra.mxu0 0
  %668 = vmatpush.bf16.xpose.msra.mxu0 0
  %669 = vmatpush.bf16.xpose.msra.mxu0 0
  %670 = vmatpush.bf16.xpose.msra.mxu0 0
  %671 = vmatpush.bf16.xpose.msra.mxu0 0
  %672 = vmatpush.bf16.xpose.msra.mxu0 0
  %673 = vmatpush.bf16.xpose.msra.mxu0 %v664
  %674 = vmatmul.bf16.gmra.mxu0 %v661
  %v675 = vpop.f32.mrf.mxu0
  %v676 = vadd.f32 0.0, %v675
  %v677 = vpop.f32.mrf.mxu0
  %678 = vdwg.mxu0
  %v679 = vsel %vm51, %v676, -inf
  %680 = vmax.xlane.f32.xlu0 %v679
  %v681 = vpop.xlane.xlu0 %680
  %v682 = vsub.f32 %v676, %v681
  %v683 = vmul.f32 %v682, 1.442695
  %v684 = vpow.pop %v683
  %v685 = vsel %vm51, %v684, 0.0
  %686 = vadd.xlane.f32.xlu0 %v685
  %v687 = vpop.xlane.xlu0 %686
  %v688 = vrcp.pop %v687
  %v689 = vmul.f32 %v684, %v688
  %v690 = vpack.c.bf16 %v689, %v689
  %691 = vrot.lane.b32.xlu0 %v539, 48
  %v692 = vpop.permute.xlu0 %691
  %v694 = vsel %vm66, %v690, 0
  %v697 = vsel %vm70, %v692, 0
  %699 = vmatpush.bf16.msra.mxu0 0
  %700 = vmatpush.bf16.msra.mxu0 0
  %701 = vmatpush.bf16.msra.mxu0 0
  %702 = vmatpush.bf16.msra.mxu0 0
  %703 = vmatpush.bf16.msra.mxu0 0
  %704 = vmatpush.bf16.msra.mxu0 0
  %705 = vmatpush.bf16.msra.mxu0 0
  %706 = vmatpush.bf16.msra.mxu0 %v697
  %707 = vmatmul.bf16.gmra.mxu0 %v694
  %v708 = vpop.f32.mrf.mxu0
  %v709 = vadd.f32 0.0, %v708
  %v710 = vpop.f32.mrf.mxu0
  %711 = vdwg.mxu0
  %713 = vrot.lane.b32.xlu0 %v709, 16
  %v714 = vpop.permute.xlu0 %713
  %716 = vst.msk [vmem:[#allocation2 + $0x4] sm:$0x3] %vm211, %v714
  %717 = vrot.lane.b32.xlu0 %v539, 104
  %v718 = vpop.permute.xlu0 %717
  %719 = vrot.lane.b32.xlu0 %v539, 72
  %v720 = vpop.permute.xlu0 %719
  %v722 = vsel %vm31, %v718, 0
  %v725 = vsel %vm31, %v720, 0
  %727 = vmatpush.bf16.xpose.msra.mxu0 0
  %728 = vmatpush.bf16.xpose.msra.mxu0 0
  %729 = vmatpush.bf16.xpose.msra.mxu0 0
  %730 = vmatpush.bf16.xpose.msra.mxu0 0
  %731 = vmatpush.bf16.xpose.msra.mxu0 0
  %732 = vmatpush.bf16.xpose.msra.mxu0 0
  %733 = vmatpush.bf16.xpose.msra.mxu0 0
  %734 = vmatpush.bf16.xpose.msra.mxu0 %v725
  %735 = vmatmul.bf16.gmra.mxu0 %v722
  %v736 = vpop.f32.mrf.mxu0
  %v737 = vadd.f32 0.0, %v736
  %v738 = vpop.f32.mrf.mxu0
  %739 = vdwg.mxu0
  %v740 = vsel %vm51, %v737, -inf
  %741 = vmax.xlane.f32.xlu0 %v740
  %v742 = vpop.xlane.xlu0 %741
  %v743 = vsub.f32 %v737, %v742
  %v744 = vmul.f32 %v743, 1.442695
  %v745 = vpow.pop %v744
  %v746 = vsel %vm51, %v745, 0.0
  %747 = vadd.xlane.f32.xlu0 %v746
  %v748 = vpop.xlane.xlu0 %747
  %v749 = vrcp.pop %v748
  %v750 = vmul.f32 %v745, %v749
  %v751 = vpack.c.bf16 %v750, %v750
  %752 = vrot.lane.b32.xlu0 %v539, 40
  %v753 = vpop.permute.xlu0 %752
  %v755 = vsel %vm66, %v751, 0
  %v758 = vsel %vm70, %v753, 0
  %760 = vmatpush.bf16.msra.mxu0 0
  %761 = vmatpush.bf16.msra.mxu0 0
  %762 = vmatpush.bf16.msra.mxu0 0
  %763 = vmatpush.bf16.msra.mxu0 0
  %764 = vmatpush.bf16.msra.mxu0 0
  %765 = vmatpush.bf16.msra.mxu0 0
  %766 = vmatpush.bf16.msra.mxu0 0
  %767 = vmatpush.bf16.msra.mxu0 %v758
  %768 = vmatmul.bf16.gmra.mxu0 %v755
  %v769 = vpop.f32.mrf.mxu0
  %v770 = vadd.f32 0.0, %v769
  %v771 = vpop.f32.mrf.mxu0
  %772 = vdwg.mxu0
  %774 = vrot.lane.b32.xlu0 %v770, 24
  %v775 = vpop.permute.xlu0 %774
  %777 = vst.msk [vmem:[#allocation2 + $0x4] sm:$0x3] %vm273, %v775
  %v778 = vld [vmem:[%s0] sm:$0x2]
  %v779 = vld [vmem:[%s0 + $0x4] sm:$0x2]
  %v782 = vunpack.c.l.b16 %v778
  %v783 = vunpack.c.l.b16 %v779
  %v784 = vpack.c.b16 %v782, %v782
  %v785 = vpack.c.b16 %v783, %v783
  %v786 = vunpack.c.l.b16 %v784
  %v787 = vunpack.c.l.b16 %v785
  %v788 = vrot.slane %v786, 3
  %v789 = vrot.slane %v787, 2
  %v790 = vsel %vm26, %v789, %v788
  %v791 = vpack.c.b16 %v790, %v790
  %792 = vrot.lane.b32.xlu0 %v791, 96
  %v793 = vpop.permute.xlu0 %792
  %v795 = vsel %vm31, %v791, 0
  %v798 = vsel %vm31, %v793, 0
  %800 = vmatpush.bf16.xpose.msra.mxu0 0
  %801 = vmatpush.bf16.xpose.msra.mxu0 0
  %802 = vmatpush.bf16.xpose.msra.mxu0 0
  %803 = vmatpush.bf16.xpose.msra.mxu0 0
  %804 = vmatpush.bf16.xpose.msra.mxu0 0
  %805 = vmatpush.bf16.xpose.msra.mxu0 0
  %806 = vmatpush.bf16.xpose.msra.mxu0 0
  %807 = vmatpush.bf16.xpose.msra.mxu0 %v798
  %808 = vmatmul.bf16.gmra.mxu0 %v795
  %v809 = vpop.f32.mrf.mxu0
  %v810 = vadd.f32 0.0, %v809
  %v811 = vpop.f32.mrf.mxu0
  %812 = vdwg.mxu0
  %v813 = vsel %vm51, %v810, -inf
  %814 = vmax.xlane.f32.xlu0 %v813
  %v815 = vpop.xlane.xlu0 %814
  %v816 = vsub.f32 %v810, %v815
  %v817 = vmul.f32 %v816, 1.442695
  %v818 = vpow.pop %v817
  %v819 = vsel %vm51, %v818, 0.0
  %820 = vadd.xlane.f32.xlu0 %v819
  %v821 = vpop.xlane.xlu0 %820
  %v822 = vrcp.pop %v821
  %v823 = vmul.f32 %v818, %v822
  %v824 = vpack.c.bf16 %v823, %v823
  %825 = vrot.lane.b32.xlu0 %v791, 64
  %v826 = vpop.permute.xlu0 %825
  %v828 = vsel %vm66, %v824, 0
  %v831 = vsel %vm70, %v826, 0
  %833 = vmatpush.bf16.msra.mxu0 0
  %834 = vmatpush.bf16.msra.mxu0 0
  %835 = vmatpush.bf16.msra.mxu0 0
  %836 = vmatpush.bf16.msra.mxu0 0
  %837 = vmatpush.bf16.msra.mxu0 0
  %838 = vmatpush.bf16.msra.mxu0 0
  %839 = vmatpush.bf16.msra.mxu0 0
  %840 = vmatpush.bf16.msra.mxu0 %v831
  %841 = vmatmul.bf16.gmra.mxu0 %v828
  %v842 = vpop.f32.mrf.mxu0
  %v843 = vadd.f32 0.0, %v842
  %v844 = vpop.f32.mrf.mxu0
  %845 = vdwg.mxu0
  %846 = vst.msk [vmem:[#allocation2 + $0x6] sm:$0x3] %vm87, %v843
  %847 = vrot.lane.b32.xlu0 %v791, 120
  %v848 = vpop.permute.xlu0 %847
  %849 = vrot.lane.b32.xlu0 %v791, 88
  %v850 = vpop.permute.xlu0 %849
  %v852 = vsel %vm31, %v848, 0
  %v855 = vsel %vm31, %v850, 0
  %857 = vmatpush.bf16.xpose.msra.mxu0 0
  %858 = vmatpush.bf16.xpose.msra.mxu0 0
  %859 = vmatpush.bf16.xpose.msra.mxu0 0
  %860 = vmatpush.bf16.xpose.msra.mxu0 0
  %861 = vmatpush.bf16.xpose.msra.mxu0 0
  %862 = vmatpush.bf16.xpose.msra.mxu0 0
  %863 = vmatpush.bf16.xpose.msra.mxu0 0
  %864 = vmatpush.bf16.xpose.msra.mxu0 %v855
  %865 = vmatmul.bf16.gmra.mxu0 %v852
  %v866 = vpop.f32.mrf.mxu0
  %v867 = vadd.f32 0.0, %v866
  %v868 = vpop.f32.mrf.mxu0
  %869 = vdwg.mxu0
  %v870 = vsel %vm51, %v867, -inf
  %871 = vmax.xlane.f32.xlu0 %v870
  %v872 = vpop.xlane.xlu0 %871
  %v873 = vsub.f32 %v867, %v872
  %v874 = vmul.f32 %v873, 1.442695
  %v875 = vpow.pop %v874
  %v876 = vsel %vm51, %v875, 0.0
  %877 = vadd.xlane.f32.xlu0 %v876
  %v878 = vpop.xlane.xlu0 %877
  %v879 = vrcp.pop %v878
  %v880 = vmul.f32 %v875, %v879
  %v881 = vpack.c.bf16 %v880, %v880
  %882 = vrot.lane.b32.xlu0 %v791, 56
  %v883 = vpop.permute.xlu0 %882
  %v885 = vsel %vm66, %v881, 0
  %v888 = vsel %vm70, %v883, 0
  %890 = vmatpush.bf16.msra.mxu0 0
  %891 = vmatpush.bf16.msra.mxu0 0
  %892 = vmatpush.bf16.msra.mxu0 0
  %893 = vmatpush.bf16.msra.mxu0 0
  %894 = vmatpush.bf16.msra.mxu0 0
  %895 = vmatpush.bf16.msra.mxu0 0
  %896 = vmatpush.bf16.msra.mxu0 0
  %897 = vmatpush.bf16.msra.mxu0 %v888
  %898 = vmatmul.bf16.gmra.mxu0 %v885
  %v899 = vpop.f32.mrf.mxu0
  %v900 = vadd.f32 0.0, %v899
  %v901 = vpop.f32.mrf.mxu0
  %902 = vdwg.mxu0
  %904 = vrot.lane.b32.xlu0 %v900, 8
  %v905 = vpop.permute.xlu0 %904
  %907 = vst.msk [vmem:[#allocation2 + $0x6] sm:$0x3] %vm149, %v905
  %908 = vrot.lane.b32.xlu0 %v791, 112
  %v909 = vpop.permute.xlu0 %908
  %910 = vrot.lane.b32.xlu0 %v791, 80
  %v911 = vpop.permute.xlu0 %910
  %v913 = vsel %vm31, %v909, 0
  %v916 = vsel %vm31, %v911, 0
  %918 = vmatpush.bf16.xpose.msra.mxu0 0
  %919 = vmatpush.bf16.xpose.msra.mxu0 0
  %920 = vmatpush.bf16.xpose.msra.mxu0 0
  %921 = vmatpush.bf16.xpose.msra.mxu0 0
  %922 = vmatpush.bf16.xpose.msra.mxu0 0
  %923 = vmatpush.bf16.xpose.msra.mxu0 0
  %924 = vmatpush.bf16.xpose.msra.mxu0 0
  %925 = vmatpush.bf16.xpose.msra.mxu0 %v916
  %926 = vmatmul.bf16.gmra.mxu0 %v913
  %v927 = vpop.f32.mrf.mxu0
  %v928 = vadd.f32 0.0, %v927
  %v929 = vpop.f32.mrf.mxu0
  %930 = vdwg.mxu0
  %v931 = vsel %vm51, %v928, -inf
  %932 = vmax.xlane.f32.xlu0 %v931
  %v933 = vpop.xlane.xlu0 %932
  %v934 = vsub.f32 %v928, %v933
  %v935 = vmul.f32 %v934, 1.442695
  %v936 = vpow.pop %v935
  %v937 = vsel %vm51, %v936, 0.0
  %938 = vadd.xlane.f32.xlu0 %v937
  %v939 = vpop.xlane.xlu0 %938
  %v940 = vrcp.pop %v939
  %v941 = vmul.f32 %v936, %v940
  %v942 = vpack.c.bf16 %v941, %v941
  %943 = vrot.lane.b32.xlu0 %v791, 48
  %v944 = vpop.permute.xlu0 %943
  %v946 = vsel %vm66, %v942, 0
  %v949 = vsel %vm70, %v944, 0
  %951 = vmatpush.bf16.msra.mxu0 0
  %952 = vmatpush.bf16.msra.mxu0 0
  %953 = vmatpush.bf16.msra.mxu0 0
  %954 = vmatpush.bf16.msra.mxu0 0
  %955 = vmatpush.bf16.msra.mxu0 0
  %956 = vmatpush.bf16.msra.mxu0 0
  %957 = vmatpush.bf16.msra.mxu0 0
  %958 = vmatpush.bf16.msra.mxu0 %v949
  %959 = vmatmul.bf16.gmra.mxu0 %v946
  %v960 = vpop.f32.mrf.mxu0
  %v961 = vadd.f32 0.0, %v960
  %v962 = vpop.f32.mrf.mxu0
  %963 = vdwg.mxu0
  %965 = vrot.lane.b32.xlu0 %v961, 16
  %v966 = vpop.permute.xlu0 %965
  %968 = vst.msk [vmem:[#allocation2 + $0x6] sm:$0x3] %vm211, %v966
  %969 = vrot.lane.b32.xlu0 %v791, 104
  %v970 = vpop.permute.xlu0 %969
  %971 = vrot.lane.b32.xlu0 %v791, 72
  %v972 = vpop.permute.xlu0 %971
  %v974 = vsel %vm31, %v970, 0
  %v977 = vsel %vm31, %v972, 0
  %979 = vmatpush.bf16.xpose.msra.mxu0 0
  %980 = vmatpush.bf16.xpose.msra.mxu0 0
  %981 = vmatpush.bf16.xpose.msra.mxu0 0
  %982 = vmatpush.bf16.xpose.msra.mxu0 0
  %983 = vmatpush.bf16.xpose.msra.mxu0 0
  %984 = vmatpush.bf16.xpose.msra.mxu0 0
  %985 = vmatpush.bf16.xpose.msra.mxu0 0
  %986 = vmatpush.bf16.xpose.msra.mxu0 %v977
  %987 = vmatmul.bf16.gmra.mxu0 %v974
  %v988 = vpop.f32.mrf.mxu0
  %v989 = vadd.f32 0.0, %v988
  %v990 = vpop.f32.mrf.mxu0
  %991 = vdwg.mxu0
  %v992 = vsel %vm51, %v989, -inf
  %993 = vmax.xlane.f32.xlu0 %v992
  %v994 = vpop.xlane.xlu0 %993
  %v995 = vsub.f32 %v989, %v994
  %v996 = vmul.f32 %v995, 1.442695
  %v997 = vpow.pop %v996
  %v998 = vsel %vm51, %v997, 0.0
  %999 = vadd.xlane.f32.xlu0 %v998
  %v1000 = vpop.xlane.xlu0 %999
  %v1001 = vrcp.pop %v1000
  %v1002 = vmul.f32 %v997, %v1001
  %v1003 = vpack.c.bf16 %v1002, %v1002
  %1004 = vrot.lane.b32.xlu0 %v791, 40
  %v1005 = vpop.permute.xlu0 %1004
  %v1007 = vsel %vm66, %v1003, 0
  %v1010 = vsel %vm70, %v1005, 0
  %1012 = vmatpush.bf16.msra.mxu0 0
  %1013 = vmatpush.bf16.msra.mxu0 0
  %1014 = vmatpush.bf16.msra.mxu0 0
  %1015 = vmatpush.bf16.msra.mxu0 0
  %1016 = vmatpush.bf16.msra.mxu0 0
  %1017 = vmatpush.bf16.msra.mxu0 0
  %1018 = vmatpush.bf16.msra.mxu0 0
  %1019 = vmatpush.bf16.msra.mxu0 %v1010
  %1020 = vmatmul.bf16.gmra.mxu0 %v1007
  %v1021 = vpop.f32.mrf.mxu0
  %v1022 = vadd.f32 0.0, %v1021
  %v1023 = vpop.f32.mrf.mxu0
  %1024 = vdwg.mxu0
  %1026 = vrot.lane.b32.xlu0 %v1022, 24
  %v1027 = vpop.permute.xlu0 %1026
  %1029 = vst.msk [vmem:[#allocation2 + $0x6] sm:$0x3] %vm273, %v1027
  %v1030 = vld [vmem:[%s0] sm:$0x4]
  %v1031 = vld [vmem:[%s0 + $0x4] sm:$0x4]
  %v1034 = vunpack.c.l.b16 %v1030
  %v1035 = vunpack.c.l.b16 %v1031
  %v1036 = vpack.c.b16 %v1034, %v1034
  %v1037 = vpack.c.b16 %v1035, %v1035
  %v1038 = vunpack.c.l.b16 %v1036
  %v1039 = vunpack.c.l.b16 %v1037
  %v1040 = vrot.slane %v1038, 4
  %v1041 = vrot.slane %v1039, 3
  %v1042 = vsel %vm26, %v1041, %v1040
  %v1043 = vpack.c.b16 %v1042, %v1042
  %1044 = vrot.lane.b32.xlu0 %v1043, 96
  %v1045 = vpop.permute.xlu0 %1044
  %v1047 = vsel %vm31, %v1043, 0
  %v1050 = vsel %vm31, %v1045, 0
  %1052 = vmatpush.bf16.xpose.msra.mxu0 0
  %1053 = vmatpush.bf16.xpose.msra.mxu0 0
  %1054 = vmatpush.bf16.xpose.msra.mxu0 0
  %1055 = vmatpush.bf16.xpose.msra.mxu0 0
  %1056 = vmatpush.bf16.xpose.msra.mxu0 0
  %1057 = vmatpush.bf16.xpose.msra.mxu0 0
  %1058 = vmatpush.bf16.xpose.msra.mxu0 0
  %1059 = vmatpush.bf16.xpose.msra.mxu0 %v1050
  %1060 = vmatmul.bf16.gmra.mxu0 %v1047
  %v1061 = vpop.f32.mrf.mxu0
  %v1062 = vadd.f32 0.0, %v1061
  %v1063 = vpop.f32.mrf.mxu0
  %1064 = vdwg.mxu0
  %v1065 = vsel %vm51, %v1062, -inf
  %1066 = vmax.xlane.f32.xlu0 %v1065
  %v1067 = vpop.xlane.xlu0 %1066
  %v1068 = vsub.f32 %v1062, %v1067
  %v1069 = vmul.f32 %v1068, 1.442695
  %v1070 = vpow.pop %v1069
  %v1071 = vsel %vm51, %v1070, 0.0
  %1072 = vadd.xlane.f32.xlu0 %v1071
  %v1073 = vpop.xlane.xlu0 %1072
  %v1074 = vrcp.pop %v1073
  %v1075 = vmul.f32 %v1070, %v1074
  %v1076 = vpack.c.bf16 %v1075, %v1075
  %1077 = vrot.lane.b32.xlu0 %v1043, 64
  %v1078 = vpop.permute.xlu0 %1077
  %v1080 = vsel %vm66, %v1076, 0
  %v1083 = vsel %vm70, %v1078, 0
  %1085 = vmatpush.bf16.msra.mxu0 0
  %1086 = vmatpush.bf16.msra.mxu0 0
  %1087 = vmatpush.bf16.msra.mxu0 0
  %1088 = vmatpush.bf16.msra.mxu0 0
  %1089 = vmatpush.bf16.msra.mxu0 0
  %1090 = vmatpush.bf16.msra.mxu0 0
  %1091 = vmatpush.bf16.msra.mxu0 0
  %1092 = vmatpush.bf16.msra.mxu0 %v1083
  %1093 = vmatmul.bf16.gmra.mxu0 %v1080
  %v1094 = vpop.f32.mrf.mxu0
  %v1095 = vadd.f32 0.0, %v1094
  %v1096 = vpop.f32.mrf.mxu0
  %1097 = vdwg.mxu0
  %1098 = vst.msk [vmem:[#allocation2 + $0x8] sm:$0x3] %vm87, %v1095
  %1099 = vrot.lane.b32.xlu0 %v1043, 120
  %v1100 = vpop.permute.xlu0 %1099
  %1101 = vrot.lane.b32.xlu0 %v1043, 88
  %v1102 = vpop.permute.xlu0 %1101
  %v1104 = vsel %vm31, %v1100, 0
  %v1107 = vsel %vm31, %v1102, 0
  %1109 = vmatpush.bf16.xpose.msra.mxu0 0
  %1110 = vmatpush.bf16.xpose.msra.mxu0 0
  %1111 = vmatpush.bf16.xpose.msra.mxu0 0
  %1112 = vmatpush.bf16.xpose.msra.mxu0 0
  %1113 = vmatpush.bf16.xpose.msra.mxu0 0
  %1114 = vmatpush.bf16.xpose.msra.mxu0 0
  %1115 = vmatpush.bf16.xpose.msra.mxu0 0
  %1116 = vmatpush.bf16.xpose.msra.mxu0 %v1107
  %1117 = vmatmul.bf16.gmra.mxu0 %v1104
  %v1118 = vpop.f32.mrf.mxu0
  %v1119 = vadd.f32 0.0, %v1118
  %v1120 = vpop.f32.mrf.mxu0
  %1121 = vdwg.mxu0
  %v1122 = vsel %vm51, %v1119, -inf
  %1123 = vmax.xlane.f32.xlu0 %v1122
  %v1124 = vpop.xlane.xlu0 %1123
  %v1125 = vsub.f32 %v1119, %v1124
  %v1126 = vmul.f32 %v1125, 1.442695
  %v1127 = vpow.pop %v1126
  %v1128 = vsel %vm51, %v1127, 0.0
  %1129 = vadd.xlane.f32.xlu0 %v1128
  %v1130 = vpop.xlane.xlu0 %1129
  %v1131 = vrcp.pop %v1130
  %v1132 = vmul.f32 %v1127, %v1131
  %v1133 = vpack.c.bf16 %v1132, %v1132
  %1134 = vrot.lane.b32.xlu0 %v1043, 56
  %v1135 = vpop.permute.xlu0 %1134
  %v1137 = vsel %vm66, %v1133, 0
  %v1140 = vsel %vm70, %v1135, 0
  %1142 = vmatpush.bf16.msra.mxu0 0
  %1143 = vmatpush.bf16.msra.mxu0 0
  %1144 = vmatpush.bf16.msra.mxu0 0
  %1145 = vmatpush.bf16.msra.mxu0 0
  %1146 = vmatpush.bf16.msra.mxu0 0
  %1147 = vmatpush.bf16.msra.mxu0 0
  %1148 = vmatpush.bf16.msra.mxu0 0
  %1149 = vmatpush.bf16.msra.mxu0 %v1140
  %1150 = vmatmul.bf16.gmra.mxu0 %v1137
  %v1151 = vpop.f32.mrf.mxu0
  %v1152 = vadd.f32 0.0, %v1151
  %v1153 = vpop.f32.mrf.mxu0
  %1154 = vdwg.mxu0
  %1156 = vrot.lane.b32.xlu0 %v1152, 8
  %v1157 = vpop.permute.xlu0 %1156
  %1159 = vst.msk [vmem:[#allocation2 + $0x8] sm:$0x3] %vm149, %v1157
  %1160 = vrot.lane.b32.xlu0 %v1043, 112
  %v1161 = vpop.permute.xlu0 %1160
  %1162 = vrot.lane.b32.xlu0 %v1043, 80
  %v1163 = vpop.permute.xlu0 %1162
  %v1165 = vsel %vm31, %v1161, 0
  %v1168 = vsel %vm31, %v1163, 0
  %1170 = vmatpush.bf16.xpose.msra.mxu0 0
  %1171 = vmatpush.bf16.xpose.msra.mxu0 0
  %1172 = vmatpush.bf16.xpose.msra.mxu0 0
  %1173 = vmatpush.bf16.xpose.msra.mxu0 0
  %1174 = vmatpush.bf16.xpose.msra.mxu0 0
  %1175 = vmatpush.bf16.xpose.msra.mxu0 0
  %1176 = vmatpush.bf16.xpose.msra.mxu0 0
  %1177 = vmatpush.bf16.xpose.msra.mxu0 %v1168
  %1178 = vmatmul.bf16.gmra.mxu0 %v1165
  %v1179 = vpop.f32.mrf.mxu0
  %v1180 = vadd.f32 0.0, %v1179
  %v1181 = vpop.f32.mrf.mxu0
  %1182 = vdwg.mxu0
  %v1183 = vsel %vm51, %v1180, -inf
  %1184 = vmax.xlane.f32.xlu0 %v1183
  %v1185 = vpop.xlane.xlu0 %1184
  %v1186 = vsub.f32 %v1180, %v1185
  %v1187 = vmul.f32 %v1186, 1.442695
  %v1188 = vpow.pop %v1187
  %v1189 = vsel %vm51, %v1188, 0.0
  %1190 = vadd.xlane.f32.xlu0 %v1189
  %v1191 = vpop.xlane.xlu0 %1190
  %v1192 = vrcp.pop %v1191
  %v1193 = vmul.f32 %v1188, %v1192
  %v1194 = vpack.c.bf16 %v1193, %v1193
  %1195 = vrot.lane.b32.xlu0 %v1043, 48
  %v1196 = vpop.permute.xlu0 %1195
  %v1198 = vsel %vm66, %v1194, 0
  %v1201 = vsel %vm70, %v1196, 0
  %1203 = vmatpush.bf16.msra.mxu0 0
  %1204 = vmatpush.bf16.msra.mxu0 0
  %1205 = vmatpush.bf16.msra.mxu0 0
  %1206 = vmatpush.bf16.msra.mxu0 0
  %1207 = vmatpush.bf16.msra.mxu0 0
  %1208 = vmatpush.bf16.msra.mxu0 0
  %1209 = vmatpush.bf16.msra.mxu0 0
  %1210 = vmatpush.bf16.msra.mxu0 %v1201
  %1211 = vmatmul.bf16.gmra.mxu0 %v1198
  %v1212 = vpop.f32.mrf.mxu0
  %v1213 = vadd.f32 0.0, %v1212
  %v1214 = vpop.f32.mrf.mxu0
  %1215 = vdwg.mxu0
  %1217 = vrot.lane.b32.xlu0 %v1213, 16
  %v1218 = vpop.permute.xlu0 %1217
  %1220 = vst.msk [vmem:[#allocation2 + $0x8] sm:$0x3] %vm211, %v1218
  %1221 = vrot.lane.b32.xlu0 %v1043, 104
  %v1222 = vpop.permute.xlu0 %1221
  %1223 = vrot.lane.b32.xlu0 %v1043, 72
  %v1224 = vpop.permute.xlu0 %1223
  %v1226 = vsel %vm31, %v1222, 0
  %v1229 = vsel %vm31, %v1224, 0
  %1231 = vmatpush.bf16.xpose.msra.mxu0 0
  %1232 = vmatpush.bf16.xpose.msra.mxu0 0
  %1233 = vmatpush.bf16.xpose.msra.mxu0 0
  %1234 = vmatpush.bf16.xpose.msra.mxu0 0
  %1235 = vmatpush.bf16.xpose.msra.mxu0 0
  %1236 = vmatpush.bf16.xpose.msra.mxu0 0
  %1237 = vmatpush.bf16.xpose.msra.mxu0 0
  %1238 = vmatpush.bf16.xpose.msra.mxu0 %v1229
  %1239 = vmatmul.bf16.gmra.mxu0 %v1226
  %v1240 = vpop.f32.mrf.mxu0
  %v1241 = vadd.f32 0.0, %v1240
  %v1242 = vpop.f32.mrf.mxu0
  %1243 = vdwg.mxu0
  %v1244 = vsel %vm51, %v1241, -inf
  %1245 = vmax.xlane.f32.xlu0 %v1244
  %v1246 = vpop.xlane.xlu0 %1245
  %v1247 = vsub.f32 %v1241, %v1246
  %v1248 = vmul.f32 %v1247, 1.442695
  %v1249 = vpow.pop %v1248
  %v1250 = vsel %vm51, %v1249, 0.0
  %1251 = vadd.xlane.f32.xlu0 %v1250
  %v1252 = vpop.xlane.xlu0 %1251
  %v1253 = vrcp.pop %v1252
  %v1254 = vmul.f32 %v1249, %v1253
  %v1255 = vpack.c.bf16 %v1254, %v1254
  %1256 = vrot.lane.b32.xlu0 %v1043, 40
  %v1257 = vpop.permute.xlu0 %1256
  %v1259 = vsel %vm66, %v1255, 0
  %v1262 = vsel %vm70, %v1257, 0
  %1264 = vmatpush.bf16.msra.mxu0 0
  %1265 = vmatpush.bf16.msra.mxu0 0
  %1266 = vmatpush.bf16.msra.mxu0 0
  %1267 = vmatpush.bf16.msra.mxu0 0
  %1268 = vmatpush.bf16.msra.mxu0 0
  %1269 = vmatpush.bf16.msra.mxu0 0
  %1270 = vmatpush.bf16.msra.mxu0 0
  %1271 = vmatpush.bf16.msra.mxu0 %v1262
  %1272 = vmatmul.bf16.gmra.mxu0 %v1259
  %v1273 = vpop.f32.mrf.mxu0
  %v1274 = vadd.f32 0.0, %v1273
  %v1275 = vpop.f32.mrf.mxu0
  %1276 = vdwg.mxu0
  %1278 = vrot.lane.b32.xlu0 %v1274, 24
  %v1279 = vpop.permute.xlu0 %1278
  %1281 = vst.msk [vmem:[#allocation2 + $0x8] sm:$0x3] %vm273, %v1279
  %v1282 = vld [vmem:[%s0] sm:$0x4]
  %v1283 = vld [vmem:[%s0 + $0x4] sm:$0x4]
  %v1286 = vunpack.c.l.b16 %v1282
  %v1287 = vunpack.c.l.b16 %v1283
  %v1288 = vpack.c.b16 %v1286, %v1286
  %v1289 = vpack.c.b16 %v1287, %v1287
  %v1290 = vunpack.c.l.b16 %v1288
  %v1291 = vunpack.c.l.b16 %v1289
  %v1292 = vrot.slane %v1290, 5
  %v1293 = vrot.slane %v1291, 4
  %v1294 = vsel %vm26, %v1293, %v1292
  %v1295 = vpack.c.b16 %v1294, %v1294
  %1296 = vrot.lane.b32.xlu0 %v1295, 96
  %v1297 = vpop.permute.xlu0 %1296
  %v1299 = vsel %vm31, %v1295, 0
  %v1302 = vsel %vm31, %v1297, 0
  %1304 = vmatpush.bf16.xpose.msra.mxu0 0
  %1305 = vmatpush.bf16.xpose.msra.mxu0 0
  %1306 = vmatpush.bf16.xpose.msra.mxu0 0
  %1307 = vmatpush.bf16.xpose.msra.mxu0 0
  %1308 = vmatpush.bf16.xpose.msra.mxu0 0
  %1309 = vmatpush.bf16.xpose.msra.mxu0 0
  %1310 = vmatpush.bf16.xpose.msra.mxu0 0
  %1311 = vmatpush.bf16.xpose.msra.mxu0 %v1302
  %1312 = vmatmul.bf16.gmra.mxu0 %v1299
  %v1313 = vpop.f32.mrf.mxu0
  %v1314 = vadd.f32 0.0, %v1313
  %v1315 = vpop.f32.mrf.mxu0
  %1316 = vdwg.mxu0
  %v1317 = vsel %vm51, %v1314, -inf
  %1318 = vmax.xlane.f32.xlu0 %v1317
  %v1319 = vpop.xlane.xlu0 %1318
  %v1320 = vsub.f32 %v1314, %v1319
  %v1321 = vmul.f32 %v1320, 1.442695
  %v1322 = vpow.pop %v1321
  %v1323 = vsel %vm51, %v1322, 0.0
  %1324 = vadd.xlane.f32.xlu0 %v1323
  %v1325 = vpop.xlane.xlu0 %1324
  %v1326 = vrcp.pop %v1325
  %v1327 = vmul.f32 %v1322, %v1326
  %v1328 = vpack.c.bf16 %v1327, %v1327
  %1329 = vrot.lane.b32.xlu0 %v1295, 64
  %v1330 = vpop.permute.xlu0 %1329
  %v1332 = vsel %vm66, %v1328, 0
  %v1335 = vsel %vm70, %v1330, 0
  %1337 = vmatpush.bf16.msra.mxu0 0
  %1338 = vmatpush.bf16.msra.mxu0 0
  %1339 = vmatpush.bf16.msra.mxu0 0
  %1340 = vmatpush.bf16.msra.mxu0 0
  %1341 = vmatpush.bf16.msra.mxu0 0
  %1342 = vmatpush.bf16.msra.mxu0 0
  %1343 = vmatpush.bf16.msra.mxu0 0
  %1344 = vmatpush.bf16.msra.mxu0 %v1335
  %1345 = vmatmul.bf16.gmra.mxu0 %v1332
  %v1346 = vpop.f32.mrf.mxu0
  %v1347 = vadd.f32 0.0, %v1346
  %v1348 = vpop.f32.mrf.mxu0
  %1349 = vdwg.mxu0
  %1350 = vst.msk [vmem:[#allocation2 + $0xa] sm:$0x3] %vm87, %v1347
  %1351 = vrot.lane.b32.xlu0 %v1295, 120
  %v1352 = vpop.permute.xlu0 %1351
  %1353 = vrot.lane.b32.xlu0 %v1295, 88
  %v1354 = vpop.permute.xlu0 %1353
  %v1356 = vsel %vm31, %v1352, 0
  %v1359 = vsel %vm31, %v1354, 0
  %1361 = vmatpush.bf16.xpose.msra.mxu0 0
  %1362 = vmatpush.bf16.xpose.msra.mxu0 0
  %1363 = vmatpush.bf16.xpose.msra.mxu0 0
  %1364 = vmatpush.bf16.xpose.msra.mxu0 0
  %1365 = vmatpush.bf16.xpose.msra.mxu0 0
  %1366 = vmatpush.bf16.xpose.msra.mxu0 0
  %1367 = vmatpush.bf16.xpose.msra.mxu0 0
  %1368 = vmatpush.bf16.xpose.msra.mxu0 %v1359
  %1369 = vmatmul.bf16.gmra.mxu0 %v1356
  %v1370 = vpop.f32.mrf.mxu0
  %v1371 = vadd.f32 0.0, %v1370
  %v1372 = vpop.f32.mrf.mxu0
  %1373 = vdwg.mxu0
  %v1374 = vsel %vm51, %v1371, -inf
  %1375 = vmax.xlane.f32.xlu0 %v1374
  %v1376 = vpop.xlane.xlu0 %1375
  %v1377 = vsub.f32 %v1371, %v1376
  %v1378 = vmul.f32 %v1377, 1.442695
  %v1379 = vpow.pop %v1378
  %v1380 = vsel %vm51, %v1379, 0.0
  %1381 = vadd.xlane.f32.xlu0 %v1380
  %v1382 = vpop.xlane.xlu0 %1381
  %v1383 = vrcp.pop %v1382
  %v1384 = vmul.f32 %v1379, %v1383
  %v1385 = vpack.c.bf16 %v1384, %v1384
  %1386 = vrot.lane.b32.xlu0 %v1295, 56
  %v1387 = vpop.permute.xlu0 %1386
  %v1389 = vsel %vm66, %v1385, 0
  %v1392 = vsel %vm70, %v1387, 0
  %1394 = vmatpush.bf16.msra.mxu0 0
  %1395 = vmatpush.bf16.msra.mxu0 0
  %1396 = vmatpush.bf16.msra.mxu0 0
  %1397 = vmatpush.bf16.msra.mxu0 0
  %1398 = vmatpush.bf16.msra.mxu0 0
  %1399 = vmatpush.bf16.msra.mxu0 0
  %1400 = vmatpush.bf16.msra.mxu0 0
  %1401 = vmatpush.bf16.msra.mxu0 %v1392
  %1402 = vmatmul.bf16.gmra.mxu0 %v1389
  %v1403 = vpop.f32.mrf.mxu0
  %v1404 = vadd.f32 0.0, %v1403
  %v1405 = vpop.f32.mrf.mxu0
  %1406 = vdwg.mxu0
  %1408 = vrot.lane.b32.xlu0 %v1404, 8
  %v1409 = vpop.permute.xlu0 %1408
  %1411 = vst.msk [vmem:[#allocation2 + $0xa] sm:$0x3] %vm149, %v1409
  %1412 = vrot.lane.b32.xlu0 %v1295, 112
  %v1413 = vpop.permute.xlu0 %1412
  %1414 = vrot.lane.b32.xlu0 %v1295, 80
  %v1415 = vpop.permute.xlu0 %1414
  %v1417 = vsel %vm31, %v1413, 0
  %v1420 = vsel %vm31, %v1415, 0
  %1422 = vmatpush.bf16.xpose.msra.mxu0 0
  %1423 = vmatpush.bf16.xpose.msra.mxu0 0
  %1424 = vmatpush.bf16.xpose.msra.mxu0 0
  %1425 = vmatpush.bf16.xpose.msra.mxu0 0
  %1426 = vmatpush.bf16.xpose.msra.mxu0 0
  %1427 = vmatpush.bf16.xpose.msra.mxu0 0
  %1428 = vmatpush.bf16.xpose.msra.mxu0 0
  %1429 = vmatpush.bf16.xpose.msra.mxu0 %v1420
  %1430 = vmatmul.bf16.gmra.mxu0 %v1417
  %v1431 = vpop.f32.mrf.mxu0
  %v1432 = vadd.f32 0.0, %v1431
  %v1433 = vpop.f32.mrf.mxu0
  %1434 = vdwg.mxu0
  %v1435 = vsel %vm51, %v1432, -inf
  %1436 = vmax.xlane.f32.xlu0 %v1435
  %v1437 = vpop.xlane.xlu0 %1436
  %v1438 = vsub.f32 %v1432, %v1437
  %v1439 = vmul.f32 %v1438, 1.442695
  %v1440 = vpow.pop %v1439
  %v1441 = vsel %vm51, %v1440, 0.0
  %1442 = vadd.xlane.f32.xlu0 %v1441
  %v1443 = vpop.xlane.xlu0 %1442
  %v1444 = vrcp.pop %v1443
  %v1445 = vmul.f32 %v1440, %v1444
  %v1446 = vpack.c.bf16 %v1445, %v1445
  %1447 = vrot.lane.b32.xlu0 %v1295, 48
  %v1448 = vpop.permute.xlu0 %1447
  %v1450 = vsel %vm66, %v1446, 0
  %v1453 = vsel %vm70, %v1448, 0
  %1455 = vmatpush.bf16.msra.mxu0 0
  %1456 = vmatpush.bf16.msra.mxu0 0
  %1457 = vmatpush.bf16.msra.mxu0 0
  %1458 = vmatpush.bf16.msra.mxu0 0
  %1459 = vmatpush.bf16.msra.mxu0 0
  %1460 = vmatpush.bf16.msra.mxu0 0
  %1461 = vmatpush.bf16.msra.mxu0 0
  %1462 = vmatpush.bf16.msra.mxu0 %v1453
  %1463 = vmatmul.bf16.gmra.mxu0 %v1450
  %v1464 = vpop.f32.mrf.mxu0
  %v1465 = vadd.f32 0.0, %v1464
  %v1466 = vpop.f32.mrf.mxu0
  %1467 = vdwg.mxu0
  %1469 = vrot.lane.b32.xlu0 %v1465, 16
  %v1470 = vpop.permute.xlu0 %1469
  %1472 = vst.msk [vmem:[#allocation2 + $0xa] sm:$0x3] %vm211, %v1470
  %1473 = vrot.lane.b32.xlu0 %v1295, 104
  %v1474 = vpop.permute.xlu0 %1473
  %1475 = vrot.lane.b32.xlu0 %v1295, 72
  %v1476 = vpop.permute.xlu0 %1475
  %v1478 = vsel %vm31, %v1474, 0
  %v1481 = vsel %vm31, %v1476, 0
  %1483 = vmatpush.bf16.xpose.msra.mxu0 0
  %1484 = vmatpush.bf16.xpose.msra.mxu0 0
  %1485 = vmatpush.bf16.xpose.msra.mxu0 0
  %1486 = vmatpush.bf16.xpose.msra.mxu0 0
  %1487 = vmatpush.bf16.xpose.msra.mxu0 0
  %1488 = vmatpush.bf16.xpose.msra.mxu0 0
  %1489 = vmatpush.bf16.xpose.msra.mxu0 0
  %1490 = vmatpush.bf16.xpose.msra.mxu0 %v1481
  %1491 = vmatmul.bf16.gmra.mxu0 %v1478
  %v1492 = vpop.f32.mrf.mxu0
  %v1493 = vadd.f32 0.0, %v1492
  %v1494 = vpop.f32.mrf.mxu0
  %1495 = vdwg.mxu0
  %v1496 = vsel %vm51, %v1493, -inf
  %1497 = vmax.xlane.f32.xlu0 %v1496
  %v1498 = vpop.xlane.xlu0 %1497
  %v1499 = vsub.f32 %v1493, %v1498
  %v1500 = vmul.f32 %v1499, 1.442695
  %v1501 = vpow.pop %v1500
  %v1502 = vsel %vm51, %v1501, 0.0
  %1503 = vadd.xlane.f32.xlu0 %v1502
  %v1504 = vpop.xlane.xlu0 %1503
  %v1505 = vrcp.pop %v1504
  %v1506 = vmul.f32 %v1501, %v1505
  %v1507 = vpack.c.bf16 %v1506, %v1506
  %1508 = vrot.lane.b32.xlu0 %v1295, 40
  %v1509 = vpop.permute.xlu0 %1508
  %v1511 = vsel %vm66, %v1507, 0
  %v1514 = vsel %vm70, %v1509, 0
  %1516 = vmatpush.bf16.msra.mxu0 0
  %1517 = vmatpush.bf16.msra.mxu0 0
  %1518 = vmatpush.bf16.msra.mxu0 0
  %1519 = vmatpush.bf16.msra.mxu0 0
  %1520 = vmatpush.bf16.msra.mxu0 0
  %1521 = vmatpush.bf16.msra.mxu0 0
  %1522 = vmatpush.bf16.msra.mxu0 0
  %1523 = vmatpush.bf16.msra.mxu0 %v1514
  %1524 = vmatmul.bf16.gmra.mxu0 %v1511
  %v1525 = vpop.f32.mrf.mxu0
  %v1526 = vadd.f32 0.0, %v1525
  %v1527 = vpop.f32.mrf.mxu0
  %1528 = vdwg.mxu0
  %1530 = vrot.lane.b32.xlu0 %v1526, 24
  %v1531 = vpop.permute.xlu0 %1530
  %1533 = vst.msk [vmem:[#allocation2 + $0xa] sm:$0x3] %vm273, %v1531
  %v1534 = vld [vmem:[%s0] sm:$0x8]
  %v1535 = vld [vmem:[%s0 + $0x4] sm:$0x8]
  %v1538 = vunpack.c.l.b16 %v1534
  %v1539 = vunpack.c.l.b16 %v1535
  %v1540 = vpack.c.b16 %v1538, %v1538
  %v1541 = vpack.c.b16 %v1539, %v1539
  %v1542 = vunpack.c.l.b16 %v1540
  %v1543 = vunpack.c.l.b16 %v1541
  %v1544 = vrot.slane %v1542, 6
  %v1545 = vrot.slane %v1543, 5
  %v1546 = vsel %vm26, %v1545, %v1544
  %v1547 = vpack.c.b16 %v1546, %v1546
  %1548 = vrot.lane.b32.xlu0 %v1547, 96
  %v1549 = vpop.permute.xlu0 %1548
  %v1551 = vsel %vm31, %v1547, 0
  %v1554 = vsel %vm31, %v1549, 0
  %1556 = vmatpush.bf16.xpose.msra.mxu0 0
  %1557 = vmatpush.bf16.xpose.msra.mxu0 0
  %1558 = vmatpush.bf16.xpose.msra.mxu0 0
  %1559 = vmatpush.bf16.xpose.msra.mxu0 0
  %1560 = vmatpush.bf16.xpose.msra.mxu0 0
  %1561 = vmatpush.bf16.xpose.msra.mxu0 0
  %1562 = vmatpush.bf16.xpose.msra.mxu0 0
  %1563 = vmatpush.bf16.xpose.msra.mxu0 %v1554
  %1564 = vmatmul.bf16.gmra.mxu0 %v1551
  %v1565 = vpop.f32.mrf.mxu0
  %v1566 = vadd.f32 0.0, %v1565
  %v1567 = vpop.f32.mrf.mxu0
  %1568 = vdwg.mxu0
  %v1569 = vsel %vm51, %v1566, -inf
  %1570 = vmax.xlane.f32.xlu0 %v1569
  %v1571 = vpop.xlane.xlu0 %1570
  %v1572 = vsub.f32 %v1566, %v1571
  %v1573 = vmul.f32 %v1572, 1.442695
  %v1574 = vpow.pop %v1573
  %v1575 = vsel %vm51, %v1574, 0.0
  %1576 = vadd.xlane.f32.xlu0 %v1575
  %v1577 = vpop.xlane.xlu0 %1576
  %v1578 = vrcp.pop %v1577
  %v1579 = vmul.f32 %v1574, %v1578
  %v1580 = vpack.c.bf16 %v1579, %v1579
  %1581 = vrot.lane.b32.xlu0 %v1547, 64
  %v1582 = vpop.permute.xlu0 %1581
  %v1584 = vsel %vm66, %v1580, 0
  %v1587 = vsel %vm70, %v1582, 0
  %1589 = vmatpush.bf16.msra.mxu0 0
  %1590 = vmatpush.bf16.msra.mxu0 0
  %1591 = vmatpush.bf16.msra.mxu0 0
  %1592 = vmatpush.bf16.msra.mxu0 0
  %1593 = vmatpush.bf16.msra.mxu0 0
  %1594 = vmatpush.bf16.msra.mxu0 0
  %1595 = vmatpush.bf16.msra.mxu0 0
  %1596 = vmatpush.bf16.msra.mxu0 %v1587
  %1597 = vmatmul.bf16.gmra.mxu0 %v1584
  %v1598 = vpop.f32.mrf.mxu0
  %v1599 = vadd.f32 0.0, %v1598
  %v1600 = vpop.f32.mrf.mxu0
  %1601 = vdwg.mxu0
  %1602 = vst.msk [vmem:[#allocation2 + $0xc] sm:$0x3] %vm87, %v1599
  %1603 = vrot.lane.b32.xlu0 %v1547, 120
  %v1604 = vpop.permute.xlu0 %1603
  %1605 = vrot.lane.b32.xlu0 %v1547, 88
  %v1606 = vpop.permute.xlu0 %1605
  %v1608 = vsel %vm31, %v1604, 0
  %v1611 = vsel %vm31, %v1606, 0
  %1613 = vmatpush.bf16.xpose.msra.mxu0 0
  %1614 = vmatpush.bf16.xpose.msra.mxu0 0
  %1615 = vmatpush.bf16.xpose.msra.mxu0 0
  %1616 = vmatpush.bf16.xpose.msra.mxu0 0
  %1617 = vmatpush.bf16.xpose.msra.mxu0 0
  %1618 = vmatpush.bf16.xpose.msra.mxu0 0
  %1619 = vmatpush.bf16.xpose.msra.mxu0 0
  %1620 = vmatpush.bf16.xpose.msra.mxu0 %v1611
  %1621 = vmatmul.bf16.gmra.mxu0 %v1608
  %v1622 = vpop.f32.mrf.mxu0
  %v1623 = vadd.f32 0.0, %v1622
  %v1624 = vpop.f32.mrf.mxu0
  %1625 = vdwg.mxu0
  %v1626 = vsel %vm51, %v1623, -inf
  %1627 = vmax.xlane.f32.xlu0 %v1626
  %v1628 = vpop.xlane.xlu0 %1627
  %v1629 = vsub.f32 %v1623, %v1628
  %v1630 = vmul.f32 %v1629, 1.442695
  %v1631 = vpow.pop %v1630
  %v1632 = vsel %vm51, %v1631, 0.0
  %1633 = vadd.xlane.f32.xlu0 %v1632
  %v1634 = vpop.xlane.xlu0 %1633
  %v1635 = vrcp.pop %v1634
  %v1636 = vmul.f32 %v1631, %v1635
  %v1637 = vpack.c.bf16 %v1636, %v1636
  %1638 = vrot.lane.b32.xlu0 %v1547, 56
  %v1639 = vpop.permute.xlu0 %1638
  %v1641 = vsel %vm66, %v1637, 0
  %v1644 = vsel %vm70, %v1639, 0
  %1646 = vmatpush.bf16.msra.mxu0 0
  %1647 = vmatpush.bf16.msra.mxu0 0
  %1648 = vmatpush.bf16.msra.mxu0 0
  %1649 = vmatpush.bf16.msra.mxu0 0
  %1650 = vmatpush.bf16.msra.mxu0 0
  %1651 = vmatpush.bf16.msra.mxu0 0
  %1652 = vmatpush.bf16.msra.mxu0 0
  %1653 = vmatpush.bf16.msra.mxu0 %v1644
  %1654 = vmatmul.bf16.gmra.mxu0 %v1641
  %v1655 = vpop.f32.mrf.mxu0
  %v1656 = vadd.f32 0.0, %v1655
  %v1657 = vpop.f32.mrf.mxu0
  %1658 = vdwg.mxu0
  %1660 = vrot.lane.b32.xlu0 %v1656, 8
  %v1661 = vpop.permute.xlu0 %1660
  %1663 = vst.msk [vmem:[#allocation2 + $0xc] sm:$0x3] %vm149, %v1661
  %1664 = vrot.lane.b32.xlu0 %v1547, 112
  %v1665 = vpop.permute.xlu0 %1664
  %1666 = vrot.lane.b32.xlu0 %v1547, 80
  %v1667 = vpop.permute.xlu0 %1666
  %v1669 = vsel %vm31, %v1665, 0
  %v1672 = vsel %vm31, %v1667, 0
  %1674 = vmatpush.bf16.xpose.msra.mxu0 0
  %1675 = vmatpush.bf16.xpose.msra.mxu0 0
  %1676 = vmatpush.bf16.xpose.msra.mxu0 0
  %1677 = vmatpush.bf16.xpose.msra.mxu0 0
  %1678 = vmatpush.bf16.xpose.msra.mxu0 0
  %1679 = vmatpush.bf16.xpose.msra.mxu0 0
  %1680 = vmatpush.bf16.xpose.msra.mxu0 0
  %1681 = vmatpush.bf16.xpose.msra.mxu0 %v1672
  %1682 = vmatmul.bf16.gmra.mxu0 %v1669
  %v1683 = vpop.f32.mrf.mxu0
  %v1684 = vadd.f32 0.0, %v1683
  %v1685 = vpop.f32.mrf.mxu0
  %1686 = vdwg.mxu0
  %v1687 = vsel %vm51, %v1684, -inf
  %1688 = vmax.xlane.f32.xlu0 %v1687
  %v1689 = vpop.xlane.xlu0 %1688
  %v1690 = vsub.f32 %v1684, %v1689
  %v1691 = vmul.f32 %v1690, 1.442695
  %v1692 = vpow.pop %v1691
  %v1693 = vsel %vm51, %v1692, 0.0
  %1694 = vadd.xlane.f32.xlu0 %v1693
  %v1695 = vpop.xlane.xlu0 %1694
  %v1696 = vrcp.pop %v1695
  %v1697 = vmul.f32 %v1692, %v1696
  %v1698 = vpack.c.bf16 %v1697, %v1697
  %1699 = vrot.lane.b32.xlu0 %v1547, 48
  %v1700 = vpop.permute.xlu0 %1699
  %v1702 = vsel %vm66, %v1698, 0
  %v1705 = vsel %vm70, %v1700, 0
  %1707 = vmatpush.bf16.msra.mxu0 0
  %1708 = vmatpush.bf16.msra.mxu0 0
  %1709 = vmatpush.bf16.msra.mxu0 0
  %1710 = vmatpush.bf16.msra.mxu0 0
  %1711 = vmatpush.bf16.msra.mxu0 0
  %1712 = vmatpush.bf16.msra.mxu0 0
  %1713 = vmatpush.bf16.msra.mxu0 0
  %1714 = vmatpush.bf16.msra.mxu0 %v1705
  %1715 = vmatmul.bf16.gmra.mxu0 %v1702
  %v1716 = vpop.f32.mrf.mxu0
  %v1717 = vadd.f32 0.0, %v1716
  %v1718 = vpop.f32.mrf.mxu0
  %1719 = vdwg.mxu0
  %1721 = vrot.lane.b32.xlu0 %v1717, 16
  %v1722 = vpop.permute.xlu0 %1721
  %1724 = vst.msk [vmem:[#allocation2 + $0xc] sm:$0x3] %vm211, %v1722
  %1725 = vrot.lane.b32.xlu0 %v1547, 104
  %v1726 = vpop.permute.xlu0 %1725
  %1727 = vrot.lane.b32.xlu0 %v1547, 72
  %v1728 = vpop.permute.xlu0 %1727
  %v1730 = vsel %vm31, %v1726, 0
  %v1733 = vsel %vm31, %v1728, 0
  %1735 = vmatpush.bf16.xpose.msra.mxu0 0
  %1736 = vmatpush.bf16.xpose.msra.mxu0 0
  %1737 = vmatpush.bf16.xpose.msra.mxu0 0
  %1738 = vmatpush.bf16.xpose.msra.mxu0 0
  %1739 = vmatpush.bf16.xpose.msra.mxu0 0
  %1740 = vmatpush.bf16.xpose.msra.mxu0 0
  %1741 = vmatpush.bf16.xpose.msra.mxu0 0
  %1742 = vmatpush.bf16.xpose.msra.mxu0 %v1733
  %1743 = vmatmul.bf16.gmra.mxu0 %v1730
  %v1744 = vpop.f32.mrf.mxu0
  %v1745 = vadd.f32 0.0, %v1744
  %v1746 = vpop.f32.mrf.mxu0
  %1747 = vdwg.mxu0
  %v1748 = vsel %vm51, %v1745, -inf
  %1749 = vmax.xlane.f32.xlu0 %v1748
  %v1750 = vpop.xlane.xlu0 %1749
  %v1751 = vsub.f32 %v1745, %v1750
  %v1752 = vmul.f32 %v1751, 1.442695
  %v1753 = vpow.pop %v1752
  %v1754 = vsel %vm51, %v1753, 0.0
  %1755 = vadd.xlane.f32.xlu0 %v1754
  %v1756 = vpop.xlane.xlu0 %1755
  %v1757 = vrcp.pop %v1756
  %v1758 = vmul.f32 %v1753, %v1757
  %v1759 = vpack.c.bf16 %v1758, %v1758
  %1760 = vrot.lane.b32.xlu0 %v1547, 40
  %v1761 = vpop.permute.xlu0 %1760
  %v1763 = vsel %vm66, %v1759, 0
  %v1766 = vsel %vm70, %v1761, 0
  %1768 = vmatpush.bf16.msra.mxu0 0
  %1769 = vmatpush.bf16.msra.mxu0 0
  %1770 = vmatpush.bf16.msra.mxu0 0
  %1771 = vmatpush.bf16.msra.mxu0 0
  %1772 = vmatpush.bf16.msra.mxu0 0
  %1773 = vmatpush.bf16.msra.mxu0 0
  %1774 = vmatpush.bf16.msra.mxu0 0
  %1775 = vmatpush.bf16.msra.mxu0 %v1766
  %1776 = vmatmul.bf16.gmra.mxu0 %v1763
  %v1777 = vpop.f32.mrf.mxu0
  %v1778 = vadd.f32 0.0, %v1777
  %v1779 = vpop.f32.mrf.mxu0
  %1780 = vdwg.mxu0
  %1782 = vrot.lane.b32.xlu0 %v1778, 24
  %v1783 = vpop.permute.xlu0 %1782
  %1785 = vst.msk [vmem:[#allocation2 + $0xc] sm:$0x3] %vm273, %v1783
  %v1786 = vld [vmem:[%s0] sm:$0x8]
  %v1787 = vld [vmem:[%s0 + $0x4] sm:$0x8]
  %v1790 = vunpack.c.l.b16 %v1786
  %v1791 = vunpack.c.l.b16 %v1787
  %v1792 = vpack.c.b16 %v1790, %v1790
  %v1793 = vpack.c.b16 %v1791, %v1791
  %v1794 = vunpack.c.l.b16 %v1792
  %v1795 = vunpack.c.l.b16 %v1793
  %v1796 = vrot.slane %v1794, 7
  %v1797 = vrot.slane %v1795, 6
  %v1798 = vsel %vm26, %v1797, %v1796
  %v1799 = vpack.c.b16 %v1798, %v1798
  %1800 = vrot.lane.b32.xlu0 %v1799, 96
  %v1801 = vpop.permute.xlu0 %1800
  %v1803 = vsel %vm31, %v1799, 0
  %v1806 = vsel %vm31, %v1801, 0
  %1808 = vmatpush.bf16.xpose.msra.mxu0 0
  %1809 = vmatpush.bf16.xpose.msra.mxu0 0
  %1810 = vmatpush.bf16.xpose.msra.mxu0 0
  %1811 = vmatpush.bf16.xpose.msra.mxu0 0
  %1812 = vmatpush.bf16.xpose.msra.mxu0 0
  %1813 = vmatpush.bf16.xpose.msra.mxu0 0
  %1814 = vmatpush.bf16.xpose.msra.mxu0 0
  %1815 = vmatpush.bf16.xpose.msra.mxu0 %v1806
  %1816 = vmatmul.bf16.gmra.mxu0 %v1803
  %v1817 = vpop.f32.mrf.mxu0
  %v1818 = vadd.f32 0.0, %v1817
  %v1819 = vpop.f32.mrf.mxu0
  %1820 = vdwg.mxu0
  %v1821 = vsel %vm51, %v1818, -inf
  %1822 = vmax.xlane.f32.xlu0 %v1821
  %v1823 = vpop.xlane.xlu0 %1822
  %v1824 = vsub.f32 %v1818, %v1823
  %v1825 = vmul.f32 %v1824, 1.442695
  %v1826 = vpow.pop %v1825
  %v1827 = vsel %vm51, %v1826, 0.0
  %1828 = vadd.xlane.f32.xlu0 %v1827
  %v1829 = vpop.xlane.xlu0 %1828
  %v1830 = vrcp.pop %v1829
  %v1831 = vmul.f32 %v1826, %v1830
  %v1832 = vpack.c.bf16 %v1831, %v1831
  %1833 = vrot.lane.b32.xlu0 %v1799, 64
  %v1834 = vpop.permute.xlu0 %1833
  %v1836 = vsel %vm66, %v1832, 0
  %v1839 = vsel %vm70, %v1834, 0
  %1841 = vmatpush.bf16.msra.mxu0 0
  %1842 = vmatpush.bf16.msra.mxu0 0
  %1843 = vmatpush.bf16.msra.mxu0 0
  %1844 = vmatpush.bf16.msra.mxu0 0
  %1845 = vmatpush.bf16.msra.mxu0 0
  %1846 = vmatpush.bf16.msra.mxu0 0
  %1847 = vmatpush.bf16.msra.mxu0 0
  %1848 = vmatpush.bf16.msra.mxu0 %v1839
  %1849 = vmatmul.bf16.gmra.mxu0 %v1836
  %v1850 = vpop.f32.mrf.mxu0
  %v1851 = vadd.f32 0.0, %v1850
  %v1852 = vpop.f32.mrf.mxu0
  %1853 = vdwg.mxu0
  %1854 = vst.msk [vmem:[#allocation2 + $0xe] sm:$0x3] %vm87, %v1851
  %1855 = vrot.lane.b32.xlu0 %v1799, 120
  %v1856 = vpop.permute.xlu0 %1855
  %1857 = vrot.lane.b32.xlu0 %v1799, 88
  %v1858 = vpop.permute.xlu0 %1857
  %v1860 = vsel %vm31, %v1856, 0
  %v1863 = vsel %vm31, %v1858, 0
  %1865 = vmatpush.bf16.xpose.msra.mxu0 0
  %1866 = vmatpush.bf16.xpose.msra.mxu0 0
  %1867 = vmatpush.bf16.xpose.msra.mxu0 0
  %1868 = vmatpush.bf16.xpose.msra.mxu0 0
  %1869 = vmatpush.bf16.xpose.msra.mxu0 0
  %1870 = vmatpush.bf16.xpose.msra.mxu0 0
  %1871 = vmatpush.bf16.xpose.msra.mxu0 0
  %1872 = vmatpush.bf16.xpose.msra.mxu0 %v1863
  %1873 = vmatmul.bf16.gmra.mxu0 %v1860
  %v1874 = vpop.f32.mrf.mxu0
  %v1875 = vadd.f32 0.0, %v1874
  %v1876 = vpop.f32.mrf.mxu0
  %1877 = vdwg.mxu0
  %v1878 = vsel %vm51, %v1875, -inf
  %1879 = vmax.xlane.f32.xlu0 %v1878
  %v1880 = vpop.xlane.xlu0 %1879
  %v1881 = vsub.f32 %v1875, %v1880
  %v1882 = vmul.f32 %v1881, 1.442695
  %v1883 = vpow.pop %v1882
  %v1884 = vsel %vm51, %v1883, 0.0
  %1885 = vadd.xlane.f32.xlu0 %v1884
  %v1886 = vpop.xlane.xlu0 %1885
  %v1887 = vrcp.pop %v1886
  %v1888 = vmul.f32 %v1883, %v1887
  %v1889 = vpack.c.bf16 %v1888, %v1888
  %1890 = vrot.lane.b32.xlu0 %v1799, 56
  %v1891 = vpop.permute.xlu0 %1890
  %v1893 = vsel %vm66, %v1889, 0
  %v1896 = vsel %vm70, %v1891, 0
  %1898 = vmatpush.bf16.msra.mxu0 0
  %1899 = vmatpush.bf16.msra.mxu0 0
  %1900 = vmatpush.bf16.msra.mxu0 0
  %1901 = vmatpush.bf16.msra.mxu0 0
  %1902 = vmatpush.bf16.msra.mxu0 0
  %1903 = vmatpush.bf16.msra.mxu0 0
  %1904 = vmatpush.bf16.msra.mxu0 0
  %1905 = vmatpush.bf16.msra.mxu0 %v1896
  %1906 = vmatmul.bf16.gmra.mxu0 %v1893
  %v1907 = vpop.f32.mrf.mxu0
  %v1908 = vadd.f32 0.0, %v1907
  %v1909 = vpop.f32.mrf.mxu0
  %1910 = vdwg.mxu0
  %1912 = vrot.lane.b32.xlu0 %v1908, 8
  %v1913 = vpop.permute.xlu0 %1912
  %1915 = vst.msk [vmem:[#allocation2 + $0xe] sm:$0x3] %vm149, %v1913
  %1916 = vrot.lane.b32.xlu0 %v1799, 112
  %v1917 = vpop.permute.xlu0 %1916
  %1918 = vrot.lane.b32.xlu0 %v1799, 80
  %v1919 = vpop.permute.xlu0 %1918
  %v1921 = vsel %vm31, %v1917, 0
  %v1924 = vsel %vm31, %v1919, 0
  %1926 = vmatpush.bf16.xpose.msra.mxu0 0
  %1927 = vmatpush.bf16.xpose.msra.mxu0 0
  %1928 = vmatpush.bf16.xpose.msra.mxu0 0
  %1929 = vmatpush.bf16.xpose.msra.mxu0 0
  %1930 = vmatpush.bf16.xpose.msra.mxu0 0
  %1931 = vmatpush.bf16.xpose.msra.mxu0 0
  %1932 = vmatpush.bf16.xpose.msra.mxu0 0
  %1933 = vmatpush.bf16.xpose.msra.mxu0 %v1924
  %1934 = vmatmul.bf16.gmra.mxu0 %v1921
  %v1935 = vpop.f32.mrf.mxu0
  %v1936 = vadd.f32 0.0, %v1935
  %v1937 = vpop.f32.mrf.mxu0
  %1938 = vdwg.mxu0
  %v1939 = vsel %vm51, %v1936, -inf
  %1940 = vmax.xlane.f32.xlu0 %v1939
  %v1941 = vpop.xlane.xlu0 %1940
  %v1942 = vsub.f32 %v1936, %v1941
  %v1943 = vmul.f32 %v1942, 1.442695
  %v1944 = vpow.pop %v1943
  %v1945 = vsel %vm51, %v1944, 0.0
  %1946 = vadd.xlane.f32.xlu0 %v1945
  %v1947 = vpop.xlane.xlu0 %1946
  %v1948 = vrcp.pop %v1947
  %v1949 = vmul.f32 %v1944, %v1948
  %v1950 = vpack.c.bf16 %v1949, %v1949
  %1951 = vrot.lane.b32.xlu0 %v1799, 48
  %v1952 = vpop.permute.xlu0 %1951
  %v1954 = vsel %vm66, %v1950, 0
  %v1957 = vsel %vm70, %v1952, 0
  %1959 = vmatpush.bf16.msra.mxu0 0
  %1960 = vmatpush.bf16.msra.mxu0 0
  %1961 = vmatpush.bf16.msra.mxu0 0
  %1962 = vmatpush.bf16.msra.mxu0 0
  %1963 = vmatpush.bf16.msra.mxu0 0
  %1964 = vmatpush.bf16.msra.mxu0 0
  %1965 = vmatpush.bf16.msra.mxu0 0
  %1966 = vmatpush.bf16.msra.mxu0 %v1957
  %1967 = vmatmul.bf16.gmra.mxu0 %v1954
  %v1968 = vpop.f32.mrf.mxu0
  %v1969 = vadd.f32 0.0, %v1968
  %v1970 = vpop.f32.mrf.mxu0
  %1971 = vdwg.mxu0
  %1973 = vrot.lane.b32.xlu0 %v1969, 16
  %v1974 = vpop.permute.xlu0 %1973
  %1976 = vst.msk [vmem:[#allocation2 + $0xe] sm:$0x3] %vm211, %v1974
  %1977 = vrot.lane.b32.xlu0 %v1799, 104
  %v1978 = vpop.permute.xlu0 %1977
  %1979 = vrot.lane.b32.xlu0 %v1799, 72
  %v1980 = vpop.permute.xlu0 %1979
  %v1982 = vsel %vm31, %v1978, 0
  %v1985 = vsel %vm31, %v1980, 0
  %1987 = vmatpush.bf16.xpose.msra.mxu0 0
  %1988 = vmatpush.bf16.xpose.msra.mxu0 0
  %1989 = vmatpush.bf16.xpose.msra.mxu0 0
  %1990 = vmatpush.bf16.xpose.msra.mxu0 0
  %1991 = vmatpush.bf16.xpose.msra.mxu0 0
  %1992 = vmatpush.bf16.xpose.msra.mxu0 0
  %1993 = vmatpush.bf16.xpose.msra.mxu0 0
  %1994 = vmatpush.bf16.xpose.msra.mxu0 %v1985
  %1995 = vmatmul.bf16.gmra.mxu0 %v1982
  %v1996 = vpop.f32.mrf.mxu0
  %v1997 = vadd.f32 0.0, %v1996
  %v1998 = vpop.f32.mrf.mxu0
  %1999 = vdwg.mxu0
  %v2000 = vsel %vm51, %v1997, -inf
  %2001 = vmax.xlane.f32.xlu0 %v2000
  %v2002 = vpop.xlane.xlu0 %2001
  %v2003 = vsub.f32 %v1997, %v2002
  %v2004 = vmul.f32 %v2003, 1.442695
  %v2005 = vpow.pop %v2004
  %v2006 = vsel %vm51, %v2005, 0.0
  %2007 = vadd.xlane.f32.xlu0 %v2006
  %v2008 = vpop.xlane.xlu0 %2007
  %v2009 = vrcp.pop %v2008
  %v2010 = vmul.f32 %v2005, %v2009
  %v2011 = vpack.c.bf16 %v2010, %v2010
  %2012 = vrot.lane.b32.xlu0 %v1799, 40
  %v2013 = vpop.permute.xlu0 %2012
  %v2015 = vsel %vm66, %v2011, 0
  %v2018 = vsel %vm70, %v2013, 0
  %2020 = vmatpush.bf16.msra.mxu0 0
  %2021 = vmatpush.bf16.msra.mxu0 0
  %2022 = vmatpush.bf16.msra.mxu0 0
  %2023 = vmatpush.bf16.msra.mxu0 0
  %2024 = vmatpush.bf16.msra.mxu0 0
  %2025 = vmatpush.bf16.msra.mxu0 0
  %2026 = vmatpush.bf16.msra.mxu0 0
  %2027 = vmatpush.bf16.msra.mxu0 %v2018
  %2028 = vmatmul.bf16.gmra.mxu0 %v2015
  %v2029 = vpop.f32.mrf.mxu0
  %v2030 = vadd.f32 0.0, %v2029
  %v2031 = vpop.f32.mrf.mxu0
  %2032 = vdwg.mxu0
  %2034 = vrot.lane.b32.xlu0 %v2030, 24
  %v2035 = vpop.permute.xlu0 %2034
  %2037 = vst.msk [vmem:[#allocation2 + $0xe] sm:$0x3] %vm273, %v2035
  %v2038 = vld [vmem:[#allocation2] sm:$0xff]
  %v2039 = vld [vmem:[#allocation2 + $0x8] sm:$0xff]
  %v2040 = vpack.c.bf16 %v2039, %v2038
  %v2041 = vld [vmem:[%s1] sm:$0xf]
  %v2042 = vld [vmem:[%s1 + $0x4] sm:$0xf]
  %v2043 = vld [vmem:[%s1 + $0x8] sm:$0xf]
  %v2044 = vld [vmem:[%s1 + $0xc] sm:$0xf]
  %v2045 = vld [vmem:[%s2] sm:$0x1]
  %v2047 = vperm.slane %v2045, 0
  %v2053 = vunpack.c.l.b16 %v2041
  %v2054 = vunpack.c.l.b16 %v2042
  %v2055 = vunpack.c.l.b16 %v2043
  %v2056 = vunpack.c.l.b16 %v2044
  %v2057 = vpack.c.b16 %v2054, %v2053
  %v2058 = vpack.c.b16 %v2056, %v2055
  %vm2061 = vcmask 261120
  %v2063 = vsel %vm2061, %v2040, 0
  %2065 = vmatpush.bf16.msra.mxu0 0
  %2066 = vmatpush.bf16.msra.mxu0 0
  %2067 = vmatpush.bf16.msra.mxu0 0
  %2068 = vmatpush.bf16.msra.mxu0 0
  %2069 = vmatpush.bf16.msra.mxu0 0
  %2070 = vmatpush.bf16.msra.mxu0 0
  %2071 = vmatpush.bf16.msra.mxu0 %v2058
  %2072 = vmatpush.bf16.msra.mxu0 %v2057
  %2073 = vmatmul.bf16.gmra.mxu0 %v2063
  %v2074 = vpop.f32.mrf.mxu0
  %v2075 = vadd.f32 %v2047, %v2074
  %v2076 = vpop.f32.mrf.mxu0
  %v2077 = vadd.f32 %v2047, %v2076
  %2078 = vdwg.mxu0
  %v2079 = vpack.c.bf16 %v2075, %v2075
  %v2081 = vrot.slane %v2079, 3
  %v2084 = vsel %vm70, %v2079, %v2081
  %v2086 = vunpack.i.l.s16 %v2084
  %v2087 = vunpack.i.h.s16 %v2084
  %v2088 = vpack.i.b16 %v2086, %v2086
  %v2089 = vpack.i.b16 %v2087, %v2087
  %v2091 = vunpack.c.l.s4 286326784
  %v2092 = vunpack.c.0.s8 %v2091
  %v2093 = vperm.slane %v2088, %v2092
  %v2095 = vunpack.c.l.s4 286326784
  %v2096 = vunpack.c.0.s8 %v2095
  %v2097 = vperm.slane %v2089, %v2096
  %vm2100 = vcmask 253952
  %vm2101 = vsmask.f32 256
  %vm2102 = vmand %vm2100, %vm2101
  %v2103 = vld [vmem:[%s3] sm:$0x1]
  %v2104 = vsel %vm2102, %v2093, %v2103
  %2105 = vst [vmem:[%s3] sm:$0x1] %v2104
  %v2106 = vld [vmem:[%s3 + $0x4] sm:$0x1]
  %v2107 = vsel %vm2102, %v2097, %v2106
  %2108 = vst [vmem:[%s3 + $0x4] sm:$0x1] %v2107
  %2109 = vst [vmem:[#allocation1] sm:$0xff] %v2079
  %s2110 = scalar_lea.vmem [#allocation1], 1
  %v2111 = vld [vmem:[%s2110] ss:$4 sm:$0xff]
  %v2113 = vunpack.i.l.s16 %v2111
  %v2114 = vunpack.i.h.s16 %v2111
  %v2115 = vpack.i.b16 %v2113, %v2113
  %v2116 = vpack.i.b16 %v2114, %v2114
  %v2118 = vunpack.c.l.s4 286326784
  %v2119 = vunpack.c.0.s8 %v2118
  %v2120 = vperm.slane %v2115, %v2119
  %v2122 = vunpack.c.l.s4 286326784
  %v2123 = vunpack.c.0.s8 %v2122
  %v2124 = vperm.slane %v2116, %v2123
  %vm2127 = vsmask.f32 7938
  %vm2128 = vmand %vm2100, %vm2127
  %v2129 = vld [vmem:[%s3] sm:$0x1]
  %v2130 = vsel %vm2128, %v2120, %v2129
  %2131 = vst [vmem:[%s3] sm:$0x1] %v2130
  %v2132 = vld [vmem:[%s3 + $0x4] sm:$0x1]
  %v2133 = vsel %vm2128, %v2124, %v2132
  %2134 = vst [vmem:[%s3 + $0x4] sm:$0x1] %v2133
  %2135 = vst [vmem:[#allocation1] sm:$0xff] %v2079
  %s2136 = scalar_lea.vmem [#allocation1], 2
  %v2137 = vld [vmem:[%s2136] ss:$4 sm:$0xff]
  %v2139 = vunpack.i.l.s16 %v2137
  %v2140 = vunpack.i.h.s16 %v2137
  %v2141 = vpack.i.b16 %v2139, %v2139
  %v2142 = vpack.i.b16 %v2140, %v2140
  %v2144 = vunpack.c.l.s4 286326784
  %v2145 = vunpack.c.0.s8 %v2144
  %v2146 = vperm.slane %v2141, %v2145
  %v2148 = vunpack.c.l.s4 286326784
  %v2149 = vunpack.c.0.s8 %v2148
  %v2150 = vperm.slane %v2142, %v2149
  %vm2153 = vcmask 254977
  %vm2154 = vsmask.f32 1280
  %vm2155 = vmand %vm2153, %vm2154
  %v2156 = vld [vmem:[%s3] sm:$0x2]
  %v2157 = vsel %vm2155, %v2146, %v2156
  %2158 = vst [vmem:[%s3] sm:$0x2] %v2157
  %v2159 = vld [vmem:[%s3 + $0x4] sm:$0x2]
  %v2160 = vsel %vm2155, %v2150, %v2159
  %2161 = vst [vmem:[%s3 + $0x4] sm:$0x2] %v2160
  %2162 = vst [vmem:[#allocation1] sm:$0xff] %v2079
  %s2163 = scalar_lea.vmem [#allocation1], 3
  %v2164 = vld [vmem:[%s2163] ss:$4 sm:$0xff]
  %v2166 = vunpack.i.l.s16 %v2164
  %v2167 = vunpack.i.h.s16 %v2164
  %v2168 = vpack.i.b16 %v2166, %v2166
  %v2169 = vpack.i.b16 %v2167, %v2167
  %v2171 = vunpack.c.l.s4 286326784
  %v2172 = vunpack.c.0.s8 %v2171
  %v2173 = vperm.slane %v2168, %v2172
  %v2175 = vunpack.c.l.s4 286326784
  %v2176 = vunpack.c.0.s8 %v2175
  %v2177 = vperm.slane %v2169, %v2176
  %vm2180 = vsmask.f32 7942
  %vm2181 = vmand %vm2153, %vm2180
  %v2182 = vld [vmem:[%s3] sm:$0x2]
  %v2183 = vsel %vm2181, %v2173, %v2182
  %2184 = vst [vmem:[%s3] sm:$0x2] %v2183
  %v2185 = vld [vmem:[%s3 + $0x4] sm:$0x2]
  %v2186 = vsel %vm2181, %v2177, %v2185
  %2187 = vst [vmem:[%s3 + $0x4] sm:$0x2] %v2186
  %v2188 = vpack.c.bf16 %v2077, %v2077
  %v2190 = vrot.slane %v2188, 3
  %v2193 = vsel %vm70, %v2188, %v2190
  %v2195 = vunpack.i.l.s16 %v2193
  %v2196 = vunpack.i.h.s16 %v2193
  %v2197 = vpack.i.b16 %v2195, %v2195
  %v2198 = vpack.i.b16 %v2196, %v2196
  %v2200 = vunpack.c.l.s4 286326784
  %v2201 = vunpack.c.0.s8 %v2200
  %v2202 = vperm.slane %v2197, %v2201
  %v2204 = vunpack.c.l.s4 286326784
  %v2205 = vunpack.c.0.s8 %v2204
  %v2206 = vperm.slane %v2198, %v2205
  %vm2209 = vcmask 256002
  %vm2210 = vsmask.f32 2304
  %vm2211 = vmand %vm2209, %vm2210
  %v2212 = vld [vmem:[%s3] sm:$0x4]
  %v2213 = vsel %vm2211, %v2202, %v2212
  %2214 = vst [vmem:[%s3] sm:$0x4] %v2213
  %v2215 = vld [vmem:[%s3 + $0x4] sm:$0x4]
  %v2216 = vsel %vm2211, %v2206, %v2215
  %2217 = vst [vmem:[%s3 + $0x4] sm:$0x4] %v2216
  %2218 = vst [vmem:[#allocation1] sm:$0xff] %v2188
  %s2219 = scalar_lea.vmem [#allocation1], 1
  %v2220 = vld [vmem:[%s2219] ss:$4 sm:$0xff]
  %v2222 = vunpack.i.l.s16 %v2220
  %v2223 = vunpack.i.h.s16 %v2220
  %v2224 = vpack.i.b16 %v2222, %v2222
  %v2225 = vpack.i.b16 %v2223, %v2223
  %v2227 = vunpack.c.l.s4 286326784
  %v2228 = vunpack.c.0.s8 %v2227
  %v2229 = vperm.slane %v2224, %v2228
  %v2231 = vunpack.c.l.s4 286326784
  %v2232 = vunpack.c.0.s8 %v2231
  %v2233 = vperm.slane %v2225, %v2232
  %vm2236 = vsmask.f32 7946
  %vm2237 = vmand %vm2209, %vm2236
  %v2238 = vld [vmem:[%s3] sm:$0x4]
  %v2239 = vsel %vm2237, %v2229, %v2238
  %2240 = vst [vmem:[%s3] sm:$0x4] %v2239
  %v2241 = vld [vmem:[%s3 + $0x4] sm:$0x4]
  %v2242 = vsel %vm2237, %v2233, %v2241
  %2243 = vst [vmem:[%s3 + $0x4] sm:$0x4] %v2242
  %2244 = vst [vmem:[#allocation1] sm:$0xff] %v2188
  %s2245 = scalar_lea.vmem [#allocation1], 2
  %v2246 = vld [vmem:[%s2245] ss:$4 sm:$0xff]
  %v2248 = vunpack.i.l.s16 %v2246
  %v2249 = vunpack.i.h.s16 %v2246
  %v2250 = vpack.i.b16 %v2248, %v2248
  %v2251 = vpack.i.b16 %v2249, %v2249
  %v2253 = vunpack.c.l.s4 286326784
  %v2254 = vunpack.c.0.s8 %v2253
  %v2255 = vperm.slane %v2250, %v2254
  %v2257 = vunpack.c.l.s4 286326784
  %v2258 = vunpack.c.0.s8 %v2257
  %v2259 = vperm.slane %v2251, %v2258
  %vm2262 = vcmask 257027
  %vm2263 = vsmask.f32 3328
  %vm2264 = vmand %vm2262, %vm2263
  %v2265 = vld [vmem:[%s3] sm:$0x8]
  %v2266 = vsel %vm2264, %v2255, %v2265
  %2267 = vst [vmem:[%s3] sm:$0x8] %v2266
  %v2268 = vld [vmem:[%s3 + $0x4] sm:$0x8]
  %v2269 = vsel %vm2264, %v2259, %v2268
  %2270 = vst [vmem:[%s3 + $0x4] sm:$0x8] %v2269
  %2271 = vst [vmem:[#allocation1] sm:$0xff] %v2188
  %s2272 = scalar_lea.vmem [#allocation1], 3
  %v2273 = vld [vmem:[%s2272] ss:$4 sm:$0xff]
  %v2275 = vunpack.i.l.s16 %v2273
  %v2276 = vunpack.i.h.s16 %v2273
  %v2277 = vpack.i.b16 %v2275, %v2275
  %v2278 = vpack.i.b16 %v2276, %v2276
  %v2280 = vunpack.c.l.s4 286326784
  %v2281 = vunpack.c.0.s8 %v2280
  %v2282 = vperm.slane %v2277, %v2281
  %v2284 = vunpack.c.l.s4 286326784
  %v2285 = vunpack.c.0.s8 %v2284
  %v2286 = vperm.slane %v2278, %v2285
  %vm2289 = vsmask.f32 7950
  %vm2290 = vmand %vm2262, %vm2289
  %v2291 = vld [vmem:[%s3] sm:$0x8]
  %v2292 = vsel %vm2290, %v2282, %v2291
  %2293 = vst [vmem:[%s3] sm:$0x8] %v2292
  %v2294 = vld [vmem:[%s3 + $0x4] sm:$0x8]
  %v2295 = vsel %vm2290, %v2286, %v2294
  %2296 = vst [vmem:[%s3 + $0x4] sm:$0x8] %v2295
  // Predicated region
  $region14: #{clip_trainer_forward.28} parent=0 // pred_check
    _
  $region15: #{clip_trainer_forward.28} parent=0 // pred_check_branch
    %2298 = sbr.rel (0) target = $region17
  $region16: #{clip_trainer_forward.28} parent=0 // pred_region
    _
  $region17: #{clip_trainer_forward.28} parent=0 // pred_fallthru
    _
  // Predicated region
  $region18: #{clip_trainer_forward.28} parent=0 // pred_check
    _
  $region19: #{clip_trainer_forward.28} parent=0 // pred_check_branch
    %2300 = sbr.rel (0) target = $region21
  $region20: #{clip_trainer_forward.28} parent=0 // pred_region
    _
  $region21: #{clip_trainer_forward.28} parent=0 // pred_fallthru
    _

</llo_original>
